<compile_context>
chip_gen: v6e
topology: v6e:2x2x1
jax: 0.10.0
libtpu: 0.0.40
codegen_flags: <defaults>
</compile_context>

<pallas_src>
import numpy as np
import jax
import jax.numpy as jnp
from jax.experimental import pallas as pl
from jax.experimental.pallas import tpu as pltpu

LEAKY_SLOPE = 0.1
BN_EPS = 1e-5

# speccnn8l1_bn, last_layers_to_remove=0:
#   (cin, cout, kernel, stride, padding, use_bn)
LAYERS = [
    (1,    8,   (5, 5), (2, 2), (2, 2), False),   # enc1 (no BN)
    (8,    16,  (4, 4), (2, 2), (2, 2), True),    # enc2
    (16,   32,  (4, 4), (2, 2), (2, 2), True),    # enc3
    (32,   64,  (4, 4), (2, 2), (2, 2), True),    # enc4
    (64,   128, (4, 4), (2, 2), (2, 2), True),    # enc5
    (128,  256, (4, 4), (2, 2), (2, 2), True),    # enc6
    (256,  512, (4, 4), (2, 2), (2, 2), True),    # enc7 ('4x4conv')
    (512, 1024, (1, 1), (1, 1), (0, 0), False),   # enc8 ('1x1conv', no BN, LeakyReLU kept)
]

# BigW layers (0-indexed) stored as int8 (the DMA-dominant ones: enc6 ~1 MiB, enc7 ~4 MiB in
# bf16).  The final 1x1-conv weight (~1 MiB) is also stored int8.  Early small layers stay bf16.
INT8_BIGW_LAYERS = frozenset({5, 6})


def _round_up(x, m):
    return ((x + m - 1) // m) * m


# --------------------------------------------------------------------------------------
# Fused kernel: the whole network in VMEM.
# refs = (x_ref, W1, scale1, shift1, ..., W8, scale8, shift8, o_ref)
#   x_ref   : (rows, K0)    flattened (row = batch-tile row, lanes = spatial*Cin), bf16
#   W_l     : (K_l, L_l)    folded conv(+BN-scale) matrix, bf16 (early) or int8 (late layers)
#   scale_l : (1,  L_l)     f32 per-column dequant scale (ones for bf16-stored layers)
#   shift_l : (1,  L_l)     f32 per-lane shift (conv bias + BN fold), zero in pad lanes
#   W8      : (512, 1024)   int8 1x1-conv weight shared across spatial positions
#   o_ref   : (rows, n_pos*1024) f32 output
# --------------------------------------------------------------------------------------
def _make_fused_kernel(num_bigw, cin_last, cout_last, n_pos):
    def kernel(*refs):
        x_ref, o_ref = refs[0], refs[-1]
        w_refs = refs[1:-1:3]
        sc_refs = refs[2:-1:3]
        sh_refs = refs[3:-1:3]

        a = x_ref[...]                                   # already bf16 (cast in the wrapper)

        # Layers 1..7: one dense MXU matmul each (conv + BN-scale folded into the weight).
        # int8-stored weights are dequantized to bf16 in-kernel (storage format only; the
        # matmul itself stays on the bf16 MXU path on every TPU generation).
        for l in range(num_bigw):
            w = w_refs[l][...].astype(jnp.bfloat16)
            y = jnp.dot(a, w, preferred_element_type=jnp.float32)
            y = y * sc_refs[l][...] + sh_refs[l][...]
            y = jnp.maximum(y, LEAKY_SLOPE * y)          # LeakyReLU as mul+max (no cmp/select)
            a = y.astype(jnp.bfloat16)

        # Layer 8: 1x1 conv with LeakyReLU, weight shared across the n_pos spatial positions.
        # TODO(synk): once batched and MXU-bound, fuse these n_pos dots into a single matmul
        # (relayout (rows, n_pos*512) -> (n_pos*rows, 512)); at small batch the kernel is
        # weight-DMA-bound and the repeated W8 push is noise.
        w_last = w_refs[num_bigw][...].astype(jnp.bfloat16)
        sc_last = sc_refs[num_bigw][...]
        sh_last = sh_refs[num_bigw][...]
        for q in range(n_pos):
            y = jnp.dot(a[:, q * cin_last:(q + 1) * cin_last], w_last,
                        preferred_element_type=jnp.float32)
            y = y * sc_last + sh_last
            o_ref[:, q * cout_last:(q + 1) * cout_last] = jnp.maximum(y, LEAKY_SLOPE * y)
    return kernel


# --------------------------------------------------------------------------------------
# One-time host-side parameter preparation (hoisted out of the forward pass).
# --------------------------------------------------------------------------------------
def _fold_bn(bias, bn):
    if bn is None:
        return np.ones_like(bias), bias
    gamma, beta, rmean, rvar = bn
    scale = gamma / np.sqrt(rvar + BN_EPS)
    shift = (bias - rmean) * scale + beta
    return scale, shift


def _quantize_cols_int8(w):
    """Per-output-column symmetric int8 quantization. Returns (q_int8, col_scale_f32)."""
    amax = np.max(np.abs(w), axis=0)
    col_scale = np.where(amax > 0.0, amax / 127.0, 1.0).astype(np.float32)
    q = np.clip(np.rint(w / col_scale[None, :]), -127, 127).astype(np.int8)
    return q, col_scale


def prep_params(params, in_hw=(16, 16)):
    """Fold every strided conv (+ eval-mode BN scale) into a dense matrix
    (Hin*Win*Cin -> Hout*Wout*Cout, lane dims padded to multiples of 128).  Per layer emits
    (weight, col_scale_row, shift_row): weight is bf16 for the small early layers and int8
    (per-column quantized) for the DMA-dominant late layers; col_scale dequantizes the matmul
    result; shift carries conv bias + BN shift (zero in pad lanes).  The last 1x1 conv keeps
    its (Cin, Cout) weight (int8) + scale + bias."""
    H, W = in_hw
    flat = []
    prev_pad = _round_up(H * W * LAYERS[0][0], 128)

    for li in range(len(LAYERS) - 1):
        w, b, bn = params[li]
        cin, cout, (kh, kw), (sh, sw), (ph, pw), _ = LAYERS[li]
        OH = (H + 2 * ph - kh) // sh + 1
        OW = (W + 2 * pw - kw) // sw + 1

        w_np = np.asarray(w, np.float32).transpose(2, 3, 1, 0)      # (kh, kw, cin, cout)
        b_np = np.asarray(b, np.float32)
        bn_np = tuple(np.asarray(t, np.float32) for t in bn) if bn is not None else None
        scale, shift = _fold_bn(b_np, bn_np)
        w_np = w_np * scale[None, None, None, :]                    # fold BN scale

        l_real = OH * OW * cout
        l_pad = _round_up(l_real, 128)
        big = np.zeros((prev_pad, l_pad), np.float32)
        for oh in range(OH):
            for ow in range(OW):
                c0 = (oh * OW + ow) * cout
                for ki in range(kh):
                    ih = oh * sh + ki - ph
                    if ih < 0 or ih >= H:
                        continue
                    for kj in range(kw):
                        iw = ow * sw + kj - pw
                        if iw < 0 or iw >= W:
                            continue
                        r0 = (ih * W + iw) * cin
                        big[r0:r0 + cin, c0:c0 + cout] = w_np[ki, kj]
        shift_big = np.zeros((1, l_pad), np.float32)
        shift_big[0, :l_real] = np.tile(shift, OH * OW)

        if li in INT8_BIGW_LAYERS:
            q, col_scale = _quantize_cols_int8(big)
            flat.append(jnp.asarray(q))                              # int8 weight
            flat.append(jnp.asarray(col_scale.reshape(1, l_pad)))    # f32 dequant scale
        else:
            flat.append(jnp.asarray(big).astype(jnp.bfloat16))       # bf16 weight
            flat.append(jnp.asarray(np.ones((1, l_pad), np.float32)))
        flat.append(jnp.asarray(shift_big))
        H, W, prev_pad = OH, OW, l_pad

    # Last layer: 1x1 conv, stride 1, no padding, no BN, shared across spatial positions.
    w, b, bn = params[-1]
    cin, cout, k, s, p, _ = LAYERS[-1]
    assert k == (1, 1) and s == (1, 1) and p == (0, 0) and bn is None
    assert prev_pad == H * W * cin  # no lane padding right before the 1x1 conv
    w_np = np.asarray(w, np.float32).reshape(cout, cin).T            # (cin, cout)
    q, col_scale = _quantize_cols_int8(w_np)
    flat.append(jnp.asarray(q))
    flat.append(jnp.asarray(col_scale.reshape(1, cout)))
    flat.append(jnp.asarray(np.asarray(b, np.float32).reshape(1, cout)))
    return tuple(flat)


# --------------------------------------------------------------------------------------
# Forward pass (jit-able).  Input/output NCHW (PyTorch convention).
# --------------------------------------------------------------------------------------
def spectrogram_cnn_forward(x_nchw, flat_params):
    N, C, H, W = x_nchw.shape

    # Static spatial-size chain (PyTorch floor semantics): 16 -> 8 -> 5 -> 3 -> 2 -> 2 -> 2 -> 2.
    hw = [(H, W)]
    for _, _, (kh, kw), (sh, sw), (ph, pw), _ in LAYERS:
        h, w = hw[-1]
        hw.append(((h + 2 * ph - kh) // sh + 1, (w + 2 * pw - kw) // sw + 1))
    oh_f, ow_f = hw[-1]
    n_pos = hw[-2][0] * hw[-2][1]             # spatial positions entering the 1x1 conv
    cin_last, cout_last = LAYERS[-1][0], LAYERS[-1][1]
    k_in = flat_params[0].shape[0]            # padded lane width expected by BigW_1
    l_out = n_pos * cout_last

    # NCHW -> NHWC -> (N, H*W*C) in bf16; pad batch rows to full row-tiles, lanes to k_in.
    x = jnp.transpose(x_nchw, (0, 2, 3, 1)).reshape(N, H * W * C)
    n_pad = _round_up(N, 8)
    row_tile = min(n_pad, 256)                # large batches: 256-row LHS tiles fill the MXU
    n_pad = _round_up(n_pad, row_tile)
    n_tiles = n_pad // row_tile
    x = jnp.pad(x, ((0, n_pad - N), (0, k_in - H * W * C))).astype(jnp.bfloat16)

    kernel = _make_fused_kernel(len(LAYERS) - 1, cin_last, cout_last, n_pos)

    # Weights / scale rows / shift rows: full-array blocks with constant index_maps, so they
    # are DMA'd once and stay VMEM-resident across all batch tiles.
    param_specs = [pl.BlockSpec(p.shape, lambda i: (0, 0)) for p in flat_params]

    # NOTE: padded batch rows (N .. n_pad-1) compute nonzero garbage (the bias/BN shift
    # propagates through LeakyReLU); they are sliced off below — never reduce over them.
    out = pl.pallas_call(
        kernel,
        out_shape=jax.ShapeDtypeStruct((n_pad, l_out), jnp.float32),
        grid=(n_tiles,),
        in_specs=[pl.BlockSpec((row_tile, k_in), lambda i: (i, 0))] + param_specs,
        out_specs=pl.BlockSpec((row_tile, l_out), lambda i: (i, 0)),
        compiler_params=pltpu.CompilerParams(
            dimension_semantics=("parallel",),     # batch tiles shard across TCs (v7x megacore)
            vmem_limit_bytes=32 * 1024 * 1024,     # right-sized: ~4.6 MiB weights (x2 buffers)
        ),                                         # + dequant temps + tiles, with headroom
    )(x, *flat_params)

    out = out[:N].reshape(N, oh_f, ow_f, cout_last)   # (N, OH, OW, Cout)
    return jnp.transpose(out, (0, 3, 1, 2))           # -> NCHW


# --------------------------------------------------------------------------------------
# Deterministic synthetic parameters + pure-JAX reference for validation.
# --------------------------------------------------------------------------------------
def init_params(key):
    params = []
    for (cin, cout, k, s, p, use_bn) in LAYERS:
        key, wk, bk, gk, bek, mk = jax.random.split(key, 6)
        fan_in = cin * k[0] * k[1]
        w = jax.random.normal(wk, (cout, cin, k[0], k[1]), jnp.float32) / jnp.sqrt(fan_in)
        b = 0.01 * jax.random.normal(bk, (cout,), jnp.float32)
        if use_bn:
            gamma = 1.0 + 0.1 * jax.random.normal(gk, (cout,), jnp.float32)
            beta = 0.01 * jax.random.normal(bek, (cout,), jnp.float32)
            rmean = 0.01 * jax.random.normal(mk, (cout,), jnp.float32)
            rvar = jnp.ones((cout,), jnp.float32)
            bn = (gamma, beta, rmean, rvar)
        else:
            bn = None
        params.append((w, b, bn))
    return params


def reference_forward(x_nchw, params):
    """Pure-JAX f32 reference: conv -> eval-mode BN -> LeakyReLU(0.1), per layer."""
    x = jnp.transpose(x_nchw, (0, 2, 3, 1))  # NHWC
    for (w, b, bn), (cin, cout, k, s, p, use_bn) in zip(params, LAYERS):
        rhs = jnp.transpose(w, (2, 3, 1, 0))  # -> HWIO
        y = jax.lax.conv_general_dilated(
            x, rhs, window_strides=s,
            padding=[(p[0], p[0]), (p[1], p[1])],
            dimension_numbers=('NHWC', 'HWIO', 'NHWC')) + b
        if bn is not None:
            gamma, beta, rmean, rvar = bn
            y = (y - rmean) * (gamma * jax.lax.rsqrt(rvar + BN_EPS)) + beta
        x = jnp.where(y >= 0.0, y, LEAKY_SLOPE * y)
    return jnp.transpose(x, (0, 3, 1, 2))


if __name__ == "__main__":
    key = jax.random.PRNGKey(0)
    pkey, xkey = jax.random.split(key)
    params = init_params(pkey)
    flat_params = prep_params(params, in_hw=(16, 16))   # one-time param prep (hoisted)

    # Single-channel spectrogram, NCHW: (batch=2, 1, 16, 16)
    x = jax.random.normal(xkey, (2, 1, 16, 16), jnp.float32)

    fwd = jax.jit(spectrogram_cnn_forward)
    y = jax.block_until_ready(fwd(x, flat_params))

    assert y.shape == (2, 1024, 2, 2), y.shape
    assert bool(jnp.all(jnp.isfinite(y)))

    # Validate against the pure-JAX f32 reference (loose tolerance: bf16 weights/activations
    # plus per-column int8 quantization of the enc6/enc7/enc8 weights from the perf review).
    y_ref = jax.block_until_ready(jax.jit(reference_forward)(x, params))
    assert jnp.allclose(y, y_ref, atol=0.15, rtol=0.15), \
        float(jnp.max(jnp.abs(y - y_ref)))

    print("KERNEL_OK")
</pallas_src>

<mosaic_0001>
module attributes {stable_mosaic.version = 11 : i64} {
  func.func @kernel(%arg0: i32, %arg1: memref<8x256xbf16, #tpu.memory_space<vmem>>, %arg2: memref<256x512xbf16, #tpu.memory_space<vmem>>, %arg3: memref<1x512xf32, #tpu.memory_space<vmem>>, %arg4: memref<1x512xf32, #tpu.memory_space<vmem>>, %arg5: memref<512x512xbf16, #tpu.memory_space<vmem>>, %arg6: memref<1x512xf32, #tpu.memory_space<vmem>>, %arg7: memref<1x512xf32, #tpu.memory_space<vmem>>, %arg8: memref<512x384xbf16, #tpu.memory_space<vmem>>, %arg9: memref<1x384xf32, #tpu.memory_space<vmem>>, %arg10: memref<1x384xf32, #tpu.memory_space<vmem>>, %arg11: memref<384x256xbf16, #tpu.memory_space<vmem>>, %arg12: memref<1x256xf32, #tpu.memory_space<vmem>>, %arg13: memref<1x256xf32, #tpu.memory_space<vmem>>, %arg14: memref<256x512xbf16, #tpu.memory_space<vmem>>, %arg15: memref<1x512xf32, #tpu.memory_space<vmem>>, %arg16: memref<1x512xf32, #tpu.memory_space<vmem>>, %arg17: memref<512x1024xi8, #tpu.memory_space<vmem>>, %arg18: memref<1x1024xf32, #tpu.memory_space<vmem>>, %arg19: memref<1x1024xf32, #tpu.memory_space<vmem>>, %arg20: memref<1024x2048xi8, #tpu.memory_space<vmem>>, %arg21: memref<1x2048xf32, #tpu.memory_space<vmem>>, %arg22: memref<1x2048xf32, #tpu.memory_space<vmem>>, %arg23: memref<512x1024xi8, #tpu.memory_space<vmem>>, %arg24: memref<1x1024xf32, #tpu.memory_space<vmem>>, %arg25: memref<1x1024xf32, #tpu.memory_space<vmem>>, %arg26: memref<8x4096xf32, #tpu.memory_space<vmem>>) attributes {dimension_semantics = [#tpu.dimension_semantics<parallel>], iteration_bounds = array<i64: 1>, scalar_prefetch = 0 : i64, scratch_operands = 0 : i64, tpu.core_type = #tpu.core_type<tc>, window_params = [{transform_indices = @transform_0, window_bounds = array<i64: 8, 256>}, {pipeline_mode = #tpu.pipeline_mode<synchronous>, transform_indices = @transform_1, window_bounds = array<i64: 256, 512>}, {pipeline_mode = #tpu.pipeline_mode<synchronous>, transform_indices = @transform_2, window_bounds = array<i64: 1, 512>}, {pipeline_mode = #tpu.pipeline_mode<synchronous>, transform_indices = @transform_3, window_bounds = array<i64: 1, 512>}, {pipeline_mode = #tpu.pipeline_mode<synchronous>, transform_indices = @transform_4, window_bounds = array<i64: 512, 512>}, {pipeline_mode = #tpu.pipeline_mode<synchronous>, transform_indices = @transform_5, window_bounds = array<i64: 1, 512>}, {pipeline_mode = #tpu.pipeline_mode<synchronous>, transform_indices = @transform_6, window_bounds = array<i64: 1, 512>}, {pipeline_mode = #tpu.pipeline_mode<synchronous>, transform_indices = @transform_7, window_bounds = array<i64: 512, 384>}, {pipeline_mode = #tpu.pipeline_mode<synchronous>, transform_indices = @transform_8, window_bounds = array<i64: 1, 384>}, {pipeline_mode = #tpu.pipeline_mode<synchronous>, transform_indices = @transform_9, window_bounds = array<i64: 1, 384>}, {pipeline_mode = #tpu.pipeline_mode<synchronous>, transform_indices = @transform_10, window_bounds = array<i64: 384, 256>}, {pipeline_mode = #tpu.pipeline_mode<synchronous>, transform_indices = @transform_11, window_bounds = array<i64: 1, 256>}, {pipeline_mode = #tpu.pipeline_mode<synchronous>, transform_indices = @transform_12, window_bounds = array<i64: 1, 256>}, {pipeline_mode = #tpu.pipeline_mode<synchronous>, transform_indices = @transform_13, window_bounds = array<i64: 256, 512>}, {pipeline_mode = #tpu.pipeline_mode<synchronous>, transform_indices = @transform_14, window_bounds = array<i64: 1, 512>}, {pipeline_mode = #tpu.pipeline_mode<synchronous>, transform_indices = @transform_15, window_bounds = array<i64: 1, 512>}, {pipeline_mode = #tpu.pipeline_mode<synchronous>, transform_indices = @transform_16, window_bounds = array<i64: 512, 1024>}, {pipeline_mode = #tpu.pipeline_mode<synchronous>, transform_indices = @transform_17, window_bounds = array<i64: 1, 1024>}, {pipeline_mode = #tpu.pipeline_mode<synchronous>, transform_indices = @transform_18, window_bounds = array<i64: 1, 1024>}, {pipeline_mode = #tpu.pipeline_mode<synchronous>, transform_indices = @transform_19, window_bounds = array<i64: 1024, 2048>}, {pipeline_mode = #tpu.pipeline_mode<synchronous>, transform_indices = @transform_20, window_bounds = array<i64: 1, 2048>}, {pipeline_mode = #tpu.pipeline_mode<synchronous>, transform_indices = @transform_21, window_bounds = array<i64: 1, 2048>}, {pipeline_mode = #tpu.pipeline_mode<synchronous>, transform_indices = @transform_22, window_bounds = array<i64: 512, 1024>}, {pipeline_mode = #tpu.pipeline_mode<synchronous>, transform_indices = @transform_23, window_bounds = array<i64: 1, 1024>}, {pipeline_mode = #tpu.pipeline_mode<synchronous>, transform_indices = @transform_24, window_bounds = array<i64: 1, 1024>}, {transform_indices = @transform_25, window_bounds = array<i64: 8, 4096>}]} {
    %c0 = arith.constant 0 : index
    %c0_0 = arith.constant 0 : index
    %0 = vector.load %arg1[%c0, %c0_0] : memref<8x256xbf16, #tpu.memory_space<vmem>>, vector<8x256xbf16>
    %c0_1 = arith.constant 0 : index
    %c0_2 = arith.constant 0 : index
    %1 = vector.load %arg2[%c0_1, %c0_2] : memref<256x512xbf16, #tpu.memory_space<vmem>>, vector<256x512xbf16>
    %cst = arith.constant dense<0.000000e+00> : vector<8x512xf32>
    %2 = tpu.matmul %0, %1, %cst {dimension_numbers = #tpu.dot_dimension_numbers<[1], [0], [0], [1], [0, 0, 1, 1], [], []>} : vector<8x256xbf16>, vector<256x512xbf16>, vector<8x512xf32> -> vector<8x512xf32>
    %c0_3 = arith.constant 0 : index
    %c0_4 = arith.constant 0 : index
    %3 = vector.load %arg3[%c0_3, %c0_4] : memref<1x512xf32, #tpu.memory_space<vmem>>, vector<1x512xf32>
    %4 = vector.broadcast %3 : vector<1x512xf32> to vector<8x512xf32>
    %5 = arith.mulf %2, %4 : vector<8x512xf32>
    %c0_5 = arith.constant 0 : index
    %c0_6 = arith.constant 0 : index
    %6 = vector.load %arg4[%c0_5, %c0_6] : memref<1x512xf32, #tpu.memory_space<vmem>>, vector<1x512xf32>
    %7 = vector.broadcast %6 : vector<1x512xf32> to vector<8x512xf32>
    %8 = arith.addf %5, %7 : vector<8x512xf32>
    %cst_7 = arith.constant 1.000000e-01 : f32
    %9 = vector.broadcast %cst_7 : f32 to vector<8x512xf32>
    %10 = arith.mulf %9, %8 : vector<8x512xf32>
    %11 = arith.maximumf %8, %10 : vector<8x512xf32>
    %12 = arith.truncf %11 : vector<8x512xf32> to vector<8x512xbf16>
    %c0_8 = arith.constant 0 : index
    %c0_9 = arith.constant 0 : index
    %13 = vector.load %arg5[%c0_8, %c0_9] : memref<512x512xbf16, #tpu.memory_space<vmem>>, vector<512x512xbf16>
    %cst_10 = arith.constant dense<0.000000e+00> : vector<8x512xf32>
    %14 = tpu.matmul %12, %13, %cst_10 {dimension_numbers = #tpu.dot_dimension_numbers<[1], [0], [0], [1], [0, 0, 1, 1], [], []>} : vector<8x512xbf16>, vector<512x512xbf16>, vector<8x512xf32> -> vector<8x512xf32>
    %c0_11 = arith.constant 0 : index
    %c0_12 = arith.constant 0 : index
    %15 = vector.load %arg6[%c0_11, %c0_12] : memref<1x512xf32, #tpu.memory_space<vmem>>, vector<1x512xf32>
    %16 = vector.broadcast %15 : vector<1x512xf32> to vector<8x512xf32>
    %17 = arith.mulf %14, %16 : vector<8x512xf32>
    %c0_13 = arith.constant 0 : index
    %c0_14 = arith.constant 0 : index
    %18 = vector.load %arg7[%c0_13, %c0_14] : memref<1x512xf32, #tpu.memory_space<vmem>>, vector<1x512xf32>
    %19 = vector.broadcast %18 : vector<1x512xf32> to vector<8x512xf32>
    %20 = arith.addf %17, %19 : vector<8x512xf32>
    %cst_15 = arith.constant 1.000000e-01 : f32
    %21 = vector.broadcast %cst_15 : f32 to vector<8x512xf32>
    %22 = arith.mulf %21, %20 : vector<8x512xf32>
    %23 = arith.maximumf %20, %22 : vector<8x512xf32>
    %24 = arith.truncf %23 : vector<8x512xf32> to vector<8x512xbf16>
    %c0_16 = arith.constant 0 : index
    %c0_17 = arith.constant 0 : index
    %25 = vector.load %arg8[%c0_16, %c0_17] : memref<512x384xbf16, #tpu.memory_space<vmem>>, vector<512x384xbf16>
    %cst_18 = arith.constant dense<0.000000e+00> : vector<8x384xf32>
    %26 = tpu.matmul %24, %25, %cst_18 {dimension_numbers = #tpu.dot_dimension_numbers<[1], [0], [0], [1], [0, 0, 1, 1], [], []>} : vector<8x512xbf16>, vector<512x384xbf16>, vector<8x384xf32> -> vector<8x384xf32>
    %c0_19 = arith.constant 0 : index
    %c0_20 = arith.constant 0 : index
    %27 = vector.load %arg9[%c0_19, %c0_20] : memref<1x384xf32, #tpu.memory_space<vmem>>, vector<1x384xf32>
    %28 = vector.broadcast %27 : vector<1x384xf32> to vector<8x384xf32>
    %29 = arith.mulf %26, %28 : vector<8x384xf32>
    %c0_21 = arith.constant 0 : index
    %c0_22 = arith.constant 0 : index
    %30 = vector.load %arg10[%c0_21, %c0_22] : memref<1x384xf32, #tpu.memory_space<vmem>>, vector<1x384xf32>
    %31 = vector.broadcast %30 : vector<1x384xf32> to vector<8x384xf32>
    %32 = arith.addf %29, %31 : vector<8x384xf32>
    %cst_23 = arith.constant 1.000000e-01 : f32
    %33 = vector.broadcast %cst_23 : f32 to vector<8x384xf32>
    %34 = arith.mulf %33, %32 : vector<8x384xf32>
    %35 = arith.maximumf %32, %34 : vector<8x384xf32>
    %36 = arith.truncf %35 : vector<8x384xf32> to vector<8x384xbf16>
    %c0_24 = arith.constant 0 : index
    %c0_25 = arith.constant 0 : index
    %37 = vector.load %arg11[%c0_24, %c0_25] : memref<384x256xbf16, #tpu.memory_space<vmem>>, vector<384x256xbf16>
    %cst_26 = arith.constant dense<0.000000e+00> : vector<8x256xf32>
    %38 = tpu.matmul %36, %37, %cst_26 {dimension_numbers = #tpu.dot_dimension_numbers<[1], [0], [0], [1], [0, 0, 1, 1], [], []>} : vector<8x384xbf16>, vector<384x256xbf16>, vector<8x256xf32> -> vector<8x256xf32>
    %c0_27 = arith.constant 0 : index
    %c0_28 = arith.constant 0 : index
    %39 = vector.load %arg12[%c0_27, %c0_28] : memref<1x256xf32, #tpu.memory_space<vmem>>, vector<1x256xf32>
    %40 = vector.broadcast %39 : vector<1x256xf32> to vector<8x256xf32>
    %41 = arith.mulf %38, %40 : vector<8x256xf32>
    %c0_29 = arith.constant 0 : index
    %c0_30 = arith.constant 0 : index
    %42 = vector.load %arg13[%c0_29, %c0_30] : memref<1x256xf32, #tpu.memory_space<vmem>>, vector<1x256xf32>
    %43 = vector.broadcast %42 : vector<1x256xf32> to vector<8x256xf32>
    %44 = arith.addf %41, %43 : vector<8x256xf32>
    %cst_31 = arith.constant 1.000000e-01 : f32
    %45 = vector.broadcast %cst_31 : f32 to vector<8x256xf32>
    %46 = arith.mulf %45, %44 : vector<8x256xf32>
    %47 = arith.maximumf %44, %46 : vector<8x256xf32>
    %48 = arith.truncf %47 : vector<8x256xf32> to vector<8x256xbf16>
    %c0_32 = arith.constant 0 : index
    %c0_33 = arith.constant 0 : index
    %49 = vector.load %arg14[%c0_32, %c0_33] : memref<256x512xbf16, #tpu.memory_space<vmem>>, vector<256x512xbf16>
    %cst_34 = arith.constant dense<0.000000e+00> : vector<8x512xf32>
    %50 = tpu.matmul %48, %49, %cst_34 {dimension_numbers = #tpu.dot_dimension_numbers<[1], [0], [0], [1], [0, 0, 1, 1], [], []>} : vector<8x256xbf16>, vector<256x512xbf16>, vector<8x512xf32> -> vector<8x512xf32>
    %c0_35 = arith.constant 0 : index
    %c0_36 = arith.constant 0 : index
    %51 = vector.load %arg15[%c0_35, %c0_36] : memref<1x512xf32, #tpu.memory_space<vmem>>, vector<1x512xf32>
    %52 = vector.broadcast %51 : vector<1x512xf32> to vector<8x512xf32>
    %53 = arith.mulf %50, %52 : vector<8x512xf32>
    %c0_37 = arith.constant 0 : index
    %c0_38 = arith.constant 0 : index
    %54 = vector.load %arg16[%c0_37, %c0_38] : memref<1x512xf32, #tpu.memory_space<vmem>>, vector<1x512xf32>
    %55 = vector.broadcast %54 : vector<1x512xf32> to vector<8x512xf32>
    %56 = arith.addf %53, %55 : vector<8x512xf32>
    %cst_39 = arith.constant 1.000000e-01 : f32
    %57 = vector.broadcast %cst_39 : f32 to vector<8x512xf32>
    %58 = arith.mulf %57, %56 : vector<8x512xf32>
    %59 = arith.maximumf %56, %58 : vector<8x512xf32>
    %60 = arith.truncf %59 : vector<8x512xf32> to vector<8x512xbf16>
    %c0_40 = arith.constant 0 : index
    %c0_41 = arith.constant 0 : index
    %61 = vector.load %arg17[%c0_40, %c0_41] : memref<512x1024xi8, #tpu.memory_space<vmem>>, vector<512x1024xi8>
    %62 = arith.sitofp %61 : vector<512x1024xi8> to vector<512x1024xbf16>
    %cst_42 = arith.constant dense<0.000000e+00> : vector<8x1024xf32>
    %63 = tpu.matmul %60, %62, %cst_42 {dimension_numbers = #tpu.dot_dimension_numbers<[1], [0], [0], [1], [0, 0, 1, 1], [], []>} : vector<8x512xbf16>, vector<512x1024xbf16>, vector<8x1024xf32> -> vector<8x1024xf32>
    %c0_43 = arith.constant 0 : index
    %c0_44 = arith.constant 0 : index
    %64 = vector.load %arg18[%c0_43, %c0_44] : memref<1x1024xf32, #tpu.memory_space<vmem>>, vector<1x1024xf32>
    %65 = vector.broadcast %64 : vector<1x1024xf32> to vector<8x1024xf32>
    %66 = arith.mulf %63, %65 : vector<8x1024xf32>
    %c0_45 = arith.constant 0 : index
    %c0_46 = arith.constant 0 : index
    %67 = vector.load %arg19[%c0_45, %c0_46] : memref<1x1024xf32, #tpu.memory_space<vmem>>, vector<1x1024xf32>
    %68 = vector.broadcast %67 : vector<1x1024xf32> to vector<8x1024xf32>
    %69 = arith.addf %66, %68 : vector<8x1024xf32>
    %cst_47 = arith.constant 1.000000e-01 : f32
    %70 = vector.broadcast %cst_47 : f32 to vector<8x1024xf32>
    %71 = arith.mulf %70, %69 : vector<8x1024xf32>
    %72 = arith.maximumf %69, %71 : vector<8x1024xf32>
    %73 = arith.truncf %72 : vector<8x1024xf32> to vector<8x1024xbf16>
    %c0_48 = arith.constant 0 : index
    %c0_49 = arith.constant 0 : index
    %74 = vector.load %arg20[%c0_48, %c0_49] : memref<1024x2048xi8, #tpu.memory_space<vmem>>, vector<1024x2048xi8>
    %75 = arith.sitofp %74 : vector<1024x2048xi8> to vector<1024x2048xbf16>
    %cst_50 = arith.constant dense<0.000000e+00> : vector<8x2048xf32>
    %76 = tpu.matmul %73, %75, %cst_50 {dimension_numbers = #tpu.dot_dimension_numbers<[1], [0], [0], [1], [0, 0, 1, 1], [], []>} : vector<8x1024xbf16>, vector<1024x2048xbf16>, vector<8x2048xf32> -> vector<8x2048xf32>
    %c0_51 = arith.constant 0 : index
    %c0_52 = arith.constant 0 : index
    %77 = vector.load %arg21[%c0_51, %c0_52] : memref<1x2048xf32, #tpu.memory_space<vmem>>, vector<1x2048xf32>
    %78 = vector.broadcast %77 : vector<1x2048xf32> to vector<8x2048xf32>
    %79 = arith.mulf %76, %78 : vector<8x2048xf32>
    %c0_53 = arith.constant 0 : index
    %c0_54 = arith.constant 0 : index
    %80 = vector.load %arg22[%c0_53, %c0_54] : memref<1x2048xf32, #tpu.memory_space<vmem>>, vector<1x2048xf32>
    %81 = vector.broadcast %80 : vector<1x2048xf32> to vector<8x2048xf32>
    %82 = arith.addf %79, %81 : vector<8x2048xf32>
    %cst_55 = arith.constant 1.000000e-01 : f32
    %83 = vector.broadcast %cst_55 : f32 to vector<8x2048xf32>
    %84 = arith.mulf %83, %82 : vector<8x2048xf32>
    %85 = arith.maximumf %82, %84 : vector<8x2048xf32>
    %86 = arith.truncf %85 : vector<8x2048xf32> to vector<8x2048xbf16>
    %c0_56 = arith.constant 0 : index
    %c0_57 = arith.constant 0 : index
    %87 = vector.load %arg23[%c0_56, %c0_57] : memref<512x1024xi8, #tpu.memory_space<vmem>>, vector<512x1024xi8>
    %88 = arith.sitofp %87 : vector<512x1024xi8> to vector<512x1024xbf16>
    %c0_58 = arith.constant 0 : index
    %c0_59 = arith.constant 0 : index
    %89 = vector.load %arg24[%c0_58, %c0_59] : memref<1x1024xf32, #tpu.memory_space<vmem>>, vector<1x1024xf32>
    %c0_60 = arith.constant 0 : index
    %c0_61 = arith.constant 0 : index
    %90 = vector.load %arg25[%c0_60, %c0_61] : memref<1x1024xf32, #tpu.memory_space<vmem>>, vector<1x1024xf32>
    %91 = vector.extract_strided_slice %86 {offsets = [0, 0], sizes = [8, 512], strides = [1, 1]} : vector<8x2048xbf16> to vector<8x512xbf16>
    %cst_62 = arith.constant dense<0.000000e+00> : vector<8x1024xf32>
    %92 = tpu.matmul %91, %88, %cst_62 {dimension_numbers = #tpu.dot_dimension_numbers<[1], [0], [0], [1], [0, 0, 1, 1], [], []>} : vector<8x512xbf16>, vector<512x1024xbf16>, vector<8x1024xf32> -> vector<8x1024xf32>
    %93 = vector.broadcast %89 : vector<1x1024xf32> to vector<8x1024xf32>
    %94 = arith.mulf %92, %93 : vector<8x1024xf32>
    %95 = vector.broadcast %90 : vector<1x1024xf32> to vector<8x1024xf32>
    %96 = arith.addf %94, %95 : vector<8x1024xf32>
    %cst_63 = arith.constant 1.000000e-01 : f32
    %97 = vector.broadcast %cst_63 : f32 to vector<8x1024xf32>
    %98 = arith.mulf %97, %96 : vector<8x1024xf32>
    %99 = arith.maximumf %96, %98 : vector<8x1024xf32>
    %c0_64 = arith.constant 0 : index
    %c0_65 = arith.constant 0 : index
    %100 = vector.load %arg26[%c0_64, %c0_65] : memref<8x4096xf32, #tpu.memory_space<vmem>>, vector<8x1024xf32>
    tpu.vector_store %arg26[%c0_64, %c0_65], %99 {strides = array<i32>} : memref<8x4096xf32, #tpu.memory_space<vmem>>, vector<8x1024xf32>,
    %101 = vector.extract_strided_slice %86 {offsets = [0, 512], sizes = [8, 512], strides = [1, 1]} : vector<8x2048xbf16> to vector<8x512xbf16>
    %cst_66 = arith.constant dense<0.000000e+00> : vector<8x1024xf32>
    %102 = tpu.matmul %101, %88, %cst_66 {dimension_numbers = #tpu.dot_dimension_numbers<[1], [0], [0], [1], [0, 0, 1, 1], [], []>} : vector<8x512xbf16>, vector<512x1024xbf16>, vector<8x1024xf32> -> vector<8x1024xf32>
    %103 = vector.broadcast %89 : vector<1x1024xf32> to vector<8x1024xf32>
    %104 = arith.mulf %102, %103 : vector<8x1024xf32>
    %105 = vector.broadcast %90 : vector<1x1024xf32> to vector<8x1024xf32>
    %106 = arith.addf %104, %105 : vector<8x1024xf32>
    %cst_67 = arith.constant 1.000000e-01 : f32
    %107 = vector.broadcast %cst_67 : f32 to vector<8x1024xf32>
    %108 = arith.mulf %107, %106 : vector<8x1024xf32>
    %109 = arith.maximumf %106, %108 : vector<8x1024xf32>
    %c0_68 = arith.constant 0 : index
    %c1024 = arith.constant 1024 : index
    %110 = vector.load %arg26[%c0_68, %c1024] : memref<8x4096xf32, #tpu.memory_space<vmem>>, vector<8x1024xf32>
    tpu.vector_store %arg26[%c0_68, %c1024], %109 {strides = array<i32>} : memref<8x4096xf32, #tpu.memory_space<vmem>>, vector<8x1024xf32>,
    %111 = vector.extract_strided_slice %86 {offsets = [0, 1024], sizes = [8, 512], strides = [1, 1]} : vector<8x2048xbf16> to vector<8x512xbf16>
    %cst_69 = arith.constant dense<0.000000e+00> : vector<8x1024xf32>
    %112 = tpu.matmul %111, %88, %cst_69 {dimension_numbers = #tpu.dot_dimension_numbers<[1], [0], [0], [1], [0, 0, 1, 1], [], []>} : vector<8x512xbf16>, vector<512x1024xbf16>, vector<8x1024xf32> -> vector<8x1024xf32>
    %113 = vector.broadcast %89 : vector<1x1024xf32> to vector<8x1024xf32>
    %114 = arith.mulf %112, %113 : vector<8x1024xf32>
    %115 = vector.broadcast %90 : vector<1x1024xf32> to vector<8x1024xf32>
    %116 = arith.addf %114, %115 : vector<8x1024xf32>
    %cst_70 = arith.constant 1.000000e-01 : f32
    %117 = vector.broadcast %cst_70 : f32 to vector<8x1024xf32>
    %118 = arith.mulf %117, %116 : vector<8x1024xf32>
    %119 = arith.maximumf %116, %118 : vector<8x1024xf32>
    %c0_71 = arith.constant 0 : index
    %c2048 = arith.constant 2048 : index
    %120 = vector.load %arg26[%c0_71, %c2048] : memref<8x4096xf32, #tpu.memory_space<vmem>>, vector<8x1024xf32>
    tpu.vector_store %arg26[%c0_71, %c2048], %119 {strides = array<i32>} : memref<8x4096xf32, #tpu.memory_space<vmem>>, vector<8x1024xf32>,
    %121 = vector.extract_strided_slice %86 {offsets = [0, 1536], sizes = [8, 512], strides = [1, 1]} : vector<8x2048xbf16> to vector<8x512xbf16>
    %cst_72 = arith.constant dense<0.000000e+00> : vector<8x1024xf32>
    %122 = tpu.matmul %121, %88, %cst_72 {dimension_numbers = #tpu.dot_dimension_numbers<[1], [0], [0], [1], [0, 0, 1, 1], [], []>} : vector<8x512xbf16>, vector<512x1024xbf16>, vector<8x1024xf32> -> vector<8x1024xf32>
    %123 = vector.broadcast %89 : vector<1x1024xf32> to vector<8x1024xf32>
    %124 = arith.mulf %122, %123 : vector<8x1024xf32>
    %125 = vector.broadcast %90 : vector<1x1024xf32> to vector<8x1024xf32>
    %126 = arith.addf %124, %125 : vector<8x1024xf32>
    %cst_73 = arith.constant 1.000000e-01 : f32
    %127 = vector.broadcast %cst_73 : f32 to vector<8x1024xf32>
    %128 = arith.mulf %127, %126 : vector<8x1024xf32>
    %129 = arith.maximumf %126, %128 : vector<8x1024xf32>
    %c0_74 = arith.constant 0 : index
    %c3072 = arith.constant 3072 : index
    %130 = vector.load %arg26[%c0_74, %c3072] : memref<8x4096xf32, #tpu.memory_space<vmem>>, vector<8x1024xf32>
    tpu.vector_store %arg26[%c0_74, %c3072], %129 {strides = array<i32>} : memref<8x4096xf32, #tpu.memory_space<vmem>>, vector<8x1024xf32>,
    return
  }
  func.func @transform_0(%arg0: i32) -> (i32, i32) {
    %c0_i32 = arith.constant 0 : i32
    %c0_i32_0 = arith.constant 0 : i32
    return %arg0, %c0_i32 : i32, i32
  }
  func.func @transform_1(%arg0: i32) -> (i32, i32) {
    %c0_i32 = arith.constant 0 : i32
    %c0_i32_0 = arith.constant 0 : i32
    %c0_i32_1 = arith.constant 0 : i32
    return %c0_i32, %c0_i32_0 : i32, i32
  }
  func.func @transform_2(%arg0: i32) -> (i32, i32) {
    %c0_i32 = arith.constant 0 : i32
    %c0_i32_0 = arith.constant 0 : i32
    %c0_i32_1 = arith.constant 0 : i32
    return %c0_i32, %c0_i32_0 : i32, i32
  }
  func.func @transform_3(%arg0: i32) -> (i32, i32) {
    %c0_i32 = arith.constant 0 : i32
    %c0_i32_0 = arith.constant 0 : i32
    %c0_i32_1 = arith.constant 0 : i32
    return %c0_i32, %c0_i32_0 : i32, i32
  }
  func.func @transform_4(%arg0: i32) -> (i32, i32) {
    %c0_i32 = arith.constant 0 : i32
    %c0_i32_0 = arith.constant 0 : i32
    %c0_i32_1 = arith.constant 0 : i32
    return %c0_i32, %c0_i32_0 : i32, i32
  }
  func.func @transform_5(%arg0: i32) -> (i32, i32) {
    %c0_i32 = arith.constant 0 : i32
    %c0_i32_0 = arith.constant 0 : i32
    %c0_i32_1 = arith.constant 0 : i32
    return %c0_i32, %c0_i32_0 : i32, i32
  }
  func.func @transform_6(%arg0: i32) -> (i32, i32) {
    %c0_i32 = arith.constant 0 : i32
    %c0_i32_0 = arith.constant 0 : i32
    %c0_i32_1 = arith.constant 0 : i32
    return %c0_i32, %c0_i32_0 : i32, i32
  }
  func.func @transform_7(%arg0: i32) -> (i32, i32) {
    %c0_i32 = arith.constant 0 : i32
    %c0_i32_0 = arith.constant 0 : i32
    %c0_i32_1 = arith.constant 0 : i32
    return %c0_i32, %c0_i32_0 : i32, i32
  }
  func.func @transform_8(%arg0: i32) -> (i32, i32) {
    %c0_i32 = arith.constant 0 : i32
    %c0_i32_0 = arith.constant 0 : i32
    %c0_i32_1 = arith.constant 0 : i32
    return %c0_i32, %c0_i32_0 : i32, i32
  }
  func.func @transform_9(%arg0: i32) -> (i32, i32) {
    %c0_i32 = arith.constant 0 : i32
    %c0_i32_0 = arith.constant 0 : i32
    %c0_i32_1 = arith.constant 0 : i32
    return %c0_i32, %c0_i32_0 : i32, i32
  }
  func.func @transform_10(%arg0: i32) -> (i32, i32) {
    %c0_i32 = arith.constant 0 : i32
    %c0_i32_0 = arith.constant 0 : i32
    %c0_i32_1 = arith.constant 0 : i32
    return %c0_i32, %c0_i32_0 : i32, i32
  }
  func.func @transform_11(%arg0: i32) -> (i32, i32) {
    %c0_i32 = arith.constant 0 : i32
    %c0_i32_0 = arith.constant 0 : i32
    %c0_i32_1 = arith.constant 0 : i32
    return %c0_i32, %c0_i32_0 : i32, i32
  }
  func.func @transform_12(%arg0: i32) -> (i32, i32) {
    %c0_i32 = arith.constant 0 : i32
    %c0_i32_0 = arith.constant 0 : i32
    %c0_i32_1 = arith.constant 0 : i32
    return %c0_i32, %c0_i32_0 : i32, i32
  }
  func.func @transform_13(%arg0: i32) -> (i32, i32) {
    %c0_i32 = arith.constant 0 : i32
    %c0_i32_0 = arith.constant 0 : i32
    %c0_i32_1 = arith.constant 0 : i32
    return %c0_i32, %c0_i32_0 : i32, i32
  }
  func.func @transform_14(%arg0: i32) -> (i32, i32) {
    %c0_i32 = arith.constant 0 : i32
    %c0_i32_0 = arith.constant 0 : i32
    %c0_i32_1 = arith.constant 0 : i32
    return %c0_i32, %c0_i32_0 : i32, i32
  }
  func.func @transform_15(%arg0: i32) -> (i32, i32) {
    %c0_i32 = arith.constant 0 : i32
    %c0_i32_0 = arith.constant 0 : i32
    %c0_i32_1 = arith.constant 0 : i32
    return %c0_i32, %c0_i32_0 : i32, i32
  }
  func.func @transform_16(%arg0: i32) -> (i32, i32) {
    %c0_i32 = arith.constant 0 : i32
    %c0_i32_0 = arith.constant 0 : i32
    %c0_i32_1 = arith.constant 0 : i32
    return %c0_i32, %c0_i32_0 : i32, i32
  }
  func.func @transform_17(%arg0: i32) -> (i32, i32) {
    %c0_i32 = arith.constant 0 : i32
    %c0_i32_0 = arith.constant 0 : i32
    %c0_i32_1 = arith.constant 0 : i32
    return %c0_i32, %c0_i32_0 : i32, i32
  }
  func.func @transform_18(%arg0: i32) -> (i32, i32) {
    %c0_i32 = arith.constant 0 : i32
    %c0_i32_0 = arith.constant 0 : i32
    %c0_i32_1 = arith.constant 0 : i32
    return %c0_i32, %c0_i32_0 : i32, i32
  }
  func.func @transform_19(%arg0: i32) -> (i32, i32) {
    %c0_i32 = arith.constant 0 : i32
    %c0_i32_0 = arith.constant 0 : i32
    %c0_i32_1 = arith.constant 0 : i32
    return %c0_i32, %c0_i32_0 : i32, i32
  }
  func.func @transform_20(%arg0: i32) -> (i32, i32) {
    %c0_i32 = arith.constant 0 : i32
    %c0_i32_0 = arith.constant 0 : i32
    %c0_i32_1 = arith.constant 0 : i32
    return %c0_i32, %c0_i32_0 : i32, i32
  }
  func.func @transform_21(%arg0: i32) -> (i32, i32) {
    %c0_i32 = arith.constant 0 : i32
    %c0_i32_0 = arith.constant 0 : i32
    %c0_i32_1 = arith.constant 0 : i32
    return %c0_i32, %c0_i32_0 : i32, i32
  }
  func.func @transform_22(%arg0: i32) -> (i32, i32) {
    %c0_i32 = arith.constant 0 : i32
    %c0_i32_0 = arith.constant 0 : i32
    %c0_i32_1 = arith.constant 0 : i32
    return %c0_i32, %c0_i32_0 : i32, i32
  }
  func.func @transform_23(%arg0: i32) -> (i32, i32) {
    %c0_i32 = arith.constant 0 : i32
    %c0_i32_0 = arith.constant 0 : i32
    %c0_i32_1 = arith.constant 0 : i32
    return %c0_i32, %c0_i32_0 : i32, i32
  }
  func.func @transform_24(%arg0: i32) -> (i32, i32) {
    %c0_i32 = arith.constant 0 : i32
    %c0_i32_0 = arith.constant 0 : i32
    %c0_i32_1 = arith.constant 0 : i32
    return %c0_i32, %c0_i32_0 : i32, i32
  }
  func.func @transform_25(%arg0: i32) -> (i32, i32) {
    %c0_i32 = arith.constant 0 : i32
    %c0_i32_0 = arith.constant 0 : i32
    return %arg0, %c0_i32 : i32, i32
  }
}

</mosaic_0001>

<llo_original>
// kernel: spectrogram_cnn_forward.1
$region0: #{spectrogram_cnn_forward.1}
  #allocation0 [shape = 'u32[]', space=smem, size = 0x4, offset = 0x4, fixed_abs, tag = 'smem constant byte address 0x4 - core index']
  #allocation1 [shape = 'u32[144,128]{1,0:T(1,128)}', space=vmem, size = 0x12000, scoped, tag = 'internal scratch']
  %s0 = inlined_call_operand.vmem [shape: bf16[8,256], index: 0, kind: input, shape index: {}]
  %s1 = inlined_call_operand.hbm [shape: bf16[256,512], index: 1, kind: input, shape index: {}]
  %s2 = inlined_call_operand.hbm [shape: f32[1,512], index: 2, kind: input, shape index: {}]
  %s3 = inlined_call_operand.hbm [shape: f32[1,512], index: 3, kind: input, shape index: {}]
  %s4 = inlined_call_operand.hbm [shape: bf16[512,512], index: 4, kind: input, shape index: {}]
  %s5 = inlined_call_operand.hbm [shape: f32[1,512], index: 5, kind: input, shape index: {}]
  %s6 = inlined_call_operand.hbm [shape: f32[1,512], index: 6, kind: input, shape index: {}]
  %s7 = inlined_call_operand.hbm [shape: bf16[512,384], index: 7, kind: input, shape index: {}]
  %s8 = inlined_call_operand.hbm [shape: f32[1,384], index: 8, kind: input, shape index: {}]
  %s9 = inlined_call_operand.hbm [shape: f32[1,384], index: 9, kind: input, shape index: {}]
  %s10 = inlined_call_operand.hbm [shape: bf16[384,256], index: 10, kind: input, shape index: {}]
  %s11 = inlined_call_operand.hbm [shape: f32[1,256], index: 11, kind: input, shape index: {}]
  %s12 = inlined_call_operand.hbm [shape: f32[1,256], index: 12, kind: input, shape index: {}]
  %s13 = inlined_call_operand.hbm [shape: bf16[256,512], index: 13, kind: input, shape index: {}]
  %s14 = inlined_call_operand.hbm [shape: f32[1,512], index: 14, kind: input, shape index: {}]
  %s15 = inlined_call_operand.hbm [shape: f32[1,512], index: 15, kind: input, shape index: {}]
  %s16 = inlined_call_operand.hbm [shape: s8[512,1024], index: 16, kind: input, shape index: {}]
  %s17 = inlined_call_operand.hbm [shape: f32[1,1024], index: 17, kind: input, shape index: {}]
  %s18 = inlined_call_operand.hbm [shape: f32[1,1024], index: 18, kind: input, shape index: {}]
  %s19 = inlined_call_operand.hbm [shape: s8[1024,2048], index: 19, kind: input, shape index: {}]
  %s20 = inlined_call_operand.hbm [shape: f32[1,2048], index: 20, kind: input, shape index: {}]
  %s21 = inlined_call_operand.hbm [shape: f32[1,2048], index: 21, kind: input, shape index: {}]
  %s22 = inlined_call_operand.hbm [shape: s8[512,1024], index: 22, kind: input, shape index: {}]
  %s23 = inlined_call_operand.hbm [shape: f32[1,1024], index: 23, kind: input, shape index: {}]
  %s24 = inlined_call_operand.hbm [shape: f32[1,1024], index: 24, kind: input, shape index: {}]
  %s25 = inlined_call_operand.vmem [shape: f32[8,4096], index: 25, kind: output, shape index: {}]
  %s26 = sld [smem:[#allocation0]]
  $region206: #{spectrogram_cnn_forward.1} parent=0
    _
  %s28 = ssub.s32 1, %s26
  %s29 = scalar_select 0, %s28, %s26
  $region1: #{spectrogram_cnn_forward.1} parent=0
    #allocation2 [shape = 'u8[262144]{0}', space=vmem, size = 0x40000, scoped, tag = 'input window, operand 1, single buffered']
    #allocation3 [shape = 's32[1]{0}', space=sflag, size = 0x4, scoped, tag = 'scoped memory for spectrogram_cnn_forward.1']
    #allocation4 [shape = 'u8[2048]{0}', space=vmem, size = 0x800, scoped, tag = 'input window, operand 2, single buffered']
    #allocation5 [shape = 's32[1]{0}', space=sflag, size = 0x4, scoped, tag = 'scoped memory for spectrogram_cnn_forward.1']
    #allocation6 [shape = 'u8[2048]{0}', space=vmem, size = 0x800, scoped, tag = 'input window, operand 3, single buffered']
    #allocation7 [shape = 'u8[524288]{0}', space=vmem, size = 0x80000, scoped, tag = 'input window, operand 4, single buffered']
    #allocation8 [shape = 's32[1]{0}', space=sflag, size = 0x4, scoped, tag = 'scoped memory for spectrogram_cnn_forward.1']
    #allocation9 [shape = 'u8[2048]{0}', space=vmem, size = 0x800, scoped, tag = 'input window, operand 5, single buffered']
    #allocation10 [shape = 'u8[2048]{0}', space=vmem, size = 0x800, scoped, tag = 'input window, operand 6, single buffered']
    #allocation11 [shape = 's32[1]{0}', space=sflag, size = 0x4, scoped, tag = 'scoped memory for spectrogram_cnn_forward.1']
    #allocation12 [shape = 'u8[393216]{0}', space=vmem, size = 0x60000, scoped, tag = 'input window, operand 7, single buffered']
    #allocation13 [shape = 'u8[1536]{0}', space=vmem, size = 0x800, scoped, tag = 'input window, operand 8, single buffered']
    #allocation14 [shape = 's32[1]{0}', space=sflag, size = 0x4, scoped, tag = 'scoped memory for spectrogram_cnn_forward.1']
    #allocation15 [shape = 'u8[1536]{0}', space=vmem, size = 0x800, scoped, tag = 'input window, operand 9, single buffered']
    #allocation16 [shape = 'u8[196608]{0}', space=vmem, size = 0x30000, scoped, tag = 'input window, operand 10, single buffered']
    #allocation17 [shape = 's32[1]{0}', space=sflag, size = 0x4, scoped, tag = 'scoped memory for spectrogram_cnn_forward.1']
    #allocation18 [shape = 'u8[1024]{0}', space=vmem, size = 0x400, scoped, tag = 'input window, operand 11, single buffered']
    #allocation19 [shape = 'u8[1024]{0}', space=vmem, size = 0x400, scoped, tag = 'input window, operand 12, single buffered']
    #allocation20 [shape = 's32[1]{0}', space=sflag, size = 0x4, scoped, tag = 'scoped memory for spectrogram_cnn_forward.1']
    #allocation21 [shape = 'u8[262144]{0}', space=vmem, size = 0x40000, scoped, tag = 'input window, operand 13, single buffered']
    #allocation22 [shape = 'u8[2048]{0}', space=vmem, size = 0x800, scoped, tag = 'input window, operand 14, single buffered']
    #allocation23 [shape = 's32[1]{0}', space=sflag, size = 0x4, scoped, tag = 'scoped memory for spectrogram_cnn_forward.1']
    #allocation24 [shape = 'u8[2048]{0}', space=vmem, size = 0x800, scoped, tag = 'input window, operand 15, single buffered']
    #allocation25 [shape = 'u8[524288]{0}', space=vmem, size = 0x80000, scoped, tag = 'input window, operand 16, single buffered']
    #allocation26 [shape = 's32[1]{0}', space=sflag, size = 0x4, scoped, tag = 'scoped memory for spectrogram_cnn_forward.1']
    #allocation27 [shape = 'u8[4096]{0}', space=vmem, size = 0x1000, scoped, tag = 'input window, operand 17, single buffered']
    #allocation28 [shape = 'u8[4096]{0}', space=vmem, size = 0x1000, scoped, tag = 'input window, operand 18, single buffered']
    #allocation29 [shape = 's32[1]{0}', space=sflag, size = 0x4, scoped, tag = 'scoped memory for spectrogram_cnn_forward.1']
    #allocation30 [shape = 'u8[2097152]{0}', space=vmem, size = 0x200000, scoped, tag = 'input window, operand 19, single buffered']
    #allocation31 [shape = 'u8[8192]{0}', space=vmem, size = 0x2000, scoped, tag = 'input window, operand 20, single buffered']
    #allocation32 [shape = 's32[1]{0}', space=sflag, size = 0x4, scoped, tag = 'scoped memory for spectrogram_cnn_forward.1']
    #allocation33 [shape = 'u8[8192]{0}', space=vmem, size = 0x2000, scoped, tag = 'input window, operand 21, single buffered']
    #allocation34 [shape = 'u8[524288]{0}', space=vmem, size = 0x80000, scoped, tag = 'input window, operand 22, single buffered']
    #allocation35 [shape = 's32[1]{0}', space=sflag, size = 0x4, scoped, tag = 'scoped memory for spectrogram_cnn_forward.1']
    #allocation36 [shape = 'u8[4096]{0}', space=vmem, size = 0x1000, scoped, tag = 'input window, operand 23, single buffered']
    #allocation37 [shape = 'u8[4096]{0}', space=vmem, size = 0x1000, scoped, tag = 'input window, operand 24, single buffered']
    #allocation38 [shape = 's32[1]{0}', space=sflag, size = 0x4, scoped, tag = 'scoped memory for spectrogram_cnn_forward.1']
    %30 = vsyncpa [#allocation3], 0
    %31 = vsyncpa [#allocation5], 0
    %32 = vsyncpa [#allocation8], 0
    %33 = vsyncpa [#allocation11], 0
    %34 = vsyncpa [#allocation14], 0
    %35 = vsyncpa [#allocation17], 0
    %36 = vsyncpa [#allocation20], 0
    %37 = vsyncpa [#allocation23], 0
    %38 = vsyncpa [#allocation26], 0
    %39 = vsyncpa [#allocation29], 0
    %40 = vsyncpa [#allocation32], 0
    %41 = vsyncpa [#allocation35], 0
    %42 = vsyncpa [#allocation38], 0
    // Predicated region
    $region2: #{spectrogram_cnn_forward.1} parent=1 // pred_check
      _
    $region3: #{spectrogram_cnn_forward.1} parent=1 // pred_check_branch
      %44 = sbr.rel (0) target = $region5
    $region4: #{spectrogram_cnn_forward.1} parent=1 // pred_region
      _
    $region5: #{spectrogram_cnn_forward.1} parent=1 // pred_fallthru
      _
    // Predicated region
    $region6: #{spectrogram_cnn_forward.1} parent=1 // pred_check
      _
    $region7: #{spectrogram_cnn_forward.1} parent=1 // pred_check_branch
      %46 = sbr.rel (0) target = $region9
    $region8: #{spectrogram_cnn_forward.1} parent=1 // pred_region
      %s48 = ssub.s32 8192, 8192
      %49 = vsyncadd [#allocation3], %s48
      %s50 = sshll.u32 [#allocation2], 4
      %s51 = int_to_ptr.vmem [resolvable:$true] %s50
      %56 = dma.hbm_to_vmem [thread:$0]  %s1, 8192, %s51, [#allocation3], 256, 256, 16
    $region9: #{spectrogram_cnn_forward.1} parent=1 // pred_fallthru
      _
    // Predicated region
    $region10: #{spectrogram_cnn_forward.1} parent=1 // pred_check
      _
    $region11: #{spectrogram_cnn_forward.1} parent=1 // pred_check_branch
      %58 = sbr.rel (0) target = $region13
    $region12: #{spectrogram_cnn_forward.1} parent=1 // pred_region
      %s60 = ssub.s32 64, 64
      %61 = vsyncadd [#allocation5], %s60
      %s63 = sshll.u32 [#allocation4], 4
      %s64 = int_to_ptr.vmem [resolvable:$true] %s63
      %66 = dma.hbm_to_vmem [thread:$0]  %s2, 64, %s64, [#allocation5]
    $region13: #{spectrogram_cnn_forward.1} parent=1 // pred_fallthru
      _
    // Predicated region
    $region14: #{spectrogram_cnn_forward.1} parent=1 // pred_check
      _
    $region15: #{spectrogram_cnn_forward.1} parent=1 // pred_check_branch
      %68 = sbr.rel (0) target = $region17
    $region16: #{spectrogram_cnn_forward.1} parent=1 // pred_region
      %s70 = ssub.s32 64, 64
      %71 = vsyncadd [#allocation5], %s70
      %s73 = sshll.u32 [#allocation6], 4
      %s74 = int_to_ptr.vmem [resolvable:$true] %s73
      %76 = dma.hbm_to_vmem [thread:$0]  %s3, 64, %s74, [#allocation5]
    $region17: #{spectrogram_cnn_forward.1} parent=1 // pred_fallthru
      _
    // Predicated region
    $region18: #{spectrogram_cnn_forward.1} parent=1 // pred_check
      _
    $region19: #{spectrogram_cnn_forward.1} parent=1 // pred_check_branch
      %78 = sbr.rel (0) target = $region21
    $region20: #{spectrogram_cnn_forward.1} parent=1 // pred_region
      %s80 = ssub.s32 16384, 16384
      %81 = vsyncadd [#allocation8], %s80
      %s82 = sshll.u32 [#allocation7], 4
      %s83 = int_to_ptr.vmem [resolvable:$true] %s82
      %88 = dma.hbm_to_vmem [thread:$0]  %s4, 16384, %s83, [#allocation8], 256, 256, 16
    $region21: #{spectrogram_cnn_forward.1} parent=1 // pred_fallthru
      _
    // Predicated region
    $region22: #{spectrogram_cnn_forward.1} parent=1 // pred_check
      _
    $region23: #{spectrogram_cnn_forward.1} parent=1 // pred_check_branch
      %90 = sbr.rel (0) target = $region25
    $region24: #{spectrogram_cnn_forward.1} parent=1 // pred_region
      %s92 = ssub.s32 64, 64
      %93 = vsyncadd [#allocation8], %s92
      %s95 = sshll.u32 [#allocation9], 4
      %s96 = int_to_ptr.vmem [resolvable:$true] %s95
      %98 = dma.hbm_to_vmem [thread:$0]  %s5, 64, %s96, [#allocation8]
    $region25: #{spectrogram_cnn_forward.1} parent=1 // pred_fallthru
      _
    // Predicated region
    $region26: #{spectrogram_cnn_forward.1} parent=1 // pred_check
      _
    $region27: #{spectrogram_cnn_forward.1} parent=1 // pred_check_branch
      %100 = sbr.rel (0) target = $region29
    $region28: #{spectrogram_cnn_forward.1} parent=1 // pred_region
      %s102 = ssub.s32 64, 64
      %103 = vsyncadd [#allocation11], %s102
      %s105 = sshll.u32 [#allocation10], 4
      %s106 = int_to_ptr.vmem [resolvable:$true] %s105
      %108 = dma.hbm_to_vmem [thread:$0]  %s6, 64, %s106, [#allocation11]
    $region29: #{spectrogram_cnn_forward.1} parent=1 // pred_fallthru
      _
    // Predicated region
    $region30: #{spectrogram_cnn_forward.1} parent=1 // pred_check
      _
    $region31: #{spectrogram_cnn_forward.1} parent=1 // pred_check_branch
      %110 = sbr.rel (0) target = $region33
    $region32: #{spectrogram_cnn_forward.1} parent=1 // pred_region
      %s112 = ssub.s32 12288, 12288
      %113 = vsyncadd [#allocation11], %s112
      %s114 = sshll.u32 [#allocation12], 4
      %s115 = int_to_ptr.vmem [resolvable:$true] %s114
      %120 = dma.hbm_to_vmem [thread:$0]  %s7, 12288, %s115, [#allocation11], 192, 192, 12
    $region33: #{spectrogram_cnn_forward.1} parent=1 // pred_fallthru
      _
    // Predicated region
    $region34: #{spectrogram_cnn_forward.1} parent=1 // pred_check
      _
    $region35: #{spectrogram_cnn_forward.1} parent=1 // pred_check_branch
      %122 = sbr.rel (0) target = $region37
    $region36: #{spectrogram_cnn_forward.1} parent=1 // pred_region
      %s124 = ssub.s32 48, 48
      %125 = vsyncadd [#allocation14], %s124
      %s127 = sshll.u32 [#allocation13], 4
      %s128 = int_to_ptr.vmem [resolvable:$true] %s127
      %130 = dma.hbm_to_vmem [thread:$0]  %s8, 48, %s128, [#allocation14]
    $region37: #{spectrogram_cnn_forward.1} parent=1 // pred_fallthru
      _
    // Predicated region
    $region38: #{spectrogram_cnn_forward.1} parent=1 // pred_check
      _
    $region39: #{spectrogram_cnn_forward.1} parent=1 // pred_check_branch
      %132 = sbr.rel (0) target = $region41
    $region40: #{spectrogram_cnn_forward.1} parent=1 // pred_region
      %s134 = ssub.s32 48, 48
      %135 = vsyncadd [#allocation14], %s134
      %s137 = sshll.u32 [#allocation15], 4
      %s138 = int_to_ptr.vmem [resolvable:$true] %s137
      %140 = dma.hbm_to_vmem [thread:$0]  %s9, 48, %s138, [#allocation14]
    $region41: #{spectrogram_cnn_forward.1} parent=1 // pred_fallthru
      _
    // Predicated region
    $region42: #{spectrogram_cnn_forward.1} parent=1 // pred_check
      _
    $region43: #{spectrogram_cnn_forward.1} parent=1 // pred_check_branch
      %142 = sbr.rel (0) target = $region45
    $region44: #{spectrogram_cnn_forward.1} parent=1 // pred_region
      %s144 = ssub.s32 6144, 6144
      %145 = vsyncadd [#allocation17], %s144
      %s146 = sshll.u32 [#allocation16], 4
      %s147 = int_to_ptr.vmem [resolvable:$true] %s146
      %152 = dma.hbm_to_vmem [thread:$0]  %s10, 6144, %s147, [#allocation17], 128, 128, 8
    $region45: #{spectrogram_cnn_forward.1} parent=1 // pred_fallthru
      _
    // Predicated region
    $region46: #{spectrogram_cnn_forward.1} parent=1 // pred_check
      _
    $region47: #{spectrogram_cnn_forward.1} parent=1 // pred_check_branch
      %154 = sbr.rel (0) target = $region49
    $region48: #{spectrogram_cnn_forward.1} parent=1 // pred_region
      %s156 = ssub.s32 32, 32
      %157 = vsyncadd [#allocation17], %s156
      %s159 = sshll.u32 [#allocation18], 4
      %s160 = int_to_ptr.vmem [resolvable:$true] %s159
      %162 = dma.hbm_to_vmem [thread:$0]  %s11, 32, %s160, [#allocation17]
    $region49: #{spectrogram_cnn_forward.1} parent=1 // pred_fallthru
      _
    // Predicated region
    $region50: #{spectrogram_cnn_forward.1} parent=1 // pred_check
      _
    $region51: #{spectrogram_cnn_forward.1} parent=1 // pred_check_branch
      %164 = sbr.rel (0) target = $region53
    $region52: #{spectrogram_cnn_forward.1} parent=1 // pred_region
      %s166 = ssub.s32 32, 32
      %167 = vsyncadd [#allocation20], %s166
      %s169 = sshll.u32 [#allocation19], 4
      %s170 = int_to_ptr.vmem [resolvable:$true] %s169
      %172 = dma.hbm_to_vmem [thread:$0]  %s12, 32, %s170, [#allocation20]
    $region53: #{spectrogram_cnn_forward.1} parent=1 // pred_fallthru
      _
    // Predicated region
    $region54: #{spectrogram_cnn_forward.1} parent=1 // pred_check
      _
    $region55: #{spectrogram_cnn_forward.1} parent=1 // pred_check_branch
      %174 = sbr.rel (0) target = $region57
    $region56: #{spectrogram_cnn_forward.1} parent=1 // pred_region
      %s176 = ssub.s32 8192, 8192
      %177 = vsyncadd [#allocation20], %s176
      %s178 = sshll.u32 [#allocation21], 4
      %s179 = int_to_ptr.vmem [resolvable:$true] %s178
      %184 = dma.hbm_to_vmem [thread:$0]  %s13, 8192, %s179, [#allocation20], 256, 256, 16
    $region57: #{spectrogram_cnn_forward.1} parent=1 // pred_fallthru
      _
    // Predicated region
    $region58: #{spectrogram_cnn_forward.1} parent=1 // pred_check
      _
    $region59: #{spectrogram_cnn_forward.1} parent=1 // pred_check_branch
      %186 = sbr.rel (0) target = $region61
    $region60: #{spectrogram_cnn_forward.1} parent=1 // pred_region
      %s188 = ssub.s32 64, 64
      %189 = vsyncadd [#allocation23], %s188
      %s191 = sshll.u32 [#allocation22], 4
      %s192 = int_to_ptr.vmem [resolvable:$true] %s191
      %194 = dma.hbm_to_vmem [thread:$0]  %s14, 64, %s192, [#allocation23]
    $region61: #{spectrogram_cnn_forward.1} parent=1 // pred_fallthru
      _
    // Predicated region
    $region62: #{spectrogram_cnn_forward.1} parent=1 // pred_check
      _
    $region63: #{spectrogram_cnn_forward.1} parent=1 // pred_check_branch
      %196 = sbr.rel (0) target = $region65
    $region64: #{spectrogram_cnn_forward.1} parent=1 // pred_region
      %s198 = ssub.s32 64, 64
      %199 = vsyncadd [#allocation23], %s198
      %s201 = sshll.u32 [#allocation24], 4
      %s202 = int_to_ptr.vmem [resolvable:$true] %s201
      %204 = dma.hbm_to_vmem [thread:$0]  %s15, 64, %s202, [#allocation23]
    $region65: #{spectrogram_cnn_forward.1} parent=1 // pred_fallthru
      _
    // Predicated region
    $region66: #{spectrogram_cnn_forward.1} parent=1 // pred_check
      _
    $region67: #{spectrogram_cnn_forward.1} parent=1 // pred_check_branch
      %206 = sbr.rel (0) target = $region69
    $region68: #{spectrogram_cnn_forward.1} parent=1 // pred_region
      %s208 = ssub.s32 16384, 16384
      %209 = vsyncadd [#allocation26], %s208
      %s210 = sshll.u32 [#allocation25], 4
      %s211 = int_to_ptr.vmem [resolvable:$true] %s210
      %216 = dma.hbm_to_vmem [thread:$0]  %s16, 16384, %s211, [#allocation26], 1024, 1024, 64
    $region69: #{spectrogram_cnn_forward.1} parent=1 // pred_fallthru
      _
    // Predicated region
    $region70: #{spectrogram_cnn_forward.1} parent=1 // pred_check
      _
    $region71: #{spectrogram_cnn_forward.1} parent=1 // pred_check_branch
      %218 = sbr.rel (0) target = $region73
    $region72: #{spectrogram_cnn_forward.1} parent=1 // pred_region
      %s220 = ssub.s32 128, 128
      %221 = vsyncadd [#allocation26], %s220
      %s223 = sshll.u32 [#allocation27], 4
      %s224 = int_to_ptr.vmem [resolvable:$true] %s223
      %226 = dma.hbm_to_vmem [thread:$0]  %s17, 128, %s224, [#allocation26]
    $region73: #{spectrogram_cnn_forward.1} parent=1 // pred_fallthru
      _
    // Predicated region
    $region74: #{spectrogram_cnn_forward.1} parent=1 // pred_check
      _
    $region75: #{spectrogram_cnn_forward.1} parent=1 // pred_check_branch
      %228 = sbr.rel (0) target = $region77
    $region76: #{spectrogram_cnn_forward.1} parent=1 // pred_region
      %s230 = ssub.s32 128, 128
      %231 = vsyncadd [#allocation29], %s230
      %s233 = sshll.u32 [#allocation28], 4
      %s234 = int_to_ptr.vmem [resolvable:$true] %s233
      %236 = dma.hbm_to_vmem [thread:$0]  %s18, 128, %s234, [#allocation29]
    $region77: #{spectrogram_cnn_forward.1} parent=1 // pred_fallthru
      _
    // Predicated region
    $region78: #{spectrogram_cnn_forward.1} parent=1 // pred_check
      _
    $region79: #{spectrogram_cnn_forward.1} parent=1 // pred_check_branch
      %238 = sbr.rel (0) target = $region81
    $region80: #{spectrogram_cnn_forward.1} parent=1 // pred_region
      %s240 = ssub.s32 65536, 65536
      %241 = vsyncadd [#allocation29], %s240
      %s242 = sshll.u32 [#allocation30], 4
      %s243 = int_to_ptr.vmem [resolvable:$true] %s242
      %248 = dma.hbm_to_vmem [thread:$0]  %s19, 65536, %s243, [#allocation29], 2048, 2048, 128
    $region81: #{spectrogram_cnn_forward.1} parent=1 // pred_fallthru
      _
    // Predicated region
    $region82: #{spectrogram_cnn_forward.1} parent=1 // pred_check
      _
    $region83: #{spectrogram_cnn_forward.1} parent=1 // pred_check_branch
      %250 = sbr.rel (0) target = $region85
    $region84: #{spectrogram_cnn_forward.1} parent=1 // pred_region
      %s252 = ssub.s32 256, 256
      %253 = vsyncadd [#allocation32], %s252
      %s255 = sshll.u32 [#allocation31], 4
      %s256 = int_to_ptr.vmem [resolvable:$true] %s255
      %258 = dma.hbm_to_vmem [thread:$0]  %s20, 256, %s256, [#allocation32]
    $region85: #{spectrogram_cnn_forward.1} parent=1 // pred_fallthru
      _
    // Predicated region
    $region86: #{spectrogram_cnn_forward.1} parent=1 // pred_check
      _
    $region87: #{spectrogram_cnn_forward.1} parent=1 // pred_check_branch
      %260 = sbr.rel (0) target = $region89
    $region88: #{spectrogram_cnn_forward.1} parent=1 // pred_region
      %s262 = ssub.s32 256, 256
      %263 = vsyncadd [#allocation32], %s262
      %s265 = sshll.u32 [#allocation33], 4
      %s266 = int_to_ptr.vmem [resolvable:$true] %s265
      %268 = dma.hbm_to_vmem [thread:$0]  %s21, 256, %s266, [#allocation32]
    $region89: #{spectrogram_cnn_forward.1} parent=1 // pred_fallthru
      _
    // Predicated region
    $region90: #{spectrogram_cnn_forward.1} parent=1 // pred_check
      _
    $region91: #{spectrogram_cnn_forward.1} parent=1 // pred_check_branch
      %270 = sbr.rel (0) target = $region93
    $region92: #{spectrogram_cnn_forward.1} parent=1 // pred_region
      %s272 = ssub.s32 16384, 16384
      %273 = vsyncadd [#allocation35], %s272
      %s274 = sshll.u32 [#allocation34], 4
      %s275 = int_to_ptr.vmem [resolvable:$true] %s274
      %280 = dma.hbm_to_vmem [thread:$0]  %s22, 16384, %s275, [#allocation35], 1024, 1024, 64
    $region93: #{spectrogram_cnn_forward.1} parent=1 // pred_fallthru
      _
    // Predicated region
    $region94: #{spectrogram_cnn_forward.1} parent=1 // pred_check
      _
    $region95: #{spectrogram_cnn_forward.1} parent=1 // pred_check_branch
      %282 = sbr.rel (0) target = $region97
    $region96: #{spectrogram_cnn_forward.1} parent=1 // pred_region
      %s284 = ssub.s32 128, 128
      %285 = vsyncadd [#allocation35], %s284
      %s287 = sshll.u32 [#allocation36], 4
      %s288 = int_to_ptr.vmem [resolvable:$true] %s287
      %290 = dma.hbm_to_vmem [thread:$0]  %s23, 128, %s288, [#allocation35]
    $region97: #{spectrogram_cnn_forward.1} parent=1 // pred_fallthru
      _
    // Predicated region
    $region98: #{spectrogram_cnn_forward.1} parent=1 // pred_check
      _
    $region99: #{spectrogram_cnn_forward.1} parent=1 // pred_check_branch
      %292 = sbr.rel (0) target = $region101
    $region100: #{spectrogram_cnn_forward.1} parent=1 // pred_region
      %s294 = ssub.s32 128, 128
      %295 = vsyncadd [#allocation38], %s294
      %s297 = sshll.u32 [#allocation37], 4
      %s298 = int_to_ptr.vmem [resolvable:$true] %s297
      %300 = dma.hbm_to_vmem [thread:$0]  %s24, 128, %s298, [#allocation38]
    $region101: #{spectrogram_cnn_forward.1} parent=1 // pred_fallthru
      _
    // Predicated region
    $region102: #{spectrogram_cnn_forward.1} parent=1 // pred_check
      _
    $region103: #{spectrogram_cnn_forward.1} parent=1 // pred_check_branch
      %302 = sbr.rel (0) target = $region105
    $region104: #{spectrogram_cnn_forward.1} parent=1 // pred_region
      %303 = dma.done [#allocation3], 8192
    $region105: #{spectrogram_cnn_forward.1} parent=1 // pred_fallthru
      _
    // Predicated region
    $region106: #{spectrogram_cnn_forward.1} parent=1 // pred_check
      _
    $region107: #{spectrogram_cnn_forward.1} parent=1 // pred_check_branch
      %305 = sbr.rel (0) target = $region109
    $region108: #{spectrogram_cnn_forward.1} parent=1 // pred_region
      %306 = dma.done [#allocation5], 64
    $region109: #{spectrogram_cnn_forward.1} parent=1 // pred_fallthru
      _
    // Predicated region
    $region110: #{spectrogram_cnn_forward.1} parent=1 // pred_check
      _
    $region111: #{spectrogram_cnn_forward.1} parent=1 // pred_check_branch
      %308 = sbr.rel (0) target = $region113
    $region112: #{spectrogram_cnn_forward.1} parent=1 // pred_region
      %309 = dma.done [#allocation5], 64
    $region113: #{spectrogram_cnn_forward.1} parent=1 // pred_fallthru
      _
    // Predicated region
    $region114: #{spectrogram_cnn_forward.1} parent=1 // pred_check
      _
    $region115: #{spectrogram_cnn_forward.1} parent=1 // pred_check_branch
      %311 = sbr.rel (0) target = $region117
    $region116: #{spectrogram_cnn_forward.1} parent=1 // pred_region
      %312 = dma.done [#allocation8], 16384
    $region117: #{spectrogram_cnn_forward.1} parent=1 // pred_fallthru
      _
    // Predicated region
    $region118: #{spectrogram_cnn_forward.1} parent=1 // pred_check
      _
    $region119: #{spectrogram_cnn_forward.1} parent=1 // pred_check_branch
      %314 = sbr.rel (0) target = $region121
    $region120: #{spectrogram_cnn_forward.1} parent=1 // pred_region
      %315 = dma.done [#allocation8], 64
    $region121: #{spectrogram_cnn_forward.1} parent=1 // pred_fallthru
      _
    // Predicated region
    $region122: #{spectrogram_cnn_forward.1} parent=1 // pred_check
      _
    $region123: #{spectrogram_cnn_forward.1} parent=1 // pred_check_branch
      %317 = sbr.rel (0) target = $region125
    $region124: #{spectrogram_cnn_forward.1} parent=1 // pred_region
      %318 = dma.done [#allocation11], 64
    $region125: #{spectrogram_cnn_forward.1} parent=1 // pred_fallthru
      _
    // Predicated region
    $region126: #{spectrogram_cnn_forward.1} parent=1 // pred_check
      _
    $region127: #{spectrogram_cnn_forward.1} parent=1 // pred_check_branch
      %320 = sbr.rel (0) target = $region129
    $region128: #{spectrogram_cnn_forward.1} parent=1 // pred_region
      %321 = dma.done [#allocation11], 12288
    $region129: #{spectrogram_cnn_forward.1} parent=1 // pred_fallthru
      _
    // Predicated region
    $region130: #{spectrogram_cnn_forward.1} parent=1 // pred_check
      _
    $region131: #{spectrogram_cnn_forward.1} parent=1 // pred_check_branch
      %323 = sbr.rel (0) target = $region133
    $region132: #{spectrogram_cnn_forward.1} parent=1 // pred_region
      %324 = dma.done [#allocation14], 48
    $region133: #{spectrogram_cnn_forward.1} parent=1 // pred_fallthru
      _
    // Predicated region
    $region134: #{spectrogram_cnn_forward.1} parent=1 // pred_check
      _
    $region135: #{spectrogram_cnn_forward.1} parent=1 // pred_check_branch
      %326 = sbr.rel (0) target = $region137
    $region136: #{spectrogram_cnn_forward.1} parent=1 // pred_region
      %327 = dma.done [#allocation14], 48
    $region137: #{spectrogram_cnn_forward.1} parent=1 // pred_fallthru
      _
    // Predicated region
    $region138: #{spectrogram_cnn_forward.1} parent=1 // pred_check
      _
    $region139: #{spectrogram_cnn_forward.1} parent=1 // pred_check_branch
      %329 = sbr.rel (0) target = $region141
    $region140: #{spectrogram_cnn_forward.1} parent=1 // pred_region
      %330 = dma.done [#allocation17], 6144
    $region141: #{spectrogram_cnn_forward.1} parent=1 // pred_fallthru
      _
    // Predicated region
    $region142: #{spectrogram_cnn_forward.1} parent=1 // pred_check
      _
    $region143: #{spectrogram_cnn_forward.1} parent=1 // pred_check_branch
      %332 = sbr.rel (0) target = $region145
    $region144: #{spectrogram_cnn_forward.1} parent=1 // pred_region
      %333 = dma.done [#allocation17], 32
    $region145: #{spectrogram_cnn_forward.1} parent=1 // pred_fallthru
      _
    // Predicated region
    $region146: #{spectrogram_cnn_forward.1} parent=1 // pred_check
      _
    $region147: #{spectrogram_cnn_forward.1} parent=1 // pred_check_branch
      %335 = sbr.rel (0) target = $region149
    $region148: #{spectrogram_cnn_forward.1} parent=1 // pred_region
      %336 = dma.done [#allocation20], 32
    $region149: #{spectrogram_cnn_forward.1} parent=1 // pred_fallthru
      _
    // Predicated region
    $region150: #{spectrogram_cnn_forward.1} parent=1 // pred_check
      _
    $region151: #{spectrogram_cnn_forward.1} parent=1 // pred_check_branch
      %338 = sbr.rel (0) target = $region153
    $region152: #{spectrogram_cnn_forward.1} parent=1 // pred_region
      %339 = dma.done [#allocation20], 8192
    $region153: #{spectrogram_cnn_forward.1} parent=1 // pred_fallthru
      _
    // Predicated region
    $region154: #{spectrogram_cnn_forward.1} parent=1 // pred_check
      _
    $region155: #{spectrogram_cnn_forward.1} parent=1 // pred_check_branch
      %341 = sbr.rel (0) target = $region157
    $region156: #{spectrogram_cnn_forward.1} parent=1 // pred_region
      %342 = dma.done [#allocation23], 64
    $region157: #{spectrogram_cnn_forward.1} parent=1 // pred_fallthru
      _
    // Predicated region
    $region158: #{spectrogram_cnn_forward.1} parent=1 // pred_check
      _
    $region159: #{spectrogram_cnn_forward.1} parent=1 // pred_check_branch
      %344 = sbr.rel (0) target = $region161
    $region160: #{spectrogram_cnn_forward.1} parent=1 // pred_region
      %345 = dma.done [#allocation23], 64
    $region161: #{spectrogram_cnn_forward.1} parent=1 // pred_fallthru
      _
    // Predicated region
    $region162: #{spectrogram_cnn_forward.1} parent=1 // pred_check
      _
    $region163: #{spectrogram_cnn_forward.1} parent=1 // pred_check_branch
      %347 = sbr.rel (0) target = $region165
    $region164: #{spectrogram_cnn_forward.1} parent=1 // pred_region
      %348 = dma.done [#allocation26], 16384
    $region165: #{spectrogram_cnn_forward.1} parent=1 // pred_fallthru
      _
    // Predicated region
    $region166: #{spectrogram_cnn_forward.1} parent=1 // pred_check
      _
    $region167: #{spectrogram_cnn_forward.1} parent=1 // pred_check_branch
      %350 = sbr.rel (0) target = $region169
    $region168: #{spectrogram_cnn_forward.1} parent=1 // pred_region
      %351 = dma.done [#allocation26], 128
    $region169: #{spectrogram_cnn_forward.1} parent=1 // pred_fallthru
      _
    // Predicated region
    $region170: #{spectrogram_cnn_forward.1} parent=1 // pred_check
      _
    $region171: #{spectrogram_cnn_forward.1} parent=1 // pred_check_branch
      %353 = sbr.rel (0) target = $region173
    $region172: #{spectrogram_cnn_forward.1} parent=1 // pred_region
      %354 = dma.done [#allocation29], 128
    $region173: #{spectrogram_cnn_forward.1} parent=1 // pred_fallthru
      _
    // Predicated region
    $region174: #{spectrogram_cnn_forward.1} parent=1 // pred_check
      _
    $region175: #{spectrogram_cnn_forward.1} parent=1 // pred_check_branch
      %356 = sbr.rel (0) target = $region177
    $region176: #{spectrogram_cnn_forward.1} parent=1 // pred_region
      %357 = dma.done [#allocation29], 65536
    $region177: #{spectrogram_cnn_forward.1} parent=1 // pred_fallthru
      _
    // Predicated region
    $region178: #{spectrogram_cnn_forward.1} parent=1 // pred_check
      _
    $region179: #{spectrogram_cnn_forward.1} parent=1 // pred_check_branch
      %359 = sbr.rel (0) target = $region181
    $region180: #{spectrogram_cnn_forward.1} parent=1 // pred_region
      %360 = dma.done [#allocation32], 256
    $region181: #{spectrogram_cnn_forward.1} parent=1 // pred_fallthru
      _
    // Predicated region
    $region182: #{spectrogram_cnn_forward.1} parent=1 // pred_check
      _
    $region183: #{spectrogram_cnn_forward.1} parent=1 // pred_check_branch
      %362 = sbr.rel (0) target = $region185
    $region184: #{spectrogram_cnn_forward.1} parent=1 // pred_region
      %363 = dma.done [#allocation32], 256
    $region185: #{spectrogram_cnn_forward.1} parent=1 // pred_fallthru
      _
    // Predicated region
    $region186: #{spectrogram_cnn_forward.1} parent=1 // pred_check
      _
    $region187: #{spectrogram_cnn_forward.1} parent=1 // pred_check_branch
      %365 = sbr.rel (0) target = $region189
    $region188: #{spectrogram_cnn_forward.1} parent=1 // pred_region
      %366 = dma.done [#allocation35], 16384
    $region189: #{spectrogram_cnn_forward.1} parent=1 // pred_fallthru
      _
    // Predicated region
    $region190: #{spectrogram_cnn_forward.1} parent=1 // pred_check
      _
    $region191: #{spectrogram_cnn_forward.1} parent=1 // pred_check_branch
      %368 = sbr.rel (0) target = $region193
    $region192: #{spectrogram_cnn_forward.1} parent=1 // pred_region
      %369 = dma.done [#allocation35], 128
    $region193: #{spectrogram_cnn_forward.1} parent=1 // pred_fallthru
      _
    // Predicated region
    $region194: #{spectrogram_cnn_forward.1} parent=1 // pred_check
      _
    $region195: #{spectrogram_cnn_forward.1} parent=1 // pred_check_branch
      %371 = sbr.rel (0) target = $region197
    $region196: #{spectrogram_cnn_forward.1} parent=1 // pred_region
      %372 = dma.done [#allocation38], 128
    $region197: #{spectrogram_cnn_forward.1} parent=1 // pred_fallthru
      _
    %v374 = vld [vmem:[%s0] sm:$0xff]
    %v375 = vld [vmem:[#allocation2] sm:$0xff]
    %v376 = vld [vmem:[#allocation2 + $0x8] sm:$0xff]
    %v377 = vld [vmem:[#allocation2 + $0x10] sm:$0xff]
    %v378 = vld [vmem:[#allocation2 + $0x18] sm:$0xff]
    %v379 = vld [vmem:[#allocation2 + $0x20] sm:$0xff]
    %v380 = vld [vmem:[#allocation2 + $0x28] sm:$0xff]
    %v381 = vld [vmem:[#allocation2 + $0x30] sm:$0xff]
    %v382 = vld [vmem:[#allocation2 + $0x38] sm:$0xff]
    %v383 = vld [vmem:[#allocation2 + $0x40] sm:$0xff]
    %v384 = vld [vmem:[#allocation2 + $0x48] sm:$0xff]
    %v385 = vld [vmem:[#allocation2 + $0x50] sm:$0xff]
    %v386 = vld [vmem:[#allocation2 + $0x58] sm:$0xff]
    %v387 = vld [vmem:[#allocation2 + $0x60] sm:$0xff]
    %v388 = vld [vmem:[#allocation2 + $0x68] sm:$0xff]
    %v389 = vld [vmem:[#allocation2 + $0x70] sm:$0xff]
    %v390 = vld [vmem:[#allocation2 + $0x78] sm:$0xff]
    %v391 = vld [vmem:[#allocation2 + $0x80] sm:$0xff]
    %v392 = vld [vmem:[#allocation2 + $0x88] sm:$0xff]
    %v393 = vld [vmem:[#allocation2 + $0x90] sm:$0xff]
    %v394 = vld [vmem:[#allocation2 + $0x98] sm:$0xff]
    %v395 = vld [vmem:[#allocation2 + $0xa0] sm:$0xff]
    %v396 = vld [vmem:[#allocation2 + $0xa8] sm:$0xff]
    %v397 = vld [vmem:[#allocation2 + $0xb0] sm:$0xff]
    %v398 = vld [vmem:[#allocation2 + $0xb8] sm:$0xff]
    %v399 = vld [vmem:[#allocation2 + $0xc0] sm:$0xff]
    %v400 = vld [vmem:[#allocation2 + $0xc8] sm:$0xff]
    %v401 = vld [vmem:[#allocation2 + $0xd0] sm:$0xff]
    %v402 = vld [vmem:[#allocation2 + $0xd8] sm:$0xff]
    %v403 = vld [vmem:[#allocation2 + $0xe0] sm:$0xff]
    %v404 = vld [vmem:[#allocation2 + $0xe8] sm:$0xff]
    %v405 = vld [vmem:[#allocation2 + $0xf0] sm:$0xff]
    %v406 = vld [vmem:[#allocation2 + $0xf8] sm:$0xff]
    %v407 = vld [vmem:[#allocation2 + $0x100] sm:$0xff]
    %v408 = vld [vmem:[#allocation2 + $0x108] sm:$0xff]
    %v409 = vld [vmem:[#allocation2 + $0x110] sm:$0xff]
    %v410 = vld [vmem:[#allocation2 + $0x118] sm:$0xff]
    %v411 = vld [vmem:[#allocation2 + $0x120] sm:$0xff]
    %v412 = vld [vmem:[#allocation2 + $0x128] sm:$0xff]
    %v413 = vld [vmem:[#allocation2 + $0x130] sm:$0xff]
    %v414 = vld [vmem:[#allocation2 + $0x138] sm:$0xff]
    %v415 = vld [vmem:[#allocation2 + $0x140] sm:$0xff]
    %v416 = vld [vmem:[#allocation2 + $0x148] sm:$0xff]
    %v417 = vld [vmem:[#allocation2 + $0x150] sm:$0xff]
    %v418 = vld [vmem:[#allocation2 + $0x158] sm:$0xff]
    %v419 = vld [vmem:[#allocation2 + $0x160] sm:$0xff]
    %v420 = vld [vmem:[#allocation2 + $0x168] sm:$0xff]
    %v421 = vld [vmem:[#allocation2 + $0x170] sm:$0xff]
    %v422 = vld [vmem:[#allocation2 + $0x178] sm:$0xff]
    %v423 = vld [vmem:[#allocation2 + $0x180] sm:$0xff]
    %v424 = vld [vmem:[#allocation2 + $0x188] sm:$0xff]
    %v425 = vld [vmem:[#allocation2 + $0x190] sm:$0xff]
    %v426 = vld [vmem:[#allocation2 + $0x198] sm:$0xff]
    %v427 = vld [vmem:[#allocation2 + $0x1a0] sm:$0xff]
    %v428 = vld [vmem:[#allocation2 + $0x1a8] sm:$0xff]
    %v429 = vld [vmem:[#allocation2 + $0x1b0] sm:$0xff]
    %v430 = vld [vmem:[#allocation2 + $0x1b8] sm:$0xff]
    %v431 = vld [vmem:[#allocation2 + $0x1c0] sm:$0xff]
    %v432 = vld [vmem:[#allocation2 + $0x1c8] sm:$0xff]
    %v433 = vld [vmem:[#allocation2 + $0x1d0] sm:$0xff]
    %v434 = vld [vmem:[#allocation2 + $0x1d8] sm:$0xff]
    %v435 = vld [vmem:[#allocation2 + $0x1e0] sm:$0xff]
    %v436 = vld [vmem:[#allocation2 + $0x1e8] sm:$0xff]
    %v437 = vld [vmem:[#allocation2 + $0x1f0] sm:$0xff]
    %v438 = vld [vmem:[#allocation2 + $0x1f8] sm:$0xff]
    %v440 = vunpack.c.l.b16 %v374
    %v441 = vunpack.c.h.b16 %v374
    %v442 = vpack.c.b16 %v440, %v440
    %v443 = vpack.c.b16 %v441, %v441
    %v510 = vunpack.c.l.b16 %v375
    %v511 = vunpack.c.h.b16 %v375
    %v512 = vunpack.c.l.b16 %v376
    %v513 = vunpack.c.h.b16 %v376
    %v514 = vunpack.c.l.b16 %v377
    %v515 = vunpack.c.h.b16 %v377
    %v516 = vunpack.c.l.b16 %v378
    %v517 = vunpack.c.h.b16 %v378
    %v518 = vunpack.c.l.b16 %v379
    %v519 = vunpack.c.h.b16 %v379
    %v520 = vunpack.c.l.b16 %v380
    %v521 = vunpack.c.h.b16 %v380
    %v522 = vunpack.c.l.b16 %v381
    %v523 = vunpack.c.h.b16 %v381
    %v524 = vunpack.c.l.b16 %v382
    %v525 = vunpack.c.h.b16 %v382
    %v526 = vunpack.c.l.b16 %v383
    %v527 = vunpack.c.h.b16 %v383
    %v528 = vunpack.c.l.b16 %v384
    %v529 = vunpack.c.h.b16 %v384
    %v530 = vunpack.c.l.b16 %v385
    %v531 = vunpack.c.h.b16 %v385
    %v532 = vunpack.c.l.b16 %v386
    %v533 = vunpack.c.h.b16 %v386
    %v534 = vunpack.c.l.b16 %v387
    %v535 = vunpack.c.h.b16 %v387
    %v536 = vunpack.c.l.b16 %v388
    %v537 = vunpack.c.h.b16 %v388
    %v538 = vunpack.c.l.b16 %v389
    %v539 = vunpack.c.h.b16 %v389
    %v540 = vunpack.c.l.b16 %v390
    %v541 = vunpack.c.h.b16 %v390
    %v542 = vunpack.c.l.b16 %v391
    %v543 = vunpack.c.h.b16 %v391
    %v544 = vunpack.c.l.b16 %v392
    %v545 = vunpack.c.h.b16 %v392
    %v546 = vunpack.c.l.b16 %v393
    %v547 = vunpack.c.h.b16 %v393
    %v548 = vunpack.c.l.b16 %v394
    %v549 = vunpack.c.h.b16 %v394
    %v550 = vunpack.c.l.b16 %v395
    %v551 = vunpack.c.h.b16 %v395
    %v552 = vunpack.c.l.b16 %v396
    %v553 = vunpack.c.h.b16 %v396
    %v554 = vunpack.c.l.b16 %v397
    %v555 = vunpack.c.h.b16 %v397
    %v556 = vunpack.c.l.b16 %v398
    %v557 = vunpack.c.h.b16 %v398
    %v558 = vunpack.c.l.b16 %v399
    %v559 = vunpack.c.h.b16 %v399
    %v560 = vunpack.c.l.b16 %v400
    %v561 = vunpack.c.h.b16 %v400
    %v562 = vunpack.c.l.b16 %v401
    %v563 = vunpack.c.h.b16 %v401
    %v564 = vunpack.c.l.b16 %v402
    %v565 = vunpack.c.h.b16 %v402
    %v566 = vunpack.c.l.b16 %v403
    %v567 = vunpack.c.h.b16 %v403
    %v568 = vunpack.c.l.b16 %v404
    %v569 = vunpack.c.h.b16 %v404
    %v570 = vunpack.c.l.b16 %v405
    %v571 = vunpack.c.h.b16 %v405
    %v572 = vunpack.c.l.b16 %v406
    %v573 = vunpack.c.h.b16 %v406
    %v574 = vunpack.c.l.b16 %v407
    %v575 = vunpack.c.h.b16 %v407
    %v576 = vunpack.c.l.b16 %v408
    %v577 = vunpack.c.h.b16 %v408
    %v578 = vunpack.c.l.b16 %v409
    %v579 = vunpack.c.h.b16 %v409
    %v580 = vunpack.c.l.b16 %v410
    %v581 = vunpack.c.h.b16 %v410
    %v582 = vunpack.c.l.b16 %v411
    %v583 = vunpack.c.h.b16 %v411
    %v584 = vunpack.c.l.b16 %v412
    %v585 = vunpack.c.h.b16 %v412
    %v586 = vunpack.c.l.b16 %v413
    %v587 = vunpack.c.h.b16 %v413
    %v588 = vunpack.c.l.b16 %v414
    %v589 = vunpack.c.h.b16 %v414
    %v590 = vunpack.c.l.b16 %v415
    %v591 = vunpack.c.h.b16 %v415
    %v592 = vunpack.c.l.b16 %v416
    %v593 = vunpack.c.h.b16 %v416
    %v594 = vunpack.c.l.b16 %v417
    %v595 = vunpack.c.h.b16 %v417
    %v596 = vunpack.c.l.b16 %v418
    %v597 = vunpack.c.h.b16 %v418
    %v598 = vunpack.c.l.b16 %v419
    %v599 = vunpack.c.h.b16 %v419
    %v600 = vunpack.c.l.b16 %v420
    %v601 = vunpack.c.h.b16 %v420
    %v602 = vunpack.c.l.b16 %v421
    %v603 = vunpack.c.h.b16 %v421
    %v604 = vunpack.c.l.b16 %v422
    %v605 = vunpack.c.h.b16 %v422
    %v606 = vunpack.c.l.b16 %v423
    %v607 = vunpack.c.h.b16 %v423
    %v608 = vunpack.c.l.b16 %v424
    %v609 = vunpack.c.h.b16 %v424
    %v610 = vunpack.c.l.b16 %v425
    %v611 = vunpack.c.h.b16 %v425
    %v612 = vunpack.c.l.b16 %v426
    %v613 = vunpack.c.h.b16 %v426
    %v614 = vunpack.c.l.b16 %v427
    %v615 = vunpack.c.h.b16 %v427
    %v616 = vunpack.c.l.b16 %v428
    %v617 = vunpack.c.h.b16 %v428
    %v618 = vunpack.c.l.b16 %v429
    %v619 = vunpack.c.h.b16 %v429
    %v620 = vunpack.c.l.b16 %v430
    %v621 = vunpack.c.h.b16 %v430
    %v622 = vunpack.c.l.b16 %v431
    %v623 = vunpack.c.h.b16 %v431
    %v624 = vunpack.c.l.b16 %v432
    %v625 = vunpack.c.h.b16 %v432
    %v626 = vunpack.c.l.b16 %v433
    %v627 = vunpack.c.h.b16 %v433
    %v628 = vunpack.c.l.b16 %v434
    %v629 = vunpack.c.h.b16 %v434
    %v630 = vunpack.c.l.b16 %v435
    %v631 = vunpack.c.h.b16 %v435
    %v632 = vunpack.c.l.b16 %v436
    %v633 = vunpack.c.h.b16 %v436
    %v634 = vunpack.c.l.b16 %v437
    %v635 = vunpack.c.h.b16 %v437
    %v636 = vunpack.c.l.b16 %v438
    %v637 = vunpack.c.h.b16 %v438
    %v638 = vpack.c.b16 %v514, %v510
    %v639 = vpack.c.b16 %v515, %v511
    %v640 = vpack.c.b16 %v516, %v512
    %v641 = vpack.c.b16 %v517, %v513
    %v642 = vpack.c.b16 %v522, %v518
    %v643 = vpack.c.b16 %v523, %v519
    %v644 = vpack.c.b16 %v524, %v520
    %v645 = vpack.c.b16 %v525, %v521
    %v646 = vpack.c.b16 %v530, %v526
    %v647 = vpack.c.b16 %v531, %v527
    %v648 = vpack.c.b16 %v532, %v528
    %v649 = vpack.c.b16 %v533, %v529
    %v650 = vpack.c.b16 %v538, %v534
    %v651 = vpack.c.b16 %v539, %v535
    %v652 = vpack.c.b16 %v540, %v536
    %v653 = vpack.c.b16 %v541, %v537
    %v654 = vpack.c.b16 %v546, %v542
    %v655 = vpack.c.b16 %v547, %v543
    %v656 = vpack.c.b16 %v548, %v544
    %v657 = vpack.c.b16 %v549, %v545
    %v658 = vpack.c.b16 %v554, %v550
    %v659 = vpack.c.b16 %v555, %v551
    %v660 = vpack.c.b16 %v556, %v552
    %v661 = vpack.c.b16 %v557, %v553
    %v662 = vpack.c.b16 %v562, %v558
    %v663 = vpack.c.b16 %v563, %v559
    %v664 = vpack.c.b16 %v564, %v560
    %v665 = vpack.c.b16 %v565, %v561
    %v666 = vpack.c.b16 %v570, %v566
    %v667 = vpack.c.b16 %v571, %v567
    %v668 = vpack.c.b16 %v572, %v568
    %v669 = vpack.c.b16 %v573, %v569
    %v670 = vpack.c.b16 %v578, %v574
    %v671 = vpack.c.b16 %v579, %v575
    %v672 = vpack.c.b16 %v580, %v576
    %v673 = vpack.c.b16 %v581, %v577
    %v674 = vpack.c.b16 %v586, %v582
    %v675 = vpack.c.b16 %v587, %v583
    %v676 = vpack.c.b16 %v588, %v584
    %v677 = vpack.c.b16 %v589, %v585
    %v678 = vpack.c.b16 %v594, %v590
    %v679 = vpack.c.b16 %v595, %v591
    %v680 = vpack.c.b16 %v596, %v592
    %v681 = vpack.c.b16 %v597, %v593
    %v682 = vpack.c.b16 %v602, %v598
    %v683 = vpack.c.b16 %v603, %v599
    %v684 = vpack.c.b16 %v604, %v600
    %v685 = vpack.c.b16 %v605, %v601
    %v686 = vpack.c.b16 %v610, %v606
    %v687 = vpack.c.b16 %v611, %v607
    %v688 = vpack.c.b16 %v612, %v608
    %v689 = vpack.c.b16 %v613, %v609
    %v690 = vpack.c.b16 %v618, %v614
    %v691 = vpack.c.b16 %v619, %v615
    %v692 = vpack.c.b16 %v620, %v616
    %v693 = vpack.c.b16 %v621, %v617
    %v694 = vpack.c.b16 %v626, %v622
    %v695 = vpack.c.b16 %v627, %v623
    %v696 = vpack.c.b16 %v628, %v624
    %v697 = vpack.c.b16 %v629, %v625
    %v698 = vpack.c.b16 %v634, %v630
    %v699 = vpack.c.b16 %v635, %v631
    %v700 = vpack.c.b16 %v636, %v632
    %v701 = vpack.c.b16 %v637, %v633
    %766 = vmatprep.subr.bf16.mxu0 %v667
    %767 = vmatpush1.bf16.msra.mxu0 %v666
    %768 = vmatprep.subr.bf16.mxu0 %v663
    %769 = vmatpush1.bf16.msra.mxu0 %v662
    %770 = vmatprep.subr.bf16.mxu0 %v659
    %771 = vmatpush1.bf16.msra.mxu0 %v658
    %772 = vmatprep.subr.bf16.mxu0 %v655
    %773 = vmatpush1.bf16.msra.mxu0 %v654
    %774 = vmatprep.subr.bf16.mxu0 %v651
    %775 = vmatpush1.bf16.msra.mxu0 %v650
    %776 = vmatprep.subr.bf16.mxu0 %v647
    %777 = vmatpush1.bf16.msra.mxu0 %v646
    %778 = vmatprep.subr.bf16.mxu0 %v643
    %779 = vmatpush1.bf16.msra.mxu0 %v642
    %780 = vmatprep.subr.bf16.mxu0 %v639
    %781 = vmatpush1.bf16.msra.mxu0 %v638
    %782 = vmatprep.subr.bf16.mxu0 %v699
    %783 = vmatpush2.bf16.msra.mxu0 %v698
    %784 = vmatprep.subr.bf16.mxu0 %v695
    %785 = vmatpush2.bf16.msra.mxu0 %v694
    %786 = vmatprep.subr.bf16.mxu0 %v691
    %787 = vmatpush2.bf16.msra.mxu0 %v690
    %788 = vmatprep.subr.bf16.mxu0 %v687
    %789 = vmatpush2.bf16.msra.mxu0 %v686
    %790 = vmatprep.subr.bf16.mxu0 %v683
    %791 = vmatpush2.bf16.msra.mxu0 %v682
    %792 = vmatprep.subr.bf16.mxu0 %v679
    %793 = vmatpush2.bf16.msra.mxu0 %v678
    %794 = vmatprep.subr.bf16.mxu0 %v675
    %795 = vmatpush2.bf16.msra.mxu0 %v674
    %796 = vmatprep.subr.bf16.mxu0 %v671
    %797 = vmatpush2.bf16.msra.mxu0 %v670
    %798 = vmatprep.mubr.bf16.mxu0 %v443
    %799 = vmatmul.mubr.bf16.gmra.mxu0 %v442
    %v800 = vpop.f32.mrf.mxu0
    %v801 = vadd.f32 0.0, %v800
    %v802 = vpop.f32.mrf.mxu0
    %v803 = vadd.f32 0.0, %v802
    %v804 = vpop.f32.mrf.mxu0
    %v805 = vpop.f32.mrf.mxu0
    %806 = vdwg.mxu0
    %807 = vmatprep.subr.bf16.mxu0 %v669
    %808 = vmatpush1.bf16.msra.mxu0 %v668
    %809 = vmatprep.subr.bf16.mxu0 %v665
    %810 = vmatpush1.bf16.msra.mxu0 %v664
    %811 = vmatprep.subr.bf16.mxu0 %v661
    %812 = vmatpush1.bf16.msra.mxu0 %v660
    %813 = vmatprep.subr.bf16.mxu0 %v657
    %814 = vmatpush1.bf16.msra.mxu0 %v656
    %815 = vmatprep.subr.bf16.mxu0 %v653
    %816 = vmatpush1.bf16.msra.mxu0 %v652
    %817 = vmatprep.subr.bf16.mxu0 %v649
    %818 = vmatpush1.bf16.msra.mxu0 %v648
    %819 = vmatprep.subr.bf16.mxu0 %v645
    %820 = vmatpush1.bf16.msra.mxu0 %v644
    %821 = vmatprep.subr.bf16.mxu0 %v641
    %822 = vmatpush1.bf16.msra.mxu0 %v640
    %823 = vmatprep.subr.bf16.mxu0 %v701
    %824 = vmatpush2.bf16.msra.mxu0 %v700
    %825 = vmatprep.subr.bf16.mxu0 %v697
    %826 = vmatpush2.bf16.msra.mxu0 %v696
    %827 = vmatprep.subr.bf16.mxu0 %v693
    %828 = vmatpush2.bf16.msra.mxu0 %v692
    %829 = vmatprep.subr.bf16.mxu0 %v689
    %830 = vmatpush2.bf16.msra.mxu0 %v688
    %831 = vmatprep.subr.bf16.mxu0 %v685
    %832 = vmatpush2.bf16.msra.mxu0 %v684
    %833 = vmatprep.subr.bf16.mxu0 %v681
    %834 = vmatpush2.bf16.msra.mxu0 %v680
    %835 = vmatprep.subr.bf16.mxu0 %v677
    %836 = vmatpush2.bf16.msra.mxu0 %v676
    %837 = vmatprep.subr.bf16.mxu0 %v673
    %838 = vmatpush2.bf16.msra.mxu0 %v672
    %839 = vmatprep.mubr.bf16.mxu0 %v443
    %840 = vmatmul.mubr.bf16.gmra.mxu0 %v442
    %v841 = vpop.f32.mrf.mxu0
    %v842 = vadd.f32 0.0, %v841
    %v843 = vpop.f32.mrf.mxu0
    %v844 = vadd.f32 0.0, %v843
    %v845 = vpop.f32.mrf.mxu0
    %v846 = vpop.f32.mrf.mxu0
    %847 = vdwg.mxu0
    %v848 = vld [vmem:[#allocation4] sm:$0xf]
    %v850 = vlaneseq
    %v851 = vshrl.u32 %v850, 7
    %v852 = vsub.s32 0, %v851
    %v853 = vrot.slane %v848, %v852
    %v854 = vlaneseq
    %v855 = vshrl.u32 %v854, 7
    %v856 = vsub.s32 1, %v855
    %v857 = vrot.slane %v848, %v856
    %v858 = vlaneseq
    %v859 = vshrl.u32 %v858, 7
    %v860 = vsub.s32 2, %v859
    %v861 = vrot.slane %v848, %v860
    %v862 = vlaneseq
    %v863 = vshrl.u32 %v862, 7
    %v864 = vsub.s32 3, %v863
    %v865 = vrot.slane %v848, %v864
    %v870 = vmul.f32 %v801, %v853
    %v871 = vmul.f32 %v803, %v857
    %v872 = vmul.f32 %v842, %v861
    %v873 = vmul.f32 %v844, %v865
    %v874 = vld [vmem:[#allocation6] sm:$0xf]
    %v876 = vlaneseq
    %v877 = vshrl.u32 %v876, 7
    %v878 = vsub.s32 0, %v877
    %v879 = vrot.slane %v874, %v878
    %v880 = vlaneseq
    %v881 = vshrl.u32 %v880, 7
    %v882 = vsub.s32 1, %v881
    %v883 = vrot.slane %v874, %v882
    %v884 = vlaneseq
    %v885 = vshrl.u32 %v884, 7
    %v886 = vsub.s32 2, %v885
    %v887 = vrot.slane %v874, %v886
    %v888 = vlaneseq
    %v889 = vshrl.u32 %v888, 7
    %v890 = vsub.s32 3, %v889
    %v891 = vrot.slane %v874, %v890
    %v896 = vadd.f32 %v870, %v879
    %v897 = vadd.f32 %v871, %v883
    %v898 = vadd.f32 %v872, %v887
    %v899 = vadd.f32 %v873, %v891
    %v900 = vmul.f32 %v896, 0.1
    %v901 = vmul.f32 %v897, 0.1
    %v902 = vmul.f32 %v898, 0.1
    %v903 = vmul.f32 %v899, 0.1
    %v904 = vmax.f32 %v896, %v900
    %v905 = vmax.f32 %v897, %v901
    %v906 = vmax.f32 %v898, %v902
    %v907 = vmax.f32 %v899, %v903
    %v908 = vpack.c.bf16 %v904, %v904
    %v909 = vpack.c.bf16 %v905, %v905
    %v910 = vpack.c.bf16 %v906, %v906
    %v911 = vpack.c.bf16 %v907, %v907
    %v912 = vld [vmem:[#allocation7] sm:$0xff]
    %v913 = vld [vmem:[#allocation7 + $0x8] sm:$0xff]
    %v914 = vld [vmem:[#allocation7 + $0x10] sm:$0xff]
    %v915 = vld [vmem:[#allocation7 + $0x18] sm:$0xff]
    %v916 = vld [vmem:[#allocation7 + $0x20] sm:$0xff]
    %v917 = vld [vmem:[#allocation7 + $0x28] sm:$0xff]
    %v918 = vld [vmem:[#allocation7 + $0x30] sm:$0xff]
    %v919 = vld [vmem:[#allocation7 + $0x38] sm:$0xff]
    %v920 = vld [vmem:[#allocation7 + $0x40] sm:$0xff]
    %v921 = vld [vmem:[#allocation7 + $0x48] sm:$0xff]
    %v922 = vld [vmem:[#allocation7 + $0x50] sm:$0xff]
    %v923 = vld [vmem:[#allocation7 + $0x58] sm:$0xff]
    %v924 = vld [vmem:[#allocation7 + $0x60] sm:$0xff]
    %v925 = vld [vmem:[#allocation7 + $0x68] sm:$0xff]
    %v926 = vld [vmem:[#allocation7 + $0x70] sm:$0xff]
    %v927 = vld [vmem:[#allocation7 + $0x78] sm:$0xff]
    %v928 = vld [vmem:[#allocation7 + $0x80] sm:$0xff]
    %v929 = vld [vmem:[#allocation7 + $0x88] sm:$0xff]
    %v930 = vld [vmem:[#allocation7 + $0x90] sm:$0xff]
    %v931 = vld [vmem:[#allocation7 + $0x98] sm:$0xff]
    %v932 = vld [vmem:[#allocation7 + $0xa0] sm:$0xff]
    %v933 = vld [vmem:[#allocation7 + $0xa8] sm:$0xff]
    %v934 = vld [vmem:[#allocation7 + $0xb0] sm:$0xff]
    %v935 = vld [vmem:[#allocation7 + $0xb8] sm:$0xff]
    %v936 = vld [vmem:[#allocation7 + $0xc0] sm:$0xff]
    %v937 = vld [vmem:[#allocation7 + $0xc8] sm:$0xff]
    %v938 = vld [vmem:[#allocation7 + $0xd0] sm:$0xff]
    %v939 = vld [vmem:[#allocation7 + $0xd8] sm:$0xff]
    %v940 = vld [vmem:[#allocation7 + $0xe0] sm:$0xff]
    %v941 = vld [vmem:[#allocation7 + $0xe8] sm:$0xff]
    %v942 = vld [vmem:[#allocation7 + $0xf0] sm:$0xff]
    %v943 = vld [vmem:[#allocation7 + $0xf8] sm:$0xff]
    %v944 = vld [vmem:[#allocation7 + $0x100] sm:$0xff]
    %v945 = vld [vmem:[#allocation7 + $0x108] sm:$0xff]
    %v946 = vld [vmem:[#allocation7 + $0x110] sm:$0xff]
    %v947 = vld [vmem:[#allocation7 + $0x118] sm:$0xff]
    %v948 = vld [vmem:[#allocation7 + $0x120] sm:$0xff]
    %v949 = vld [vmem:[#allocation7 + $0x128] sm:$0xff]
    %v950 = vld [vmem:[#allocation7 + $0x130] sm:$0xff]
    %v951 = vld [vmem:[#allocation7 + $0x138] sm:$0xff]
    %v952 = vld [vmem:[#allocation7 + $0x140] sm:$0xff]
    %v953 = vld [vmem:[#allocation7 + $0x148] sm:$0xff]
    %v954 = vld [vmem:[#allocation7 + $0x150] sm:$0xff]
    %v955 = vld [vmem:[#allocation7 + $0x158] sm:$0xff]
    %v956 = vld [vmem:[#allocation7 + $0x160] sm:$0xff]
    %v957 = vld [vmem:[#allocation7 + $0x168] sm:$0xff]
    %v958 = vld [vmem:[#allocation7 + $0x170] sm:$0xff]
    %v959 = vld [vmem:[#allocation7 + $0x178] sm:$0xff]
    %v960 = vld [vmem:[#allocation7 + $0x180] sm:$0xff]
    %v961 = vld [vmem:[#allocation7 + $0x188] sm:$0xff]
    %v962 = vld [vmem:[#allocation7 + $0x190] sm:$0xff]
    %v963 = vld [vmem:[#allocation7 + $0x198] sm:$0xff]
    %v964 = vld [vmem:[#allocation7 + $0x1a0] sm:$0xff]
    %v965 = vld [vmem:[#allocation7 + $0x1a8] sm:$0xff]
    %v966 = vld [vmem:[#allocation7 + $0x1b0] sm:$0xff]
    %v967 = vld [vmem:[#allocation7 + $0x1b8] sm:$0xff]
    %v968 = vld [vmem:[#allocation7 + $0x1c0] sm:$0xff]
    %v969 = vld [vmem:[#allocation7 + $0x1c8] sm:$0xff]
    %v970 = vld [vmem:[#allocation7 + $0x1d0] sm:$0xff]
    %v971 = vld [vmem:[#allocation7 + $0x1d8] sm:$0xff]
    %v972 = vld [vmem:[#allocation7 + $0x1e0] sm:$0xff]
    %v973 = vld [vmem:[#allocation7 + $0x1e8] sm:$0xff]
    %v974 = vld [vmem:[#allocation7 + $0x1f0] sm:$0xff]
    %v975 = vld [vmem:[#allocation7 + $0x1f8] sm:$0xff]
    %v976 = vld [vmem:[#allocation7 + $0x200] sm:$0xff]
    %v977 = vld [vmem:[#allocation7 + $0x208] sm:$0xff]
    %v978 = vld [vmem:[#allocation7 + $0x210] sm:$0xff]
    %v979 = vld [vmem:[#allocation7 + $0x218] sm:$0xff]
    %v980 = vld [vmem:[#allocation7 + $0x220] sm:$0xff]
    %v981 = vld [vmem:[#allocation7 + $0x228] sm:$0xff]
    %v982 = vld [vmem:[#allocation7 + $0x230] sm:$0xff]
    %v983 = vld [vmem:[#allocation7 + $0x238] sm:$0xff]
    %v984 = vld [vmem:[#allocation7 + $0x240] sm:$0xff]
    %v985 = vld [vmem:[#allocation7 + $0x248] sm:$0xff]
    %v986 = vld [vmem:[#allocation7 + $0x250] sm:$0xff]
    %v987 = vld [vmem:[#allocation7 + $0x258] sm:$0xff]
    %v988 = vld [vmem:[#allocation7 + $0x260] sm:$0xff]
    %v989 = vld [vmem:[#allocation7 + $0x268] sm:$0xff]
    %v990 = vld [vmem:[#allocation7 + $0x270] sm:$0xff]
    %v991 = vld [vmem:[#allocation7 + $0x278] sm:$0xff]
    %v992 = vld [vmem:[#allocation7 + $0x280] sm:$0xff]
    %v993 = vld [vmem:[#allocation7 + $0x288] sm:$0xff]
    %v994 = vld [vmem:[#allocation7 + $0x290] sm:$0xff]
    %v995 = vld [vmem:[#allocation7 + $0x298] sm:$0xff]
    %v996 = vld [vmem:[#allocation7 + $0x2a0] sm:$0xff]
    %v997 = vld [vmem:[#allocation7 + $0x2a8] sm:$0xff]
    %v998 = vld [vmem:[#allocation7 + $0x2b0] sm:$0xff]
    %v999 = vld [vmem:[#allocation7 + $0x2b8] sm:$0xff]
    %v1000 = vld [vmem:[#allocation7 + $0x2c0] sm:$0xff]
    %v1001 = vld [vmem:[#allocation7 + $0x2c8] sm:$0xff]
    %v1002 = vld [vmem:[#allocation7 + $0x2d0] sm:$0xff]
    %v1003 = vld [vmem:[#allocation7 + $0x2d8] sm:$0xff]
    %v1004 = vld [vmem:[#allocation7 + $0x2e0] sm:$0xff]
    %v1005 = vld [vmem:[#allocation7 + $0x2e8] sm:$0xff]
    %v1006 = vld [vmem:[#allocation7 + $0x2f0] sm:$0xff]
    %v1007 = vld [vmem:[#allocation7 + $0x2f8] sm:$0xff]
    %v1008 = vld [vmem:[#allocation7 + $0x300] sm:$0xff]
    %v1009 = vld [vmem:[#allocation7 + $0x308] sm:$0xff]
    %v1010 = vld [vmem:[#allocation7 + $0x310] sm:$0xff]
    %v1011 = vld [vmem:[#allocation7 + $0x318] sm:$0xff]
    %v1012 = vld [vmem:[#allocation7 + $0x320] sm:$0xff]
    %v1013 = vld [vmem:[#allocation7 + $0x328] sm:$0xff]
    %v1014 = vld [vmem:[#allocation7 + $0x330] sm:$0xff]
    %v1015 = vld [vmem:[#allocation7 + $0x338] sm:$0xff]
    %v1016 = vld [vmem:[#allocation7 + $0x340] sm:$0xff]
    %v1017 = vld [vmem:[#allocation7 + $0x348] sm:$0xff]
    %v1018 = vld [vmem:[#allocation7 + $0x350] sm:$0xff]
    %v1019 = vld [vmem:[#allocation7 + $0x358] sm:$0xff]
    %v1020 = vld [vmem:[#allocation7 + $0x360] sm:$0xff]
    %v1021 = vld [vmem:[#allocation7 + $0x368] sm:$0xff]
    %v1022 = vld [vmem:[#allocation7 + $0x370] sm:$0xff]
    %v1023 = vld [vmem:[#allocation7 + $0x378] sm:$0xff]
    %v1024 = vld [vmem:[#allocation7 + $0x380] sm:$0xff]
    %v1025 = vld [vmem:[#allocation7 + $0x388] sm:$0xff]
    %v1026 = vld [vmem:[#allocation7 + $0x390] sm:$0xff]
    %v1027 = vld [vmem:[#allocation7 + $0x398] sm:$0xff]
    %v1028 = vld [vmem:[#allocation7 + $0x3a0] sm:$0xff]
    %v1029 = vld [vmem:[#allocation7 + $0x3a8] sm:$0xff]
    %v1030 = vld [vmem:[#allocation7 + $0x3b0] sm:$0xff]
    %v1031 = vld [vmem:[#allocation7 + $0x3b8] sm:$0xff]
    %v1032 = vld [vmem:[#allocation7 + $0x3c0] sm:$0xff]
    %v1033 = vld [vmem:[#allocation7 + $0x3c8] sm:$0xff]
    %v1034 = vld [vmem:[#allocation7 + $0x3d0] sm:$0xff]
    %v1035 = vld [vmem:[#allocation7 + $0x3d8] sm:$0xff]
    %v1036 = vld [vmem:[#allocation7 + $0x3e0] sm:$0xff]
    %v1037 = vld [vmem:[#allocation7 + $0x3e8] sm:$0xff]
    %v1038 = vld [vmem:[#allocation7 + $0x3f0] sm:$0xff]
    %v1039 = vld [vmem:[#allocation7 + $0x3f8] sm:$0xff]
    %v1168 = vunpack.c.l.b16 %v912
    %v1169 = vunpack.c.h.b16 %v912
    %v1170 = vunpack.c.l.b16 %v913
    %v1171 = vunpack.c.h.b16 %v913
    %v1172 = vunpack.c.l.b16 %v914
    %v1173 = vunpack.c.h.b16 %v914
    %v1174 = vunpack.c.l.b16 %v915
    %v1175 = vunpack.c.h.b16 %v915
    %v1176 = vunpack.c.l.b16 %v916
    %v1177 = vunpack.c.h.b16 %v916
    %v1178 = vunpack.c.l.b16 %v917
    %v1179 = vunpack.c.h.b16 %v917
    %v1180 = vunpack.c.l.b16 %v918
    %v1181 = vunpack.c.h.b16 %v918
    %v1182 = vunpack.c.l.b16 %v919
    %v1183 = vunpack.c.h.b16 %v919
    %v1184 = vunpack.c.l.b16 %v920
    %v1185 = vunpack.c.h.b16 %v920
    %v1186 = vunpack.c.l.b16 %v921
    %v1187 = vunpack.c.h.b16 %v921
    %v1188 = vunpack.c.l.b16 %v922
    %v1189 = vunpack.c.h.b16 %v922
    %v1190 = vunpack.c.l.b16 %v923
    %v1191 = vunpack.c.h.b16 %v923
    %v1192 = vunpack.c.l.b16 %v924
    %v1193 = vunpack.c.h.b16 %v924
    %v1194 = vunpack.c.l.b16 %v925
    %v1195 = vunpack.c.h.b16 %v925
    %v1196 = vunpack.c.l.b16 %v926
    %v1197 = vunpack.c.h.b16 %v926
    %v1198 = vunpack.c.l.b16 %v927
    %v1199 = vunpack.c.h.b16 %v927
    %v1200 = vunpack.c.l.b16 %v928
    %v1201 = vunpack.c.h.b16 %v928
    %v1202 = vunpack.c.l.b16 %v929
    %v1203 = vunpack.c.h.b16 %v929
    %v1204 = vunpack.c.l.b16 %v930
    %v1205 = vunpack.c.h.b16 %v930
    %v1206 = vunpack.c.l.b16 %v931
    %v1207 = vunpack.c.h.b16 %v931
    %v1208 = vunpack.c.l.b16 %v932
    %v1209 = vunpack.c.h.b16 %v932
    %v1210 = vunpack.c.l.b16 %v933
    %v1211 = vunpack.c.h.b16 %v933
    %v1212 = vunpack.c.l.b16 %v934
    %v1213 = vunpack.c.h.b16 %v934
    %v1214 = vunpack.c.l.b16 %v935
    %v1215 = vunpack.c.h.b16 %v935
    %v1216 = vunpack.c.l.b16 %v936
    %v1217 = vunpack.c.h.b16 %v936
    %v1218 = vunpack.c.l.b16 %v937
    %v1219 = vunpack.c.h.b16 %v937
    %v1220 = vunpack.c.l.b16 %v938
    %v1221 = vunpack.c.h.b16 %v938
    %v1222 = vunpack.c.l.b16 %v939
    %v1223 = vunpack.c.h.b16 %v939
    %v1224 = vunpack.c.l.b16 %v940
    %v1225 = vunpack.c.h.b16 %v940
    %v1226 = vunpack.c.l.b16 %v941
    %v1227 = vunpack.c.h.b16 %v941
    %v1228 = vunpack.c.l.b16 %v942
    %v1229 = vunpack.c.h.b16 %v942
    %v1230 = vunpack.c.l.b16 %v943
    %v1231 = vunpack.c.h.b16 %v943
    %v1232 = vunpack.c.l.b16 %v944
    %v1233 = vunpack.c.h.b16 %v944
    %v1234 = vunpack.c.l.b16 %v945
    %v1235 = vunpack.c.h.b16 %v945
    %v1236 = vunpack.c.l.b16 %v946
    %v1237 = vunpack.c.h.b16 %v946
    %v1238 = vunpack.c.l.b16 %v947
    %v1239 = vunpack.c.h.b16 %v947
    %v1240 = vunpack.c.l.b16 %v948
    %v1241 = vunpack.c.h.b16 %v948
    %v1242 = vunpack.c.l.b16 %v949
    %v1243 = vunpack.c.h.b16 %v949
    %v1244 = vunpack.c.l.b16 %v950
    %v1245 = vunpack.c.h.b16 %v950
    %v1246 = vunpack.c.l.b16 %v951
    %v1247 = vunpack.c.h.b16 %v951
    %v1248 = vunpack.c.l.b16 %v952
    %v1249 = vunpack.c.h.b16 %v952
    %v1250 = vunpack.c.l.b16 %v953
    %v1251 = vunpack.c.h.b16 %v953
    %v1252 = vunpack.c.l.b16 %v954
    %v1253 = vunpack.c.h.b16 %v954
    %v1254 = vunpack.c.l.b16 %v955
    %v1255 = vunpack.c.h.b16 %v955
    %v1256 = vunpack.c.l.b16 %v956
    %v1257 = vunpack.c.h.b16 %v956
    %v1258 = vunpack.c.l.b16 %v957
    %v1259 = vunpack.c.h.b16 %v957
    %v1260 = vunpack.c.l.b16 %v958
    %v1261 = vunpack.c.h.b16 %v958
    %v1262 = vunpack.c.l.b16 %v959
    %v1263 = vunpack.c.h.b16 %v959
    %v1264 = vunpack.c.l.b16 %v960
    %v1265 = vunpack.c.h.b16 %v960
    %v1266 = vunpack.c.l.b16 %v961
    %v1267 = vunpack.c.h.b16 %v961
    %v1268 = vunpack.c.l.b16 %v962
    %v1269 = vunpack.c.h.b16 %v962
    %v1270 = vunpack.c.l.b16 %v963
    %v1271 = vunpack.c.h.b16 %v963
    %v1272 = vunpack.c.l.b16 %v964
    %v1273 = vunpack.c.h.b16 %v964
    %v1274 = vunpack.c.l.b16 %v965
    %v1275 = vunpack.c.h.b16 %v965
    %v1276 = vunpack.c.l.b16 %v966
    %v1277 = vunpack.c.h.b16 %v966
    %v1278 = vunpack.c.l.b16 %v967
    %v1279 = vunpack.c.h.b16 %v967
    %v1280 = vunpack.c.l.b16 %v968
    %v1281 = vunpack.c.h.b16 %v968
    %v1282 = vunpack.c.l.b16 %v969
    %v1283 = vunpack.c.h.b16 %v969
    %v1284 = vunpack.c.l.b16 %v970
    %v1285 = vunpack.c.h.b16 %v970
    %v1286 = vunpack.c.l.b16 %v971
    %v1287 = vunpack.c.h.b16 %v971
    %v1288 = vunpack.c.l.b16 %v972
    %v1289 = vunpack.c.h.b16 %v972
    %v1290 = vunpack.c.l.b16 %v973
    %v1291 = vunpack.c.h.b16 %v973
    %v1292 = vunpack.c.l.b16 %v974
    %v1293 = vunpack.c.h.b16 %v974
    %v1294 = vunpack.c.l.b16 %v975
    %v1295 = vunpack.c.h.b16 %v975
    %v1296 = vunpack.c.l.b16 %v976
    %v1297 = vunpack.c.h.b16 %v976
    %v1298 = vunpack.c.l.b16 %v977
    %v1299 = vunpack.c.h.b16 %v977
    %v1300 = vunpack.c.l.b16 %v978
    %v1301 = vunpack.c.h.b16 %v978
    %v1302 = vunpack.c.l.b16 %v979
    %v1303 = vunpack.c.h.b16 %v979
    %v1304 = vunpack.c.l.b16 %v980
    %v1305 = vunpack.c.h.b16 %v980
    %v1306 = vunpack.c.l.b16 %v981
    %v1307 = vunpack.c.h.b16 %v981
    %v1308 = vunpack.c.l.b16 %v982
    %v1309 = vunpack.c.h.b16 %v982
    %v1310 = vunpack.c.l.b16 %v983
    %v1311 = vunpack.c.h.b16 %v983
    %v1312 = vunpack.c.l.b16 %v984
    %v1313 = vunpack.c.h.b16 %v984
    %v1314 = vunpack.c.l.b16 %v985
    %v1315 = vunpack.c.h.b16 %v985
    %v1316 = vunpack.c.l.b16 %v986
    %v1317 = vunpack.c.h.b16 %v986
    %v1318 = vunpack.c.l.b16 %v987
    %v1319 = vunpack.c.h.b16 %v987
    %v1320 = vunpack.c.l.b16 %v988
    %v1321 = vunpack.c.h.b16 %v988
    %v1322 = vunpack.c.l.b16 %v989
    %v1323 = vunpack.c.h.b16 %v989
    %v1324 = vunpack.c.l.b16 %v990
    %v1325 = vunpack.c.h.b16 %v990
    %v1326 = vunpack.c.l.b16 %v991
    %v1327 = vunpack.c.h.b16 %v991
    %v1328 = vunpack.c.l.b16 %v992
    %v1329 = vunpack.c.h.b16 %v992
    %v1330 = vunpack.c.l.b16 %v993
    %v1331 = vunpack.c.h.b16 %v993
    %v1332 = vunpack.c.l.b16 %v994
    %v1333 = vunpack.c.h.b16 %v994
    %v1334 = vunpack.c.l.b16 %v995
    %v1335 = vunpack.c.h.b16 %v995
    %v1336 = vunpack.c.l.b16 %v996
    %v1337 = vunpack.c.h.b16 %v996
    %v1338 = vunpack.c.l.b16 %v997
    %v1339 = vunpack.c.h.b16 %v997
    %v1340 = vunpack.c.l.b16 %v998
    %v1341 = vunpack.c.h.b16 %v998
    %v1342 = vunpack.c.l.b16 %v999
    %v1343 = vunpack.c.h.b16 %v999
    %v1344 = vunpack.c.l.b16 %v1000
    %v1345 = vunpack.c.h.b16 %v1000
    %v1346 = vunpack.c.l.b16 %v1001
    %v1347 = vunpack.c.h.b16 %v1001
    %v1348 = vunpack.c.l.b16 %v1002
    %v1349 = vunpack.c.h.b16 %v1002
    %v1350 = vunpack.c.l.b16 %v1003
    %v1351 = vunpack.c.h.b16 %v1003
    %v1352 = vunpack.c.l.b16 %v1004
    %v1353 = vunpack.c.h.b16 %v1004
    %v1354 = vunpack.c.l.b16 %v1005
    %v1355 = vunpack.c.h.b16 %v1005
    %v1356 = vunpack.c.l.b16 %v1006
    %v1357 = vunpack.c.h.b16 %v1006
    %v1358 = vunpack.c.l.b16 %v1007
    %v1359 = vunpack.c.h.b16 %v1007
    %v1360 = vunpack.c.l.b16 %v1008
    %v1361 = vunpack.c.h.b16 %v1008
    %v1362 = vunpack.c.l.b16 %v1009
    %v1363 = vunpack.c.h.b16 %v1009
    %v1364 = vunpack.c.l.b16 %v1010
    %v1365 = vunpack.c.h.b16 %v1010
    %v1366 = vunpack.c.l.b16 %v1011
    %v1367 = vunpack.c.h.b16 %v1011
    %v1368 = vunpack.c.l.b16 %v1012
    %v1369 = vunpack.c.h.b16 %v1012
    %v1370 = vunpack.c.l.b16 %v1013
    %v1371 = vunpack.c.h.b16 %v1013
    %v1372 = vunpack.c.l.b16 %v1014
    %v1373 = vunpack.c.h.b16 %v1014
    %v1374 = vunpack.c.l.b16 %v1015
    %v1375 = vunpack.c.h.b16 %v1015
    %v1376 = vunpack.c.l.b16 %v1016
    %v1377 = vunpack.c.h.b16 %v1016
    %v1378 = vunpack.c.l.b16 %v1017
    %v1379 = vunpack.c.h.b16 %v1017
    %v1380 = vunpack.c.l.b16 %v1018
    %v1381 = vunpack.c.h.b16 %v1018
    %v1382 = vunpack.c.l.b16 %v1019
    %v1383 = vunpack.c.h.b16 %v1019
    %v1384 = vunpack.c.l.b16 %v1020
    %v1385 = vunpack.c.h.b16 %v1020
    %v1386 = vunpack.c.l.b16 %v1021
    %v1387 = vunpack.c.h.b16 %v1021
    %v1388 = vunpack.c.l.b16 %v1022
    %v1389 = vunpack.c.h.b16 %v1022
    %v1390 = vunpack.c.l.b16 %v1023
    %v1391 = vunpack.c.h.b16 %v1023
    %v1392 = vunpack.c.l.b16 %v1024
    %v1393 = vunpack.c.h.b16 %v1024
    %v1394 = vunpack.c.l.b16 %v1025
    %v1395 = vunpack.c.h.b16 %v1025
    %v1396 = vunpack.c.l.b16 %v1026
    %v1397 = vunpack.c.h.b16 %v1026
    %v1398 = vunpack.c.l.b16 %v1027
    %v1399 = vunpack.c.h.b16 %v1027
    %v1400 = vunpack.c.l.b16 %v1028
    %v1401 = vunpack.c.h.b16 %v1028
    %v1402 = vunpack.c.l.b16 %v1029
    %v1403 = vunpack.c.h.b16 %v1029
    %v1404 = vunpack.c.l.b16 %v1030
    %v1405 = vunpack.c.h.b16 %v1030
    %v1406 = vunpack.c.l.b16 %v1031
    %v1407 = vunpack.c.h.b16 %v1031
    %v1408 = vunpack.c.l.b16 %v1032
    %v1409 = vunpack.c.h.b16 %v1032
    %v1410 = vunpack.c.l.b16 %v1033
    %v1411 = vunpack.c.h.b16 %v1033
    %v1412 = vunpack.c.l.b16 %v1034
    %v1413 = vunpack.c.h.b16 %v1034
    %v1414 = vunpack.c.l.b16 %v1035
    %v1415 = vunpack.c.h.b16 %v1035
    %v1416 = vunpack.c.l.b16 %v1036
    %v1417 = vunpack.c.h.b16 %v1036
    %v1418 = vunpack.c.l.b16 %v1037
    %v1419 = vunpack.c.h.b16 %v1037
    %v1420 = vunpack.c.l.b16 %v1038
    %v1421 = vunpack.c.h.b16 %v1038
    %v1422 = vunpack.c.l.b16 %v1039
    %v1423 = vunpack.c.h.b16 %v1039
    %v1424 = vpack.c.b16 %v1172, %v1168
    %v1425 = vpack.c.b16 %v1173, %v1169
    %v1426 = vpack.c.b16 %v1174, %v1170
    %v1427 = vpack.c.b16 %v1175, %v1171
    %v1428 = vpack.c.b16 %v1180, %v1176
    %v1429 = vpack.c.b16 %v1181, %v1177
    %v1430 = vpack.c.b16 %v1182, %v1178
    %v1431 = vpack.c.b16 %v1183, %v1179
    %v1432 = vpack.c.b16 %v1188, %v1184
    %v1433 = vpack.c.b16 %v1189, %v1185
    %v1434 = vpack.c.b16 %v1190, %v1186
    %v1435 = vpack.c.b16 %v1191, %v1187
    %v1436 = vpack.c.b16 %v1196, %v1192
    %v1437 = vpack.c.b16 %v1197, %v1193
    %v1438 = vpack.c.b16 %v1198, %v1194
    %v1439 = vpack.c.b16 %v1199, %v1195
    %v1440 = vpack.c.b16 %v1204, %v1200
    %v1441 = vpack.c.b16 %v1205, %v1201
    %v1442 = vpack.c.b16 %v1206, %v1202
    %v1443 = vpack.c.b16 %v1207, %v1203
    %v1444 = vpack.c.b16 %v1212, %v1208
    %v1445 = vpack.c.b16 %v1213, %v1209
    %v1446 = vpack.c.b16 %v1214, %v1210
    %v1447 = vpack.c.b16 %v1215, %v1211
    %v1448 = vpack.c.b16 %v1220, %v1216
    %v1449 = vpack.c.b16 %v1221, %v1217
    %v1450 = vpack.c.b16 %v1222, %v1218
    %v1451 = vpack.c.b16 %v1223, %v1219
    %v1452 = vpack.c.b16 %v1228, %v1224
    %v1453 = vpack.c.b16 %v1229, %v1225
    %v1454 = vpack.c.b16 %v1230, %v1226
    %v1455 = vpack.c.b16 %v1231, %v1227
    %v1456 = vpack.c.b16 %v1236, %v1232
    %v1457 = vpack.c.b16 %v1237, %v1233
    %v1458 = vpack.c.b16 %v1238, %v1234
    %v1459 = vpack.c.b16 %v1239, %v1235
    %v1460 = vpack.c.b16 %v1244, %v1240
    %v1461 = vpack.c.b16 %v1245, %v1241
    %v1462 = vpack.c.b16 %v1246, %v1242
    %v1463 = vpack.c.b16 %v1247, %v1243
    %v1464 = vpack.c.b16 %v1252, %v1248
    %v1465 = vpack.c.b16 %v1253, %v1249
    %v1466 = vpack.c.b16 %v1254, %v1250
    %v1467 = vpack.c.b16 %v1255, %v1251
    %v1468 = vpack.c.b16 %v1260, %v1256
    %v1469 = vpack.c.b16 %v1261, %v1257
    %v1470 = vpack.c.b16 %v1262, %v1258
    %v1471 = vpack.c.b16 %v1263, %v1259
    %v1472 = vpack.c.b16 %v1268, %v1264
    %v1473 = vpack.c.b16 %v1269, %v1265
    %v1474 = vpack.c.b16 %v1270, %v1266
    %v1475 = vpack.c.b16 %v1271, %v1267
    %v1476 = vpack.c.b16 %v1276, %v1272
    %v1477 = vpack.c.b16 %v1277, %v1273
    %v1478 = vpack.c.b16 %v1278, %v1274
    %v1479 = vpack.c.b16 %v1279, %v1275
    %v1480 = vpack.c.b16 %v1284, %v1280
    %v1481 = vpack.c.b16 %v1285, %v1281
    %v1482 = vpack.c.b16 %v1286, %v1282
    %v1483 = vpack.c.b16 %v1287, %v1283
    %v1484 = vpack.c.b16 %v1292, %v1288
    %v1485 = vpack.c.b16 %v1293, %v1289
    %v1486 = vpack.c.b16 %v1294, %v1290
    %v1487 = vpack.c.b16 %v1295, %v1291
    %v1488 = vpack.c.b16 %v1300, %v1296
    %v1489 = vpack.c.b16 %v1301, %v1297
    %v1490 = vpack.c.b16 %v1302, %v1298
    %v1491 = vpack.c.b16 %v1303, %v1299
    %v1492 = vpack.c.b16 %v1308, %v1304
    %v1493 = vpack.c.b16 %v1309, %v1305
    %v1494 = vpack.c.b16 %v1310, %v1306
    %v1495 = vpack.c.b16 %v1311, %v1307
    %v1496 = vpack.c.b16 %v1316, %v1312
    %v1497 = vpack.c.b16 %v1317, %v1313
    %v1498 = vpack.c.b16 %v1318, %v1314
    %v1499 = vpack.c.b16 %v1319, %v1315
    %v1500 = vpack.c.b16 %v1324, %v1320
    %v1501 = vpack.c.b16 %v1325, %v1321
    %v1502 = vpack.c.b16 %v1326, %v1322
    %v1503 = vpack.c.b16 %v1327, %v1323
    %v1504 = vpack.c.b16 %v1332, %v1328
    %v1505 = vpack.c.b16 %v1333, %v1329
    %v1506 = vpack.c.b16 %v1334, %v1330
    %v1507 = vpack.c.b16 %v1335, %v1331
    %v1508 = vpack.c.b16 %v1340, %v1336
    %v1509 = vpack.c.b16 %v1341, %v1337
    %v1510 = vpack.c.b16 %v1342, %v1338
    %v1511 = vpack.c.b16 %v1343, %v1339
    %v1512 = vpack.c.b16 %v1348, %v1344
    %v1513 = vpack.c.b16 %v1349, %v1345
    %v1514 = vpack.c.b16 %v1350, %v1346
    %v1515 = vpack.c.b16 %v1351, %v1347
    %v1516 = vpack.c.b16 %v1356, %v1352
    %v1517 = vpack.c.b16 %v1357, %v1353
    %v1518 = vpack.c.b16 %v1358, %v1354
    %v1519 = vpack.c.b16 %v1359, %v1355
    %v1520 = vpack.c.b16 %v1364, %v1360
    %v1521 = vpack.c.b16 %v1365, %v1361
    %v1522 = vpack.c.b16 %v1366, %v1362
    %v1523 = vpack.c.b16 %v1367, %v1363
    %v1524 = vpack.c.b16 %v1372, %v1368
    %v1525 = vpack.c.b16 %v1373, %v1369
    %v1526 = vpack.c.b16 %v1374, %v1370
    %v1527 = vpack.c.b16 %v1375, %v1371
    %v1528 = vpack.c.b16 %v1380, %v1376
    %v1529 = vpack.c.b16 %v1381, %v1377
    %v1530 = vpack.c.b16 %v1382, %v1378
    %v1531 = vpack.c.b16 %v1383, %v1379
    %v1532 = vpack.c.b16 %v1388, %v1384
    %v1533 = vpack.c.b16 %v1389, %v1385
    %v1534 = vpack.c.b16 %v1390, %v1386
    %v1535 = vpack.c.b16 %v1391, %v1387
    %v1536 = vpack.c.b16 %v1396, %v1392
    %v1537 = vpack.c.b16 %v1397, %v1393
    %v1538 = vpack.c.b16 %v1398, %v1394
    %v1539 = vpack.c.b16 %v1399, %v1395
    %v1540 = vpack.c.b16 %v1404, %v1400
    %v1541 = vpack.c.b16 %v1405, %v1401
    %v1542 = vpack.c.b16 %v1406, %v1402
    %v1543 = vpack.c.b16 %v1407, %v1403
    %v1544 = vpack.c.b16 %v1412, %v1408
    %v1545 = vpack.c.b16 %v1413, %v1409
    %v1546 = vpack.c.b16 %v1414, %v1410
    %v1547 = vpack.c.b16 %v1415, %v1411
    %v1548 = vpack.c.b16 %v1420, %v1416
    %v1549 = vpack.c.b16 %v1421, %v1417
    %v1550 = vpack.c.b16 %v1422, %v1418
    %v1551 = vpack.c.b16 %v1423, %v1419
    %1680 = vmatprep.subr.bf16.mxu0 %v1453
    %1681 = vmatpush1.bf16.msra.mxu0 %v1452
    %1682 = vmatprep.subr.bf16.mxu0 %v1449
    %1683 = vmatpush1.bf16.msra.mxu0 %v1448
    %1684 = vmatprep.subr.bf16.mxu0 %v1445
    %1685 = vmatpush1.bf16.msra.mxu0 %v1444
    %1686 = vmatprep.subr.bf16.mxu0 %v1441
    %1687 = vmatpush1.bf16.msra.mxu0 %v1440
    %1688 = vmatprep.subr.bf16.mxu0 %v1437
    %1689 = vmatpush1.bf16.msra.mxu0 %v1436
    %1690 = vmatprep.subr.bf16.mxu0 %v1433
    %1691 = vmatpush1.bf16.msra.mxu0 %v1432
    %1692 = vmatprep.subr.bf16.mxu0 %v1429
    %1693 = vmatpush1.bf16.msra.mxu0 %v1428
    %1694 = vmatprep.subr.bf16.mxu0 %v1425
    %1695 = vmatpush1.bf16.msra.mxu0 %v1424
    %1696 = vmatprep.subr.bf16.mxu0 %v1485
    %1697 = vmatpush2.bf16.msra.mxu0 %v1484
    %1698 = vmatprep.subr.bf16.mxu0 %v1481
    %1699 = vmatpush2.bf16.msra.mxu0 %v1480
    %1700 = vmatprep.subr.bf16.mxu0 %v1477
    %1701 = vmatpush2.bf16.msra.mxu0 %v1476
    %1702 = vmatprep.subr.bf16.mxu0 %v1473
    %1703 = vmatpush2.bf16.msra.mxu0 %v1472
    %1704 = vmatprep.subr.bf16.mxu0 %v1469
    %1705 = vmatpush2.bf16.msra.mxu0 %v1468
    %1706 = vmatprep.subr.bf16.mxu0 %v1465
    %1707 = vmatpush2.bf16.msra.mxu0 %v1464
    %1708 = vmatprep.subr.bf16.mxu0 %v1461
    %1709 = vmatpush2.bf16.msra.mxu0 %v1460
    %1710 = vmatprep.subr.bf16.mxu0 %v1457
    %1711 = vmatpush2.bf16.msra.mxu0 %v1456
    %1712 = vmatprep.mubr.bf16.mxu0 %v909
    %1713 = vmatmul.mubr.bf16.gmra.mxu0 %v908
    %v1714 = vpop.f32.mrf.mxu0
    %v1715 = vadd.f32 0.0, %v1714
    %v1716 = vpop.f32.mrf.mxu0
    %v1717 = vadd.f32 0.0, %v1716
    %v1718 = vpop.f32.mrf.mxu0
    %v1719 = vpop.f32.mrf.mxu0
    %1720 = vdwg.mxu0
    %1721 = vmatprep.subr.bf16.mxu0 %v1517
    %1722 = vmatpush1.bf16.msra.mxu0 %v1516
    %1723 = vmatprep.subr.bf16.mxu0 %v1513
    %1724 = vmatpush1.bf16.msra.mxu0 %v1512
    %1725 = vmatprep.subr.bf16.mxu0 %v1509
    %1726 = vmatpush1.bf16.msra.mxu0 %v1508
    %1727 = vmatprep.subr.bf16.mxu0 %v1505
    %1728 = vmatpush1.bf16.msra.mxu0 %v1504
    %1729 = vmatprep.subr.bf16.mxu0 %v1501
    %1730 = vmatpush1.bf16.msra.mxu0 %v1500
    %1731 = vmatprep.subr.bf16.mxu0 %v1497
    %1732 = vmatpush1.bf16.msra.mxu0 %v1496
    %1733 = vmatprep.subr.bf16.mxu0 %v1493
    %1734 = vmatpush1.bf16.msra.mxu0 %v1492
    %1735 = vmatprep.subr.bf16.mxu0 %v1489
    %1736 = vmatpush1.bf16.msra.mxu0 %v1488
    %1737 = vmatprep.subr.bf16.mxu0 %v1549
    %1738 = vmatpush2.bf16.msra.mxu0 %v1548
    %1739 = vmatprep.subr.bf16.mxu0 %v1545
    %1740 = vmatpush2.bf16.msra.mxu0 %v1544
    %1741 = vmatprep.subr.bf16.mxu0 %v1541
    %1742 = vmatpush2.bf16.msra.mxu0 %v1540
    %1743 = vmatprep.subr.bf16.mxu0 %v1537
    %1744 = vmatpush2.bf16.msra.mxu0 %v1536
    %1745 = vmatprep.subr.bf16.mxu0 %v1533
    %1746 = vmatpush2.bf16.msra.mxu0 %v1532
    %1747 = vmatprep.subr.bf16.mxu0 %v1529
    %1748 = vmatpush2.bf16.msra.mxu0 %v1528
    %1749 = vmatprep.subr.bf16.mxu0 %v1525
    %1750 = vmatpush2.bf16.msra.mxu0 %v1524
    %1751 = vmatprep.subr.bf16.mxu0 %v1521
    %1752 = vmatpush2.bf16.msra.mxu0 %v1520
    %1753 = vmatprep.mubr.bf16.mxu0 %v911
    %1754 = vmatmul.mubr.bf16.gmra.mxu0 %v910
    %v1755 = vpop.f32.mrf.mxu0
    %v1756 = vadd.f32 %v1715, %v1755
    %v1757 = vpop.f32.mrf.mxu0
    %v1758 = vadd.f32 %v1717, %v1757
    %v1759 = vpop.f32.mrf.mxu0
    %v1760 = vpop.f32.mrf.mxu0
    %1761 = vdwg.mxu0
    %1762 = vmatprep.subr.bf16.mxu0 %v1455
    %1763 = vmatpush1.bf16.msra.mxu0 %v1454
    %1764 = vmatprep.subr.bf16.mxu0 %v1451
    %1765 = vmatpush1.bf16.msra.mxu0 %v1450
    %1766 = vmatprep.subr.bf16.mxu0 %v1447
    %1767 = vmatpush1.bf16.msra.mxu0 %v1446
    %1768 = vmatprep.subr.bf16.mxu0 %v1443
    %1769 = vmatpush1.bf16.msra.mxu0 %v1442
    %1770 = vmatprep.subr.bf16.mxu0 %v1439
    %1771 = vmatpush1.bf16.msra.mxu0 %v1438
    %1772 = vmatprep.subr.bf16.mxu0 %v1435
    %1773 = vmatpush1.bf16.msra.mxu0 %v1434
    %1774 = vmatprep.subr.bf16.mxu0 %v1431
    %1775 = vmatpush1.bf16.msra.mxu0 %v1430
    %1776 = vmatprep.subr.bf16.mxu0 %v1427
    %1777 = vmatpush1.bf16.msra.mxu0 %v1426
    %1778 = vmatprep.subr.bf16.mxu0 %v1487
    %1779 = vmatpush2.bf16.msra.mxu0 %v1486
    %1780 = vmatprep.subr.bf16.mxu0 %v1483
    %1781 = vmatpush2.bf16.msra.mxu0 %v1482
    %1782 = vmatprep.subr.bf16.mxu0 %v1479
    %1783 = vmatpush2.bf16.msra.mxu0 %v1478
    %1784 = vmatprep.subr.bf16.mxu0 %v1475
    %1785 = vmatpush2.bf16.msra.mxu0 %v1474
    %1786 = vmatprep.subr.bf16.mxu0 %v1471
    %1787 = vmatpush2.bf16.msra.mxu0 %v1470
    %1788 = vmatprep.subr.bf16.mxu0 %v1467
    %1789 = vmatpush2.bf16.msra.mxu0 %v1466
    %1790 = vmatprep.subr.bf16.mxu0 %v1463
    %1791 = vmatpush2.bf16.msra.mxu0 %v1462
    %1792 = vmatprep.subr.bf16.mxu0 %v1459
    %1793 = vmatpush2.bf16.msra.mxu0 %v1458
    %1794 = vmatprep.mubr.bf16.mxu0 %v909
    %1795 = vmatmul.mubr.bf16.gmra.mxu0 %v908
    %v1796 = vpop.f32.mrf.mxu0
    %v1797 = vadd.f32 0.0, %v1796
    %v1798 = vpop.f32.mrf.mxu0
    %v1799 = vadd.f32 0.0, %v1798
    %v1800 = vpop.f32.mrf.mxu0
    %v1801 = vpop.f32.mrf.mxu0
    %1802 = vdwg.mxu0
    %1803 = vmatprep.subr.bf16.mxu0 %v1519
    %1804 = vmatpush1.bf16.msra.mxu0 %v1518
    %1805 = vmatprep.subr.bf16.mxu0 %v1515
    %1806 = vmatpush1.bf16.msra.mxu0 %v1514
    %1807 = vmatprep.subr.bf16.mxu0 %v1511
    %1808 = vmatpush1.bf16.msra.mxu0 %v1510
    %1809 = vmatprep.subr.bf16.mxu0 %v1507
    %1810 = vmatpush1.bf16.msra.mxu0 %v1506
    %1811 = vmatprep.subr.bf16.mxu0 %v1503
    %1812 = vmatpush1.bf16.msra.mxu0 %v1502
    %1813 = vmatprep.subr.bf16.mxu0 %v1499
    %1814 = vmatpush1.bf16.msra.mxu0 %v1498
    %1815 = vmatprep.subr.bf16.mxu0 %v1495
    %1816 = vmatpush1.bf16.msra.mxu0 %v1494
    %1817 = vmatprep.subr.bf16.mxu0 %v1491
    %1818 = vmatpush1.bf16.msra.mxu0 %v1490
    %1819 = vmatprep.subr.bf16.mxu0 %v1551
    %1820 = vmatpush2.bf16.msra.mxu0 %v1550
    %1821 = vmatprep.subr.bf16.mxu0 %v1547
    %1822 = vmatpush2.bf16.msra.mxu0 %v1546
    %1823 = vmatprep.subr.bf16.mxu0 %v1543
    %1824 = vmatpush2.bf16.msra.mxu0 %v1542
    %1825 = vmatprep.subr.bf16.mxu0 %v1539
    %1826 = vmatpush2.bf16.msra.mxu0 %v1538
    %1827 = vmatprep.subr.bf16.mxu0 %v1535
    %1828 = vmatpush2.bf16.msra.mxu0 %v1534
    %1829 = vmatprep.subr.bf16.mxu0 %v1531
    %1830 = vmatpush2.bf16.msra.mxu0 %v1530
    %1831 = vmatprep.subr.bf16.mxu0 %v1527
    %1832 = vmatpush2.bf16.msra.mxu0 %v1526
    %1833 = vmatprep.subr.bf16.mxu0 %v1523
    %1834 = vmatpush2.bf16.msra.mxu0 %v1522
    %1835 = vmatprep.mubr.bf16.mxu0 %v911
    %1836 = vmatmul.mubr.bf16.gmra.mxu0 %v910
    %v1837 = vpop.f32.mrf.mxu0
    %v1838 = vadd.f32 %v1797, %v1837
    %v1839 = vpop.f32.mrf.mxu0
    %v1840 = vadd.f32 %v1799, %v1839
    %v1841 = vpop.f32.mrf.mxu0
    %v1842 = vpop.f32.mrf.mxu0
    %1843 = vdwg.mxu0
    %v1844 = vld [vmem:[#allocation9] sm:$0xf]
    %v1846 = vlaneseq
    %v1847 = vshrl.u32 %v1846, 7
    %v1848 = vsub.s32 0, %v1847
    %v1849 = vrot.slane %v1844, %v1848
    %v1850 = vlaneseq
    %v1851 = vshrl.u32 %v1850, 7
    %v1852 = vsub.s32 1, %v1851
    %v1853 = vrot.slane %v1844, %v1852
    %v1854 = vlaneseq
    %v1855 = vshrl.u32 %v1854, 7
    %v1856 = vsub.s32 2, %v1855
    %v1857 = vrot.slane %v1844, %v1856
    %v1858 = vlaneseq
    %v1859 = vshrl.u32 %v1858, 7
    %v1860 = vsub.s32 3, %v1859
    %v1861 = vrot.slane %v1844, %v1860
    %v1866 = vmul.f32 %v1756, %v1849
    %v1867 = vmul.f32 %v1758, %v1853
    %v1868 = vmul.f32 %v1838, %v1857
    %v1869 = vmul.f32 %v1840, %v1861
    %v1870 = vld [vmem:[#allocation10] sm:$0xf]
    %v1872 = vlaneseq
    %v1873 = vshrl.u32 %v1872, 7
    %v1874 = vsub.s32 0, %v1873
    %v1875 = vrot.slane %v1870, %v1874
    %v1876 = vlaneseq
    %v1877 = vshrl.u32 %v1876, 7
    %v1878 = vsub.s32 1, %v1877
    %v1879 = vrot.slane %v1870, %v1878
    %v1880 = vlaneseq
    %v1881 = vshrl.u32 %v1880, 7
    %v1882 = vsub.s32 2, %v1881
    %v1883 = vrot.slane %v1870, %v1882
    %v1884 = vlaneseq
    %v1885 = vshrl.u32 %v1884, 7
    %v1886 = vsub.s32 3, %v1885
    %v1887 = vrot.slane %v1870, %v1886
    %v1892 = vadd.f32 %v1866, %v1875
    %v1893 = vadd.f32 %v1867, %v1879
    %v1894 = vadd.f32 %v1868, %v1883
    %v1895 = vadd.f32 %v1869, %v1887
    %v1896 = vmul.f32 %v1892, 0.1
    %v1897 = vmul.f32 %v1893, 0.1
    %v1898 = vmul.f32 %v1894, 0.1
    %v1899 = vmul.f32 %v1895, 0.1
    %v1900 = vmax.f32 %v1892, %v1896
    %v1901 = vmax.f32 %v1893, %v1897
    %v1902 = vmax.f32 %v1894, %v1898
    %v1903 = vmax.f32 %v1895, %v1899
    %v1904 = vpack.c.bf16 %v1900, %v1900
    %v1905 = vpack.c.bf16 %v1901, %v1901
    %v1906 = vpack.c.bf16 %v1902, %v1902
    %v1907 = vpack.c.bf16 %v1903, %v1903
    %v1908 = vld [vmem:[#allocation12] sm:$0xff]
    %v1909 = vld [vmem:[#allocation12 + $0x8] sm:$0xf]
    %v1910 = vld [vmem:[#allocation12 + $0xc] sm:$0xff]
    %v1911 = vld [vmem:[#allocation12 + $0x14] sm:$0xf]
    %v1912 = vld [vmem:[#allocation12 + $0x18] sm:$0xff]
    %v1913 = vld [vmem:[#allocation12 + $0x20] sm:$0xf]
    %v1914 = vld [vmem:[#allocation12 + $0x24] sm:$0xff]
    %v1915 = vld [vmem:[#allocation12 + $0x2c] sm:$0xf]
    %v1916 = vld [vmem:[#allocation12 + $0x30] sm:$0xff]
    %v1917 = vld [vmem:[#allocation12 + $0x38] sm:$0xf]
    %v1918 = vld [vmem:[#allocation12 + $0x3c] sm:$0xff]
    %v1919 = vld [vmem:[#allocation12 + $0x44] sm:$0xf]
    %v1920 = vld [vmem:[#allocation12 + $0x48] sm:$0xff]
    %v1921 = vld [vmem:[#allocation12 + $0x50] sm:$0xf]
    %v1922 = vld [vmem:[#allocation12 + $0x54] sm:$0xff]
    %v1923 = vld [vmem:[#allocation12 + $0x5c] sm:$0xf]
    %v1924 = vld [vmem:[#allocation12 + $0x60] sm:$0xff]
    %v1925 = vld [vmem:[#allocation12 + $0x68] sm:$0xf]
    %v1926 = vld [vmem:[#allocation12 + $0x6c] sm:$0xff]
    %v1927 = vld [vmem:[#allocation12 + $0x74] sm:$0xf]
    %v1928 = vld [vmem:[#allocation12 + $0x78] sm:$0xff]
    %v1929 = vld [vmem:[#allocation12 + $0x80] sm:$0xf]
    %v1930 = vld [vmem:[#allocation12 + $0x84] sm:$0xff]
    %v1931 = vld [vmem:[#allocation12 + $0x8c] sm:$0xf]
    %v1932 = vld [vmem:[#allocation12 + $0x90] sm:$0xff]
    %v1933 = vld [vmem:[#allocation12 + $0x98] sm:$0xf]
    %v1934 = vld [vmem:[#allocation12 + $0x9c] sm:$0xff]
    %v1935 = vld [vmem:[#allocation12 + $0xa4] sm:$0xf]
    %v1936 = vld [vmem:[#allocation12 + $0xa8] sm:$0xff]
    %v1937 = vld [vmem:[#allocation12 + $0xb0] sm:$0xf]
    %v1938 = vld [vmem:[#allocation12 + $0xb4] sm:$0xff]
    %v1939 = vld [vmem:[#allocation12 + $0xbc] sm:$0xf]
    %v1940 = vld [vmem:[#allocation12 + $0xc0] sm:$0xff]
    %v1941 = vld [vmem:[#allocation12 + $0xc8] sm:$0xf]
    %v1942 = vld [vmem:[#allocation12 + $0xcc] sm:$0xff]
    %v1943 = vld [vmem:[#allocation12 + $0xd4] sm:$0xf]
    %v1944 = vld [vmem:[#allocation12 + $0xd8] sm:$0xff]
    %v1945 = vld [vmem:[#allocation12 + $0xe0] sm:$0xf]
    %v1946 = vld [vmem:[#allocation12 + $0xe4] sm:$0xff]
    %v1947 = vld [vmem:[#allocation12 + $0xec] sm:$0xf]
    %v1948 = vld [vmem:[#allocation12 + $0xf0] sm:$0xff]
    %v1949 = vld [vmem:[#allocation12 + $0xf8] sm:$0xf]
    %v1950 = vld [vmem:[#allocation12 + $0xfc] sm:$0xff]
    %v1951 = vld [vmem:[#allocation12 + $0x104] sm:$0xf]
    %v1952 = vld [vmem:[#allocation12 + $0x108] sm:$0xff]
    %v1953 = vld [vmem:[#allocation12 + $0x110] sm:$0xf]
    %v1954 = vld [vmem:[#allocation12 + $0x114] sm:$0xff]
    %v1955 = vld [vmem:[#allocation12 + $0x11c] sm:$0xf]
    %v1956 = vld [vmem:[#allocation12 + $0x120] sm:$0xff]
    %v1957 = vld [vmem:[#allocation12 + $0x128] sm:$0xf]
    %v1958 = vld [vmem:[#allocation12 + $0x12c] sm:$0xff]
    %v1959 = vld [vmem:[#allocation12 + $0x134] sm:$0xf]
    %v1960 = vld [vmem:[#allocation12 + $0x138] sm:$0xff]
    %v1961 = vld [vmem:[#allocation12 + $0x140] sm:$0xf]
    %v1962 = vld [vmem:[#allocation12 + $0x144] sm:$0xff]
    %v1963 = vld [vmem:[#allocation12 + $0x14c] sm:$0xf]
    %v1964 = vld [vmem:[#allocation12 + $0x150] sm:$0xff]
    %v1965 = vld [vmem:[#allocation12 + $0x158] sm:$0xf]
    %v1966 = vld [vmem:[#allocation12 + $0x15c] sm:$0xff]
    %v1967 = vld [vmem:[#allocation12 + $0x164] sm:$0xf]
    %v1968 = vld [vmem:[#allocation12 + $0x168] sm:$0xff]
    %v1969 = vld [vmem:[#allocation12 + $0x170] sm:$0xf]
    %v1970 = vld [vmem:[#allocation12 + $0x174] sm:$0xff]
    %v1971 = vld [vmem:[#allocation12 + $0x17c] sm:$0xf]
    %v1972 = vld [vmem:[#allocation12 + $0x180] sm:$0xff]
    %v1973 = vld [vmem:[#allocation12 + $0x188] sm:$0xf]
    %v1974 = vld [vmem:[#allocation12 + $0x18c] sm:$0xff]
    %v1975 = vld [vmem:[#allocation12 + $0x194] sm:$0xf]
    %v1976 = vld [vmem:[#allocation12 + $0x198] sm:$0xff]
    %v1977 = vld [vmem:[#allocation12 + $0x1a0] sm:$0xf]
    %v1978 = vld [vmem:[#allocation12 + $0x1a4] sm:$0xff]
    %v1979 = vld [vmem:[#allocation12 + $0x1ac] sm:$0xf]
    %v1980 = vld [vmem:[#allocation12 + $0x1b0] sm:$0xff]
    %v1981 = vld [vmem:[#allocation12 + $0x1b8] sm:$0xf]
    %v1982 = vld [vmem:[#allocation12 + $0x1bc] sm:$0xff]
    %v1983 = vld [vmem:[#allocation12 + $0x1c4] sm:$0xf]
    %v1984 = vld [vmem:[#allocation12 + $0x1c8] sm:$0xff]
    %v1985 = vld [vmem:[#allocation12 + $0x1d0] sm:$0xf]
    %v1986 = vld [vmem:[#allocation12 + $0x1d4] sm:$0xff]
    %v1987 = vld [vmem:[#allocation12 + $0x1dc] sm:$0xf]
    %v1988 = vld [vmem:[#allocation12 + $0x1e0] sm:$0xff]
    %v1989 = vld [vmem:[#allocation12 + $0x1e8] sm:$0xf]
    %v1990 = vld [vmem:[#allocation12 + $0x1ec] sm:$0xff]
    %v1991 = vld [vmem:[#allocation12 + $0x1f4] sm:$0xf]
    %v1992 = vld [vmem:[#allocation12 + $0x1f8] sm:$0xff]
    %v1993 = vld [vmem:[#allocation12 + $0x200] sm:$0xf]
    %v1994 = vld [vmem:[#allocation12 + $0x204] sm:$0xff]
    %v1995 = vld [vmem:[#allocation12 + $0x20c] sm:$0xf]
    %v1996 = vld [vmem:[#allocation12 + $0x210] sm:$0xff]
    %v1997 = vld [vmem:[#allocation12 + $0x218] sm:$0xf]
    %v1998 = vld [vmem:[#allocation12 + $0x21c] sm:$0xff]
    %v1999 = vld [vmem:[#allocation12 + $0x224] sm:$0xf]
    %v2000 = vld [vmem:[#allocation12 + $0x228] sm:$0xff]
    %v2001 = vld [vmem:[#allocation12 + $0x230] sm:$0xf]
    %v2002 = vld [vmem:[#allocation12 + $0x234] sm:$0xff]
    %v2003 = vld [vmem:[#allocation12 + $0x23c] sm:$0xf]
    %v2004 = vld [vmem:[#allocation12 + $0x240] sm:$0xff]
    %v2005 = vld [vmem:[#allocation12 + $0x248] sm:$0xf]
    %v2006 = vld [vmem:[#allocation12 + $0x24c] sm:$0xff]
    %v2007 = vld [vmem:[#allocation12 + $0x254] sm:$0xf]
    %v2008 = vld [vmem:[#allocation12 + $0x258] sm:$0xff]
    %v2009 = vld [vmem:[#allocation12 + $0x260] sm:$0xf]
    %v2010 = vld [vmem:[#allocation12 + $0x264] sm:$0xff]
    %v2011 = vld [vmem:[#allocation12 + $0x26c] sm:$0xf]
    %v2012 = vld [vmem:[#allocation12 + $0x270] sm:$0xff]
    %v2013 = vld [vmem:[#allocation12 + $0x278] sm:$0xf]
    %v2014 = vld [vmem:[#allocation12 + $0x27c] sm:$0xff]
    %v2015 = vld [vmem:[#allocation12 + $0x284] sm:$0xf]
    %v2016 = vld [vmem:[#allocation12 + $0x288] sm:$0xff]
    %v2017 = vld [vmem:[#allocation12 + $0x290] sm:$0xf]
    %v2018 = vld [vmem:[#allocation12 + $0x294] sm:$0xff]
    %v2019 = vld [vmem:[#allocation12 + $0x29c] sm:$0xf]
    %v2020 = vld [vmem:[#allocation12 + $0x2a0] sm:$0xff]
    %v2021 = vld [vmem:[#allocation12 + $0x2a8] sm:$0xf]
    %v2022 = vld [vmem:[#allocation12 + $0x2ac] sm:$0xff]
    %v2023 = vld [vmem:[#allocation12 + $0x2b4] sm:$0xf]
    %v2024 = vld [vmem:[#allocation12 + $0x2b8] sm:$0xff]
    %v2025 = vld [vmem:[#allocation12 + $0x2c0] sm:$0xf]
    %v2026 = vld [vmem:[#allocation12 + $0x2c4] sm:$0xff]
    %v2027 = vld [vmem:[#allocation12 + $0x2cc] sm:$0xf]
    %v2028 = vld [vmem:[#allocation12 + $0x2d0] sm:$0xff]
    %v2029 = vld [vmem:[#allocation12 + $0x2d8] sm:$0xf]
    %v2030 = vld [vmem:[#allocation12 + $0x2dc] sm:$0xff]
    %v2031 = vld [vmem:[#allocation12 + $0x2e4] sm:$0xf]
    %v2032 = vld [vmem:[#allocation12 + $0x2e8] sm:$0xff]
    %v2033 = vld [vmem:[#allocation12 + $0x2f0] sm:$0xf]
    %v2034 = vld [vmem:[#allocation12 + $0x2f4] sm:$0xff]
    %v2035 = vld [vmem:[#allocation12 + $0x2fc] sm:$0xf]
    %v2164 = vunpack.c.l.b16 %v1908
    %v2165 = vunpack.c.h.b16 %v1908
    %v2166 = vunpack.c.l.b16 %v1909
    %v2167 = vunpack.c.l.b16 %v1910
    %v2168 = vunpack.c.h.b16 %v1910
    %v2169 = vunpack.c.l.b16 %v1911
    %v2170 = vunpack.c.l.b16 %v1912
    %v2171 = vunpack.c.h.b16 %v1912
    %v2172 = vunpack.c.l.b16 %v1913
    %v2173 = vunpack.c.l.b16 %v1914
    %v2174 = vunpack.c.h.b16 %v1914
    %v2175 = vunpack.c.l.b16 %v1915
    %v2176 = vunpack.c.l.b16 %v1916
    %v2177 = vunpack.c.h.b16 %v1916
    %v2178 = vunpack.c.l.b16 %v1917
    %v2179 = vunpack.c.l.b16 %v1918
    %v2180 = vunpack.c.h.b16 %v1918
    %v2181 = vunpack.c.l.b16 %v1919
    %v2182 = vunpack.c.l.b16 %v1920
    %v2183 = vunpack.c.h.b16 %v1920
    %v2184 = vunpack.c.l.b16 %v1921
    %v2185 = vunpack.c.l.b16 %v1922
    %v2186 = vunpack.c.h.b16 %v1922
    %v2187 = vunpack.c.l.b16 %v1923
    %v2188 = vunpack.c.l.b16 %v1924
    %v2189 = vunpack.c.h.b16 %v1924
    %v2190 = vunpack.c.l.b16 %v1925
    %v2191 = vunpack.c.l.b16 %v1926
    %v2192 = vunpack.c.h.b16 %v1926
    %v2193 = vunpack.c.l.b16 %v1927
    %v2194 = vunpack.c.l.b16 %v1928
    %v2195 = vunpack.c.h.b16 %v1928
    %v2196 = vunpack.c.l.b16 %v1929
    %v2197 = vunpack.c.l.b16 %v1930
    %v2198 = vunpack.c.h.b16 %v1930
    %v2199 = vunpack.c.l.b16 %v1931
    %v2200 = vunpack.c.l.b16 %v1932
    %v2201 = vunpack.c.h.b16 %v1932
    %v2202 = vunpack.c.l.b16 %v1933
    %v2203 = vunpack.c.l.b16 %v1934
    %v2204 = vunpack.c.h.b16 %v1934
    %v2205 = vunpack.c.l.b16 %v1935
    %v2206 = vunpack.c.l.b16 %v1936
    %v2207 = vunpack.c.h.b16 %v1936
    %v2208 = vunpack.c.l.b16 %v1937
    %v2209 = vunpack.c.l.b16 %v1938
    %v2210 = vunpack.c.h.b16 %v1938
    %v2211 = vunpack.c.l.b16 %v1939
    %v2212 = vunpack.c.l.b16 %v1940
    %v2213 = vunpack.c.h.b16 %v1940
    %v2214 = vunpack.c.l.b16 %v1941
    %v2215 = vunpack.c.l.b16 %v1942
    %v2216 = vunpack.c.h.b16 %v1942
    %v2217 = vunpack.c.l.b16 %v1943
    %v2218 = vunpack.c.l.b16 %v1944
    %v2219 = vunpack.c.h.b16 %v1944
    %v2220 = vunpack.c.l.b16 %v1945
    %v2221 = vunpack.c.l.b16 %v1946
    %v2222 = vunpack.c.h.b16 %v1946
    %v2223 = vunpack.c.l.b16 %v1947
    %v2224 = vunpack.c.l.b16 %v1948
    %v2225 = vunpack.c.h.b16 %v1948
    %v2226 = vunpack.c.l.b16 %v1949
    %v2227 = vunpack.c.l.b16 %v1950
    %v2228 = vunpack.c.h.b16 %v1950
    %v2229 = vunpack.c.l.b16 %v1951
    %v2230 = vunpack.c.l.b16 %v1952
    %v2231 = vunpack.c.h.b16 %v1952
    %v2232 = vunpack.c.l.b16 %v1953
    %v2233 = vunpack.c.l.b16 %v1954
    %v2234 = vunpack.c.h.b16 %v1954
    %v2235 = vunpack.c.l.b16 %v1955
    %v2236 = vunpack.c.l.b16 %v1956
    %v2237 = vunpack.c.h.b16 %v1956
    %v2238 = vunpack.c.l.b16 %v1957
    %v2239 = vunpack.c.l.b16 %v1958
    %v2240 = vunpack.c.h.b16 %v1958
    %v2241 = vunpack.c.l.b16 %v1959
    %v2242 = vunpack.c.l.b16 %v1960
    %v2243 = vunpack.c.h.b16 %v1960
    %v2244 = vunpack.c.l.b16 %v1961
    %v2245 = vunpack.c.l.b16 %v1962
    %v2246 = vunpack.c.h.b16 %v1962
    %v2247 = vunpack.c.l.b16 %v1963
    %v2248 = vunpack.c.l.b16 %v1964
    %v2249 = vunpack.c.h.b16 %v1964
    %v2250 = vunpack.c.l.b16 %v1965
    %v2251 = vunpack.c.l.b16 %v1966
    %v2252 = vunpack.c.h.b16 %v1966
    %v2253 = vunpack.c.l.b16 %v1967
    %v2254 = vunpack.c.l.b16 %v1968
    %v2255 = vunpack.c.h.b16 %v1968
    %v2256 = vunpack.c.l.b16 %v1969
    %v2257 = vunpack.c.l.b16 %v1970
    %v2258 = vunpack.c.h.b16 %v1970
    %v2259 = vunpack.c.l.b16 %v1971
    %v2260 = vunpack.c.l.b16 %v1972
    %v2261 = vunpack.c.h.b16 %v1972
    %v2262 = vunpack.c.l.b16 %v1973
    %v2263 = vunpack.c.l.b16 %v1974
    %v2264 = vunpack.c.h.b16 %v1974
    %v2265 = vunpack.c.l.b16 %v1975
    %v2266 = vunpack.c.l.b16 %v1976
    %v2267 = vunpack.c.h.b16 %v1976
    %v2268 = vunpack.c.l.b16 %v1977
    %v2269 = vunpack.c.l.b16 %v1978
    %v2270 = vunpack.c.h.b16 %v1978
    %v2271 = vunpack.c.l.b16 %v1979
    %v2272 = vunpack.c.l.b16 %v1980
    %v2273 = vunpack.c.h.b16 %v1980
    %v2274 = vunpack.c.l.b16 %v1981
    %v2275 = vunpack.c.l.b16 %v1982
    %v2276 = vunpack.c.h.b16 %v1982
    %v2277 = vunpack.c.l.b16 %v1983
    %v2278 = vunpack.c.l.b16 %v1984
    %v2279 = vunpack.c.h.b16 %v1984
    %v2280 = vunpack.c.l.b16 %v1985
    %v2281 = vunpack.c.l.b16 %v1986
    %v2282 = vunpack.c.h.b16 %v1986
    %v2283 = vunpack.c.l.b16 %v1987
    %v2284 = vunpack.c.l.b16 %v1988
    %v2285 = vunpack.c.h.b16 %v1988
    %v2286 = vunpack.c.l.b16 %v1989
    %v2287 = vunpack.c.l.b16 %v1990
    %v2288 = vunpack.c.h.b16 %v1990
    %v2289 = vunpack.c.l.b16 %v1991
    %v2290 = vunpack.c.l.b16 %v1992
    %v2291 = vunpack.c.h.b16 %v1992
    %v2292 = vunpack.c.l.b16 %v1993
    %v2293 = vunpack.c.l.b16 %v1994
    %v2294 = vunpack.c.h.b16 %v1994
    %v2295 = vunpack.c.l.b16 %v1995
    %v2296 = vunpack.c.l.b16 %v1996
    %v2297 = vunpack.c.h.b16 %v1996
    %v2298 = vunpack.c.l.b16 %v1997
    %v2299 = vunpack.c.l.b16 %v1998
    %v2300 = vunpack.c.h.b16 %v1998
    %v2301 = vunpack.c.l.b16 %v1999
    %v2302 = vunpack.c.l.b16 %v2000
    %v2303 = vunpack.c.h.b16 %v2000
    %v2304 = vunpack.c.l.b16 %v2001
    %v2305 = vunpack.c.l.b16 %v2002
    %v2306 = vunpack.c.h.b16 %v2002
    %v2307 = vunpack.c.l.b16 %v2003
    %v2308 = vunpack.c.l.b16 %v2004
    %v2309 = vunpack.c.h.b16 %v2004
    %v2310 = vunpack.c.l.b16 %v2005
    %v2311 = vunpack.c.l.b16 %v2006
    %v2312 = vunpack.c.h.b16 %v2006
    %v2313 = vunpack.c.l.b16 %v2007
    %v2314 = vunpack.c.l.b16 %v2008
    %v2315 = vunpack.c.h.b16 %v2008
    %v2316 = vunpack.c.l.b16 %v2009
    %v2317 = vunpack.c.l.b16 %v2010
    %v2318 = vunpack.c.h.b16 %v2010
    %v2319 = vunpack.c.l.b16 %v2011
    %v2320 = vunpack.c.l.b16 %v2012
    %v2321 = vunpack.c.h.b16 %v2012
    %v2322 = vunpack.c.l.b16 %v2013
    %v2323 = vunpack.c.l.b16 %v2014
    %v2324 = vunpack.c.h.b16 %v2014
    %v2325 = vunpack.c.l.b16 %v2015
    %v2326 = vunpack.c.l.b16 %v2016
    %v2327 = vunpack.c.h.b16 %v2016
    %v2328 = vunpack.c.l.b16 %v2017
    %v2329 = vunpack.c.l.b16 %v2018
    %v2330 = vunpack.c.h.b16 %v2018
    %v2331 = vunpack.c.l.b16 %v2019
    %v2332 = vunpack.c.l.b16 %v2020
    %v2333 = vunpack.c.h.b16 %v2020
    %v2334 = vunpack.c.l.b16 %v2021
    %v2335 = vunpack.c.l.b16 %v2022
    %v2336 = vunpack.c.h.b16 %v2022
    %v2337 = vunpack.c.l.b16 %v2023
    %v2338 = vunpack.c.l.b16 %v2024
    %v2339 = vunpack.c.h.b16 %v2024
    %v2340 = vunpack.c.l.b16 %v2025
    %v2341 = vunpack.c.l.b16 %v2026
    %v2342 = vunpack.c.h.b16 %v2026
    %v2343 = vunpack.c.l.b16 %v2027
    %v2344 = vunpack.c.l.b16 %v2028
    %v2345 = vunpack.c.h.b16 %v2028
    %v2346 = vunpack.c.l.b16 %v2029
    %v2347 = vunpack.c.l.b16 %v2030
    %v2348 = vunpack.c.h.b16 %v2030
    %v2349 = vunpack.c.l.b16 %v2031
    %v2350 = vunpack.c.l.b16 %v2032
    %v2351 = vunpack.c.h.b16 %v2032
    %v2352 = vunpack.c.l.b16 %v2033
    %v2353 = vunpack.c.l.b16 %v2034
    %v2354 = vunpack.c.h.b16 %v2034
    %v2355 = vunpack.c.l.b16 %v2035
    %v2356 = vpack.c.b16 %v2167, %v2164
    %v2357 = vpack.c.b16 %v2168, %v2165
    %v2358 = vpack.c.b16 %v2169, %v2166
    %v2359 = vpack.c.b16 %v2173, %v2170
    %v2360 = vpack.c.b16 %v2174, %v2171
    %v2361 = vpack.c.b16 %v2175, %v2172
    %v2362 = vpack.c.b16 %v2179, %v2176
    %v2363 = vpack.c.b16 %v2180, %v2177
    %v2364 = vpack.c.b16 %v2181, %v2178
    %v2365 = vpack.c.b16 %v2185, %v2182
    %v2366 = vpack.c.b16 %v2186, %v2183
    %v2367 = vpack.c.b16 %v2187, %v2184
    %v2368 = vpack.c.b16 %v2191, %v2188
    %v2369 = vpack.c.b16 %v2192, %v2189
    %v2370 = vpack.c.b16 %v2193, %v2190
    %v2371 = vpack.c.b16 %v2197, %v2194
    %v2372 = vpack.c.b16 %v2198, %v2195
    %v2373 = vpack.c.b16 %v2199, %v2196
    %v2374 = vpack.c.b16 %v2203, %v2200
    %v2375 = vpack.c.b16 %v2204, %v2201
    %v2376 = vpack.c.b16 %v2205, %v2202
    %v2377 = vpack.c.b16 %v2209, %v2206
    %v2378 = vpack.c.b16 %v2210, %v2207
    %v2379 = vpack.c.b16 %v2211, %v2208
    %v2380 = vpack.c.b16 %v2215, %v2212
    %v2381 = vpack.c.b16 %v2216, %v2213
    %v2382 = vpack.c.b16 %v2217, %v2214
    %v2383 = vpack.c.b16 %v2221, %v2218
    %v2384 = vpack.c.b16 %v2222, %v2219
    %v2385 = vpack.c.b16 %v2223, %v2220
    %v2386 = vpack.c.b16 %v2227, %v2224
    %v2387 = vpack.c.b16 %v2228, %v2225
    %v2388 = vpack.c.b16 %v2229, %v2226
    %v2389 = vpack.c.b16 %v2233, %v2230
    %v2390 = vpack.c.b16 %v2234, %v2231
    %v2391 = vpack.c.b16 %v2235, %v2232
    %v2392 = vpack.c.b16 %v2239, %v2236
    %v2393 = vpack.c.b16 %v2240, %v2237
    %v2394 = vpack.c.b16 %v2241, %v2238
    %v2395 = vpack.c.b16 %v2245, %v2242
    %v2396 = vpack.c.b16 %v2246, %v2243
    %v2397 = vpack.c.b16 %v2247, %v2244
    %v2398 = vpack.c.b16 %v2251, %v2248
    %v2399 = vpack.c.b16 %v2252, %v2249
    %v2400 = vpack.c.b16 %v2253, %v2250
    %v2401 = vpack.c.b16 %v2257, %v2254
    %v2402 = vpack.c.b16 %v2258, %v2255
    %v2403 = vpack.c.b16 %v2259, %v2256
    %v2404 = vpack.c.b16 %v2263, %v2260
    %v2405 = vpack.c.b16 %v2264, %v2261
    %v2406 = vpack.c.b16 %v2265, %v2262
    %v2407 = vpack.c.b16 %v2269, %v2266
    %v2408 = vpack.c.b16 %v2270, %v2267
    %v2409 = vpack.c.b16 %v2271, %v2268
    %v2410 = vpack.c.b16 %v2275, %v2272
    %v2411 = vpack.c.b16 %v2276, %v2273
    %v2412 = vpack.c.b16 %v2277, %v2274
    %v2413 = vpack.c.b16 %v2281, %v2278
    %v2414 = vpack.c.b16 %v2282, %v2279
    %v2415 = vpack.c.b16 %v2283, %v2280
    %v2416 = vpack.c.b16 %v2287, %v2284
    %v2417 = vpack.c.b16 %v2288, %v2285
    %v2418 = vpack.c.b16 %v2289, %v2286
    %v2419 = vpack.c.b16 %v2293, %v2290
    %v2420 = vpack.c.b16 %v2294, %v2291
    %v2421 = vpack.c.b16 %v2295, %v2292
    %v2422 = vpack.c.b16 %v2299, %v2296
    %v2423 = vpack.c.b16 %v2300, %v2297
    %v2424 = vpack.c.b16 %v2301, %v2298
    %v2425 = vpack.c.b16 %v2305, %v2302
    %v2426 = vpack.c.b16 %v2306, %v2303
    %v2427 = vpack.c.b16 %v2307, %v2304
    %v2428 = vpack.c.b16 %v2311, %v2308
    %v2429 = vpack.c.b16 %v2312, %v2309
    %v2430 = vpack.c.b16 %v2313, %v2310
    %v2431 = vpack.c.b16 %v2317, %v2314
    %v2432 = vpack.c.b16 %v2318, %v2315
    %v2433 = vpack.c.b16 %v2319, %v2316
    %v2434 = vpack.c.b16 %v2323, %v2320
    %v2435 = vpack.c.b16 %v2324, %v2321
    %v2436 = vpack.c.b16 %v2325, %v2322
    %v2437 = vpack.c.b16 %v2329, %v2326
    %v2438 = vpack.c.b16 %v2330, %v2327
    %v2439 = vpack.c.b16 %v2331, %v2328
    %v2440 = vpack.c.b16 %v2335, %v2332
    %v2441 = vpack.c.b16 %v2336, %v2333
    %v2442 = vpack.c.b16 %v2337, %v2334
    %v2443 = vpack.c.b16 %v2341, %v2338
    %v2444 = vpack.c.b16 %v2342, %v2339
    %v2445 = vpack.c.b16 %v2343, %v2340
    %v2446 = vpack.c.b16 %v2347, %v2344
    %v2447 = vpack.c.b16 %v2348, %v2345
    %v2448 = vpack.c.b16 %v2349, %v2346
    %v2449 = vpack.c.b16 %v2353, %v2350
    %v2450 = vpack.c.b16 %v2354, %v2351
    %v2451 = vpack.c.b16 %v2355, %v2352
    %2548 = vmatprep.subr.bf16.mxu0 %v2378
    %2549 = vmatpush1.bf16.msra.mxu0 %v2377
    %2550 = vmatprep.subr.bf16.mxu0 %v2375
    %2551 = vmatpush1.bf16.msra.mxu0 %v2374
    %2552 = vmatprep.subr.bf16.mxu0 %v2372
    %2553 = vmatpush1.bf16.msra.mxu0 %v2371
    %2554 = vmatprep.subr.bf16.mxu0 %v2369
    %2555 = vmatpush1.bf16.msra.mxu0 %v2368
    %2556 = vmatprep.subr.bf16.mxu0 %v2366
    %2557 = vmatpush1.bf16.msra.mxu0 %v2365
    %2558 = vmatprep.subr.bf16.mxu0 %v2363
    %2559 = vmatpush1.bf16.msra.mxu0 %v2362
    %2560 = vmatprep.subr.bf16.mxu0 %v2360
    %2561 = vmatpush1.bf16.msra.mxu0 %v2359
    %2562 = vmatprep.subr.bf16.mxu0 %v2357
    %2563 = vmatpush1.bf16.msra.mxu0 %v2356
    %2564 = vmatprep.subr.bf16.mxu0 %v2402
    %2565 = vmatpush2.bf16.msra.mxu0 %v2401
    %2566 = vmatprep.subr.bf16.mxu0 %v2399
    %2567 = vmatpush2.bf16.msra.mxu0 %v2398
    %2568 = vmatprep.subr.bf16.mxu0 %v2396
    %2569 = vmatpush2.bf16.msra.mxu0 %v2395
    %2570 = vmatprep.subr.bf16.mxu0 %v2393
    %2571 = vmatpush2.bf16.msra.mxu0 %v2392
    %2572 = vmatprep.subr.bf16.mxu0 %v2390
    %2573 = vmatpush2.bf16.msra.mxu0 %v2389
    %2574 = vmatprep.subr.bf16.mxu0 %v2387
    %2575 = vmatpush2.bf16.msra.mxu0 %v2386
    %2576 = vmatprep.subr.bf16.mxu0 %v2384
    %2577 = vmatpush2.bf16.msra.mxu0 %v2383
    %2578 = vmatprep.subr.bf16.mxu0 %v2381
    %2579 = vmatpush2.bf16.msra.mxu0 %v2380
    %2580 = vmatprep.mubr.bf16.mxu0 %v1905
    %2581 = vmatmul.mubr.bf16.gmra.mxu0 %v1904
    %v2582 = vpop.f32.mrf.mxu0
    %v2583 = vadd.f32 0.0, %v2582
    %v2584 = vpop.f32.mrf.mxu0
    %v2585 = vadd.f32 0.0, %v2584
    %v2586 = vpop.f32.mrf.mxu0
    %v2587 = vpop.f32.mrf.mxu0
    %2588 = vdwg.mxu0
    %2589 = vmatprep.subr.bf16.mxu0 %v2426
    %2590 = vmatpush1.bf16.msra.mxu0 %v2425
    %2591 = vmatprep.subr.bf16.mxu0 %v2423
    %2592 = vmatpush1.bf16.msra.mxu0 %v2422
    %2593 = vmatprep.subr.bf16.mxu0 %v2420
    %2594 = vmatpush1.bf16.msra.mxu0 %v2419
    %2595 = vmatprep.subr.bf16.mxu0 %v2417
    %2596 = vmatpush1.bf16.msra.mxu0 %v2416
    %2597 = vmatprep.subr.bf16.mxu0 %v2414
    %2598 = vmatpush1.bf16.msra.mxu0 %v2413
    %2599 = vmatprep.subr.bf16.mxu0 %v2411
    %2600 = vmatpush1.bf16.msra.mxu0 %v2410
    %2601 = vmatprep.subr.bf16.mxu0 %v2408
    %2602 = vmatpush1.bf16.msra.mxu0 %v2407
    %2603 = vmatprep.subr.bf16.mxu0 %v2405
    %2604 = vmatpush1.bf16.msra.mxu0 %v2404
    %2605 = vmatprep.subr.bf16.mxu0 %v2450
    %2606 = vmatpush2.bf16.msra.mxu0 %v2449
    %2607 = vmatprep.subr.bf16.mxu0 %v2447
    %2608 = vmatpush2.bf16.msra.mxu0 %v2446
    %2609 = vmatprep.subr.bf16.mxu0 %v2444
    %2610 = vmatpush2.bf16.msra.mxu0 %v2443
    %2611 = vmatprep.subr.bf16.mxu0 %v2441
    %2612 = vmatpush2.bf16.msra.mxu0 %v2440
    %2613 = vmatprep.subr.bf16.mxu0 %v2438
    %2614 = vmatpush2.bf16.msra.mxu0 %v2437
    %2615 = vmatprep.subr.bf16.mxu0 %v2435
    %2616 = vmatpush2.bf16.msra.mxu0 %v2434
    %2617 = vmatprep.subr.bf16.mxu0 %v2432
    %2618 = vmatpush2.bf16.msra.mxu0 %v2431
    %2619 = vmatprep.subr.bf16.mxu0 %v2429
    %2620 = vmatpush2.bf16.msra.mxu0 %v2428
    %2621 = vmatprep.mubr.bf16.mxu0 %v1907
    %2622 = vmatmul.mubr.bf16.gmra.mxu0 %v1906
    %v2623 = vpop.f32.mrf.mxu0
    %v2624 = vadd.f32 %v2583, %v2623
    %v2625 = vpop.f32.mrf.mxu0
    %v2626 = vadd.f32 %v2585, %v2625
    %v2627 = vpop.f32.mrf.mxu0
    %v2628 = vpop.f32.mrf.mxu0
    %2629 = vdwg.mxu0
    %2630 = vmatprep.subr.bf16.mxu0 0
    %2631 = vmatpush1.bf16.msra.mxu0 %v2379
    %2632 = vmatprep.subr.bf16.mxu0 0
    %2633 = vmatpush1.bf16.msra.mxu0 %v2376
    %2634 = vmatprep.subr.bf16.mxu0 0
    %2635 = vmatpush1.bf16.msra.mxu0 %v2373
    %2636 = vmatprep.subr.bf16.mxu0 0
    %2637 = vmatpush1.bf16.msra.mxu0 %v2370
    %2638 = vmatprep.subr.bf16.mxu0 0
    %2639 = vmatpush1.bf16.msra.mxu0 %v2367
    %2640 = vmatprep.subr.bf16.mxu0 0
    %2641 = vmatpush1.bf16.msra.mxu0 %v2364
    %2642 = vmatprep.subr.bf16.mxu0 0
    %2643 = vmatpush1.bf16.msra.mxu0 %v2361
    %2644 = vmatprep.subr.bf16.mxu0 0
    %2645 = vmatpush1.bf16.msra.mxu0 %v2358
    %2646 = vmatprep.subr.bf16.mxu0 0
    %2647 = vmatpush2.bf16.msra.mxu0 %v2403
    %2648 = vmatprep.subr.bf16.mxu0 0
    %2649 = vmatpush2.bf16.msra.mxu0 %v2400
    %2650 = vmatprep.subr.bf16.mxu0 0
    %2651 = vmatpush2.bf16.msra.mxu0 %v2397
    %2652 = vmatprep.subr.bf16.mxu0 0
    %2653 = vmatpush2.bf16.msra.mxu0 %v2394
    %2654 = vmatprep.subr.bf16.mxu0 0
    %2655 = vmatpush2.bf16.msra.mxu0 %v2391
    %2656 = vmatprep.subr.bf16.mxu0 0
    %2657 = vmatpush2.bf16.msra.mxu0 %v2388
    %2658 = vmatprep.subr.bf16.mxu0 0
    %2659 = vmatpush2.bf16.msra.mxu0 %v2385
    %2660 = vmatprep.subr.bf16.mxu0 0
    %2661 = vmatpush2.bf16.msra.mxu0 %v2382
    %2662 = vmatprep.mubr.bf16.mxu0 %v1905
    %2663 = vmatmul.mubr.bf16.gmra.mxu0 %v1904
    %v2664 = vpop.f32.mrf.mxu0
    %v2665 = vadd.f32 0.0, %v2664
    %v2666 = vpop.f32.mrf.mxu0
    %v2667 = vpop.f32.mrf.mxu0
    %v2668 = vpop.f32.mrf.mxu0
    %2669 = vdwg.mxu0
    %2670 = vmatprep.subr.bf16.mxu0 0
    %2671 = vmatpush1.bf16.msra.mxu0 %v2427
    %2672 = vmatprep.subr.bf16.mxu0 0
    %2673 = vmatpush1.bf16.msra.mxu0 %v2424
    %2674 = vmatprep.subr.bf16.mxu0 0
    %2675 = vmatpush1.bf16.msra.mxu0 %v2421
    %2676 = vmatprep.subr.bf16.mxu0 0
    %2677 = vmatpush1.bf16.msra.mxu0 %v2418
    %2678 = vmatprep.subr.bf16.mxu0 0
    %2679 = vmatpush1.bf16.msra.mxu0 %v2415
    %2680 = vmatprep.subr.bf16.mxu0 0
    %2681 = vmatpush1.bf16.msra.mxu0 %v2412
    %2682 = vmatprep.subr.bf16.mxu0 0
    %2683 = vmatpush1.bf16.msra.mxu0 %v2409
    %2684 = vmatprep.subr.bf16.mxu0 0
    %2685 = vmatpush1.bf16.msra.mxu0 %v2406
    %2686 = vmatprep.subr.bf16.mxu0 0
    %2687 = vmatpush2.bf16.msra.mxu0 %v2451
    %2688 = vmatprep.subr.bf16.mxu0 0
    %2689 = vmatpush2.bf16.msra.mxu0 %v2448
    %2690 = vmatprep.subr.bf16.mxu0 0
    %2691 = vmatpush2.bf16.msra.mxu0 %v2445
    %2692 = vmatprep.subr.bf16.mxu0 0
    %2693 = vmatpush2.bf16.msra.mxu0 %v2442
    %2694 = vmatprep.subr.bf16.mxu0 0
    %2695 = vmatpush2.bf16.msra.mxu0 %v2439
    %2696 = vmatprep.subr.bf16.mxu0 0
    %2697 = vmatpush2.bf16.msra.mxu0 %v2436
    %2698 = vmatprep.subr.bf16.mxu0 0
    %2699 = vmatpush2.bf16.msra.mxu0 %v2433
    %2700 = vmatprep.subr.bf16.mxu0 0
    %2701 = vmatpush2.bf16.msra.mxu0 %v2430
    %2702 = vmatprep.mubr.bf16.mxu0 %v1907
    %2703 = vmatmul.mubr.bf16.gmra.mxu0 %v1906
    %v2704 = vpop.f32.mrf.mxu0
    %v2705 = vadd.f32 %v2665, %v2704
    %v2706 = vpop.f32.mrf.mxu0
    %v2707 = vpop.f32.mrf.mxu0
    %v2708 = vpop.f32.mrf.mxu0
    %2709 = vdwg.mxu0
    %v2710 = vld [vmem:[#allocation13] sm:$0x7]
    %v2712 = vlaneseq
    %v2713 = vshrl.u32 %v2712, 7
    %v2714 = vsub.s32 0, %v2713
    %v2715 = vrot.slane %v2710, %v2714
    %v2716 = vlaneseq
    %v2717 = vshrl.u32 %v2716, 7
    %v2718 = vsub.s32 1, %v2717
    %v2719 = vrot.slane %v2710, %v2718
    %v2720 = vlaneseq
    %v2721 = vshrl.u32 %v2720, 7
    %v2722 = vsub.s32 2, %v2721
    %v2723 = vrot.slane %v2710, %v2722
    %v2727 = vmul.f32 %v2624, %v2715
    %v2728 = vmul.f32 %v2626, %v2719
    %v2729 = vmul.f32 %v2705, %v2723
    %v2730 = vld [vmem:[#allocation15] sm:$0x7]
    %v2732 = vlaneseq
    %v2733 = vshrl.u32 %v2732, 7
    %v2734 = vsub.s32 0, %v2733
    %v2735 = vrot.slane %v2730, %v2734
    %v2736 = vlaneseq
    %v2737 = vshrl.u32 %v2736, 7
    %v2738 = vsub.s32 1, %v2737
    %v2739 = vrot.slane %v2730, %v2738
    %v2740 = vlaneseq
    %v2741 = vshrl.u32 %v2740, 7
    %v2742 = vsub.s32 2, %v2741
    %v2743 = vrot.slane %v2730, %v2742
    %v2747 = vadd.f32 %v2727, %v2735
    %v2748 = vadd.f32 %v2728, %v2739
    %v2749 = vadd.f32 %v2729, %v2743
    %v2750 = vmul.f32 %v2747, 0.1
    %v2751 = vmul.f32 %v2748, 0.1
    %v2752 = vmul.f32 %v2749, 0.1
    %v2753 = vmax.f32 %v2747, %v2750
    %v2754 = vmax.f32 %v2748, %v2751
    %v2755 = vmax.f32 %v2749, %v2752
    %v2756 = vpack.c.bf16 %v2753, %v2753
    %v2757 = vpack.c.bf16 %v2754, %v2754
    %v2758 = vpack.c.bf16 %v2755, %v2755
    %v2759 = vld [vmem:[#allocation16] sm:$0xff]
    %v2760 = vld [vmem:[#allocation16 + $0x8] sm:$0xff]
    %v2761 = vld [vmem:[#allocation16 + $0x10] sm:$0xff]
    %v2762 = vld [vmem:[#allocation16 + $0x18] sm:$0xff]
    %v2763 = vld [vmem:[#allocation16 + $0x20] sm:$0xff]
    %v2764 = vld [vmem:[#allocation16 + $0x28] sm:$0xff]
    %v2765 = vld [vmem:[#allocation16 + $0x30] sm:$0xff]
    %v2766 = vld [vmem:[#allocation16 + $0x38] sm:$0xff]
    %v2767 = vld [vmem:[#allocation16 + $0x40] sm:$0xff]
    %v2768 = vld [vmem:[#allocation16 + $0x48] sm:$0xff]
    %v2769 = vld [vmem:[#allocation16 + $0x50] sm:$0xff]
    %v2770 = vld [vmem:[#allocation16 + $0x58] sm:$0xff]
    %v2771 = vld [vmem:[#allocation16 + $0x60] sm:$0xff]
    %v2772 = vld [vmem:[#allocation16 + $0x68] sm:$0xff]
    %v2773 = vld [vmem:[#allocation16 + $0x70] sm:$0xff]
    %v2774 = vld [vmem:[#allocation16 + $0x78] sm:$0xff]
    %v2775 = vld [vmem:[#allocation16 + $0x80] sm:$0xff]
    %v2776 = vld [vmem:[#allocation16 + $0x88] sm:$0xff]
    %v2777 = vld [vmem:[#allocation16 + $0x90] sm:$0xff]
    %v2778 = vld [vmem:[#allocation16 + $0x98] sm:$0xff]
    %v2779 = vld [vmem:[#allocation16 + $0xa0] sm:$0xff]
    %v2780 = vld [vmem:[#allocation16 + $0xa8] sm:$0xff]
    %v2781 = vld [vmem:[#allocation16 + $0xb0] sm:$0xff]
    %v2782 = vld [vmem:[#allocation16 + $0xb8] sm:$0xff]
    %v2783 = vld [vmem:[#allocation16 + $0xc0] sm:$0xff]
    %v2784 = vld [vmem:[#allocation16 + $0xc8] sm:$0xff]
    %v2785 = vld [vmem:[#allocation16 + $0xd0] sm:$0xff]
    %v2786 = vld [vmem:[#allocation16 + $0xd8] sm:$0xff]
    %v2787 = vld [vmem:[#allocation16 + $0xe0] sm:$0xff]
    %v2788 = vld [vmem:[#allocation16 + $0xe8] sm:$0xff]
    %v2789 = vld [vmem:[#allocation16 + $0xf0] sm:$0xff]
    %v2790 = vld [vmem:[#allocation16 + $0xf8] sm:$0xff]
    %v2791 = vld [vmem:[#allocation16 + $0x100] sm:$0xff]
    %v2792 = vld [vmem:[#allocation16 + $0x108] sm:$0xff]
    %v2793 = vld [vmem:[#allocation16 + $0x110] sm:$0xff]
    %v2794 = vld [vmem:[#allocation16 + $0x118] sm:$0xff]
    %v2795 = vld [vmem:[#allocation16 + $0x120] sm:$0xff]
    %v2796 = vld [vmem:[#allocation16 + $0x128] sm:$0xff]
    %v2797 = vld [vmem:[#allocation16 + $0x130] sm:$0xff]
    %v2798 = vld [vmem:[#allocation16 + $0x138] sm:$0xff]
    %v2799 = vld [vmem:[#allocation16 + $0x140] sm:$0xff]
    %v2800 = vld [vmem:[#allocation16 + $0x148] sm:$0xff]
    %v2801 = vld [vmem:[#allocation16 + $0x150] sm:$0xff]
    %v2802 = vld [vmem:[#allocation16 + $0x158] sm:$0xff]
    %v2803 = vld [vmem:[#allocation16 + $0x160] sm:$0xff]
    %v2804 = vld [vmem:[#allocation16 + $0x168] sm:$0xff]
    %v2805 = vld [vmem:[#allocation16 + $0x170] sm:$0xff]
    %v2806 = vld [vmem:[#allocation16 + $0x178] sm:$0xff]
    %v2855 = vunpack.c.l.b16 %v2759
    %v2856 = vunpack.c.h.b16 %v2759
    %v2857 = vunpack.c.l.b16 %v2760
    %v2858 = vunpack.c.h.b16 %v2760
    %v2859 = vunpack.c.l.b16 %v2761
    %v2860 = vunpack.c.h.b16 %v2761
    %v2861 = vunpack.c.l.b16 %v2762
    %v2862 = vunpack.c.h.b16 %v2762
    %v2863 = vunpack.c.l.b16 %v2763
    %v2864 = vunpack.c.h.b16 %v2763
    %v2865 = vunpack.c.l.b16 %v2764
    %v2866 = vunpack.c.h.b16 %v2764
    %v2867 = vunpack.c.l.b16 %v2765
    %v2868 = vunpack.c.h.b16 %v2765
    %v2869 = vunpack.c.l.b16 %v2766
    %v2870 = vunpack.c.h.b16 %v2766
    %v2871 = vunpack.c.l.b16 %v2767
    %v2872 = vunpack.c.h.b16 %v2767
    %v2873 = vunpack.c.l.b16 %v2768
    %v2874 = vunpack.c.h.b16 %v2768
    %v2875 = vunpack.c.l.b16 %v2769
    %v2876 = vunpack.c.h.b16 %v2769
    %v2877 = vunpack.c.l.b16 %v2770
    %v2878 = vunpack.c.h.b16 %v2770
    %v2879 = vunpack.c.l.b16 %v2771
    %v2880 = vunpack.c.h.b16 %v2771
    %v2881 = vunpack.c.l.b16 %v2772
    %v2882 = vunpack.c.h.b16 %v2772
    %v2883 = vunpack.c.l.b16 %v2773
    %v2884 = vunpack.c.h.b16 %v2773
    %v2885 = vunpack.c.l.b16 %v2774
    %v2886 = vunpack.c.h.b16 %v2774
    %v2887 = vunpack.c.l.b16 %v2775
    %v2888 = vunpack.c.h.b16 %v2775
    %v2889 = vunpack.c.l.b16 %v2776
    %v2890 = vunpack.c.h.b16 %v2776
    %v2891 = vunpack.c.l.b16 %v2777
    %v2892 = vunpack.c.h.b16 %v2777
    %v2893 = vunpack.c.l.b16 %v2778
    %v2894 = vunpack.c.h.b16 %v2778
    %v2895 = vunpack.c.l.b16 %v2779
    %v2896 = vunpack.c.h.b16 %v2779
    %v2897 = vunpack.c.l.b16 %v2780
    %v2898 = vunpack.c.h.b16 %v2780
    %v2899 = vunpack.c.l.b16 %v2781
    %v2900 = vunpack.c.h.b16 %v2781
    %v2901 = vunpack.c.l.b16 %v2782
    %v2902 = vunpack.c.h.b16 %v2782
    %v2903 = vunpack.c.l.b16 %v2783
    %v2904 = vunpack.c.h.b16 %v2783
    %v2905 = vunpack.c.l.b16 %v2784
    %v2906 = vunpack.c.h.b16 %v2784
    %v2907 = vunpack.c.l.b16 %v2785
    %v2908 = vunpack.c.h.b16 %v2785
    %v2909 = vunpack.c.l.b16 %v2786
    %v2910 = vunpack.c.h.b16 %v2786
    %v2911 = vunpack.c.l.b16 %v2787
    %v2912 = vunpack.c.h.b16 %v2787
    %v2913 = vunpack.c.l.b16 %v2788
    %v2914 = vunpack.c.h.b16 %v2788
    %v2915 = vunpack.c.l.b16 %v2789
    %v2916 = vunpack.c.h.b16 %v2789
    %v2917 = vunpack.c.l.b16 %v2790
    %v2918 = vunpack.c.h.b16 %v2790
    %v2919 = vunpack.c.l.b16 %v2791
    %v2920 = vunpack.c.h.b16 %v2791
    %v2921 = vunpack.c.l.b16 %v2792
    %v2922 = vunpack.c.h.b16 %v2792
    %v2923 = vunpack.c.l.b16 %v2793
    %v2924 = vunpack.c.h.b16 %v2793
    %v2925 = vunpack.c.l.b16 %v2794
    %v2926 = vunpack.c.h.b16 %v2794
    %v2927 = vunpack.c.l.b16 %v2795
    %v2928 = vunpack.c.h.b16 %v2795
    %v2929 = vunpack.c.l.b16 %v2796
    %v2930 = vunpack.c.h.b16 %v2796
    %v2931 = vunpack.c.l.b16 %v2797
    %v2932 = vunpack.c.h.b16 %v2797
    %v2933 = vunpack.c.l.b16 %v2798
    %v2934 = vunpack.c.h.b16 %v2798
    %v2935 = vunpack.c.l.b16 %v2799
    %v2936 = vunpack.c.h.b16 %v2799
    %v2937 = vunpack.c.l.b16 %v2800
    %v2938 = vunpack.c.h.b16 %v2800
    %v2939 = vunpack.c.l.b16 %v2801
    %v2940 = vunpack.c.h.b16 %v2801
    %v2941 = vunpack.c.l.b16 %v2802
    %v2942 = vunpack.c.h.b16 %v2802
    %v2943 = vunpack.c.l.b16 %v2803
    %v2944 = vunpack.c.h.b16 %v2803
    %v2945 = vunpack.c.l.b16 %v2804
    %v2946 = vunpack.c.h.b16 %v2804
    %v2947 = vunpack.c.l.b16 %v2805
    %v2948 = vunpack.c.h.b16 %v2805
    %v2949 = vunpack.c.l.b16 %v2806
    %v2950 = vunpack.c.h.b16 %v2806
    %v2951 = vpack.c.b16 %v2857, %v2855
    %v2952 = vpack.c.b16 %v2858, %v2856
    %v2953 = vpack.c.b16 %v2861, %v2859
    %v2954 = vpack.c.b16 %v2862, %v2860
    %v2955 = vpack.c.b16 %v2865, %v2863
    %v2956 = vpack.c.b16 %v2866, %v2864
    %v2957 = vpack.c.b16 %v2869, %v2867
    %v2958 = vpack.c.b16 %v2870, %v2868
    %v2959 = vpack.c.b16 %v2873, %v2871
    %v2960 = vpack.c.b16 %v2874, %v2872
    %v2961 = vpack.c.b16 %v2877, %v2875
    %v2962 = vpack.c.b16 %v2878, %v2876
    %v2963 = vpack.c.b16 %v2881, %v2879
    %v2964 = vpack.c.b16 %v2882, %v2880
    %v2965 = vpack.c.b16 %v2885, %v2883
    %v2966 = vpack.c.b16 %v2886, %v2884
    %v2967 = vpack.c.b16 %v2889, %v2887
    %v2968 = vpack.c.b16 %v2890, %v2888
    %v2969 = vpack.c.b16 %v2893, %v2891
    %v2970 = vpack.c.b16 %v2894, %v2892
    %v2971 = vpack.c.b16 %v2897, %v2895
    %v2972 = vpack.c.b16 %v2898, %v2896
    %v2973 = vpack.c.b16 %v2901, %v2899
    %v2974 = vpack.c.b16 %v2902, %v2900
    %v2975 = vpack.c.b16 %v2905, %v2903
    %v2976 = vpack.c.b16 %v2906, %v2904
    %v2977 = vpack.c.b16 %v2909, %v2907
    %v2978 = vpack.c.b16 %v2910, %v2908
    %v2979 = vpack.c.b16 %v2913, %v2911
    %v2980 = vpack.c.b16 %v2914, %v2912
    %v2981 = vpack.c.b16 %v2917, %v2915
    %v2982 = vpack.c.b16 %v2918, %v2916
    %v2983 = vpack.c.b16 %v2921, %v2919
    %v2984 = vpack.c.b16 %v2922, %v2920
    %v2985 = vpack.c.b16 %v2925, %v2923
    %v2986 = vpack.c.b16 %v2926, %v2924
    %v2987 = vpack.c.b16 %v2929, %v2927
    %v2988 = vpack.c.b16 %v2930, %v2928
    %v2989 = vpack.c.b16 %v2933, %v2931
    %v2990 = vpack.c.b16 %v2934, %v2932
    %v2991 = vpack.c.b16 %v2937, %v2935
    %v2992 = vpack.c.b16 %v2938, %v2936
    %v2993 = vpack.c.b16 %v2941, %v2939
    %v2994 = vpack.c.b16 %v2942, %v2940
    %v2995 = vpack.c.b16 %v2945, %v2943
    %v2996 = vpack.c.b16 %v2946, %v2944
    %v2997 = vpack.c.b16 %v2949, %v2947
    %v2998 = vpack.c.b16 %v2950, %v2948
    %3047 = vmatprep.subr.bf16.mxu0 %v2966
    %3048 = vmatpush1.bf16.msra.mxu0 %v2965
    %3049 = vmatprep.subr.bf16.mxu0 %v2964
    %3050 = vmatpush1.bf16.msra.mxu0 %v2963
    %3051 = vmatprep.subr.bf16.mxu0 %v2962
    %3052 = vmatpush1.bf16.msra.mxu0 %v2961
    %3053 = vmatprep.subr.bf16.mxu0 %v2960
    %3054 = vmatpush1.bf16.msra.mxu0 %v2959
    %3055 = vmatprep.subr.bf16.mxu0 %v2958
    %3056 = vmatpush1.bf16.msra.mxu0 %v2957
    %3057 = vmatprep.subr.bf16.mxu0 %v2956
    %3058 = vmatpush1.bf16.msra.mxu0 %v2955
    %3059 = vmatprep.subr.bf16.mxu0 %v2954
    %3060 = vmatpush1.bf16.msra.mxu0 %v2953
    %3061 = vmatprep.subr.bf16.mxu0 %v2952
    %3062 = vmatpush1.bf16.msra.mxu0 %v2951
    %3063 = vmatprep.subr.bf16.mxu0 %v2982
    %3064 = vmatpush2.bf16.msra.mxu0 %v2981
    %3065 = vmatprep.subr.bf16.mxu0 %v2980
    %3066 = vmatpush2.bf16.msra.mxu0 %v2979
    %3067 = vmatprep.subr.bf16.mxu0 %v2978
    %3068 = vmatpush2.bf16.msra.mxu0 %v2977
    %3069 = vmatprep.subr.bf16.mxu0 %v2976
    %3070 = vmatpush2.bf16.msra.mxu0 %v2975
    %3071 = vmatprep.subr.bf16.mxu0 %v2974
    %3072 = vmatpush2.bf16.msra.mxu0 %v2973
    %3073 = vmatprep.subr.bf16.mxu0 %v2972
    %3074 = vmatpush2.bf16.msra.mxu0 %v2971
    %3075 = vmatprep.subr.bf16.mxu0 %v2970
    %3076 = vmatpush2.bf16.msra.mxu0 %v2969
    %3077 = vmatprep.subr.bf16.mxu0 %v2968
    %3078 = vmatpush2.bf16.msra.mxu0 %v2967
    %3079 = vmatprep.mubr.bf16.mxu0 %v2757
    %3080 = vmatmul.mubr.bf16.gmra.mxu0 %v2756
    %v3081 = vpop.f32.mrf.mxu0
    %v3082 = vadd.f32 0.0, %v3081
    %v3083 = vpop.f32.mrf.mxu0
    %v3084 = vadd.f32 0.0, %v3083
    %v3085 = vpop.f32.mrf.mxu0
    %v3086 = vpop.f32.mrf.mxu0
    %3087 = vdwg.mxu0
    %3088 = vmatprep.subr.bf16.mxu0 %v2998
    %3089 = vmatpush1.bf16.msra.mxu0 %v2997
    %3090 = vmatprep.subr.bf16.mxu0 %v2996
    %3091 = vmatpush1.bf16.msra.mxu0 %v2995
    %3092 = vmatprep.subr.bf16.mxu0 %v2994
    %3093 = vmatpush1.bf16.msra.mxu0 %v2993
    %3094 = vmatprep.subr.bf16.mxu0 %v2992
    %3095 = vmatpush1.bf16.msra.mxu0 %v2991
    %3096 = vmatprep.subr.bf16.mxu0 %v2990
    %3097 = vmatpush1.bf16.msra.mxu0 %v2989
    %3098 = vmatprep.subr.bf16.mxu0 %v2988
    %3099 = vmatpush1.bf16.msra.mxu0 %v2987
    %3100 = vmatprep.subr.bf16.mxu0 %v2986
    %3101 = vmatpush1.bf16.msra.mxu0 %v2985
    %3102 = vmatprep.subr.bf16.mxu0 %v2984
    %3103 = vmatpush1.bf16.msra.mxu0 %v2983
    %3104 = vmatprep.subr.bf16.mxu0 0
    %3105 = vmatpush2.bf16.msra.mxu0 0
    %3106 = vmatprep.subr.bf16.mxu0 0
    %3107 = vmatpush2.bf16.msra.mxu0 0
    %3108 = vmatprep.subr.bf16.mxu0 0
    %3109 = vmatpush2.bf16.msra.mxu0 0
    %3110 = vmatprep.subr.bf16.mxu0 0
    %3111 = vmatpush2.bf16.msra.mxu0 0
    %3112 = vmatprep.subr.bf16.mxu0 0
    %3113 = vmatpush2.bf16.msra.mxu0 0
    %3114 = vmatprep.subr.bf16.mxu0 0
    %3115 = vmatpush2.bf16.msra.mxu0 0
    %3116 = vmatprep.subr.bf16.mxu0 0
    %3117 = vmatpush2.bf16.msra.mxu0 0
    %3118 = vmatprep.subr.bf16.mxu0 0
    %3119 = vmatpush2.bf16.msra.mxu0 0
    %3120 = vmatprep.mubr.bf16.mxu0 0
    %3121 = vmatmul.mubr.bf16.gmra.mxu0 %v2758
    %v3122 = vpop.f32.mrf.mxu0
    %v3123 = vadd.f32 %v3082, %v3122
    %v3124 = vpop.f32.mrf.mxu0
    %v3125 = vadd.f32 %v3084, %v3124
    %v3126 = vpop.f32.mrf.mxu0
    %v3127 = vpop.f32.mrf.mxu0
    %3128 = vdwg.mxu0
    %v3129 = vld [vmem:[#allocation18] sm:$0x3]
    %v3131 = vlaneseq
    %v3132 = vshrl.u32 %v3131, 7
    %v3133 = vsub.s32 0, %v3132
    %v3134 = vrot.slane %v3129, %v3133
    %v3135 = vlaneseq
    %v3136 = vshrl.u32 %v3135, 7
    %v3137 = vsub.s32 1, %v3136
    %v3138 = vrot.slane %v3129, %v3137
    %v3141 = vmul.f32 %v3123, %v3134
    %v3142 = vmul.f32 %v3125, %v3138
    %v3143 = vld [vmem:[#allocation19] sm:$0x3]
    %v3145 = vlaneseq
    %v3146 = vshrl.u32 %v3145, 7
    %v3147 = vsub.s32 0, %v3146
    %v3148 = vrot.slane %v3143, %v3147
    %v3149 = vlaneseq
    %v3150 = vshrl.u32 %v3149, 7
    %v3151 = vsub.s32 1, %v3150
    %v3152 = vrot.slane %v3143, %v3151
    %v3155 = vadd.f32 %v3141, %v3148
    %v3156 = vadd.f32 %v3142, %v3152
    %v3157 = vmul.f32 %v3155, 0.1
    %v3158 = vmul.f32 %v3156, 0.1
    %v3159 = vmax.f32 %v3155, %v3157
    %v3160 = vmax.f32 %v3156, %v3158
    %v3161 = vpack.c.bf16 %v3159, %v3159
    %v3162 = vpack.c.bf16 %v3160, %v3160
    %v3163 = vld [vmem:[#allocation21] sm:$0xff]
    %v3164 = vld [vmem:[#allocation21 + $0x8] sm:$0xff]
    %v3165 = vld [vmem:[#allocation21 + $0x10] sm:$0xff]
    %v3166 = vld [vmem:[#allocation21 + $0x18] sm:$0xff]
    %v3167 = vld [vmem:[#allocation21 + $0x20] sm:$0xff]
    %v3168 = vld [vmem:[#allocation21 + $0x28] sm:$0xff]
    %v3169 = vld [vmem:[#allocation21 + $0x30] sm:$0xff]
    %v3170 = vld [vmem:[#allocation21 + $0x38] sm:$0xff]
    %v3171 = vld [vmem:[#allocation21 + $0x40] sm:$0xff]
    %v3172 = vld [vmem:[#allocation21 + $0x48] sm:$0xff]
    %v3173 = vld [vmem:[#allocation21 + $0x50] sm:$0xff]
    %v3174 = vld [vmem:[#allocation21 + $0x58] sm:$0xff]
    %v3175 = vld [vmem:[#allocation21 + $0x60] sm:$0xff]
    %v3176 = vld [vmem:[#allocation21 + $0x68] sm:$0xff]
    %v3177 = vld [vmem:[#allocation21 + $0x70] sm:$0xff]
    %v3178 = vld [vmem:[#allocation21 + $0x78] sm:$0xff]
    %v3179 = vld [vmem:[#allocation21 + $0x80] sm:$0xff]
    %v3180 = vld [vmem:[#allocation21 + $0x88] sm:$0xff]
    %v3181 = vld [vmem:[#allocation21 + $0x90] sm:$0xff]
    %v3182 = vld [vmem:[#allocation21 + $0x98] sm:$0xff]
    %v3183 = vld [vmem:[#allocation21 + $0xa0] sm:$0xff]
    %v3184 = vld [vmem:[#allocation21 + $0xa8] sm:$0xff]
    %v3185 = vld [vmem:[#allocation21 + $0xb0] sm:$0xff]
    %v3186 = vld [vmem:[#allocation21 + $0xb8] sm:$0xff]
    %v3187 = vld [vmem:[#allocation21 + $0xc0] sm:$0xff]
    %v3188 = vld [vmem:[#allocation21 + $0xc8] sm:$0xff]
    %v3189 = vld [vmem:[#allocation21 + $0xd0] sm:$0xff]
    %v3190 = vld [vmem:[#allocation21 + $0xd8] sm:$0xff]
    %v3191 = vld [vmem:[#allocation21 + $0xe0] sm:$0xff]
    %v3192 = vld [vmem:[#allocation21 + $0xe8] sm:$0xff]
    %v3193 = vld [vmem:[#allocation21 + $0xf0] sm:$0xff]
    %v3194 = vld [vmem:[#allocation21 + $0xf8] sm:$0xff]
    %v3195 = vld [vmem:[#allocation21 + $0x100] sm:$0xff]
    %v3196 = vld [vmem:[#allocation21 + $0x108] sm:$0xff]
    %v3197 = vld [vmem:[#allocation21 + $0x110] sm:$0xff]
    %v3198 = vld [vmem:[#allocation21 + $0x118] sm:$0xff]
    %v3199 = vld [vmem:[#allocation21 + $0x120] sm:$0xff]
    %v3200 = vld [vmem:[#allocation21 + $0x128] sm:$0xff]
    %v3201 = vld [vmem:[#allocation21 + $0x130] sm:$0xff]
    %v3202 = vld [vmem:[#allocation21 + $0x138] sm:$0xff]
    %v3203 = vld [vmem:[#allocation21 + $0x140] sm:$0xff]
    %v3204 = vld [vmem:[#allocation21 + $0x148] sm:$0xff]
    %v3205 = vld [vmem:[#allocation21 + $0x150] sm:$0xff]
    %v3206 = vld [vmem:[#allocation21 + $0x158] sm:$0xff]
    %v3207 = vld [vmem:[#allocation21 + $0x160] sm:$0xff]
    %v3208 = vld [vmem:[#allocation21 + $0x168] sm:$0xff]
    %v3209 = vld [vmem:[#allocation21 + $0x170] sm:$0xff]
    %v3210 = vld [vmem:[#allocation21 + $0x178] sm:$0xff]
    %v3211 = vld [vmem:[#allocation21 + $0x180] sm:$0xff]
    %v3212 = vld [vmem:[#allocation21 + $0x188] sm:$0xff]
    %v3213 = vld [vmem:[#allocation21 + $0x190] sm:$0xff]
    %v3214 = vld [vmem:[#allocation21 + $0x198] sm:$0xff]
    %v3215 = vld [vmem:[#allocation21 + $0x1a0] sm:$0xff]
    %v3216 = vld [vmem:[#allocation21 + $0x1a8] sm:$0xff]
    %v3217 = vld [vmem:[#allocation21 + $0x1b0] sm:$0xff]
    %v3218 = vld [vmem:[#allocation21 + $0x1b8] sm:$0xff]
    %v3219 = vld [vmem:[#allocation21 + $0x1c0] sm:$0xff]
    %v3220 = vld [vmem:[#allocation21 + $0x1c8] sm:$0xff]
    %v3221 = vld [vmem:[#allocation21 + $0x1d0] sm:$0xff]
    %v3222 = vld [vmem:[#allocation21 + $0x1d8] sm:$0xff]
    %v3223 = vld [vmem:[#allocation21 + $0x1e0] sm:$0xff]
    %v3224 = vld [vmem:[#allocation21 + $0x1e8] sm:$0xff]
    %v3225 = vld [vmem:[#allocation21 + $0x1f0] sm:$0xff]
    %v3226 = vld [vmem:[#allocation21 + $0x1f8] sm:$0xff]
    %v3291 = vunpack.c.l.b16 %v3163
    %v3292 = vunpack.c.h.b16 %v3163
    %v3293 = vunpack.c.l.b16 %v3164
    %v3294 = vunpack.c.h.b16 %v3164
    %v3295 = vunpack.c.l.b16 %v3165
    %v3296 = vunpack.c.h.b16 %v3165
    %v3297 = vunpack.c.l.b16 %v3166
    %v3298 = vunpack.c.h.b16 %v3166
    %v3299 = vunpack.c.l.b16 %v3167
    %v3300 = vunpack.c.h.b16 %v3167
    %v3301 = vunpack.c.l.b16 %v3168
    %v3302 = vunpack.c.h.b16 %v3168
    %v3303 = vunpack.c.l.b16 %v3169
    %v3304 = vunpack.c.h.b16 %v3169
    %v3305 = vunpack.c.l.b16 %v3170
    %v3306 = vunpack.c.h.b16 %v3170
    %v3307 = vunpack.c.l.b16 %v3171
    %v3308 = vunpack.c.h.b16 %v3171
    %v3309 = vunpack.c.l.b16 %v3172
    %v3310 = vunpack.c.h.b16 %v3172
    %v3311 = vunpack.c.l.b16 %v3173
    %v3312 = vunpack.c.h.b16 %v3173
    %v3313 = vunpack.c.l.b16 %v3174
    %v3314 = vunpack.c.h.b16 %v3174
    %v3315 = vunpack.c.l.b16 %v3175
    %v3316 = vunpack.c.h.b16 %v3175
    %v3317 = vunpack.c.l.b16 %v3176
    %v3318 = vunpack.c.h.b16 %v3176
    %v3319 = vunpack.c.l.b16 %v3177
    %v3320 = vunpack.c.h.b16 %v3177
    %v3321 = vunpack.c.l.b16 %v3178
    %v3322 = vunpack.c.h.b16 %v3178
    %v3323 = vunpack.c.l.b16 %v3179
    %v3324 = vunpack.c.h.b16 %v3179
    %v3325 = vunpack.c.l.b16 %v3180
    %v3326 = vunpack.c.h.b16 %v3180
    %v3327 = vunpack.c.l.b16 %v3181
    %v3328 = vunpack.c.h.b16 %v3181
    %v3329 = vunpack.c.l.b16 %v3182
    %v3330 = vunpack.c.h.b16 %v3182
    %v3331 = vunpack.c.l.b16 %v3183
    %v3332 = vunpack.c.h.b16 %v3183
    %v3333 = vunpack.c.l.b16 %v3184
    %v3334 = vunpack.c.h.b16 %v3184
    %v3335 = vunpack.c.l.b16 %v3185
    %v3336 = vunpack.c.h.b16 %v3185
    %v3337 = vunpack.c.l.b16 %v3186
    %v3338 = vunpack.c.h.b16 %v3186
    %v3339 = vunpack.c.l.b16 %v3187
    %v3340 = vunpack.c.h.b16 %v3187
    %v3341 = vunpack.c.l.b16 %v3188
    %v3342 = vunpack.c.h.b16 %v3188
    %v3343 = vunpack.c.l.b16 %v3189
    %v3344 = vunpack.c.h.b16 %v3189
    %v3345 = vunpack.c.l.b16 %v3190
    %v3346 = vunpack.c.h.b16 %v3190
    %v3347 = vunpack.c.l.b16 %v3191
    %v3348 = vunpack.c.h.b16 %v3191
    %v3349 = vunpack.c.l.b16 %v3192
    %v3350 = vunpack.c.h.b16 %v3192
    %v3351 = vunpack.c.l.b16 %v3193
    %v3352 = vunpack.c.h.b16 %v3193
    %v3353 = vunpack.c.l.b16 %v3194
    %v3354 = vunpack.c.h.b16 %v3194
    %v3355 = vunpack.c.l.b16 %v3195
    %v3356 = vunpack.c.h.b16 %v3195
    %v3357 = vunpack.c.l.b16 %v3196
    %v3358 = vunpack.c.h.b16 %v3196
    %v3359 = vunpack.c.l.b16 %v3197
    %v3360 = vunpack.c.h.b16 %v3197
    %v3361 = vunpack.c.l.b16 %v3198
    %v3362 = vunpack.c.h.b16 %v3198
    %v3363 = vunpack.c.l.b16 %v3199
    %v3364 = vunpack.c.h.b16 %v3199
    %v3365 = vunpack.c.l.b16 %v3200
    %v3366 = vunpack.c.h.b16 %v3200
    %v3367 = vunpack.c.l.b16 %v3201
    %v3368 = vunpack.c.h.b16 %v3201
    %v3369 = vunpack.c.l.b16 %v3202
    %v3370 = vunpack.c.h.b16 %v3202
    %v3371 = vunpack.c.l.b16 %v3203
    %v3372 = vunpack.c.h.b16 %v3203
    %v3373 = vunpack.c.l.b16 %v3204
    %v3374 = vunpack.c.h.b16 %v3204
    %v3375 = vunpack.c.l.b16 %v3205
    %v3376 = vunpack.c.h.b16 %v3205
    %v3377 = vunpack.c.l.b16 %v3206
    %v3378 = vunpack.c.h.b16 %v3206
    %v3379 = vunpack.c.l.b16 %v3207
    %v3380 = vunpack.c.h.b16 %v3207
    %v3381 = vunpack.c.l.b16 %v3208
    %v3382 = vunpack.c.h.b16 %v3208
    %v3383 = vunpack.c.l.b16 %v3209
    %v3384 = vunpack.c.h.b16 %v3209
    %v3385 = vunpack.c.l.b16 %v3210
    %v3386 = vunpack.c.h.b16 %v3210
    %v3387 = vunpack.c.l.b16 %v3211
    %v3388 = vunpack.c.h.b16 %v3211
    %v3389 = vunpack.c.l.b16 %v3212
    %v3390 = vunpack.c.h.b16 %v3212
    %v3391 = vunpack.c.l.b16 %v3213
    %v3392 = vunpack.c.h.b16 %v3213
    %v3393 = vunpack.c.l.b16 %v3214
    %v3394 = vunpack.c.h.b16 %v3214
    %v3395 = vunpack.c.l.b16 %v3215
    %v3396 = vunpack.c.h.b16 %v3215
    %v3397 = vunpack.c.l.b16 %v3216
    %v3398 = vunpack.c.h.b16 %v3216
    %v3399 = vunpack.c.l.b16 %v3217
    %v3400 = vunpack.c.h.b16 %v3217
    %v3401 = vunpack.c.l.b16 %v3218
    %v3402 = vunpack.c.h.b16 %v3218
    %v3403 = vunpack.c.l.b16 %v3219
    %v3404 = vunpack.c.h.b16 %v3219
    %v3405 = vunpack.c.l.b16 %v3220
    %v3406 = vunpack.c.h.b16 %v3220
    %v3407 = vunpack.c.l.b16 %v3221
    %v3408 = vunpack.c.h.b16 %v3221
    %v3409 = vunpack.c.l.b16 %v3222
    %v3410 = vunpack.c.h.b16 %v3222
    %v3411 = vunpack.c.l.b16 %v3223
    %v3412 = vunpack.c.h.b16 %v3223
    %v3413 = vunpack.c.l.b16 %v3224
    %v3414 = vunpack.c.h.b16 %v3224
    %v3415 = vunpack.c.l.b16 %v3225
    %v3416 = vunpack.c.h.b16 %v3225
    %v3417 = vunpack.c.l.b16 %v3226
    %v3418 = vunpack.c.h.b16 %v3226
    %v3419 = vpack.c.b16 %v3295, %v3291
    %v3420 = vpack.c.b16 %v3296, %v3292
    %v3421 = vpack.c.b16 %v3297, %v3293
    %v3422 = vpack.c.b16 %v3298, %v3294
    %v3423 = vpack.c.b16 %v3303, %v3299
    %v3424 = vpack.c.b16 %v3304, %v3300
    %v3425 = vpack.c.b16 %v3305, %v3301
    %v3426 = vpack.c.b16 %v3306, %v3302
    %v3427 = vpack.c.b16 %v3311, %v3307
    %v3428 = vpack.c.b16 %v3312, %v3308
    %v3429 = vpack.c.b16 %v3313, %v3309
    %v3430 = vpack.c.b16 %v3314, %v3310
    %v3431 = vpack.c.b16 %v3319, %v3315
    %v3432 = vpack.c.b16 %v3320, %v3316
    %v3433 = vpack.c.b16 %v3321, %v3317
    %v3434 = vpack.c.b16 %v3322, %v3318
    %v3435 = vpack.c.b16 %v3327, %v3323
    %v3436 = vpack.c.b16 %v3328, %v3324
    %v3437 = vpack.c.b16 %v3329, %v3325
    %v3438 = vpack.c.b16 %v3330, %v3326
    %v3439 = vpack.c.b16 %v3335, %v3331
    %v3440 = vpack.c.b16 %v3336, %v3332
    %v3441 = vpack.c.b16 %v3337, %v3333
    %v3442 = vpack.c.b16 %v3338, %v3334
    %v3443 = vpack.c.b16 %v3343, %v3339
    %v3444 = vpack.c.b16 %v3344, %v3340
    %v3445 = vpack.c.b16 %v3345, %v3341
    %v3446 = vpack.c.b16 %v3346, %v3342
    %v3447 = vpack.c.b16 %v3351, %v3347
    %v3448 = vpack.c.b16 %v3352, %v3348
    %v3449 = vpack.c.b16 %v3353, %v3349
    %v3450 = vpack.c.b16 %v3354, %v3350
    %v3451 = vpack.c.b16 %v3359, %v3355
    %v3452 = vpack.c.b16 %v3360, %v3356
    %v3453 = vpack.c.b16 %v3361, %v3357
    %v3454 = vpack.c.b16 %v3362, %v3358
    %v3455 = vpack.c.b16 %v3367, %v3363
    %v3456 = vpack.c.b16 %v3368, %v3364
    %v3457 = vpack.c.b16 %v3369, %v3365
    %v3458 = vpack.c.b16 %v3370, %v3366
    %v3459 = vpack.c.b16 %v3375, %v3371
    %v3460 = vpack.c.b16 %v3376, %v3372
    %v3461 = vpack.c.b16 %v3377, %v3373
    %v3462 = vpack.c.b16 %v3378, %v3374
    %v3463 = vpack.c.b16 %v3383, %v3379
    %v3464 = vpack.c.b16 %v3384, %v3380
    %v3465 = vpack.c.b16 %v3385, %v3381
    %v3466 = vpack.c.b16 %v3386, %v3382
    %v3467 = vpack.c.b16 %v3391, %v3387
    %v3468 = vpack.c.b16 %v3392, %v3388
    %v3469 = vpack.c.b16 %v3393, %v3389
    %v3470 = vpack.c.b16 %v3394, %v3390
    %v3471 = vpack.c.b16 %v3399, %v3395
    %v3472 = vpack.c.b16 %v3400, %v3396
    %v3473 = vpack.c.b16 %v3401, %v3397
    %v3474 = vpack.c.b16 %v3402, %v3398
    %v3475 = vpack.c.b16 %v3407, %v3403
    %v3476 = vpack.c.b16 %v3408, %v3404
    %v3477 = vpack.c.b16 %v3409, %v3405
    %v3478 = vpack.c.b16 %v3410, %v3406
    %v3479 = vpack.c.b16 %v3415, %v3411
    %v3480 = vpack.c.b16 %v3416, %v3412
    %v3481 = vpack.c.b16 %v3417, %v3413
    %v3482 = vpack.c.b16 %v3418, %v3414
    %3547 = vmatprep.subr.bf16.mxu0 %v3448
    %3548 = vmatpush1.bf16.msra.mxu0 %v3447
    %3549 = vmatprep.subr.bf16.mxu0 %v3444
    %3550 = vmatpush1.bf16.msra.mxu0 %v3443
    %3551 = vmatprep.subr.bf16.mxu0 %v3440
    %3552 = vmatpush1.bf16.msra.mxu0 %v3439
    %3553 = vmatprep.subr.bf16.mxu0 %v3436
    %3554 = vmatpush1.bf16.msra.mxu0 %v3435
    %3555 = vmatprep.subr.bf16.mxu0 %v3432
    %3556 = vmatpush1.bf16.msra.mxu0 %v3431
    %3557 = vmatprep.subr.bf16.mxu0 %v3428
    %3558 = vmatpush1.bf16.msra.mxu0 %v3427
    %3559 = vmatprep.subr.bf16.mxu0 %v3424
    %3560 = vmatpush1.bf16.msra.mxu0 %v3423
    %3561 = vmatprep.subr.bf16.mxu0 %v3420
    %3562 = vmatpush1.bf16.msra.mxu0 %v3419
    %3563 = vmatprep.subr.bf16.mxu0 %v3480
    %3564 = vmatpush2.bf16.msra.mxu0 %v3479
    %3565 = vmatprep.subr.bf16.mxu0 %v3476
    %3566 = vmatpush2.bf16.msra.mxu0 %v3475
    %3567 = vmatprep.subr.bf16.mxu0 %v3472
    %3568 = vmatpush2.bf16.msra.mxu0 %v3471
    %3569 = vmatprep.subr.bf16.mxu0 %v3468
    %3570 = vmatpush2.bf16.msra.mxu0 %v3467
    %3571 = vmatprep.subr.bf16.mxu0 %v3464
    %3572 = vmatpush2.bf16.msra.mxu0 %v3463
    %3573 = vmatprep.subr.bf16.mxu0 %v3460
    %3574 = vmatpush2.bf16.msra.mxu0 %v3459
    %3575 = vmatprep.subr.bf16.mxu0 %v3456
    %3576 = vmatpush2.bf16.msra.mxu0 %v3455
    %3577 = vmatprep.subr.bf16.mxu0 %v3452
    %3578 = vmatpush2.bf16.msra.mxu0 %v3451
    %3579 = vmatprep.mubr.bf16.mxu0 %v3162
    %3580 = vmatmul.mubr.bf16.gmra.mxu0 %v3161
    %v3581 = vpop.f32.mrf.mxu0
    %v3582 = vadd.f32 0.0, %v3581
    %v3583 = vpop.f32.mrf.mxu0
    %v3584 = vadd.f32 0.0, %v3583
    %v3585 = vpop.f32.mrf.mxu0
    %v3586 = vpop.f32.mrf.mxu0
    %3587 = vdwg.mxu0
    %3588 = vmatprep.subr.bf16.mxu0 %v3450
    %3589 = vmatpush1.bf16.msra.mxu0 %v3449
    %3590 = vmatprep.subr.bf16.mxu0 %v3446
    %3591 = vmatpush1.bf16.msra.mxu0 %v3445
    %3592 = vmatprep.subr.bf16.mxu0 %v3442
    %3593 = vmatpush1.bf16.msra.mxu0 %v3441
    %3594 = vmatprep.subr.bf16.mxu0 %v3438
    %3595 = vmatpush1.bf16.msra.mxu0 %v3437
    %3596 = vmatprep.subr.bf16.mxu0 %v3434
    %3597 = vmatpush1.bf16.msra.mxu0 %v3433
    %3598 = vmatprep.subr.bf16.mxu0 %v3430
    %3599 = vmatpush1.bf16.msra.mxu0 %v3429
    %3600 = vmatprep.subr.bf16.mxu0 %v3426
    %3601 = vmatpush1.bf16.msra.mxu0 %v3425
    %3602 = vmatprep.subr.bf16.mxu0 %v3422
    %3603 = vmatpush1.bf16.msra.mxu0 %v3421
    %3604 = vmatprep.subr.bf16.mxu0 %v3482
    %3605 = vmatpush2.bf16.msra.mxu0 %v3481
    %3606 = vmatprep.subr.bf16.mxu0 %v3478
    %3607 = vmatpush2.bf16.msra.mxu0 %v3477
    %3608 = vmatprep.subr.bf16.mxu0 %v3474
    %3609 = vmatpush2.bf16.msra.mxu0 %v3473
    %3610 = vmatprep.subr.bf16.mxu0 %v3470
    %3611 = vmatpush2.bf16.msra.mxu0 %v3469
    %3612 = vmatprep.subr.bf16.mxu0 %v3466
    %3613 = vmatpush2.bf16.msra.mxu0 %v3465
    %3614 = vmatprep.subr.bf16.mxu0 %v3462
    %3615 = vmatpush2.bf16.msra.mxu0 %v3461
    %3616 = vmatprep.subr.bf16.mxu0 %v3458
    %3617 = vmatpush2.bf16.msra.mxu0 %v3457
    %3618 = vmatprep.subr.bf16.mxu0 %v3454
    %3619 = vmatpush2.bf16.msra.mxu0 %v3453
    %3620 = vmatprep.mubr.bf16.mxu0 %v3162
    %3621 = vmatmul.mubr.bf16.gmra.mxu0 %v3161
    %v3622 = vpop.f32.mrf.mxu0
    %v3623 = vadd.f32 0.0, %v3622
    %v3624 = vpop.f32.mrf.mxu0
    %v3625 = vadd.f32 0.0, %v3624
    %v3626 = vpop.f32.mrf.mxu0
    %v3627 = vpop.f32.mrf.mxu0
    %3628 = vdwg.mxu0
    %v3629 = vld [vmem:[#allocation22] sm:$0xf]
    %v3631 = vlaneseq
    %v3632 = vshrl.u32 %v3631, 7
    %v3633 = vsub.s32 0, %v3632
    %v3634 = vrot.slane %v3629, %v3633
    %v3635 = vlaneseq
    %v3636 = vshrl.u32 %v3635, 7
    %v3637 = vsub.s32 1, %v3636
    %v3638 = vrot.slane %v3629, %v3637
    %v3639 = vlaneseq
    %v3640 = vshrl.u32 %v3639, 7
    %v3641 = vsub.s32 2, %v3640
    %v3642 = vrot.slane %v3629, %v3641
    %v3643 = vlaneseq
    %v3644 = vshrl.u32 %v3643, 7
    %v3645 = vsub.s32 3, %v3644
    %v3646 = vrot.slane %v3629, %v3645
    %v3651 = vmul.f32 %v3582, %v3634
    %v3652 = vmul.f32 %v3584, %v3638
    %v3653 = vmul.f32 %v3623, %v3642
    %v3654 = vmul.f32 %v3625, %v3646
    %v3655 = vld [vmem:[#allocation24] sm:$0xf]
    %v3657 = vlaneseq
    %v3658 = vshrl.u32 %v3657, 7
    %v3659 = vsub.s32 0, %v3658
    %v3660 = vrot.slane %v3655, %v3659
    %v3661 = vlaneseq
    %v3662 = vshrl.u32 %v3661, 7
    %v3663 = vsub.s32 1, %v3662
    %v3664 = vrot.slane %v3655, %v3663
    %v3665 = vlaneseq
    %v3666 = vshrl.u32 %v3665, 7
    %v3667 = vsub.s32 2, %v3666
    %v3668 = vrot.slane %v3655, %v3667
    %v3669 = vlaneseq
    %v3670 = vshrl.u32 %v3669, 7
    %v3671 = vsub.s32 3, %v3670
    %v3672 = vrot.slane %v3655, %v3671
    %v3677 = vadd.f32 %v3651, %v3660
    %v3678 = vadd.f32 %v3652, %v3664
    %v3679 = vadd.f32 %v3653, %v3668
    %v3680 = vadd.f32 %v3654, %v3672
    %v3681 = vmul.f32 %v3677, 0.1
    %v3682 = vmul.f32 %v3678, 0.1
    %v3683 = vmul.f32 %v3679, 0.1
    %v3684 = vmul.f32 %v3680, 0.1
    %v3685 = vmax.f32 %v3677, %v3681
    %v3686 = vmax.f32 %v3678, %v3682
    %v3687 = vmax.f32 %v3679, %v3683
    %v3688 = vmax.f32 %v3680, %v3684
    %v3689 = vpack.c.bf16 %v3685, %v3685
    %v3690 = vpack.c.bf16 %v3686, %v3686
    %v3691 = vpack.c.bf16 %v3687, %v3687
    %v3692 = vpack.c.bf16 %v3688, %v3688
    %v3693 = vld [vmem:[#allocation25] sm:$0xff]
    %v3694 = vld [vmem:[#allocation25 + $0x8] sm:$0xff]
    %v3695 = vld [vmem:[#allocation25 + $0x10] sm:$0xff]
    %v3696 = vld [vmem:[#allocation25 + $0x18] sm:$0xff]
    %v3697 = vld [vmem:[#allocation25 + $0x20] sm:$0xff]
    %v3698 = vld [vmem:[#allocation25 + $0x28] sm:$0xff]
    %v3699 = vld [vmem:[#allocation25 + $0x30] sm:$0xff]
    %v3700 = vld [vmem:[#allocation25 + $0x38] sm:$0xff]
    %v3701 = vld [vmem:[#allocation25 + $0x40] sm:$0xff]
    %v3702 = vld [vmem:[#allocation25 + $0x48] sm:$0xff]
    %v3703 = vld [vmem:[#allocation25 + $0x50] sm:$0xff]
    %v3704 = vld [vmem:[#allocation25 + $0x58] sm:$0xff]
    %v3705 = vld [vmem:[#allocation25 + $0x60] sm:$0xff]
    %v3706 = vld [vmem:[#allocation25 + $0x68] sm:$0xff]
    %v3707 = vld [vmem:[#allocation25 + $0x70] sm:$0xff]
    %v3708 = vld [vmem:[#allocation25 + $0x78] sm:$0xff]
    %v3709 = vld [vmem:[#allocation25 + $0x80] sm:$0xff]
    %v3710 = vld [vmem:[#allocation25 + $0x88] sm:$0xff]
    %v3711 = vld [vmem:[#allocation25 + $0x90] sm:$0xff]
    %v3712 = vld [vmem:[#allocation25 + $0x98] sm:$0xff]
    %v3713 = vld [vmem:[#allocation25 + $0xa0] sm:$0xff]
    %v3714 = vld [vmem:[#allocation25 + $0xa8] sm:$0xff]
    %v3715 = vld [vmem:[#allocation25 + $0xb0] sm:$0xff]
    %v3716 = vld [vmem:[#allocation25 + $0xb8] sm:$0xff]
    %v3717 = vld [vmem:[#allocation25 + $0xc0] sm:$0xff]
    %v3718 = vld [vmem:[#allocation25 + $0xc8] sm:$0xff]
    %v3719 = vld [vmem:[#allocation25 + $0xd0] sm:$0xff]
    %v3720 = vld [vmem:[#allocation25 + $0xd8] sm:$0xff]
    %v3721 = vld [vmem:[#allocation25 + $0xe0] sm:$0xff]
    %v3722 = vld [vmem:[#allocation25 + $0xe8] sm:$0xff]
    %v3723 = vld [vmem:[#allocation25 + $0xf0] sm:$0xff]
    %v3724 = vld [vmem:[#allocation25 + $0xf8] sm:$0xff]
    %v3725 = vld [vmem:[#allocation25 + $0x100] sm:$0xff]
    %v3726 = vld [vmem:[#allocation25 + $0x108] sm:$0xff]
    %v3727 = vld [vmem:[#allocation25 + $0x110] sm:$0xff]
    %v3728 = vld [vmem:[#allocation25 + $0x118] sm:$0xff]
    %v3729 = vld [vmem:[#allocation25 + $0x120] sm:$0xff]
    %v3730 = vld [vmem:[#allocation25 + $0x128] sm:$0xff]
    %v3731 = vld [vmem:[#allocation25 + $0x130] sm:$0xff]
    %v3732 = vld [vmem:[#allocation25 + $0x138] sm:$0xff]
    %v3733 = vld [vmem:[#allocation25 + $0x140] sm:$0xff]
    %v3734 = vld [vmem:[#allocation25 + $0x148] sm:$0xff]
    %v3735 = vld [vmem:[#allocation25 + $0x150] sm:$0xff]
    %v3736 = vld [vmem:[#allocation25 + $0x158] sm:$0xff]
    %v3737 = vld [vmem:[#allocation25 + $0x160] sm:$0xff]
    %v3738 = vld [vmem:[#allocation25 + $0x168] sm:$0xff]
    %v3739 = vld [vmem:[#allocation25 + $0x170] sm:$0xff]
    %v3740 = vld [vmem:[#allocation25 + $0x178] sm:$0xff]
    %v3741 = vld [vmem:[#allocation25 + $0x180] sm:$0xff]
    %v3742 = vld [vmem:[#allocation25 + $0x188] sm:$0xff]
    %v3743 = vld [vmem:[#allocation25 + $0x190] sm:$0xff]
    %v3744 = vld [vmem:[#allocation25 + $0x198] sm:$0xff]
    %v3745 = vld [vmem:[#allocation25 + $0x1a0] sm:$0xff]
    %v3746 = vld [vmem:[#allocation25 + $0x1a8] sm:$0xff]
    %v3747 = vld [vmem:[#allocation25 + $0x1b0] sm:$0xff]
    %v3748 = vld [vmem:[#allocation25 + $0x1b8] sm:$0xff]
    %v3749 = vld [vmem:[#allocation25 + $0x1c0] sm:$0xff]
    %v3750 = vld [vmem:[#allocation25 + $0x1c8] sm:$0xff]
    %v3751 = vld [vmem:[#allocation25 + $0x1d0] sm:$0xff]
    %v3752 = vld [vmem:[#allocation25 + $0x1d8] sm:$0xff]
    %v3753 = vld [vmem:[#allocation25 + $0x1e0] sm:$0xff]
    %v3754 = vld [vmem:[#allocation25 + $0x1e8] sm:$0xff]
    %v3755 = vld [vmem:[#allocation25 + $0x1f0] sm:$0xff]
    %v3756 = vld [vmem:[#allocation25 + $0x1f8] sm:$0xff]
    %v3757 = vld [vmem:[#allocation25 + $0x200] sm:$0xff]
    %v3758 = vld [vmem:[#allocation25 + $0x208] sm:$0xff]
    %v3759 = vld [vmem:[#allocation25 + $0x210] sm:$0xff]
    %v3760 = vld [vmem:[#allocation25 + $0x218] sm:$0xff]
    %v3761 = vld [vmem:[#allocation25 + $0x220] sm:$0xff]
    %v3762 = vld [vmem:[#allocation25 + $0x228] sm:$0xff]
    %v3763 = vld [vmem:[#allocation25 + $0x230] sm:$0xff]
    %v3764 = vld [vmem:[#allocation25 + $0x238] sm:$0xff]
    %v3765 = vld [vmem:[#allocation25 + $0x240] sm:$0xff]
    %v3766 = vld [vmem:[#allocation25 + $0x248] sm:$0xff]
    %v3767 = vld [vmem:[#allocation25 + $0x250] sm:$0xff]
    %v3768 = vld [vmem:[#allocation25 + $0x258] sm:$0xff]
    %v3769 = vld [vmem:[#allocation25 + $0x260] sm:$0xff]
    %v3770 = vld [vmem:[#allocation25 + $0x268] sm:$0xff]
    %v3771 = vld [vmem:[#allocation25 + $0x270] sm:$0xff]
    %v3772 = vld [vmem:[#allocation25 + $0x278] sm:$0xff]
    %v3773 = vld [vmem:[#allocation25 + $0x280] sm:$0xff]
    %v3774 = vld [vmem:[#allocation25 + $0x288] sm:$0xff]
    %v3775 = vld [vmem:[#allocation25 + $0x290] sm:$0xff]
    %v3776 = vld [vmem:[#allocation25 + $0x298] sm:$0xff]
    %v3777 = vld [vmem:[#allocation25 + $0x2a0] sm:$0xff]
    %v3778 = vld [vmem:[#allocation25 + $0x2a8] sm:$0xff]
    %v3779 = vld [vmem:[#allocation25 + $0x2b0] sm:$0xff]
    %v3780 = vld [vmem:[#allocation25 + $0x2b8] sm:$0xff]
    %v3781 = vld [vmem:[#allocation25 + $0x2c0] sm:$0xff]
    %v3782 = vld [vmem:[#allocation25 + $0x2c8] sm:$0xff]
    %v3783 = vld [vmem:[#allocation25 + $0x2d0] sm:$0xff]
    %v3784 = vld [vmem:[#allocation25 + $0x2d8] sm:$0xff]
    %v3785 = vld [vmem:[#allocation25 + $0x2e0] sm:$0xff]
    %v3786 = vld [vmem:[#allocation25 + $0x2e8] sm:$0xff]
    %v3787 = vld [vmem:[#allocation25 + $0x2f0] sm:$0xff]
    %v3788 = vld [vmem:[#allocation25 + $0x2f8] sm:$0xff]
    %v3789 = vld [vmem:[#allocation25 + $0x300] sm:$0xff]
    %v3790 = vld [vmem:[#allocation25 + $0x308] sm:$0xff]
    %v3791 = vld [vmem:[#allocation25 + $0x310] sm:$0xff]
    %v3792 = vld [vmem:[#allocation25 + $0x318] sm:$0xff]
    %v3793 = vld [vmem:[#allocation25 + $0x320] sm:$0xff]
    %v3794 = vld [vmem:[#allocation25 + $0x328] sm:$0xff]
    %v3795 = vld [vmem:[#allocation25 + $0x330] sm:$0xff]
    %v3796 = vld [vmem:[#allocation25 + $0x338] sm:$0xff]
    %v3797 = vld [vmem:[#allocation25 + $0x340] sm:$0xff]
    %v3798 = vld [vmem:[#allocation25 + $0x348] sm:$0xff]
    %v3799 = vld [vmem:[#allocation25 + $0x350] sm:$0xff]
    %v3800 = vld [vmem:[#allocation25 + $0x358] sm:$0xff]
    %v3801 = vld [vmem:[#allocation25 + $0x360] sm:$0xff]
    %v3802 = vld [vmem:[#allocation25 + $0x368] sm:$0xff]
    %v3803 = vld [vmem:[#allocation25 + $0x370] sm:$0xff]
    %v3804 = vld [vmem:[#allocation25 + $0x378] sm:$0xff]
    %v3805 = vld [vmem:[#allocation25 + $0x380] sm:$0xff]
    %v3806 = vld [vmem:[#allocation25 + $0x388] sm:$0xff]
    %v3807 = vld [vmem:[#allocation25 + $0x390] sm:$0xff]
    %v3808 = vld [vmem:[#allocation25 + $0x398] sm:$0xff]
    %v3809 = vld [vmem:[#allocation25 + $0x3a0] sm:$0xff]
    %v3810 = vld [vmem:[#allocation25 + $0x3a8] sm:$0xff]
    %v3811 = vld [vmem:[#allocation25 + $0x3b0] sm:$0xff]
    %v3812 = vld [vmem:[#allocation25 + $0x3b8] sm:$0xff]
    %v3813 = vld [vmem:[#allocation25 + $0x3c0] sm:$0xff]
    %v3814 = vld [vmem:[#allocation25 + $0x3c8] sm:$0xff]
    %v3815 = vld [vmem:[#allocation25 + $0x3d0] sm:$0xff]
    %v3816 = vld [vmem:[#allocation25 + $0x3d8] sm:$0xff]
    %v3817 = vld [vmem:[#allocation25 + $0x3e0] sm:$0xff]
    %v3818 = vld [vmem:[#allocation25 + $0x3e8] sm:$0xff]
    %v3819 = vld [vmem:[#allocation25 + $0x3f0] sm:$0xff]
    %v3820 = vld [vmem:[#allocation25 + $0x3f8] sm:$0xff]
    %v3821 = vunpack.c.l.s8.bf16 %v3693
    %v3822 = vunpack.c.l.s8.bf16 %v3694
    %v3823 = vunpack.c.l.s8.bf16 %v3695
    %v3824 = vunpack.c.l.s8.bf16 %v3696
    %v3825 = vunpack.c.l.s8.bf16 %v3697
    %v3826 = vunpack.c.l.s8.bf16 %v3698
    %v3827 = vunpack.c.l.s8.bf16 %v3699
    %v3828 = vunpack.c.l.s8.bf16 %v3700
    %v3829 = vunpack.c.h.s8.bf16 %v3693
    %v3830 = vunpack.c.h.s8.bf16 %v3694
    %v3831 = vunpack.c.h.s8.bf16 %v3695
    %v3832 = vunpack.c.h.s8.bf16 %v3696
    %v3833 = vunpack.c.h.s8.bf16 %v3697
    %v3834 = vunpack.c.h.s8.bf16 %v3698
    %v3835 = vunpack.c.h.s8.bf16 %v3699
    %v3836 = vunpack.c.h.s8.bf16 %v3700
    %v3837 = vunpack.c.l.s8.bf16 %v3701
    %v3838 = vunpack.c.l.s8.bf16 %v3702
    %v3839 = vunpack.c.l.s8.bf16 %v3703
    %v3840 = vunpack.c.l.s8.bf16 %v3704
    %v3841 = vunpack.c.l.s8.bf16 %v3705
    %v3842 = vunpack.c.l.s8.bf16 %v3706
    %v3843 = vunpack.c.l.s8.bf16 %v3707
    %v3844 = vunpack.c.l.s8.bf16 %v3708
    %v3845 = vunpack.c.h.s8.bf16 %v3701
    %v3846 = vunpack.c.h.s8.bf16 %v3702
    %v3847 = vunpack.c.h.s8.bf16 %v3703
    %v3848 = vunpack.c.h.s8.bf16 %v3704
    %v3849 = vunpack.c.h.s8.bf16 %v3705
    %v3850 = vunpack.c.h.s8.bf16 %v3706
    %v3851 = vunpack.c.h.s8.bf16 %v3707
    %v3852 = vunpack.c.h.s8.bf16 %v3708
    %v3853 = vunpack.c.l.s8.bf16 %v3709
    %v3854 = vunpack.c.l.s8.bf16 %v3710
    %v3855 = vunpack.c.l.s8.bf16 %v3711
    %v3856 = vunpack.c.l.s8.bf16 %v3712
    %v3857 = vunpack.c.l.s8.bf16 %v3713
    %v3858 = vunpack.c.l.s8.bf16 %v3714
    %v3859 = vunpack.c.l.s8.bf16 %v3715
    %v3860 = vunpack.c.l.s8.bf16 %v3716
    %v3861 = vunpack.c.h.s8.bf16 %v3709
    %v3862 = vunpack.c.h.s8.bf16 %v3710
    %v3863 = vunpack.c.h.s8.bf16 %v3711
    %v3864 = vunpack.c.h.s8.bf16 %v3712
    %v3865 = vunpack.c.h.s8.bf16 %v3713
    %v3866 = vunpack.c.h.s8.bf16 %v3714
    %v3867 = vunpack.c.h.s8.bf16 %v3715
    %v3868 = vunpack.c.h.s8.bf16 %v3716
    %v3869 = vunpack.c.l.s8.bf16 %v3717
    %v3870 = vunpack.c.l.s8.bf16 %v3718
    %v3871 = vunpack.c.l.s8.bf16 %v3719
    %v3872 = vunpack.c.l.s8.bf16 %v3720
    %v3873 = vunpack.c.l.s8.bf16 %v3721
    %v3874 = vunpack.c.l.s8.bf16 %v3722
    %v3875 = vunpack.c.l.s8.bf16 %v3723
    %v3876 = vunpack.c.l.s8.bf16 %v3724
    %v3877 = vunpack.c.h.s8.bf16 %v3717
    %v3878 = vunpack.c.h.s8.bf16 %v3718
    %v3879 = vunpack.c.h.s8.bf16 %v3719
    %v3880 = vunpack.c.h.s8.bf16 %v3720
    %v3881 = vunpack.c.h.s8.bf16 %v3721
    %v3882 = vunpack.c.h.s8.bf16 %v3722
    %v3883 = vunpack.c.h.s8.bf16 %v3723
    %v3884 = vunpack.c.h.s8.bf16 %v3724
    %v3885 = vunpack.c.l.s8.bf16 %v3725
    %v3886 = vunpack.c.l.s8.bf16 %v3726
    %v3887 = vunpack.c.l.s8.bf16 %v3727
    %v3888 = vunpack.c.l.s8.bf16 %v3728
    %v3889 = vunpack.c.l.s8.bf16 %v3729
    %v3890 = vunpack.c.l.s8.bf16 %v3730
    %v3891 = vunpack.c.l.s8.bf16 %v3731
    %v3892 = vunpack.c.l.s8.bf16 %v3732
    %v3893 = vunpack.c.h.s8.bf16 %v3725
    %v3894 = vunpack.c.h.s8.bf16 %v3726
    %v3895 = vunpack.c.h.s8.bf16 %v3727
    %v3896 = vunpack.c.h.s8.bf16 %v3728
    %v3897 = vunpack.c.h.s8.bf16 %v3729
    %v3898 = vunpack.c.h.s8.bf16 %v3730
    %v3899 = vunpack.c.h.s8.bf16 %v3731
    %v3900 = vunpack.c.h.s8.bf16 %v3732
    %v3901 = vunpack.c.l.s8.bf16 %v3733
    %v3902 = vunpack.c.l.s8.bf16 %v3734
    %v3903 = vunpack.c.l.s8.bf16 %v3735
    %v3904 = vunpack.c.l.s8.bf16 %v3736
    %v3905 = vunpack.c.l.s8.bf16 %v3737
    %v3906 = vunpack.c.l.s8.bf16 %v3738
    %v3907 = vunpack.c.l.s8.bf16 %v3739
    %v3908 = vunpack.c.l.s8.bf16 %v3740
    %v3909 = vunpack.c.h.s8.bf16 %v3733
    %v3910 = vunpack.c.h.s8.bf16 %v3734
    %v3911 = vunpack.c.h.s8.bf16 %v3735
    %v3912 = vunpack.c.h.s8.bf16 %v3736
    %v3913 = vunpack.c.h.s8.bf16 %v3737
    %v3914 = vunpack.c.h.s8.bf16 %v3738
    %v3915 = vunpack.c.h.s8.bf16 %v3739
    %v3916 = vunpack.c.h.s8.bf16 %v3740
    %v3917 = vunpack.c.l.s8.bf16 %v3741
    %v3918 = vunpack.c.l.s8.bf16 %v3742
    %v3919 = vunpack.c.l.s8.bf16 %v3743
    %v3920 = vunpack.c.l.s8.bf16 %v3744
    %v3921 = vunpack.c.l.s8.bf16 %v3745
    %v3922 = vunpack.c.l.s8.bf16 %v3746
    %v3923 = vunpack.c.l.s8.bf16 %v3747
    %v3924 = vunpack.c.l.s8.bf16 %v3748
    %v3925 = vunpack.c.h.s8.bf16 %v3741
    %v3926 = vunpack.c.h.s8.bf16 %v3742
    %v3927 = vunpack.c.h.s8.bf16 %v3743
    %v3928 = vunpack.c.h.s8.bf16 %v3744
    %v3929 = vunpack.c.h.s8.bf16 %v3745
    %v3930 = vunpack.c.h.s8.bf16 %v3746
    %v3931 = vunpack.c.h.s8.bf16 %v3747
    %v3932 = vunpack.c.h.s8.bf16 %v3748
    %v3933 = vunpack.c.l.s8.bf16 %v3749
    %v3934 = vunpack.c.l.s8.bf16 %v3750
    %v3935 = vunpack.c.l.s8.bf16 %v3751
    %v3936 = vunpack.c.l.s8.bf16 %v3752
    %v3937 = vunpack.c.l.s8.bf16 %v3753
    %v3938 = vunpack.c.l.s8.bf16 %v3754
    %v3939 = vunpack.c.l.s8.bf16 %v3755
    %v3940 = vunpack.c.l.s8.bf16 %v3756
    %v3941 = vunpack.c.h.s8.bf16 %v3749
    %v3942 = vunpack.c.h.s8.bf16 %v3750
    %v3943 = vunpack.c.h.s8.bf16 %v3751
    %v3944 = vunpack.c.h.s8.bf16 %v3752
    %v3945 = vunpack.c.h.s8.bf16 %v3753
    %v3946 = vunpack.c.h.s8.bf16 %v3754
    %v3947 = vunpack.c.h.s8.bf16 %v3755
    %v3948 = vunpack.c.h.s8.bf16 %v3756
    %v3949 = vunpack.c.l.s8.bf16 %v3757
    %v3950 = vunpack.c.l.s8.bf16 %v3758
    %v3951 = vunpack.c.l.s8.bf16 %v3759
    %v3952 = vunpack.c.l.s8.bf16 %v3760
    %v3953 = vunpack.c.l.s8.bf16 %v3761
    %v3954 = vunpack.c.l.s8.bf16 %v3762
    %v3955 = vunpack.c.l.s8.bf16 %v3763
    %v3956 = vunpack.c.l.s8.bf16 %v3764
    %v3957 = vunpack.c.h.s8.bf16 %v3757
    %v3958 = vunpack.c.h.s8.bf16 %v3758
    %v3959 = vunpack.c.h.s8.bf16 %v3759
    %v3960 = vunpack.c.h.s8.bf16 %v3760
    %v3961 = vunpack.c.h.s8.bf16 %v3761
    %v3962 = vunpack.c.h.s8.bf16 %v3762
    %v3963 = vunpack.c.h.s8.bf16 %v3763
    %v3964 = vunpack.c.h.s8.bf16 %v3764
    %v3965 = vunpack.c.l.s8.bf16 %v3765
    %v3966 = vunpack.c.l.s8.bf16 %v3766
    %v3967 = vunpack.c.l.s8.bf16 %v3767
    %v3968 = vunpack.c.l.s8.bf16 %v3768
    %v3969 = vunpack.c.l.s8.bf16 %v3769
    %v3970 = vunpack.c.l.s8.bf16 %v3770
    %v3971 = vunpack.c.l.s8.bf16 %v3771
    %v3972 = vunpack.c.l.s8.bf16 %v3772
    %v3973 = vunpack.c.h.s8.bf16 %v3765
    %v3974 = vunpack.c.h.s8.bf16 %v3766
    %v3975 = vunpack.c.h.s8.bf16 %v3767
    %v3976 = vunpack.c.h.s8.bf16 %v3768
    %v3977 = vunpack.c.h.s8.bf16 %v3769
    %v3978 = vunpack.c.h.s8.bf16 %v3770
    %v3979 = vunpack.c.h.s8.bf16 %v3771
    %v3980 = vunpack.c.h.s8.bf16 %v3772
    %v3981 = vunpack.c.l.s8.bf16 %v3773
    %v3982 = vunpack.c.l.s8.bf16 %v3774
    %v3983 = vunpack.c.l.s8.bf16 %v3775
    %v3984 = vunpack.c.l.s8.bf16 %v3776
    %v3985 = vunpack.c.l.s8.bf16 %v3777
    %v3986 = vunpack.c.l.s8.bf16 %v3778
    %v3987 = vunpack.c.l.s8.bf16 %v3779
    %v3988 = vunpack.c.l.s8.bf16 %v3780
    %v3989 = vunpack.c.h.s8.bf16 %v3773
    %v3990 = vunpack.c.h.s8.bf16 %v3774
    %v3991 = vunpack.c.h.s8.bf16 %v3775
    %v3992 = vunpack.c.h.s8.bf16 %v3776
    %v3993 = vunpack.c.h.s8.bf16 %v3777
    %v3994 = vunpack.c.h.s8.bf16 %v3778
    %v3995 = vunpack.c.h.s8.bf16 %v3779
    %v3996 = vunpack.c.h.s8.bf16 %v3780
    %v3997 = vunpack.c.l.s8.bf16 %v3781
    %v3998 = vunpack.c.l.s8.bf16 %v3782
    %v3999 = vunpack.c.l.s8.bf16 %v3783
    %v4000 = vunpack.c.l.s8.bf16 %v3784
    %v4001 = vunpack.c.l.s8.bf16 %v3785
    %v4002 = vunpack.c.l.s8.bf16 %v3786
    %v4003 = vunpack.c.l.s8.bf16 %v3787
    %v4004 = vunpack.c.l.s8.bf16 %v3788
    %v4005 = vunpack.c.h.s8.bf16 %v3781
    %v4006 = vunpack.c.h.s8.bf16 %v3782
    %v4007 = vunpack.c.h.s8.bf16 %v3783
    %v4008 = vunpack.c.h.s8.bf16 %v3784
    %v4009 = vunpack.c.h.s8.bf16 %v3785
    %v4010 = vunpack.c.h.s8.bf16 %v3786
    %v4011 = vunpack.c.h.s8.bf16 %v3787
    %v4012 = vunpack.c.h.s8.bf16 %v3788
    %v4013 = vunpack.c.l.s8.bf16 %v3789
    %v4014 = vunpack.c.l.s8.bf16 %v3790
    %v4015 = vunpack.c.l.s8.bf16 %v3791
    %v4016 = vunpack.c.l.s8.bf16 %v3792
    %v4017 = vunpack.c.l.s8.bf16 %v3793
    %v4018 = vunpack.c.l.s8.bf16 %v3794
    %v4019 = vunpack.c.l.s8.bf16 %v3795
    %v4020 = vunpack.c.l.s8.bf16 %v3796
    %v4021 = vunpack.c.h.s8.bf16 %v3789
    %v4022 = vunpack.c.h.s8.bf16 %v3790
    %v4023 = vunpack.c.h.s8.bf16 %v3791
    %v4024 = vunpack.c.h.s8.bf16 %v3792
    %v4025 = vunpack.c.h.s8.bf16 %v3793
    %v4026 = vunpack.c.h.s8.bf16 %v3794
    %v4027 = vunpack.c.h.s8.bf16 %v3795
    %v4028 = vunpack.c.h.s8.bf16 %v3796
    %v4029 = vunpack.c.l.s8.bf16 %v3797
    %v4030 = vunpack.c.l.s8.bf16 %v3798
    %v4031 = vunpack.c.l.s8.bf16 %v3799
    %v4032 = vunpack.c.l.s8.bf16 %v3800
    %v4033 = vunpack.c.l.s8.bf16 %v3801
    %v4034 = vunpack.c.l.s8.bf16 %v3802
    %v4035 = vunpack.c.l.s8.bf16 %v3803
    %v4036 = vunpack.c.l.s8.bf16 %v3804
    %v4037 = vunpack.c.h.s8.bf16 %v3797
    %v4038 = vunpack.c.h.s8.bf16 %v3798
    %v4039 = vunpack.c.h.s8.bf16 %v3799
    %v4040 = vunpack.c.h.s8.bf16 %v3800
    %v4041 = vunpack.c.h.s8.bf16 %v3801
    %v4042 = vunpack.c.h.s8.bf16 %v3802
    %v4043 = vunpack.c.h.s8.bf16 %v3803
    %v4044 = vunpack.c.h.s8.bf16 %v3804
    %v4045 = vunpack.c.l.s8.bf16 %v3805
    %v4046 = vunpack.c.l.s8.bf16 %v3806
    %v4047 = vunpack.c.l.s8.bf16 %v3807
    %v4048 = vunpack.c.l.s8.bf16 %v3808
    %v4049 = vunpack.c.l.s8.bf16 %v3809
    %v4050 = vunpack.c.l.s8.bf16 %v3810
    %v4051 = vunpack.c.l.s8.bf16 %v3811
    %v4052 = vunpack.c.l.s8.bf16 %v3812
    %v4053 = vunpack.c.h.s8.bf16 %v3805
    %v4054 = vunpack.c.h.s8.bf16 %v3806
    %v4055 = vunpack.c.h.s8.bf16 %v3807
    %v4056 = vunpack.c.h.s8.bf16 %v3808
    %v4057 = vunpack.c.h.s8.bf16 %v3809
    %v4058 = vunpack.c.h.s8.bf16 %v3810
    %v4059 = vunpack.c.h.s8.bf16 %v3811
    %v4060 = vunpack.c.h.s8.bf16 %v3812
    %v4061 = vunpack.c.l.s8.bf16 %v3813
    %v4062 = vunpack.c.l.s8.bf16 %v3814
    %v4063 = vunpack.c.l.s8.bf16 %v3815
    %v4064 = vunpack.c.l.s8.bf16 %v3816
    %v4065 = vunpack.c.l.s8.bf16 %v3817
    %v4066 = vunpack.c.l.s8.bf16 %v3818
    %v4067 = vunpack.c.l.s8.bf16 %v3819
    %v4068 = vunpack.c.l.s8.bf16 %v3820
    %v4069 = vunpack.c.h.s8.bf16 %v3813
    %v4070 = vunpack.c.h.s8.bf16 %v3814
    %v4071 = vunpack.c.h.s8.bf16 %v3815
    %v4072 = vunpack.c.h.s8.bf16 %v3816
    %v4073 = vunpack.c.h.s8.bf16 %v3817
    %v4074 = vunpack.c.h.s8.bf16 %v3818
    %v4075 = vunpack.c.h.s8.bf16 %v3819
    %v4076 = vunpack.c.h.s8.bf16 %v3820
    %4077 = vmatprep.subr.bf16.mxu0 %v3878
    %4078 = vmatpush1.bf16.msra.mxu0 %v3877
    %4079 = vmatprep.subr.bf16.mxu0 %v3870
    %4080 = vmatpush1.bf16.msra.mxu0 %v3869
    %4081 = vmatprep.subr.bf16.mxu0 %v3862
    %4082 = vmatpush1.bf16.msra.mxu0 %v3861
    %4083 = vmatprep.subr.bf16.mxu0 %v3854
    %4084 = vmatpush1.bf16.msra.mxu0 %v3853
    %4085 = vmatprep.subr.bf16.mxu0 %v3846
    %4086 = vmatpush1.bf16.msra.mxu0 %v3845
    %4087 = vmatprep.subr.bf16.mxu0 %v3838
    %4088 = vmatpush1.bf16.msra.mxu0 %v3837
    %4089 = vmatprep.subr.bf16.mxu0 %v3830
    %4090 = vmatpush1.bf16.msra.mxu0 %v3829
    %4091 = vmatprep.subr.bf16.mxu0 %v3822
    %4092 = vmatpush1.bf16.msra.mxu0 %v3821
    %4093 = vmatprep.subr.bf16.mxu0 %v3942
    %4094 = vmatpush2.bf16.msra.mxu0 %v3941
    %4095 = vmatprep.subr.bf16.mxu0 %v3934
    %4096 = vmatpush2.bf16.msra.mxu0 %v3933
    %4097 = vmatprep.subr.bf16.mxu0 %v3926
    %4098 = vmatpush2.bf16.msra.mxu0 %v3925
    %4099 = vmatprep.subr.bf16.mxu0 %v3918
    %4100 = vmatpush2.bf16.msra.mxu0 %v3917
    %4101 = vmatprep.subr.bf16.mxu0 %v3910
    %4102 = vmatpush2.bf16.msra.mxu0 %v3909
    %4103 = vmatprep.subr.bf16.mxu0 %v3902
    %4104 = vmatpush2.bf16.msra.mxu0 %v3901
    %4105 = vmatprep.subr.bf16.mxu0 %v3894
    %4106 = vmatpush2.bf16.msra.mxu0 %v3893
    %4107 = vmatprep.subr.bf16.mxu0 %v3886
    %4108 = vmatpush2.bf16.msra.mxu0 %v3885
    %4109 = vmatprep.mubr.bf16.mxu0 %v3690
    %4110 = vmatmul.mubr.bf16.gmra.mxu0 %v3689
    %v4111 = vpop.f32.mrf.mxu0
    %v4112 = vadd.f32 0.0, %v4111
    %v4113 = vpop.f32.mrf.mxu0
    %v4114 = vadd.f32 0.0, %v4113
    %v4115 = vpop.f32.mrf.mxu0
    %v4116 = vpop.f32.mrf.mxu0
    %4117 = vdwg.mxu0
    %4118 = vmatprep.subr.bf16.mxu0 %v4006
    %4119 = vmatpush1.bf16.msra.mxu0 %v4005
    %4120 = vmatprep.subr.bf16.mxu0 %v3998
    %4121 = vmatpush1.bf16.msra.mxu0 %v3997
    %4122 = vmatprep.subr.bf16.mxu0 %v3990
    %4123 = vmatpush1.bf16.msra.mxu0 %v3989
    %4124 = vmatprep.subr.bf16.mxu0 %v3982
    %4125 = vmatpush1.bf16.msra.mxu0 %v3981
    %4126 = vmatprep.subr.bf16.mxu0 %v3974
    %4127 = vmatpush1.bf16.msra.mxu0 %v3973
    %4128 = vmatprep.subr.bf16.mxu0 %v3966
    %4129 = vmatpush1.bf16.msra.mxu0 %v3965
    %4130 = vmatprep.subr.bf16.mxu0 %v3958
    %4131 = vmatpush1.bf16.msra.mxu0 %v3957
    %4132 = vmatprep.subr.bf16.mxu0 %v3950
    %4133 = vmatpush1.bf16.msra.mxu0 %v3949
    %4134 = vmatprep.subr.bf16.mxu0 %v4070
    %4135 = vmatpush2.bf16.msra.mxu0 %v4069
    %4136 = vmatprep.subr.bf16.mxu0 %v4062
    %4137 = vmatpush2.bf16.msra.mxu0 %v4061
    %4138 = vmatprep.subr.bf16.mxu0 %v4054
    %4139 = vmatpush2.bf16.msra.mxu0 %v4053
    %4140 = vmatprep.subr.bf16.mxu0 %v4046
    %4141 = vmatpush2.bf16.msra.mxu0 %v4045
    %4142 = vmatprep.subr.bf16.mxu0 %v4038
    %4143 = vmatpush2.bf16.msra.mxu0 %v4037
    %4144 = vmatprep.subr.bf16.mxu0 %v4030
    %4145 = vmatpush2.bf16.msra.mxu0 %v4029
    %4146 = vmatprep.subr.bf16.mxu0 %v4022
    %4147 = vmatpush2.bf16.msra.mxu0 %v4021
    %4148 = vmatprep.subr.bf16.mxu0 %v4014
    %4149 = vmatpush2.bf16.msra.mxu0 %v4013
    %4150 = vmatprep.mubr.bf16.mxu0 %v3692
    %4151 = vmatmul.mubr.bf16.gmra.mxu0 %v3691
    %v4152 = vpop.f32.mrf.mxu0
    %v4153 = vadd.f32 %v4112, %v4152
    %v4154 = vpop.f32.mrf.mxu0
    %v4155 = vadd.f32 %v4114, %v4154
    %v4156 = vpop.f32.mrf.mxu0
    %v4157 = vpop.f32.mrf.mxu0
    %4158 = vdwg.mxu0
    %4159 = vmatprep.subr.bf16.mxu0 %v3880
    %4160 = vmatpush1.bf16.msra.mxu0 %v3879
    %4161 = vmatprep.subr.bf16.mxu0 %v3872
    %4162 = vmatpush1.bf16.msra.mxu0 %v3871
    %4163 = vmatprep.subr.bf16.mxu0 %v3864
    %4164 = vmatpush1.bf16.msra.mxu0 %v3863
    %4165 = vmatprep.subr.bf16.mxu0 %v3856
    %4166 = vmatpush1.bf16.msra.mxu0 %v3855
    %4167 = vmatprep.subr.bf16.mxu0 %v3848
    %4168 = vmatpush1.bf16.msra.mxu0 %v3847
    %4169 = vmatprep.subr.bf16.mxu0 %v3840
    %4170 = vmatpush1.bf16.msra.mxu0 %v3839
    %4171 = vmatprep.subr.bf16.mxu0 %v3832
    %4172 = vmatpush1.bf16.msra.mxu0 %v3831
    %4173 = vmatprep.subr.bf16.mxu0 %v3824
    %4174 = vmatpush1.bf16.msra.mxu0 %v3823
    %4175 = vmatprep.subr.bf16.mxu0 %v3944
    %4176 = vmatpush2.bf16.msra.mxu0 %v3943
    %4177 = vmatprep.subr.bf16.mxu0 %v3936
    %4178 = vmatpush2.bf16.msra.mxu0 %v3935
    %4179 = vmatprep.subr.bf16.mxu0 %v3928
    %4180 = vmatpush2.bf16.msra.mxu0 %v3927
    %4181 = vmatprep.subr.bf16.mxu0 %v3920
    %4182 = vmatpush2.bf16.msra.mxu0 %v3919
    %4183 = vmatprep.subr.bf16.mxu0 %v3912
    %4184 = vmatpush2.bf16.msra.mxu0 %v3911
    %4185 = vmatprep.subr.bf16.mxu0 %v3904
    %4186 = vmatpush2.bf16.msra.mxu0 %v3903
    %4187 = vmatprep.subr.bf16.mxu0 %v3896
    %4188 = vmatpush2.bf16.msra.mxu0 %v3895
    %4189 = vmatprep.subr.bf16.mxu0 %v3888
    %4190 = vmatpush2.bf16.msra.mxu0 %v3887
    %4191 = vmatprep.mubr.bf16.mxu0 %v3690
    %4192 = vmatmul.mubr.bf16.gmra.mxu0 %v3689
    %v4193 = vpop.f32.mrf.mxu0
    %v4194 = vadd.f32 0.0, %v4193
    %v4195 = vpop.f32.mrf.mxu0
    %v4196 = vadd.f32 0.0, %v4195
    %v4197 = vpop.f32.mrf.mxu0
    %v4198 = vpop.f32.mrf.mxu0
    %4199 = vdwg.mxu0
    %4200 = vmatprep.subr.bf16.mxu0 %v4008
    %4201 = vmatpush1.bf16.msra.mxu0 %v4007
    %4202 = vmatprep.subr.bf16.mxu0 %v4000
    %4203 = vmatpush1.bf16.msra.mxu0 %v3999
    %4204 = vmatprep.subr.bf16.mxu0 %v3992
    %4205 = vmatpush1.bf16.msra.mxu0 %v3991
    %4206 = vmatprep.subr.bf16.mxu0 %v3984
    %4207 = vmatpush1.bf16.msra.mxu0 %v3983
    %4208 = vmatprep.subr.bf16.mxu0 %v3976
    %4209 = vmatpush1.bf16.msra.mxu0 %v3975
    %4210 = vmatprep.subr.bf16.mxu0 %v3968
    %4211 = vmatpush1.bf16.msra.mxu0 %v3967
    %4212 = vmatprep.subr.bf16.mxu0 %v3960
    %4213 = vmatpush1.bf16.msra.mxu0 %v3959
    %4214 = vmatprep.subr.bf16.mxu0 %v3952
    %4215 = vmatpush1.bf16.msra.mxu0 %v3951
    %4216 = vmatprep.subr.bf16.mxu0 %v4072
    %4217 = vmatpush2.bf16.msra.mxu0 %v4071
    %4218 = vmatprep.subr.bf16.mxu0 %v4064
    %4219 = vmatpush2.bf16.msra.mxu0 %v4063
    %4220 = vmatprep.subr.bf16.mxu0 %v4056
    %4221 = vmatpush2.bf16.msra.mxu0 %v4055
    %4222 = vmatprep.subr.bf16.mxu0 %v4048
    %4223 = vmatpush2.bf16.msra.mxu0 %v4047
    %4224 = vmatprep.subr.bf16.mxu0 %v4040
    %4225 = vmatpush2.bf16.msra.mxu0 %v4039
    %4226 = vmatprep.subr.bf16.mxu0 %v4032
    %4227 = vmatpush2.bf16.msra.mxu0 %v4031
    %4228 = vmatprep.subr.bf16.mxu0 %v4024
    %4229 = vmatpush2.bf16.msra.mxu0 %v4023
    %4230 = vmatprep.subr.bf16.mxu0 %v4016
    %4231 = vmatpush2.bf16.msra.mxu0 %v4015
    %4232 = vmatprep.mubr.bf16.mxu0 %v3692
    %4233 = vmatmul.mubr.bf16.gmra.mxu0 %v3691
    %v4234 = vpop.f32.mrf.mxu0
    %v4235 = vadd.f32 %v4194, %v4234
    %v4236 = vpop.f32.mrf.mxu0
    %v4237 = vadd.f32 %v4196, %v4236
    %v4238 = vpop.f32.mrf.mxu0
    %v4239 = vpop.f32.mrf.mxu0
    %4240 = vdwg.mxu0
    %4241 = vmatprep.subr.bf16.mxu0 %v3882
    %4242 = vmatpush1.bf16.msra.mxu0 %v3881
    %4243 = vmatprep.subr.bf16.mxu0 %v3874
    %4244 = vmatpush1.bf16.msra.mxu0 %v3873
    %4245 = vmatprep.subr.bf16.mxu0 %v3866
    %4246 = vmatpush1.bf16.msra.mxu0 %v3865
    %4247 = vmatprep.subr.bf16.mxu0 %v3858
    %4248 = vmatpush1.bf16.msra.mxu0 %v3857
    %4249 = vmatprep.subr.bf16.mxu0 %v3850
    %4250 = vmatpush1.bf16.msra.mxu0 %v3849
    %4251 = vmatprep.subr.bf16.mxu0 %v3842
    %4252 = vmatpush1.bf16.msra.mxu0 %v3841
    %4253 = vmatprep.subr.bf16.mxu0 %v3834
    %4254 = vmatpush1.bf16.msra.mxu0 %v3833
    %4255 = vmatprep.subr.bf16.mxu0 %v3826
    %4256 = vmatpush1.bf16.msra.mxu0 %v3825
    %4257 = vmatprep.subr.bf16.mxu0 %v3946
    %4258 = vmatpush2.bf16.msra.mxu0 %v3945
    %4259 = vmatprep.subr.bf16.mxu0 %v3938
    %4260 = vmatpush2.bf16.msra.mxu0 %v3937
    %4261 = vmatprep.subr.bf16.mxu0 %v3930
    %4262 = vmatpush2.bf16.msra.mxu0 %v3929
    %4263 = vmatprep.subr.bf16.mxu0 %v3922
    %4264 = vmatpush2.bf16.msra.mxu0 %v3921
    %4265 = vmatprep.subr.bf16.mxu0 %v3914
    %4266 = vmatpush2.bf16.msra.mxu0 %v3913
    %4267 = vmatprep.subr.bf16.mxu0 %v3906
    %4268 = vmatpush2.bf16.msra.mxu0 %v3905
    %4269 = vmatprep.subr.bf16.mxu0 %v3898
    %4270 = vmatpush2.bf16.msra.mxu0 %v3897
    %4271 = vmatprep.subr.bf16.mxu0 %v3890
    %4272 = vmatpush2.bf16.msra.mxu0 %v3889
    %4273 = vmatprep.mubr.bf16.mxu0 %v3690
    %4274 = vmatmul.mubr.bf16.gmra.mxu0 %v3689
    %v4275 = vpop.f32.mrf.mxu0
    %v4276 = vadd.f32 0.0, %v4275
    %v4277 = vpop.f32.mrf.mxu0
    %v4278 = vadd.f32 0.0, %v4277
    %v4279 = vpop.f32.mrf.mxu0
    %v4280 = vpop.f32.mrf.mxu0
    %4281 = vdwg.mxu0
    %4282 = vmatprep.subr.bf16.mxu0 %v4010
    %4283 = vmatpush1.bf16.msra.mxu0 %v4009
    %4284 = vmatprep.subr.bf16.mxu0 %v4002
    %4285 = vmatpush1.bf16.msra.mxu0 %v4001
    %4286 = vmatprep.subr.bf16.mxu0 %v3994
    %4287 = vmatpush1.bf16.msra.mxu0 %v3993
    %4288 = vmatprep.subr.bf16.mxu0 %v3986
    %4289 = vmatpush1.bf16.msra.mxu0 %v3985
    %4290 = vmatprep.subr.bf16.mxu0 %v3978
    %4291 = vmatpush1.bf16.msra.mxu0 %v3977
    %4292 = vmatprep.subr.bf16.mxu0 %v3970
    %4293 = vmatpush1.bf16.msra.mxu0 %v3969
    %4294 = vmatprep.subr.bf16.mxu0 %v3962
    %4295 = vmatpush1.bf16.msra.mxu0 %v3961
    %4296 = vmatprep.subr.bf16.mxu0 %v3954
    %4297 = vmatpush1.bf16.msra.mxu0 %v3953
    %4298 = vmatprep.subr.bf16.mxu0 %v4074
    %4299 = vmatpush2.bf16.msra.mxu0 %v4073
    %4300 = vmatprep.subr.bf16.mxu0 %v4066
    %4301 = vmatpush2.bf16.msra.mxu0 %v4065
    %4302 = vmatprep.subr.bf16.mxu0 %v4058
    %4303 = vmatpush2.bf16.msra.mxu0 %v4057
    %4304 = vmatprep.subr.bf16.mxu0 %v4050
    %4305 = vmatpush2.bf16.msra.mxu0 %v4049
    %4306 = vmatprep.subr.bf16.mxu0 %v4042
    %4307 = vmatpush2.bf16.msra.mxu0 %v4041
    %4308 = vmatprep.subr.bf16.mxu0 %v4034
    %4309 = vmatpush2.bf16.msra.mxu0 %v4033
    %4310 = vmatprep.subr.bf16.mxu0 %v4026
    %4311 = vmatpush2.bf16.msra.mxu0 %v4025
    %4312 = vmatprep.subr.bf16.mxu0 %v4018
    %4313 = vmatpush2.bf16.msra.mxu0 %v4017
    %4314 = vmatprep.mubr.bf16.mxu0 %v3692
    %4315 = vmatmul.mubr.bf16.gmra.mxu0 %v3691
    %v4316 = vpop.f32.mrf.mxu0
    %v4317 = vadd.f32 %v4276, %v4316
    %v4318 = vpop.f32.mrf.mxu0
    %v4319 = vadd.f32 %v4278, %v4318
    %v4320 = vpop.f32.mrf.mxu0
    %v4321 = vpop.f32.mrf.mxu0
    %4322 = vdwg.mxu0
    %4323 = vmatprep.subr.bf16.mxu0 %v3884
    %4324 = vmatpush1.bf16.msra.mxu0 %v3883
    %4325 = vmatprep.subr.bf16.mxu0 %v3876
    %4326 = vmatpush1.bf16.msra.mxu0 %v3875
    %4327 = vmatprep.subr.bf16.mxu0 %v3868
    %4328 = vmatpush1.bf16.msra.mxu0 %v3867
    %4329 = vmatprep.subr.bf16.mxu0 %v3860
    %4330 = vmatpush1.bf16.msra.mxu0 %v3859
    %4331 = vmatprep.subr.bf16.mxu0 %v3852
    %4332 = vmatpush1.bf16.msra.mxu0 %v3851
    %4333 = vmatprep.subr.bf16.mxu0 %v3844
    %4334 = vmatpush1.bf16.msra.mxu0 %v3843
    %4335 = vmatprep.subr.bf16.mxu0 %v3836
    %4336 = vmatpush1.bf16.msra.mxu0 %v3835
    %4337 = vmatprep.subr.bf16.mxu0 %v3828
    %4338 = vmatpush1.bf16.msra.mxu0 %v3827
    %4339 = vmatprep.subr.bf16.mxu0 %v3948
    %4340 = vmatpush2.bf16.msra.mxu0 %v3947
    %4341 = vmatprep.subr.bf16.mxu0 %v3940
    %4342 = vmatpush2.bf16.msra.mxu0 %v3939
    %4343 = vmatprep.subr.bf16.mxu0 %v3932
    %4344 = vmatpush2.bf16.msra.mxu0 %v3931
    %4345 = vmatprep.subr.bf16.mxu0 %v3924
    %4346 = vmatpush2.bf16.msra.mxu0 %v3923
    %4347 = vmatprep.subr.bf16.mxu0 %v3916
    %4348 = vmatpush2.bf16.msra.mxu0 %v3915
    %4349 = vmatprep.subr.bf16.mxu0 %v3908
    %4350 = vmatpush2.bf16.msra.mxu0 %v3907
    %4351 = vmatprep.subr.bf16.mxu0 %v3900
    %4352 = vmatpush2.bf16.msra.mxu0 %v3899
    %4353 = vmatprep.subr.bf16.mxu0 %v3892
    %4354 = vmatpush2.bf16.msra.mxu0 %v3891
    %4355 = vmatprep.mubr.bf16.mxu0 %v3690
    %4356 = vmatmul.mubr.bf16.gmra.mxu0 %v3689
    %v4357 = vpop.f32.mrf.mxu0
    %v4358 = vadd.f32 0.0, %v4357
    %v4359 = vpop.f32.mrf.mxu0
    %v4360 = vadd.f32 0.0, %v4359
    %v4361 = vpop.f32.mrf.mxu0
    %v4362 = vpop.f32.mrf.mxu0
    %4363 = vdwg.mxu0
    %4364 = vmatprep.subr.bf16.mxu0 %v4012
    %4365 = vmatpush1.bf16.msra.mxu0 %v4011
    %4366 = vmatprep.subr.bf16.mxu0 %v4004
    %4367 = vmatpush1.bf16.msra.mxu0 %v4003
    %4368 = vmatprep.subr.bf16.mxu0 %v3996
    %4369 = vmatpush1.bf16.msra.mxu0 %v3995
    %4370 = vmatprep.subr.bf16.mxu0 %v3988
    %4371 = vmatpush1.bf16.msra.mxu0 %v3987
    %4372 = vmatprep.subr.bf16.mxu0 %v3980
    %4373 = vmatpush1.bf16.msra.mxu0 %v3979
    %4374 = vmatprep.subr.bf16.mxu0 %v3972
    %4375 = vmatpush1.bf16.msra.mxu0 %v3971
    %4376 = vmatprep.subr.bf16.mxu0 %v3964
    %4377 = vmatpush1.bf16.msra.mxu0 %v3963
    %4378 = vmatprep.subr.bf16.mxu0 %v3956
    %4379 = vmatpush1.bf16.msra.mxu0 %v3955
    %4380 = vmatprep.subr.bf16.mxu0 %v4076
    %4381 = vmatpush2.bf16.msra.mxu0 %v4075
    %4382 = vmatprep.subr.bf16.mxu0 %v4068
    %4383 = vmatpush2.bf16.msra.mxu0 %v4067
    %4384 = vmatprep.subr.bf16.mxu0 %v4060
    %4385 = vmatpush2.bf16.msra.mxu0 %v4059
    %4386 = vmatprep.subr.bf16.mxu0 %v4052
    %4387 = vmatpush2.bf16.msra.mxu0 %v4051
    %4388 = vmatprep.subr.bf16.mxu0 %v4044
    %4389 = vmatpush2.bf16.msra.mxu0 %v4043
    %4390 = vmatprep.subr.bf16.mxu0 %v4036
    %4391 = vmatpush2.bf16.msra.mxu0 %v4035
    %4392 = vmatprep.subr.bf16.mxu0 %v4028
    %4393 = vmatpush2.bf16.msra.mxu0 %v4027
    %4394 = vmatprep.subr.bf16.mxu0 %v4020
    %4395 = vmatpush2.bf16.msra.mxu0 %v4019
    %4396 = vmatprep.mubr.bf16.mxu0 %v3692
    %4397 = vmatmul.mubr.bf16.gmra.mxu0 %v3691
    %v4398 = vpop.f32.mrf.mxu0
    %v4399 = vadd.f32 %v4358, %v4398
    %v4400 = vpop.f32.mrf.mxu0
    %v4401 = vadd.f32 %v4360, %v4400
    %v4402 = vpop.f32.mrf.mxu0
    %v4403 = vpop.f32.mrf.mxu0
    %4404 = vdwg.mxu0
    %v4405 = vld [vmem:[#allocation27] sm:$0xff]
    %v4407 = vlaneseq
    %v4408 = vshrl.u32 %v4407, 7
    %v4409 = vsub.s32 0, %v4408
    %v4410 = vrot.slane %v4405, %v4409
    %v4411 = vlaneseq
    %v4412 = vshrl.u32 %v4411, 7
    %v4413 = vsub.s32 1, %v4412
    %v4414 = vrot.slane %v4405, %v4413
    %v4415 = vlaneseq
    %v4416 = vshrl.u32 %v4415, 7
    %v4417 = vsub.s32 2, %v4416
    %v4418 = vrot.slane %v4405, %v4417
    %v4419 = vlaneseq
    %v4420 = vshrl.u32 %v4419, 7
    %v4421 = vsub.s32 3, %v4420
    %v4422 = vrot.slane %v4405, %v4421
    %v4423 = vlaneseq
    %v4424 = vshrl.u32 %v4423, 7
    %v4425 = vsub.s32 4, %v4424
    %v4426 = vrot.slane %v4405, %v4425
    %v4427 = vlaneseq
    %v4428 = vshrl.u32 %v4427, 7
    %v4429 = vsub.s32 5, %v4428
    %v4430 = vrot.slane %v4405, %v4429
    %v4431 = vlaneseq
    %v4432 = vshrl.u32 %v4431, 7
    %v4433 = vsub.s32 6, %v4432
    %v4434 = vrot.slane %v4405, %v4433
    %v4435 = vlaneseq
    %v4436 = vshrl.u32 %v4435, 7
    %v4437 = vsub.s32 7, %v4436
    %v4438 = vrot.slane %v4405, %v4437
    %v4447 = vmul.f32 %v4153, %v4410
    %v4448 = vmul.f32 %v4155, %v4414
    %v4449 = vmul.f32 %v4235, %v4418
    %v4450 = vmul.f32 %v4237, %v4422
    %v4451 = vmul.f32 %v4317, %v4426
    %v4452 = vmul.f32 %v4319, %v4430
    %v4453 = vmul.f32 %v4399, %v4434
    %v4454 = vmul.f32 %v4401, %v4438
    %v4455 = vld [vmem:[#allocation28] sm:$0xff]
    %v4457 = vlaneseq
    %v4458 = vshrl.u32 %v4457, 7
    %v4459 = vsub.s32 0, %v4458
    %v4460 = vrot.slane %v4455, %v4459
    %v4461 = vlaneseq
    %v4462 = vshrl.u32 %v4461, 7
    %v4463 = vsub.s32 1, %v4462
    %v4464 = vrot.slane %v4455, %v4463
    %v4465 = vlaneseq
    %v4466 = vshrl.u32 %v4465, 7
    %v4467 = vsub.s32 2, %v4466
    %v4468 = vrot.slane %v4455, %v4467
    %v4469 = vlaneseq
    %v4470 = vshrl.u32 %v4469, 7
    %v4471 = vsub.s32 3, %v4470
    %v4472 = vrot.slane %v4455, %v4471
    %v4473 = vlaneseq
    %v4474 = vshrl.u32 %v4473, 7
    %v4475 = vsub.s32 4, %v4474
    %v4476 = vrot.slane %v4455, %v4475
    %v4477 = vlaneseq
    %v4478 = vshrl.u32 %v4477, 7
    %v4479 = vsub.s32 5, %v4478
    %v4480 = vrot.slane %v4455, %v4479
    %v4481 = vlaneseq
    %v4482 = vshrl.u32 %v4481, 7
    %v4483 = vsub.s32 6, %v4482
    %v4484 = vrot.slane %v4455, %v4483
    %v4485 = vlaneseq
    %v4486 = vshrl.u32 %v4485, 7
    %v4487 = vsub.s32 7, %v4486
    %v4488 = vrot.slane %v4455, %v4487
    %v4497 = vadd.f32 %v4447, %v4460
    %v4498 = vadd.f32 %v4448, %v4464
    %v4499 = vadd.f32 %v4449, %v4468
    %v4500 = vadd.f32 %v4450, %v4472
    %v4501 = vadd.f32 %v4451, %v4476
    %v4502 = vadd.f32 %v4452, %v4480
    %v4503 = vadd.f32 %v4453, %v4484
    %v4504 = vadd.f32 %v4454, %v4488
    %v4505 = vmul.f32 %v4497, 0.1
    %v4506 = vmul.f32 %v4498, 0.1
    %v4507 = vmul.f32 %v4499, 0.1
    %v4508 = vmul.f32 %v4500, 0.1
    %v4509 = vmul.f32 %v4501, 0.1
    %v4510 = vmul.f32 %v4502, 0.1
    %v4511 = vmul.f32 %v4503, 0.1
    %v4512 = vmul.f32 %v4504, 0.1
    %v4513 = vmax.f32 %v4497, %v4505
    %v4514 = vmax.f32 %v4498, %v4506
    %v4515 = vmax.f32 %v4499, %v4507
    %v4516 = vmax.f32 %v4500, %v4508
    %v4517 = vmax.f32 %v4501, %v4509
    %v4518 = vmax.f32 %v4502, %v4510
    %v4519 = vmax.f32 %v4503, %v4511
    %v4520 = vmax.f32 %v4504, %v4512
    %v4521 = vpack.c.bf16 %v4513, %v4513
    %v4522 = vpack.c.bf16 %v4514, %v4514
    %v4523 = vpack.c.bf16 %v4515, %v4515
    %v4524 = vpack.c.bf16 %v4516, %v4516
    %v4525 = vpack.c.bf16 %v4517, %v4517
    %v4526 = vpack.c.bf16 %v4518, %v4518
    %v4527 = vpack.c.bf16 %v4519, %v4519
    %v4528 = vpack.c.bf16 %v4520, %v4520
    %v4529 = vld [vmem:[#allocation30] sm:$0xff]
    %v4530 = vld [vmem:[#allocation30 + $0x8] sm:$0xff]
    %v4531 = vld [vmem:[#allocation30 + $0x10] sm:$0xff]
    %v4532 = vld [vmem:[#allocation30 + $0x18] sm:$0xff]
    %v4533 = vld [vmem:[#allocation30 + $0x20] sm:$0xff]
    %v4534 = vld [vmem:[#allocation30 + $0x28] sm:$0xff]
    %v4535 = vld [vmem:[#allocation30 + $0x30] sm:$0xff]
    %v4536 = vld [vmem:[#allocation30 + $0x38] sm:$0xff]
    %v4537 = vld [vmem:[#allocation30 + $0x40] sm:$0xff]
    %v4538 = vld [vmem:[#allocation30 + $0x48] sm:$0xff]
    %v4539 = vld [vmem:[#allocation30 + $0x50] sm:$0xff]
    %v4540 = vld [vmem:[#allocation30 + $0x58] sm:$0xff]
    %v4541 = vld [vmem:[#allocation30 + $0x60] sm:$0xff]
    %v4542 = vld [vmem:[#allocation30 + $0x68] sm:$0xff]
    %v4543 = vld [vmem:[#allocation30 + $0x70] sm:$0xff]
    %v4544 = vld [vmem:[#allocation30 + $0x78] sm:$0xff]
    %v4545 = vld [vmem:[#allocation30 + $0x80] sm:$0xff]
    %v4546 = vld [vmem:[#allocation30 + $0x88] sm:$0xff]
    %v4547 = vld [vmem:[#allocation30 + $0x90] sm:$0xff]
    %v4548 = vld [vmem:[#allocation30 + $0x98] sm:$0xff]
    %v4549 = vld [vmem:[#allocation30 + $0xa0] sm:$0xff]
    %v4550 = vld [vmem:[#allocation30 + $0xa8] sm:$0xff]
    %v4551 = vld [vmem:[#allocation30 + $0xb0] sm:$0xff]
    %v4552 = vld [vmem:[#allocation30 + $0xb8] sm:$0xff]
    %v4553 = vld [vmem:[#allocation30 + $0xc0] sm:$0xff]
    %v4554 = vld [vmem:[#allocation30 + $0xc8] sm:$0xff]
    %v4555 = vld [vmem:[#allocation30 + $0xd0] sm:$0xff]
    %v4556 = vld [vmem:[#allocation30 + $0xd8] sm:$0xff]
    %v4557 = vld [vmem:[#allocation30 + $0xe0] sm:$0xff]
    %v4558 = vld [vmem:[#allocation30 + $0xe8] sm:$0xff]
    %v4559 = vld [vmem:[#allocation30 + $0xf0] sm:$0xff]
    %v4560 = vld [vmem:[#allocation30 + $0xf8] sm:$0xff]
    %v4561 = vld [vmem:[#allocation30 + $0x100] sm:$0xff]
    %v4562 = vld [vmem:[#allocation30 + $0x108] sm:$0xff]
    %v4563 = vld [vmem:[#allocation30 + $0x110] sm:$0xff]
    %v4564 = vld [vmem:[#allocation30 + $0x118] sm:$0xff]
    %v4565 = vld [vmem:[#allocation30 + $0x120] sm:$0xff]
    %v4566 = vld [vmem:[#allocation30 + $0x128] sm:$0xff]
    %v4567 = vld [vmem:[#allocation30 + $0x130] sm:$0xff]
    %v4568 = vld [vmem:[#allocation30 + $0x138] sm:$0xff]
    %v4569 = vld [vmem:[#allocation30 + $0x140] sm:$0xff]
    %v4570 = vld [vmem:[#allocation30 + $0x148] sm:$0xff]
    %v4571 = vld [vmem:[#allocation30 + $0x150] sm:$0xff]
    %v4572 = vld [vmem:[#allocation30 + $0x158] sm:$0xff]
    %v4573 = vld [vmem:[#allocation30 + $0x160] sm:$0xff]
    %v4574 = vld [vmem:[#allocation30 + $0x168] sm:$0xff]
    %v4575 = vld [vmem:[#allocation30 + $0x170] sm:$0xff]
    %v4576 = vld [vmem:[#allocation30 + $0x178] sm:$0xff]
    %v4577 = vld [vmem:[#allocation30 + $0x180] sm:$0xff]
    %v4578 = vld [vmem:[#allocation30 + $0x188] sm:$0xff]
    %v4579 = vld [vmem:[#allocation30 + $0x190] sm:$0xff]
    %v4580 = vld [vmem:[#allocation30 + $0x198] sm:$0xff]
    %v4581 = vld [vmem:[#allocation30 + $0x1a0] sm:$0xff]
    %v4582 = vld [vmem:[#allocation30 + $0x1a8] sm:$0xff]
    %v4583 = vld [vmem:[#allocation30 + $0x1b0] sm:$0xff]
    %v4584 = vld [vmem:[#allocation30 + $0x1b8] sm:$0xff]
    %v4585 = vld [vmem:[#allocation30 + $0x1c0] sm:$0xff]
    %v4586 = vld [vmem:[#allocation30 + $0x1c8] sm:$0xff]
    %v4587 = vld [vmem:[#allocation30 + $0x1d0] sm:$0xff]
    %v4588 = vld [vmem:[#allocation30 + $0x1d8] sm:$0xff]
    %v4589 = vld [vmem:[#allocation30 + $0x1e0] sm:$0xff]
    %v4590 = vld [vmem:[#allocation30 + $0x1e8] sm:$0xff]
    %v4591 = vld [vmem:[#allocation30 + $0x1f0] sm:$0xff]
    %v4592 = vld [vmem:[#allocation30 + $0x1f8] sm:$0xff]
    %v4593 = vld [vmem:[#allocation30 + $0x200] sm:$0xff]
    %v4594 = vld [vmem:[#allocation30 + $0x208] sm:$0xff]
    %v4595 = vld [vmem:[#allocation30 + $0x210] sm:$0xff]
    %v4596 = vld [vmem:[#allocation30 + $0x218] sm:$0xff]
    %v4597 = vld [vmem:[#allocation30 + $0x220] sm:$0xff]
    %v4598 = vld [vmem:[#allocation30 + $0x228] sm:$0xff]
    %v4599 = vld [vmem:[#allocation30 + $0x230] sm:$0xff]
    %v4600 = vld [vmem:[#allocation30 + $0x238] sm:$0xff]
    %v4601 = vld [vmem:[#allocation30 + $0x240] sm:$0xff]
    %v4602 = vld [vmem:[#allocation30 + $0x248] sm:$0xff]
    %v4603 = vld [vmem:[#allocation30 + $0x250] sm:$0xff]
    %v4604 = vld [vmem:[#allocation30 + $0x258] sm:$0xff]
    %v4605 = vld [vmem:[#allocation30 + $0x260] sm:$0xff]
    %v4606 = vld [vmem:[#allocation30 + $0x268] sm:$0xff]
    %v4607 = vld [vmem:[#allocation30 + $0x270] sm:$0xff]
    %v4608 = vld [vmem:[#allocation30 + $0x278] sm:$0xff]
    %v4609 = vld [vmem:[#allocation30 + $0x280] sm:$0xff]
    %v4610 = vld [vmem:[#allocation30 + $0x288] sm:$0xff]
    %v4611 = vld [vmem:[#allocation30 + $0x290] sm:$0xff]
    %v4612 = vld [vmem:[#allocation30 + $0x298] sm:$0xff]
    %v4613 = vld [vmem:[#allocation30 + $0x2a0] sm:$0xff]
    %v4614 = vld [vmem:[#allocation30 + $0x2a8] sm:$0xff]
    %v4615 = vld [vmem:[#allocation30 + $0x2b0] sm:$0xff]
    %v4616 = vld [vmem:[#allocation30 + $0x2b8] sm:$0xff]
    %v4617 = vld [vmem:[#allocation30 + $0x2c0] sm:$0xff]
    %v4618 = vld [vmem:[#allocation30 + $0x2c8] sm:$0xff]
    %v4619 = vld [vmem:[#allocation30 + $0x2d0] sm:$0xff]
    %v4620 = vld [vmem:[#allocation30 + $0x2d8] sm:$0xff]
    %v4621 = vld [vmem:[#allocation30 + $0x2e0] sm:$0xff]
    %v4622 = vld [vmem:[#allocation30 + $0x2e8] sm:$0xff]
    %v4623 = vld [vmem:[#allocation30 + $0x2f0] sm:$0xff]
    %v4624 = vld [vmem:[#allocation30 + $0x2f8] sm:$0xff]
    %v4625 = vld [vmem:[#allocation30 + $0x300] sm:$0xff]
    %v4626 = vld [vmem:[#allocation30 + $0x308] sm:$0xff]
    %v4627 = vld [vmem:[#allocation30 + $0x310] sm:$0xff]
    %v4628 = vld [vmem:[#allocation30 + $0x318] sm:$0xff]
    %v4629 = vld [vmem:[#allocation30 + $0x320] sm:$0xff]
    %v4630 = vld [vmem:[#allocation30 + $0x328] sm:$0xff]
    %v4631 = vld [vmem:[#allocation30 + $0x330] sm:$0xff]
    %v4632 = vld [vmem:[#allocation30 + $0x338] sm:$0xff]
    %v4633 = vld [vmem:[#allocation30 + $0x340] sm:$0xff]
    %v4634 = vld [vmem:[#allocation30 + $0x348] sm:$0xff]
    %v4635 = vld [vmem:[#allocation30 + $0x350] sm:$0xff]
    %v4636 = vld [vmem:[#allocation30 + $0x358] sm:$0xff]
    %v4637 = vld [vmem:[#allocation30 + $0x360] sm:$0xff]
    %v4638 = vld [vmem:[#allocation30 + $0x368] sm:$0xff]
    %v4639 = vld [vmem:[#allocation30 + $0x370] sm:$0xff]
    %v4640 = vld [vmem:[#allocation30 + $0x378] sm:$0xff]
    %v4641 = vld [vmem:[#allocation30 + $0x380] sm:$0xff]
    %v4642 = vld [vmem:[#allocation30 + $0x388] sm:$0xff]
    %v4643 = vld [vmem:[#allocation30 + $0x390] sm:$0xff]
    %v4644 = vld [vmem:[#allocation30 + $0x398] sm:$0xff]
    %v4645 = vld [vmem:[#allocation30 + $0x3a0] sm:$0xff]
    %v4646 = vld [vmem:[#allocation30 + $0x3a8] sm:$0xff]
    %v4647 = vld [vmem:[#allocation30 + $0x3b0] sm:$0xff]
    %v4648 = vld [vmem:[#allocation30 + $0x3b8] sm:$0xff]
    %v4649 = vld [vmem:[#allocation30 + $0x3c0] sm:$0xff]
    %v4650 = vld [vmem:[#allocation30 + $0x3c8] sm:$0xff]
    %v4651 = vld [vmem:[#allocation30 + $0x3d0] sm:$0xff]
    %v4652 = vld [vmem:[#allocation30 + $0x3d8] sm:$0xff]
    %v4653 = vld [vmem:[#allocation30 + $0x3e0] sm:$0xff]
    %v4654 = vld [vmem:[#allocation30 + $0x3e8] sm:$0xff]
    %v4655 = vld [vmem:[#allocation30 + $0x3f0] sm:$0xff]
    %v4656 = vld [vmem:[#allocation30 + $0x3f8] sm:$0xff]
    %v4657 = vld [vmem:[#allocation30 + $0x400] sm:$0xff]
    %v4658 = vld [vmem:[#allocation30 + $0x408] sm:$0xff]
    %v4659 = vld [vmem:[#allocation30 + $0x410] sm:$0xff]
    %v4660 = vld [vmem:[#allocation30 + $0x418] sm:$0xff]
    %v4661 = vld [vmem:[#allocation30 + $0x420] sm:$0xff]
    %v4662 = vld [vmem:[#allocation30 + $0x428] sm:$0xff]
    %v4663 = vld [vmem:[#allocation30 + $0x430] sm:$0xff]
    %v4664 = vld [vmem:[#allocation30 + $0x438] sm:$0xff]
    %v4665 = vld [vmem:[#allocation30 + $0x440] sm:$0xff]
    %v4666 = vld [vmem:[#allocation30 + $0x448] sm:$0xff]
    %v4667 = vld [vmem:[#allocation30 + $0x450] sm:$0xff]
    %v4668 = vld [vmem:[#allocation30 + $0x458] sm:$0xff]
    %v4669 = vld [vmem:[#allocation30 + $0x460] sm:$0xff]
    %v4670 = vld [vmem:[#allocation30 + $0x468] sm:$0xff]
    %v4671 = vld [vmem:[#allocation30 + $0x470] sm:$0xff]
    %v4672 = vld [vmem:[#allocation30 + $0x478] sm:$0xff]
    %v4673 = vld [vmem:[#allocation30 + $0x480] sm:$0xff]
    %v4674 = vld [vmem:[#allocation30 + $0x488] sm:$0xff]
    %v4675 = vld [vmem:[#allocation30 + $0x490] sm:$0xff]
    %v4676 = vld [vmem:[#allocation30 + $0x498] sm:$0xff]
    %v4677 = vld [vmem:[#allocation30 + $0x4a0] sm:$0xff]
    %v4678 = vld [vmem:[#allocation30 + $0x4a8] sm:$0xff]
    %v4679 = vld [vmem:[#allocation30 + $0x4b0] sm:$0xff]
    %v4680 = vld [vmem:[#allocation30 + $0x4b8] sm:$0xff]
    %v4681 = vld [vmem:[#allocation30 + $0x4c0] sm:$0xff]
    %v4682 = vld [vmem:[#allocation30 + $0x4c8] sm:$0xff]
    %v4683 = vld [vmem:[#allocation30 + $0x4d0] sm:$0xff]
    %v4684 = vld [vmem:[#allocation30 + $0x4d8] sm:$0xff]
    %v4685 = vld [vmem:[#allocation30 + $0x4e0] sm:$0xff]
    %v4686 = vld [vmem:[#allocation30 + $0x4e8] sm:$0xff]
    %v4687 = vld [vmem:[#allocation30 + $0x4f0] sm:$0xff]
    %v4688 = vld [vmem:[#allocation30 + $0x4f8] sm:$0xff]
    %v4689 = vld [vmem:[#allocation30 + $0x500] sm:$0xff]
    %v4690 = vld [vmem:[#allocation30 + $0x508] sm:$0xff]
    %v4691 = vld [vmem:[#allocation30 + $0x510] sm:$0xff]
    %v4692 = vld [vmem:[#allocation30 + $0x518] sm:$0xff]
    %v4693 = vld [vmem:[#allocation30 + $0x520] sm:$0xff]
    %v4694 = vld [vmem:[#allocation30 + $0x528] sm:$0xff]
    %v4695 = vld [vmem:[#allocation30 + $0x530] sm:$0xff]
    %v4696 = vld [vmem:[#allocation30 + $0x538] sm:$0xff]
    %v4697 = vld [vmem:[#allocation30 + $0x540] sm:$0xff]
    %v4698 = vld [vmem:[#allocation30 + $0x548] sm:$0xff]
    %v4699 = vld [vmem:[#allocation30 + $0x550] sm:$0xff]
    %v4700 = vld [vmem:[#allocation30 + $0x558] sm:$0xff]
    %v4701 = vld [vmem:[#allocation30 + $0x560] sm:$0xff]
    %v4702 = vld [vmem:[#allocation30 + $0x568] sm:$0xff]
    %v4703 = vld [vmem:[#allocation30 + $0x570] sm:$0xff]
    %v4704 = vld [vmem:[#allocation30 + $0x578] sm:$0xff]
    %v4705 = vld [vmem:[#allocation30 + $0x580] sm:$0xff]
    %v4706 = vld [vmem:[#allocation30 + $0x588] sm:$0xff]
    %v4707 = vld [vmem:[#allocation30 + $0x590] sm:$0xff]
    %v4708 = vld [vmem:[#allocation30 + $0x598] sm:$0xff]
    %v4709 = vld [vmem:[#allocation30 + $0x5a0] sm:$0xff]
    %v4710 = vld [vmem:[#allocation30 + $0x5a8] sm:$0xff]
    %v4711 = vld [vmem:[#allocation30 + $0x5b0] sm:$0xff]
    %v4712 = vld [vmem:[#allocation30 + $0x5b8] sm:$0xff]
    %v4713 = vld [vmem:[#allocation30 + $0x5c0] sm:$0xff]
    %v4714 = vld [vmem:[#allocation30 + $0x5c8] sm:$0xff]
    %v4715 = vld [vmem:[#allocation30 + $0x5d0] sm:$0xff]
    %v4716 = vld [vmem:[#allocation30 + $0x5d8] sm:$0xff]
    %v4717 = vld [vmem:[#allocation30 + $0x5e0] sm:$0xff]
    %v4718 = vld [vmem:[#allocation30 + $0x5e8] sm:$0xff]
    %v4719 = vld [vmem:[#allocation30 + $0x5f0] sm:$0xff]
    %v4720 = vld [vmem:[#allocation30 + $0x5f8] sm:$0xff]
    %v4721 = vld [vmem:[#allocation30 + $0x600] sm:$0xff]
    %v4722 = vld [vmem:[#allocation30 + $0x608] sm:$0xff]
    %v4723 = vld [vmem:[#allocation30 + $0x610] sm:$0xff]
    %v4724 = vld [vmem:[#allocation30 + $0x618] sm:$0xff]
    %v4725 = vld [vmem:[#allocation30 + $0x620] sm:$0xff]
    %v4726 = vld [vmem:[#allocation30 + $0x628] sm:$0xff]
    %v4727 = vld [vmem:[#allocation30 + $0x630] sm:$0xff]
    %v4728 = vld [vmem:[#allocation30 + $0x638] sm:$0xff]
    %v4729 = vld [vmem:[#allocation30 + $0x640] sm:$0xff]
    %v4730 = vld [vmem:[#allocation30 + $0x648] sm:$0xff]
    %v4731 = vld [vmem:[#allocation30 + $0x650] sm:$0xff]
    %v4732 = vld [vmem:[#allocation30 + $0x658] sm:$0xff]
    %v4733 = vld [vmem:[#allocation30 + $0x660] sm:$0xff]
    %v4734 = vld [vmem:[#allocation30 + $0x668] sm:$0xff]
    %v4735 = vld [vmem:[#allocation30 + $0x670] sm:$0xff]
    %v4736 = vld [vmem:[#allocation30 + $0x678] sm:$0xff]
    %v4737 = vld [vmem:[#allocation30 + $0x680] sm:$0xff]
    %v4738 = vld [vmem:[#allocation30 + $0x688] sm:$0xff]
    %v4739 = vld [vmem:[#allocation30 + $0x690] sm:$0xff]
    %v4740 = vld [vmem:[#allocation30 + $0x698] sm:$0xff]
    %v4741 = vld [vmem:[#allocation30 + $0x6a0] sm:$0xff]
    %v4742 = vld [vmem:[#allocation30 + $0x6a8] sm:$0xff]
    %v4743 = vld [vmem:[#allocation30 + $0x6b0] sm:$0xff]
    %v4744 = vld [vmem:[#allocation30 + $0x6b8] sm:$0xff]
    %v4745 = vld [vmem:[#allocation30 + $0x6c0] sm:$0xff]
    %v4746 = vld [vmem:[#allocation30 + $0x6c8] sm:$0xff]
    %v4747 = vld [vmem:[#allocation30 + $0x6d0] sm:$0xff]
    %v4748 = vld [vmem:[#allocation30 + $0x6d8] sm:$0xff]
    %v4749 = vld [vmem:[#allocation30 + $0x6e0] sm:$0xff]
    %v4750 = vld [vmem:[#allocation30 + $0x6e8] sm:$0xff]
    %v4751 = vld [vmem:[#allocation30 + $0x6f0] sm:$0xff]
    %v4752 = vld [vmem:[#allocation30 + $0x6f8] sm:$0xff]
    %v4753 = vld [vmem:[#allocation30 + $0x700] sm:$0xff]
    %v4754 = vld [vmem:[#allocation30 + $0x708] sm:$0xff]
    %v4755 = vld [vmem:[#allocation30 + $0x710] sm:$0xff]
    %v4756 = vld [vmem:[#allocation30 + $0x718] sm:$0xff]
    %v4757 = vld [vmem:[#allocation30 + $0x720] sm:$0xff]
    %v4758 = vld [vmem:[#allocation30 + $0x728] sm:$0xff]
    %v4759 = vld [vmem:[#allocation30 + $0x730] sm:$0xff]
    %v4760 = vld [vmem:[#allocation30 + $0x738] sm:$0xff]
    %v4761 = vld [vmem:[#allocation30 + $0x740] sm:$0xff]
    %v4762 = vld [vmem:[#allocation30 + $0x748] sm:$0xff]
    %v4763 = vld [vmem:[#allocation30 + $0x750] sm:$0xff]
    %v4764 = vld [vmem:[#allocation30 + $0x758] sm:$0xff]
    %v4765 = vld [vmem:[#allocation30 + $0x760] sm:$0xff]
    %v4766 = vld [vmem:[#allocation30 + $0x768] sm:$0xff]
    %v4767 = vld [vmem:[#allocation30 + $0x770] sm:$0xff]
    %v4768 = vld [vmem:[#allocation30 + $0x778] sm:$0xff]
    %v4769 = vld [vmem:[#allocation30 + $0x780] sm:$0xff]
    %v4770 = vld [vmem:[#allocation30 + $0x788] sm:$0xff]
    %v4771 = vld [vmem:[#allocation30 + $0x790] sm:$0xff]
    %v4772 = vld [vmem:[#allocation30 + $0x798] sm:$0xff]
    %v4773 = vld [vmem:[#allocation30 + $0x7a0] sm:$0xff]
    %v4774 = vld [vmem:[#allocation30 + $0x7a8] sm:$0xff]
    %v4775 = vld [vmem:[#allocation30 + $0x7b0] sm:$0xff]
    %v4776 = vld [vmem:[#allocation30 + $0x7b8] sm:$0xff]
    %v4777 = vld [vmem:[#allocation30 + $0x7c0] sm:$0xff]
    %v4778 = vld [vmem:[#allocation30 + $0x7c8] sm:$0xff]
    %v4779 = vld [vmem:[#allocation30 + $0x7d0] sm:$0xff]
    %v4780 = vld [vmem:[#allocation30 + $0x7d8] sm:$0xff]
    %v4781 = vld [vmem:[#allocation30 + $0x7e0] sm:$0xff]
    %v4782 = vld [vmem:[#allocation30 + $0x7e8] sm:$0xff]
    %v4783 = vld [vmem:[#allocation30 + $0x7f0] sm:$0xff]
    %v4784 = vld [vmem:[#allocation30 + $0x7f8] sm:$0xff]
    %v4785 = vld [vmem:[#allocation30 + $0x800] sm:$0xff]
    %v4786 = vld [vmem:[#allocation30 + $0x808] sm:$0xff]
    %v4787 = vld [vmem:[#allocation30 + $0x810] sm:$0xff]
    %v4788 = vld [vmem:[#allocation30 + $0x818] sm:$0xff]
    %v4789 = vld [vmem:[#allocation30 + $0x820] sm:$0xff]
    %v4790 = vld [vmem:[#allocation30 + $0x828] sm:$0xff]
    %v4791 = vld [vmem:[#allocation30 + $0x830] sm:$0xff]
    %v4792 = vld [vmem:[#allocation30 + $0x838] sm:$0xff]
    %v4793 = vld [vmem:[#allocation30 + $0x840] sm:$0xff]
    %v4794 = vld [vmem:[#allocation30 + $0x848] sm:$0xff]
    %v4795 = vld [vmem:[#allocation30 + $0x850] sm:$0xff]
    %v4796 = vld [vmem:[#allocation30 + $0x858] sm:$0xff]
    %v4797 = vld [vmem:[#allocation30 + $0x860] sm:$0xff]
    %v4798 = vld [vmem:[#allocation30 + $0x868] sm:$0xff]
    %v4799 = vld [vmem:[#allocation30 + $0x870] sm:$0xff]
    %v4800 = vld [vmem:[#allocation30 + $0x878] sm:$0xff]
    %v4801 = vld [vmem:[#allocation30 + $0x880] sm:$0xff]
    %v4802 = vld [vmem:[#allocation30 + $0x888] sm:$0xff]
    %v4803 = vld [vmem:[#allocation30 + $0x890] sm:$0xff]
    %v4804 = vld [vmem:[#allocation30 + $0x898] sm:$0xff]
    %v4805 = vld [vmem:[#allocation30 + $0x8a0] sm:$0xff]
    %v4806 = vld [vmem:[#allocation30 + $0x8a8] sm:$0xff]
    %v4807 = vld [vmem:[#allocation30 + $0x8b0] sm:$0xff]
    %v4808 = vld [vmem:[#allocation30 + $0x8b8] sm:$0xff]
    %v4809 = vld [vmem:[#allocation30 + $0x8c0] sm:$0xff]
    %v4810 = vld [vmem:[#allocation30 + $0x8c8] sm:$0xff]
    %v4811 = vld [vmem:[#allocation30 + $0x8d0] sm:$0xff]
    %v4812 = vld [vmem:[#allocation30 + $0x8d8] sm:$0xff]
    %v4813 = vld [vmem:[#allocation30 + $0x8e0] sm:$0xff]
    %v4814 = vld [vmem:[#allocation30 + $0x8e8] sm:$0xff]
    %v4815 = vld [vmem:[#allocation30 + $0x8f0] sm:$0xff]
    %v4816 = vld [vmem:[#allocation30 + $0x8f8] sm:$0xff]
    %v4817 = vld [vmem:[#allocation30 + $0x900] sm:$0xff]
    %v4818 = vld [vmem:[#allocation30 + $0x908] sm:$0xff]
    %v4819 = vld [vmem:[#allocation30 + $0x910] sm:$0xff]
    %v4820 = vld [vmem:[#allocation30 + $0x918] sm:$0xff]
    %v4821 = vld [vmem:[#allocation30 + $0x920] sm:$0xff]
    %v4822 = vld [vmem:[#allocation30 + $0x928] sm:$0xff]
    %v4823 = vld [vmem:[#allocation30 + $0x930] sm:$0xff]
    %v4824 = vld [vmem:[#allocation30 + $0x938] sm:$0xff]
    %v4825 = vld [vmem:[#allocation30 + $0x940] sm:$0xff]
    %v4826 = vld [vmem:[#allocation30 + $0x948] sm:$0xff]
    %v4827 = vld [vmem:[#allocation30 + $0x950] sm:$0xff]
    %v4828 = vld [vmem:[#allocation30 + $0x958] sm:$0xff]
    %v4829 = vld [vmem:[#allocation30 + $0x960] sm:$0xff]
    %v4830 = vld [vmem:[#allocation30 + $0x968] sm:$0xff]
    %v4831 = vld [vmem:[#allocation30 + $0x970] sm:$0xff]
    %v4832 = vld [vmem:[#allocation30 + $0x978] sm:$0xff]
    %v4833 = vld [vmem:[#allocation30 + $0x980] sm:$0xff]
    %v4834 = vld [vmem:[#allocation30 + $0x988] sm:$0xff]
    %v4835 = vld [vmem:[#allocation30 + $0x990] sm:$0xff]
    %v4836 = vld [vmem:[#allocation30 + $0x998] sm:$0xff]
    %v4837 = vld [vmem:[#allocation30 + $0x9a0] sm:$0xff]
    %v4838 = vld [vmem:[#allocation30 + $0x9a8] sm:$0xff]
    %v4839 = vld [vmem:[#allocation30 + $0x9b0] sm:$0xff]
    %v4840 = vld [vmem:[#allocation30 + $0x9b8] sm:$0xff]
    %v4841 = vld [vmem:[#allocation30 + $0x9c0] sm:$0xff]
    %v4842 = vld [vmem:[#allocation30 + $0x9c8] sm:$0xff]
    %v4843 = vld [vmem:[#allocation30 + $0x9d0] sm:$0xff]
    %v4844 = vld [vmem:[#allocation30 + $0x9d8] sm:$0xff]
    %v4845 = vld [vmem:[#allocation30 + $0x9e0] sm:$0xff]
    %v4846 = vld [vmem:[#allocation30 + $0x9e8] sm:$0xff]
    %v4847 = vld [vmem:[#allocation30 + $0x9f0] sm:$0xff]
    %v4848 = vld [vmem:[#allocation30 + $0x9f8] sm:$0xff]
    %v4849 = vld [vmem:[#allocation30 + $0xa00] sm:$0xff]
    %v4850 = vld [vmem:[#allocation30 + $0xa08] sm:$0xff]
    %v4851 = vld [vmem:[#allocation30 + $0xa10] sm:$0xff]
    %v4852 = vld [vmem:[#allocation30 + $0xa18] sm:$0xff]
    %v4853 = vld [vmem:[#allocation30 + $0xa20] sm:$0xff]
    %v4854 = vld [vmem:[#allocation30 + $0xa28] sm:$0xff]
    %v4855 = vld [vmem:[#allocation30 + $0xa30] sm:$0xff]
    %v4856 = vld [vmem:[#allocation30 + $0xa38] sm:$0xff]
    %v4857 = vld [vmem:[#allocation30 + $0xa40] sm:$0xff]
    %v4858 = vld [vmem:[#allocation30 + $0xa48] sm:$0xff]
    %v4859 = vld [vmem:[#allocation30 + $0xa50] sm:$0xff]
    %v4860 = vld [vmem:[#allocation30 + $0xa58] sm:$0xff]
    %v4861 = vld [vmem:[#allocation30 + $0xa60] sm:$0xff]
    %v4862 = vld [vmem:[#allocation30 + $0xa68] sm:$0xff]
    %v4863 = vld [vmem:[#allocation30 + $0xa70] sm:$0xff]
    %v4864 = vld [vmem:[#allocation30 + $0xa78] sm:$0xff]
    %v4865 = vld [vmem:[#allocation30 + $0xa80] sm:$0xff]
    %v4866 = vld [vmem:[#allocation30 + $0xa88] sm:$0xff]
    %v4867 = vld [vmem:[#allocation30 + $0xa90] sm:$0xff]
    %v4868 = vld [vmem:[#allocation30 + $0xa98] sm:$0xff]
    %v4869 = vld [vmem:[#allocation30 + $0xaa0] sm:$0xff]
    %v4870 = vld [vmem:[#allocation30 + $0xaa8] sm:$0xff]
    %v4871 = vld [vmem:[#allocation30 + $0xab0] sm:$0xff]
    %v4872 = vld [vmem:[#allocation30 + $0xab8] sm:$0xff]
    %v4873 = vld [vmem:[#allocation30 + $0xac0] sm:$0xff]
    %v4874 = vld [vmem:[#allocation30 + $0xac8] sm:$0xff]
    %v4875 = vld [vmem:[#allocation30 + $0xad0] sm:$0xff]
    %v4876 = vld [vmem:[#allocation30 + $0xad8] sm:$0xff]
    %v4877 = vld [vmem:[#allocation30 + $0xae0] sm:$0xff]
    %v4878 = vld [vmem:[#allocation30 + $0xae8] sm:$0xff]
    %v4879 = vld [vmem:[#allocation30 + $0xaf0] sm:$0xff]
    %v4880 = vld [vmem:[#allocation30 + $0xaf8] sm:$0xff]
    %v4881 = vld [vmem:[#allocation30 + $0xb00] sm:$0xff]
    %v4882 = vld [vmem:[#allocation30 + $0xb08] sm:$0xff]
    %v4883 = vld [vmem:[#allocation30 + $0xb10] sm:$0xff]
    %v4884 = vld [vmem:[#allocation30 + $0xb18] sm:$0xff]
    %v4885 = vld [vmem:[#allocation30 + $0xb20] sm:$0xff]
    %v4886 = vld [vmem:[#allocation30 + $0xb28] sm:$0xff]
    %v4887 = vld [vmem:[#allocation30 + $0xb30] sm:$0xff]
    %v4888 = vld [vmem:[#allocation30 + $0xb38] sm:$0xff]
    %v4889 = vld [vmem:[#allocation30 + $0xb40] sm:$0xff]
    %v4890 = vld [vmem:[#allocation30 + $0xb48] sm:$0xff]
    %v4891 = vld [vmem:[#allocation30 + $0xb50] sm:$0xff]
    %v4892 = vld [vmem:[#allocation30 + $0xb58] sm:$0xff]
    %v4893 = vld [vmem:[#allocation30 + $0xb60] sm:$0xff]
    %v4894 = vld [vmem:[#allocation30 + $0xb68] sm:$0xff]
    %v4895 = vld [vmem:[#allocation30 + $0xb70] sm:$0xff]
    %v4896 = vld [vmem:[#allocation30 + $0xb78] sm:$0xff]
    %v4897 = vld [vmem:[#allocation30 + $0xb80] sm:$0xff]
    %v4898 = vld [vmem:[#allocation30 + $0xb88] sm:$0xff]
    %v4899 = vld [vmem:[#allocation30 + $0xb90] sm:$0xff]
    %v4900 = vld [vmem:[#allocation30 + $0xb98] sm:$0xff]
    %v4901 = vld [vmem:[#allocation30 + $0xba0] sm:$0xff]
    %v4902 = vld [vmem:[#allocation30 + $0xba8] sm:$0xff]
    %v4903 = vld [vmem:[#allocation30 + $0xbb0] sm:$0xff]
    %v4904 = vld [vmem:[#allocation30 + $0xbb8] sm:$0xff]
    %v4905 = vld [vmem:[#allocation30 + $0xbc0] sm:$0xff]
    %v4906 = vld [vmem:[#allocation30 + $0xbc8] sm:$0xff]
    %v4907 = vld [vmem:[#allocation30 + $0xbd0] sm:$0xff]
    %v4908 = vld [vmem:[#allocation30 + $0xbd8] sm:$0xff]
    %v4909 = vld [vmem:[#allocation30 + $0xbe0] sm:$0xff]
    %v4910 = vld [vmem:[#allocation30 + $0xbe8] sm:$0xff]
    %v4911 = vld [vmem:[#allocation30 + $0xbf0] sm:$0xff]
    %v4912 = vld [vmem:[#allocation30 + $0xbf8] sm:$0xff]
    %v4913 = vld [vmem:[#allocation30 + $0xc00] sm:$0xff]
    %v4914 = vld [vmem:[#allocation30 + $0xc08] sm:$0xff]
    %v4915 = vld [vmem:[#allocation30 + $0xc10] sm:$0xff]
    %v4916 = vld [vmem:[#allocation30 + $0xc18] sm:$0xff]
    %v4917 = vld [vmem:[#allocation30 + $0xc20] sm:$0xff]
    %v4918 = vld [vmem:[#allocation30 + $0xc28] sm:$0xff]
    %v4919 = vld [vmem:[#allocation30 + $0xc30] sm:$0xff]
    %v4920 = vld [vmem:[#allocation30 + $0xc38] sm:$0xff]
    %v4921 = vld [vmem:[#allocation30 + $0xc40] sm:$0xff]
    %v4922 = vld [vmem:[#allocation30 + $0xc48] sm:$0xff]
    %v4923 = vld [vmem:[#allocation30 + $0xc50] sm:$0xff]
    %v4924 = vld [vmem:[#allocation30 + $0xc58] sm:$0xff]
    %v4925 = vld [vmem:[#allocation30 + $0xc60] sm:$0xff]
    %v4926 = vld [vmem:[#allocation30 + $0xc68] sm:$0xff]
    %v4927 = vld [vmem:[#allocation30 + $0xc70] sm:$0xff]
    %v4928 = vld [vmem:[#allocation30 + $0xc78] sm:$0xff]
    %v4929 = vld [vmem:[#allocation30 + $0xc80] sm:$0xff]
    %v4930 = vld [vmem:[#allocation30 + $0xc88] sm:$0xff]
    %v4931 = vld [vmem:[#allocation30 + $0xc90] sm:$0xff]
    %v4932 = vld [vmem:[#allocation30 + $0xc98] sm:$0xff]
    %v4933 = vld [vmem:[#allocation30 + $0xca0] sm:$0xff]
    %v4934 = vld [vmem:[#allocation30 + $0xca8] sm:$0xff]
    %v4935 = vld [vmem:[#allocation30 + $0xcb0] sm:$0xff]
    %v4936 = vld [vmem:[#allocation30 + $0xcb8] sm:$0xff]
    %v4937 = vld [vmem:[#allocation30 + $0xcc0] sm:$0xff]
    %v4938 = vld [vmem:[#allocation30 + $0xcc8] sm:$0xff]
    %v4939 = vld [vmem:[#allocation30 + $0xcd0] sm:$0xff]
    %v4940 = vld [vmem:[#allocation30 + $0xcd8] sm:$0xff]
    %v4941 = vld [vmem:[#allocation30 + $0xce0] sm:$0xff]
    %v4942 = vld [vmem:[#allocation30 + $0xce8] sm:$0xff]
    %v4943 = vld [vmem:[#allocation30 + $0xcf0] sm:$0xff]
    %v4944 = vld [vmem:[#allocation30 + $0xcf8] sm:$0xff]
    %v4945 = vld [vmem:[#allocation30 + $0xd00] sm:$0xff]
    %v4946 = vld [vmem:[#allocation30 + $0xd08] sm:$0xff]
    %v4947 = vld [vmem:[#allocation30 + $0xd10] sm:$0xff]
    %v4948 = vld [vmem:[#allocation30 + $0xd18] sm:$0xff]
    %v4949 = vld [vmem:[#allocation30 + $0xd20] sm:$0xff]
    %v4950 = vld [vmem:[#allocation30 + $0xd28] sm:$0xff]
    %v4951 = vld [vmem:[#allocation30 + $0xd30] sm:$0xff]
    %v4952 = vld [vmem:[#allocation30 + $0xd38] sm:$0xff]
    %v4953 = vld [vmem:[#allocation30 + $0xd40] sm:$0xff]
    %v4954 = vld [vmem:[#allocation30 + $0xd48] sm:$0xff]
    %v4955 = vld [vmem:[#allocation30 + $0xd50] sm:$0xff]
    %v4956 = vld [vmem:[#allocation30 + $0xd58] sm:$0xff]
    %v4957 = vld [vmem:[#allocation30 + $0xd60] sm:$0xff]
    %v4958 = vld [vmem:[#allocation30 + $0xd68] sm:$0xff]
    %v4959 = vld [vmem:[#allocation30 + $0xd70] sm:$0xff]
    %v4960 = vld [vmem:[#allocation30 + $0xd78] sm:$0xff]
    %v4961 = vld [vmem:[#allocation30 + $0xd80] sm:$0xff]
    %v4962 = vld [vmem:[#allocation30 + $0xd88] sm:$0xff]
    %v4963 = vld [vmem:[#allocation30 + $0xd90] sm:$0xff]
    %v4964 = vld [vmem:[#allocation30 + $0xd98] sm:$0xff]
    %v4965 = vld [vmem:[#allocation30 + $0xda0] sm:$0xff]
    %v4966 = vld [vmem:[#allocation30 + $0xda8] sm:$0xff]
    %v4967 = vld [vmem:[#allocation30 + $0xdb0] sm:$0xff]
    %v4968 = vld [vmem:[#allocation30 + $0xdb8] sm:$0xff]
    %v4969 = vld [vmem:[#allocation30 + $0xdc0] sm:$0xff]
    %v4970 = vld [vmem:[#allocation30 + $0xdc8] sm:$0xff]
    %v4971 = vld [vmem:[#allocation30 + $0xdd0] sm:$0xff]
    %v4972 = vld [vmem:[#allocation30 + $0xdd8] sm:$0xff]
    %v4973 = vld [vmem:[#allocation30 + $0xde0] sm:$0xff]
    %v4974 = vld [vmem:[#allocation30 + $0xde8] sm:$0xff]
    %v4975 = vld [vmem:[#allocation30 + $0xdf0] sm:$0xff]
    %v4976 = vld [vmem:[#allocation30 + $0xdf8] sm:$0xff]
    %v4977 = vld [vmem:[#allocation30 + $0xe00] sm:$0xff]
    %v4978 = vld [vmem:[#allocation30 + $0xe08] sm:$0xff]
    %v4979 = vld [vmem:[#allocation30 + $0xe10] sm:$0xff]
    %v4980 = vld [vmem:[#allocation30 + $0xe18] sm:$0xff]
    %v4981 = vld [vmem:[#allocation30 + $0xe20] sm:$0xff]
    %v4982 = vld [vmem:[#allocation30 + $0xe28] sm:$0xff]
    %v4983 = vld [vmem:[#allocation30 + $0xe30] sm:$0xff]
    %v4984 = vld [vmem:[#allocation30 + $0xe38] sm:$0xff]
    %v4985 = vld [vmem:[#allocation30 + $0xe40] sm:$0xff]
    %v4986 = vld [vmem:[#allocation30 + $0xe48] sm:$0xff]
    %v4987 = vld [vmem:[#allocation30 + $0xe50] sm:$0xff]
    %v4988 = vld [vmem:[#allocation30 + $0xe58] sm:$0xff]
    %v4989 = vld [vmem:[#allocation30 + $0xe60] sm:$0xff]
    %v4990 = vld [vmem:[#allocation30 + $0xe68] sm:$0xff]
    %v4991 = vld [vmem:[#allocation30 + $0xe70] sm:$0xff]
    %v4992 = vld [vmem:[#allocation30 + $0xe78] sm:$0xff]
    %v4993 = vld [vmem:[#allocation30 + $0xe80] sm:$0xff]
    %v4994 = vld [vmem:[#allocation30 + $0xe88] sm:$0xff]
    %v4995 = vld [vmem:[#allocation30 + $0xe90] sm:$0xff]
    %v4996 = vld [vmem:[#allocation30 + $0xe98] sm:$0xff]
    %v4997 = vld [vmem:[#allocation30 + $0xea0] sm:$0xff]
    %v4998 = vld [vmem:[#allocation30 + $0xea8] sm:$0xff]
    %v4999 = vld [vmem:[#allocation30 + $0xeb0] sm:$0xff]
    %v5000 = vld [vmem:[#allocation30 + $0xeb8] sm:$0xff]
    %v5001 = vld [vmem:[#allocation30 + $0xec0] sm:$0xff]
    %v5002 = vld [vmem:[#allocation30 + $0xec8] sm:$0xff]
    %v5003 = vld [vmem:[#allocation30 + $0xed0] sm:$0xff]
    %v5004 = vld [vmem:[#allocation30 + $0xed8] sm:$0xff]
    %v5005 = vld [vmem:[#allocation30 + $0xee0] sm:$0xff]
    %v5006 = vld [vmem:[#allocation30 + $0xee8] sm:$0xff]
    %v5007 = vld [vmem:[#allocation30 + $0xef0] sm:$0xff]
    %v5008 = vld [vmem:[#allocation30 + $0xef8] sm:$0xff]
    %v5009 = vld [vmem:[#allocation30 + $0xf00] sm:$0xff]
    %v5010 = vld [vmem:[#allocation30 + $0xf08] sm:$0xff]
    %v5011 = vld [vmem:[#allocation30 + $0xf10] sm:$0xff]
    %v5012 = vld [vmem:[#allocation30 + $0xf18] sm:$0xff]
    %v5013 = vld [vmem:[#allocation30 + $0xf20] sm:$0xff]
    %v5014 = vld [vmem:[#allocation30 + $0xf28] sm:$0xff]
    %v5015 = vld [vmem:[#allocation30 + $0xf30] sm:$0xff]
    %v5016 = vld [vmem:[#allocation30 + $0xf38] sm:$0xff]
    %v5017 = vld [vmem:[#allocation30 + $0xf40] sm:$0xff]
    %v5018 = vld [vmem:[#allocation30 + $0xf48] sm:$0xff]
    %v5019 = vld [vmem:[#allocation30 + $0xf50] sm:$0xff]
    %v5020 = vld [vmem:[#allocation30 + $0xf58] sm:$0xff]
    %v5021 = vld [vmem:[#allocation30 + $0xf60] sm:$0xff]
    %v5022 = vld [vmem:[#allocation30 + $0xf68] sm:$0xff]
    %v5023 = vld [vmem:[#allocation30 + $0xf70] sm:$0xff]
    %v5024 = vld [vmem:[#allocation30 + $0xf78] sm:$0xff]
    %v5025 = vld [vmem:[#allocation30 + $0xf80] sm:$0xff]
    %v5026 = vld [vmem:[#allocation30 + $0xf88] sm:$0xff]
    %v5027 = vld [vmem:[#allocation30 + $0xf90] sm:$0xff]
    %v5028 = vld [vmem:[#allocation30 + $0xf98] sm:$0xff]
    %v5029 = vld [vmem:[#allocation30 + $0xfa0] sm:$0xff]
    %v5030 = vld [vmem:[#allocation30 + $0xfa8] sm:$0xff]
    %v5031 = vld [vmem:[#allocation30 + $0xfb0] sm:$0xff]
    %v5032 = vld [vmem:[#allocation30 + $0xfb8] sm:$0xff]
    %v5033 = vld [vmem:[#allocation30 + $0xfc0] sm:$0xff]
    %v5034 = vld [vmem:[#allocation30 + $0xfc8] sm:$0xff]
    %v5035 = vld [vmem:[#allocation30 + $0xfd0] sm:$0xff]
    %v5036 = vld [vmem:[#allocation30 + $0xfd8] sm:$0xff]
    %v5037 = vld [vmem:[#allocation30 + $0xfe0] sm:$0xff]
    %v5038 = vld [vmem:[#allocation30 + $0xfe8] sm:$0xff]
    %v5039 = vld [vmem:[#allocation30 + $0xff0] sm:$0xff]
    %v5040 = vld [vmem:[#allocation30 + $0xff8] sm:$0xff]
    %v5041 = vunpack.c.l.s8.bf16 %v4529
    %v5042 = vunpack.c.l.s8.bf16 %v4530
    %v5043 = vunpack.c.l.s8.bf16 %v4531
    %v5044 = vunpack.c.l.s8.bf16 %v4532
    %v5045 = vunpack.c.l.s8.bf16 %v4533
    %v5046 = vunpack.c.l.s8.bf16 %v4534
    %v5047 = vunpack.c.l.s8.bf16 %v4535
    %v5048 = vunpack.c.l.s8.bf16 %v4536
    %v5049 = vunpack.c.l.s8.bf16 %v4537
    %v5050 = vunpack.c.l.s8.bf16 %v4538
    %v5051 = vunpack.c.l.s8.bf16 %v4539
    %v5052 = vunpack.c.l.s8.bf16 %v4540
    %v5053 = vunpack.c.l.s8.bf16 %v4541
    %v5054 = vunpack.c.l.s8.bf16 %v4542
    %v5055 = vunpack.c.l.s8.bf16 %v4543
    %v5056 = vunpack.c.l.s8.bf16 %v4544
    %v5057 = vunpack.c.h.s8.bf16 %v4529
    %v5058 = vunpack.c.h.s8.bf16 %v4530
    %v5059 = vunpack.c.h.s8.bf16 %v4531
    %v5060 = vunpack.c.h.s8.bf16 %v4532
    %v5061 = vunpack.c.h.s8.bf16 %v4533
    %v5062 = vunpack.c.h.s8.bf16 %v4534
    %v5063 = vunpack.c.h.s8.bf16 %v4535
    %v5064 = vunpack.c.h.s8.bf16 %v4536
    %v5065 = vunpack.c.h.s8.bf16 %v4537
    %v5066 = vunpack.c.h.s8.bf16 %v4538
    %v5067 = vunpack.c.h.s8.bf16 %v4539
    %v5068 = vunpack.c.h.s8.bf16 %v4540
    %v5069 = vunpack.c.h.s8.bf16 %v4541
    %v5070 = vunpack.c.h.s8.bf16 %v4542
    %v5071 = vunpack.c.h.s8.bf16 %v4543
    %v5072 = vunpack.c.h.s8.bf16 %v4544
    %v5073 = vunpack.c.l.s8.bf16 %v4545
    %v5074 = vunpack.c.l.s8.bf16 %v4546
    %v5075 = vunpack.c.l.s8.bf16 %v4547
    %v5076 = vunpack.c.l.s8.bf16 %v4548
    %v5077 = vunpack.c.l.s8.bf16 %v4549
    %v5078 = vunpack.c.l.s8.bf16 %v4550
    %v5079 = vunpack.c.l.s8.bf16 %v4551
    %v5080 = vunpack.c.l.s8.bf16 %v4552
    %v5081 = vunpack.c.l.s8.bf16 %v4553
    %v5082 = vunpack.c.l.s8.bf16 %v4554
    %v5083 = vunpack.c.l.s8.bf16 %v4555
    %v5084 = vunpack.c.l.s8.bf16 %v4556
    %v5085 = vunpack.c.l.s8.bf16 %v4557
    %v5086 = vunpack.c.l.s8.bf16 %v4558
    %v5087 = vunpack.c.l.s8.bf16 %v4559
    %v5088 = vunpack.c.l.s8.bf16 %v4560
    %v5089 = vunpack.c.h.s8.bf16 %v4545
    %v5090 = vunpack.c.h.s8.bf16 %v4546
    %v5091 = vunpack.c.h.s8.bf16 %v4547
    %v5092 = vunpack.c.h.s8.bf16 %v4548
    %v5093 = vunpack.c.h.s8.bf16 %v4549
    %v5094 = vunpack.c.h.s8.bf16 %v4550
    %v5095 = vunpack.c.h.s8.bf16 %v4551
    %v5096 = vunpack.c.h.s8.bf16 %v4552
    %v5097 = vunpack.c.h.s8.bf16 %v4553
    %v5098 = vunpack.c.h.s8.bf16 %v4554
    %v5099 = vunpack.c.h.s8.bf16 %v4555
    %v5100 = vunpack.c.h.s8.bf16 %v4556
    %v5101 = vunpack.c.h.s8.bf16 %v4557
    %v5102 = vunpack.c.h.s8.bf16 %v4558
    %v5103 = vunpack.c.h.s8.bf16 %v4559
    %v5104 = vunpack.c.h.s8.bf16 %v4560
    %v5105 = vunpack.c.l.s8.bf16 %v4561
    %v5106 = vunpack.c.l.s8.bf16 %v4562
    %v5107 = vunpack.c.l.s8.bf16 %v4563
    %v5108 = vunpack.c.l.s8.bf16 %v4564
    %v5109 = vunpack.c.l.s8.bf16 %v4565
    %v5110 = vunpack.c.l.s8.bf16 %v4566
    %v5111 = vunpack.c.l.s8.bf16 %v4567
    %v5112 = vunpack.c.l.s8.bf16 %v4568
    %v5113 = vunpack.c.l.s8.bf16 %v4569
    %v5114 = vunpack.c.l.s8.bf16 %v4570
    %v5115 = vunpack.c.l.s8.bf16 %v4571
    %v5116 = vunpack.c.l.s8.bf16 %v4572
    %v5117 = vunpack.c.l.s8.bf16 %v4573
    %v5118 = vunpack.c.l.s8.bf16 %v4574
    %v5119 = vunpack.c.l.s8.bf16 %v4575
    %v5120 = vunpack.c.l.s8.bf16 %v4576
    %v5121 = vunpack.c.h.s8.bf16 %v4561
    %v5122 = vunpack.c.h.s8.bf16 %v4562
    %v5123 = vunpack.c.h.s8.bf16 %v4563
    %v5124 = vunpack.c.h.s8.bf16 %v4564
    %v5125 = vunpack.c.h.s8.bf16 %v4565
    %v5126 = vunpack.c.h.s8.bf16 %v4566
    %v5127 = vunpack.c.h.s8.bf16 %v4567
    %v5128 = vunpack.c.h.s8.bf16 %v4568
    %v5129 = vunpack.c.h.s8.bf16 %v4569
    %v5130 = vunpack.c.h.s8.bf16 %v4570
    %v5131 = vunpack.c.h.s8.bf16 %v4571
    %v5132 = vunpack.c.h.s8.bf16 %v4572
    %v5133 = vunpack.c.h.s8.bf16 %v4573
    %v5134 = vunpack.c.h.s8.bf16 %v4574
    %v5135 = vunpack.c.h.s8.bf16 %v4575
    %v5136 = vunpack.c.h.s8.bf16 %v4576
    %v5137 = vunpack.c.l.s8.bf16 %v4577
    %v5138 = vunpack.c.l.s8.bf16 %v4578
    %v5139 = vunpack.c.l.s8.bf16 %v4579
    %v5140 = vunpack.c.l.s8.bf16 %v4580
    %v5141 = vunpack.c.l.s8.bf16 %v4581
    %v5142 = vunpack.c.l.s8.bf16 %v4582
    %v5143 = vunpack.c.l.s8.bf16 %v4583
    %v5144 = vunpack.c.l.s8.bf16 %v4584
    %v5145 = vunpack.c.l.s8.bf16 %v4585
    %v5146 = vunpack.c.l.s8.bf16 %v4586
    %v5147 = vunpack.c.l.s8.bf16 %v4587
    %v5148 = vunpack.c.l.s8.bf16 %v4588
    %v5149 = vunpack.c.l.s8.bf16 %v4589
    %v5150 = vunpack.c.l.s8.bf16 %v4590
    %v5151 = vunpack.c.l.s8.bf16 %v4591
    %v5152 = vunpack.c.l.s8.bf16 %v4592
    %v5153 = vunpack.c.h.s8.bf16 %v4577
    %v5154 = vunpack.c.h.s8.bf16 %v4578
    %v5155 = vunpack.c.h.s8.bf16 %v4579
    %v5156 = vunpack.c.h.s8.bf16 %v4580
    %v5157 = vunpack.c.h.s8.bf16 %v4581
    %v5158 = vunpack.c.h.s8.bf16 %v4582
    %v5159 = vunpack.c.h.s8.bf16 %v4583
    %v5160 = vunpack.c.h.s8.bf16 %v4584
    %v5161 = vunpack.c.h.s8.bf16 %v4585
    %v5162 = vunpack.c.h.s8.bf16 %v4586
    %v5163 = vunpack.c.h.s8.bf16 %v4587
    %v5164 = vunpack.c.h.s8.bf16 %v4588
    %v5165 = vunpack.c.h.s8.bf16 %v4589
    %v5166 = vunpack.c.h.s8.bf16 %v4590
    %v5167 = vunpack.c.h.s8.bf16 %v4591
    %v5168 = vunpack.c.h.s8.bf16 %v4592
    %v5169 = vunpack.c.l.s8.bf16 %v4593
    %v5170 = vunpack.c.l.s8.bf16 %v4594
    %v5171 = vunpack.c.l.s8.bf16 %v4595
    %v5172 = vunpack.c.l.s8.bf16 %v4596
    %v5173 = vunpack.c.l.s8.bf16 %v4597
    %v5174 = vunpack.c.l.s8.bf16 %v4598
    %v5175 = vunpack.c.l.s8.bf16 %v4599
    %v5176 = vunpack.c.l.s8.bf16 %v4600
    %v5177 = vunpack.c.l.s8.bf16 %v4601
    %v5178 = vunpack.c.l.s8.bf16 %v4602
    %v5179 = vunpack.c.l.s8.bf16 %v4603
    %v5180 = vunpack.c.l.s8.bf16 %v4604
    %v5181 = vunpack.c.l.s8.bf16 %v4605
    %v5182 = vunpack.c.l.s8.bf16 %v4606
    %v5183 = vunpack.c.l.s8.bf16 %v4607
    %v5184 = vunpack.c.l.s8.bf16 %v4608
    %v5185 = vunpack.c.h.s8.bf16 %v4593
    %v5186 = vunpack.c.h.s8.bf16 %v4594
    %v5187 = vunpack.c.h.s8.bf16 %v4595
    %v5188 = vunpack.c.h.s8.bf16 %v4596
    %v5189 = vunpack.c.h.s8.bf16 %v4597
    %v5190 = vunpack.c.h.s8.bf16 %v4598
    %v5191 = vunpack.c.h.s8.bf16 %v4599
    %v5192 = vunpack.c.h.s8.bf16 %v4600
    %v5193 = vunpack.c.h.s8.bf16 %v4601
    %v5194 = vunpack.c.h.s8.bf16 %v4602
    %v5195 = vunpack.c.h.s8.bf16 %v4603
    %v5196 = vunpack.c.h.s8.bf16 %v4604
    %v5197 = vunpack.c.h.s8.bf16 %v4605
    %v5198 = vunpack.c.h.s8.bf16 %v4606
    %v5199 = vunpack.c.h.s8.bf16 %v4607
    %v5200 = vunpack.c.h.s8.bf16 %v4608
    %v5201 = vunpack.c.l.s8.bf16 %v4609
    %v5202 = vunpack.c.l.s8.bf16 %v4610
    %v5203 = vunpack.c.l.s8.bf16 %v4611
    %v5204 = vunpack.c.l.s8.bf16 %v4612
    %v5205 = vunpack.c.l.s8.bf16 %v4613
    %v5206 = vunpack.c.l.s8.bf16 %v4614
    %v5207 = vunpack.c.l.s8.bf16 %v4615
    %v5208 = vunpack.c.l.s8.bf16 %v4616
    %v5209 = vunpack.c.l.s8.bf16 %v4617
    %v5210 = vunpack.c.l.s8.bf16 %v4618
    %v5211 = vunpack.c.l.s8.bf16 %v4619
    %v5212 = vunpack.c.l.s8.bf16 %v4620
    %v5213 = vunpack.c.l.s8.bf16 %v4621
    %v5214 = vunpack.c.l.s8.bf16 %v4622
    %v5215 = vunpack.c.l.s8.bf16 %v4623
    %v5216 = vunpack.c.l.s8.bf16 %v4624
    %v5217 = vunpack.c.h.s8.bf16 %v4609
    %v5218 = vunpack.c.h.s8.bf16 %v4610
    %v5219 = vunpack.c.h.s8.bf16 %v4611
    %v5220 = vunpack.c.h.s8.bf16 %v4612
    %v5221 = vunpack.c.h.s8.bf16 %v4613
    %v5222 = vunpack.c.h.s8.bf16 %v4614
    %v5223 = vunpack.c.h.s8.bf16 %v4615
    %v5224 = vunpack.c.h.s8.bf16 %v4616
    %v5225 = vunpack.c.h.s8.bf16 %v4617
    %v5226 = vunpack.c.h.s8.bf16 %v4618
    %v5227 = vunpack.c.h.s8.bf16 %v4619
    %v5228 = vunpack.c.h.s8.bf16 %v4620
    %v5229 = vunpack.c.h.s8.bf16 %v4621
    %v5230 = vunpack.c.h.s8.bf16 %v4622
    %v5231 = vunpack.c.h.s8.bf16 %v4623
    %v5232 = vunpack.c.h.s8.bf16 %v4624
    %v5233 = vunpack.c.l.s8.bf16 %v4625
    %v5234 = vunpack.c.l.s8.bf16 %v4626
    %v5235 = vunpack.c.l.s8.bf16 %v4627
    %v5236 = vunpack.c.l.s8.bf16 %v4628
    %v5237 = vunpack.c.l.s8.bf16 %v4629
    %v5238 = vunpack.c.l.s8.bf16 %v4630
    %v5239 = vunpack.c.l.s8.bf16 %v4631
    %v5240 = vunpack.c.l.s8.bf16 %v4632
    %v5241 = vunpack.c.l.s8.bf16 %v4633
    %v5242 = vunpack.c.l.s8.bf16 %v4634
    %v5243 = vunpack.c.l.s8.bf16 %v4635
    %v5244 = vunpack.c.l.s8.bf16 %v4636
    %v5245 = vunpack.c.l.s8.bf16 %v4637
    %v5246 = vunpack.c.l.s8.bf16 %v4638
    %v5247 = vunpack.c.l.s8.bf16 %v4639
    %v5248 = vunpack.c.l.s8.bf16 %v4640
    %v5249 = vunpack.c.h.s8.bf16 %v4625
    %v5250 = vunpack.c.h.s8.bf16 %v4626
    %v5251 = vunpack.c.h.s8.bf16 %v4627
    %v5252 = vunpack.c.h.s8.bf16 %v4628
    %v5253 = vunpack.c.h.s8.bf16 %v4629
    %v5254 = vunpack.c.h.s8.bf16 %v4630
    %v5255 = vunpack.c.h.s8.bf16 %v4631
    %v5256 = vunpack.c.h.s8.bf16 %v4632
    %v5257 = vunpack.c.h.s8.bf16 %v4633
    %v5258 = vunpack.c.h.s8.bf16 %v4634
    %v5259 = vunpack.c.h.s8.bf16 %v4635
    %v5260 = vunpack.c.h.s8.bf16 %v4636
    %v5261 = vunpack.c.h.s8.bf16 %v4637
    %v5262 = vunpack.c.h.s8.bf16 %v4638
    %v5263 = vunpack.c.h.s8.bf16 %v4639
    %v5264 = vunpack.c.h.s8.bf16 %v4640
    %v5265 = vunpack.c.l.s8.bf16 %v4641
    %v5266 = vunpack.c.l.s8.bf16 %v4642
    %v5267 = vunpack.c.l.s8.bf16 %v4643
    %v5268 = vunpack.c.l.s8.bf16 %v4644
    %v5269 = vunpack.c.l.s8.bf16 %v4645
    %v5270 = vunpack.c.l.s8.bf16 %v4646
    %v5271 = vunpack.c.l.s8.bf16 %v4647
    %v5272 = vunpack.c.l.s8.bf16 %v4648
    %v5273 = vunpack.c.l.s8.bf16 %v4649
    %v5274 = vunpack.c.l.s8.bf16 %v4650
    %v5275 = vunpack.c.l.s8.bf16 %v4651
    %v5276 = vunpack.c.l.s8.bf16 %v4652
    %v5277 = vunpack.c.l.s8.bf16 %v4653
    %v5278 = vunpack.c.l.s8.bf16 %v4654
    %v5279 = vunpack.c.l.s8.bf16 %v4655
    %v5280 = vunpack.c.l.s8.bf16 %v4656
    %v5281 = vunpack.c.h.s8.bf16 %v4641
    %v5282 = vunpack.c.h.s8.bf16 %v4642
    %v5283 = vunpack.c.h.s8.bf16 %v4643
    %v5284 = vunpack.c.h.s8.bf16 %v4644
    %v5285 = vunpack.c.h.s8.bf16 %v4645
    %v5286 = vunpack.c.h.s8.bf16 %v4646
    %v5287 = vunpack.c.h.s8.bf16 %v4647
    %v5288 = vunpack.c.h.s8.bf16 %v4648
    %v5289 = vunpack.c.h.s8.bf16 %v4649
    %v5290 = vunpack.c.h.s8.bf16 %v4650
    %v5291 = vunpack.c.h.s8.bf16 %v4651
    %v5292 = vunpack.c.h.s8.bf16 %v4652
    %v5293 = vunpack.c.h.s8.bf16 %v4653
    %v5294 = vunpack.c.h.s8.bf16 %v4654
    %v5295 = vunpack.c.h.s8.bf16 %v4655
    %v5296 = vunpack.c.h.s8.bf16 %v4656
    %v5297 = vunpack.c.l.s8.bf16 %v4657
    %v5298 = vunpack.c.l.s8.bf16 %v4658
    %v5299 = vunpack.c.l.s8.bf16 %v4659
    %v5300 = vunpack.c.l.s8.bf16 %v4660
    %v5301 = vunpack.c.l.s8.bf16 %v4661
    %v5302 = vunpack.c.l.s8.bf16 %v4662
    %v5303 = vunpack.c.l.s8.bf16 %v4663
    %v5304 = vunpack.c.l.s8.bf16 %v4664
    %v5305 = vunpack.c.l.s8.bf16 %v4665
    %v5306 = vunpack.c.l.s8.bf16 %v4666
    %v5307 = vunpack.c.l.s8.bf16 %v4667
    %v5308 = vunpack.c.l.s8.bf16 %v4668
    %v5309 = vunpack.c.l.s8.bf16 %v4669
    %v5310 = vunpack.c.l.s8.bf16 %v4670
    %v5311 = vunpack.c.l.s8.bf16 %v4671
    %v5312 = vunpack.c.l.s8.bf16 %v4672
    %v5313 = vunpack.c.h.s8.bf16 %v4657
    %v5314 = vunpack.c.h.s8.bf16 %v4658
    %v5315 = vunpack.c.h.s8.bf16 %v4659
    %v5316 = vunpack.c.h.s8.bf16 %v4660
    %v5317 = vunpack.c.h.s8.bf16 %v4661
    %v5318 = vunpack.c.h.s8.bf16 %v4662
    %v5319 = vunpack.c.h.s8.bf16 %v4663
    %v5320 = vunpack.c.h.s8.bf16 %v4664
    %v5321 = vunpack.c.h.s8.bf16 %v4665
    %v5322 = vunpack.c.h.s8.bf16 %v4666
    %v5323 = vunpack.c.h.s8.bf16 %v4667
    %v5324 = vunpack.c.h.s8.bf16 %v4668
    %v5325 = vunpack.c.h.s8.bf16 %v4669
    %v5326 = vunpack.c.h.s8.bf16 %v4670
    %v5327 = vunpack.c.h.s8.bf16 %v4671
    %v5328 = vunpack.c.h.s8.bf16 %v4672
    %v5329 = vunpack.c.l.s8.bf16 %v4673
    %v5330 = vunpack.c.l.s8.bf16 %v4674
    %v5331 = vunpack.c.l.s8.bf16 %v4675
    %v5332 = vunpack.c.l.s8.bf16 %v4676
    %v5333 = vunpack.c.l.s8.bf16 %v4677
    %v5334 = vunpack.c.l.s8.bf16 %v4678
    %v5335 = vunpack.c.l.s8.bf16 %v4679
    %v5336 = vunpack.c.l.s8.bf16 %v4680
    %v5337 = vunpack.c.l.s8.bf16 %v4681
    %v5338 = vunpack.c.l.s8.bf16 %v4682
    %v5339 = vunpack.c.l.s8.bf16 %v4683
    %v5340 = vunpack.c.l.s8.bf16 %v4684
    %v5341 = vunpack.c.l.s8.bf16 %v4685
    %v5342 = vunpack.c.l.s8.bf16 %v4686
    %v5343 = vunpack.c.l.s8.bf16 %v4687
    %v5344 = vunpack.c.l.s8.bf16 %v4688
    %v5345 = vunpack.c.h.s8.bf16 %v4673
    %v5346 = vunpack.c.h.s8.bf16 %v4674
    %v5347 = vunpack.c.h.s8.bf16 %v4675
    %v5348 = vunpack.c.h.s8.bf16 %v4676
    %v5349 = vunpack.c.h.s8.bf16 %v4677
    %v5350 = vunpack.c.h.s8.bf16 %v4678
    %v5351 = vunpack.c.h.s8.bf16 %v4679
    %v5352 = vunpack.c.h.s8.bf16 %v4680
    %v5353 = vunpack.c.h.s8.bf16 %v4681
    %v5354 = vunpack.c.h.s8.bf16 %v4682
    %v5355 = vunpack.c.h.s8.bf16 %v4683
    %v5356 = vunpack.c.h.s8.bf16 %v4684
    %v5357 = vunpack.c.h.s8.bf16 %v4685
    %v5358 = vunpack.c.h.s8.bf16 %v4686
    %v5359 = vunpack.c.h.s8.bf16 %v4687
    %v5360 = vunpack.c.h.s8.bf16 %v4688
    %v5361 = vunpack.c.l.s8.bf16 %v4689
    %v5362 = vunpack.c.l.s8.bf16 %v4690
    %v5363 = vunpack.c.l.s8.bf16 %v4691
    %v5364 = vunpack.c.l.s8.bf16 %v4692
    %v5365 = vunpack.c.l.s8.bf16 %v4693
    %v5366 = vunpack.c.l.s8.bf16 %v4694
    %v5367 = vunpack.c.l.s8.bf16 %v4695
    %v5368 = vunpack.c.l.s8.bf16 %v4696
    %v5369 = vunpack.c.l.s8.bf16 %v4697
    %v5370 = vunpack.c.l.s8.bf16 %v4698
    %v5371 = vunpack.c.l.s8.bf16 %v4699
    %v5372 = vunpack.c.l.s8.bf16 %v4700
    %v5373 = vunpack.c.l.s8.bf16 %v4701
    %v5374 = vunpack.c.l.s8.bf16 %v4702
    %v5375 = vunpack.c.l.s8.bf16 %v4703
    %v5376 = vunpack.c.l.s8.bf16 %v4704
    %v5377 = vunpack.c.h.s8.bf16 %v4689
    %v5378 = vunpack.c.h.s8.bf16 %v4690
    %v5379 = vunpack.c.h.s8.bf16 %v4691
    %v5380 = vunpack.c.h.s8.bf16 %v4692
    %v5381 = vunpack.c.h.s8.bf16 %v4693
    %v5382 = vunpack.c.h.s8.bf16 %v4694
    %v5383 = vunpack.c.h.s8.bf16 %v4695
    %v5384 = vunpack.c.h.s8.bf16 %v4696
    %v5385 = vunpack.c.h.s8.bf16 %v4697
    %v5386 = vunpack.c.h.s8.bf16 %v4698
    %v5387 = vunpack.c.h.s8.bf16 %v4699
    %v5388 = vunpack.c.h.s8.bf16 %v4700
    %v5389 = vunpack.c.h.s8.bf16 %v4701
    %v5390 = vunpack.c.h.s8.bf16 %v4702
    %v5391 = vunpack.c.h.s8.bf16 %v4703
    %v5392 = vunpack.c.h.s8.bf16 %v4704
    %v5393 = vunpack.c.l.s8.bf16 %v4705
    %v5394 = vunpack.c.l.s8.bf16 %v4706
    %v5395 = vunpack.c.l.s8.bf16 %v4707
    %v5396 = vunpack.c.l.s8.bf16 %v4708
    %v5397 = vunpack.c.l.s8.bf16 %v4709
    %v5398 = vunpack.c.l.s8.bf16 %v4710
    %v5399 = vunpack.c.l.s8.bf16 %v4711
    %v5400 = vunpack.c.l.s8.bf16 %v4712
    %v5401 = vunpack.c.l.s8.bf16 %v4713
    %v5402 = vunpack.c.l.s8.bf16 %v4714
    %v5403 = vunpack.c.l.s8.bf16 %v4715
    %v5404 = vunpack.c.l.s8.bf16 %v4716
    %v5405 = vunpack.c.l.s8.bf16 %v4717
    %v5406 = vunpack.c.l.s8.bf16 %v4718
    %v5407 = vunpack.c.l.s8.bf16 %v4719
    %v5408 = vunpack.c.l.s8.bf16 %v4720
    %v5409 = vunpack.c.h.s8.bf16 %v4705
    %v5410 = vunpack.c.h.s8.bf16 %v4706
    %v5411 = vunpack.c.h.s8.bf16 %v4707
    %v5412 = vunpack.c.h.s8.bf16 %v4708
    %v5413 = vunpack.c.h.s8.bf16 %v4709
    %v5414 = vunpack.c.h.s8.bf16 %v4710
    %v5415 = vunpack.c.h.s8.bf16 %v4711
    %v5416 = vunpack.c.h.s8.bf16 %v4712
    %v5417 = vunpack.c.h.s8.bf16 %v4713
    %v5418 = vunpack.c.h.s8.bf16 %v4714
    %v5419 = vunpack.c.h.s8.bf16 %v4715
    %v5420 = vunpack.c.h.s8.bf16 %v4716
    %v5421 = vunpack.c.h.s8.bf16 %v4717
    %v5422 = vunpack.c.h.s8.bf16 %v4718
    %v5423 = vunpack.c.h.s8.bf16 %v4719
    %v5424 = vunpack.c.h.s8.bf16 %v4720
    %v5425 = vunpack.c.l.s8.bf16 %v4721
    %v5426 = vunpack.c.l.s8.bf16 %v4722
    %v5427 = vunpack.c.l.s8.bf16 %v4723
    %v5428 = vunpack.c.l.s8.bf16 %v4724
    %v5429 = vunpack.c.l.s8.bf16 %v4725
    %v5430 = vunpack.c.l.s8.bf16 %v4726
    %v5431 = vunpack.c.l.s8.bf16 %v4727
    %v5432 = vunpack.c.l.s8.bf16 %v4728
    %v5433 = vunpack.c.l.s8.bf16 %v4729
    %v5434 = vunpack.c.l.s8.bf16 %v4730
    %v5435 = vunpack.c.l.s8.bf16 %v4731
    %v5436 = vunpack.c.l.s8.bf16 %v4732
    %v5437 = vunpack.c.l.s8.bf16 %v4733
    %v5438 = vunpack.c.l.s8.bf16 %v4734
    %v5439 = vunpack.c.l.s8.bf16 %v4735
    %v5440 = vunpack.c.l.s8.bf16 %v4736
    %v5441 = vunpack.c.h.s8.bf16 %v4721
    %v5442 = vunpack.c.h.s8.bf16 %v4722
    %v5443 = vunpack.c.h.s8.bf16 %v4723
    %v5444 = vunpack.c.h.s8.bf16 %v4724
    %v5445 = vunpack.c.h.s8.bf16 %v4725
    %v5446 = vunpack.c.h.s8.bf16 %v4726
    %v5447 = vunpack.c.h.s8.bf16 %v4727
    %v5448 = vunpack.c.h.s8.bf16 %v4728
    %v5449 = vunpack.c.h.s8.bf16 %v4729
    %v5450 = vunpack.c.h.s8.bf16 %v4730
    %v5451 = vunpack.c.h.s8.bf16 %v4731
    %v5452 = vunpack.c.h.s8.bf16 %v4732
    %v5453 = vunpack.c.h.s8.bf16 %v4733
    %v5454 = vunpack.c.h.s8.bf16 %v4734
    %v5455 = vunpack.c.h.s8.bf16 %v4735
    %v5456 = vunpack.c.h.s8.bf16 %v4736
    %v5457 = vunpack.c.l.s8.bf16 %v4737
    %v5458 = vunpack.c.l.s8.bf16 %v4738
    %v5459 = vunpack.c.l.s8.bf16 %v4739
    %v5460 = vunpack.c.l.s8.bf16 %v4740
    %v5461 = vunpack.c.l.s8.bf16 %v4741
    %v5462 = vunpack.c.l.s8.bf16 %v4742
    %v5463 = vunpack.c.l.s8.bf16 %v4743
    %v5464 = vunpack.c.l.s8.bf16 %v4744
    %v5465 = vunpack.c.l.s8.bf16 %v4745
    %v5466 = vunpack.c.l.s8.bf16 %v4746
    %v5467 = vunpack.c.l.s8.bf16 %v4747
    %v5468 = vunpack.c.l.s8.bf16 %v4748
    %v5469 = vunpack.c.l.s8.bf16 %v4749
    %v5470 = vunpack.c.l.s8.bf16 %v4750
    %v5471 = vunpack.c.l.s8.bf16 %v4751
    %v5472 = vunpack.c.l.s8.bf16 %v4752
    %v5473 = vunpack.c.h.s8.bf16 %v4737
    %v5474 = vunpack.c.h.s8.bf16 %v4738
    %v5475 = vunpack.c.h.s8.bf16 %v4739
    %v5476 = vunpack.c.h.s8.bf16 %v4740
    %v5477 = vunpack.c.h.s8.bf16 %v4741
    %v5478 = vunpack.c.h.s8.bf16 %v4742
    %v5479 = vunpack.c.h.s8.bf16 %v4743
    %v5480 = vunpack.c.h.s8.bf16 %v4744
    %v5481 = vunpack.c.h.s8.bf16 %v4745
    %v5482 = vunpack.c.h.s8.bf16 %v4746
    %v5483 = vunpack.c.h.s8.bf16 %v4747
    %v5484 = vunpack.c.h.s8.bf16 %v4748
    %v5485 = vunpack.c.h.s8.bf16 %v4749
    %v5486 = vunpack.c.h.s8.bf16 %v4750
    %v5487 = vunpack.c.h.s8.bf16 %v4751
    %v5488 = vunpack.c.h.s8.bf16 %v4752
    %v5489 = vunpack.c.l.s8.bf16 %v4753
    %v5490 = vunpack.c.l.s8.bf16 %v4754
    %v5491 = vunpack.c.l.s8.bf16 %v4755
    %v5492 = vunpack.c.l.s8.bf16 %v4756
    %v5493 = vunpack.c.l.s8.bf16 %v4757
    %v5494 = vunpack.c.l.s8.bf16 %v4758
    %v5495 = vunpack.c.l.s8.bf16 %v4759
    %v5496 = vunpack.c.l.s8.bf16 %v4760
    %v5497 = vunpack.c.l.s8.bf16 %v4761
    %v5498 = vunpack.c.l.s8.bf16 %v4762
    %v5499 = vunpack.c.l.s8.bf16 %v4763
    %v5500 = vunpack.c.l.s8.bf16 %v4764
    %v5501 = vunpack.c.l.s8.bf16 %v4765
    %v5502 = vunpack.c.l.s8.bf16 %v4766
    %v5503 = vunpack.c.l.s8.bf16 %v4767
    %v5504 = vunpack.c.l.s8.bf16 %v4768
    %v5505 = vunpack.c.h.s8.bf16 %v4753
    %v5506 = vunpack.c.h.s8.bf16 %v4754
    %v5507 = vunpack.c.h.s8.bf16 %v4755
    %v5508 = vunpack.c.h.s8.bf16 %v4756
    %v5509 = vunpack.c.h.s8.bf16 %v4757
    %v5510 = vunpack.c.h.s8.bf16 %v4758
    %v5511 = vunpack.c.h.s8.bf16 %v4759
    %v5512 = vunpack.c.h.s8.bf16 %v4760
    %v5513 = vunpack.c.h.s8.bf16 %v4761
    %v5514 = vunpack.c.h.s8.bf16 %v4762
    %v5515 = vunpack.c.h.s8.bf16 %v4763
    %v5516 = vunpack.c.h.s8.bf16 %v4764
    %v5517 = vunpack.c.h.s8.bf16 %v4765
    %v5518 = vunpack.c.h.s8.bf16 %v4766
    %v5519 = vunpack.c.h.s8.bf16 %v4767
    %v5520 = vunpack.c.h.s8.bf16 %v4768
    %v5521 = vunpack.c.l.s8.bf16 %v4769
    %v5522 = vunpack.c.l.s8.bf16 %v4770
    %v5523 = vunpack.c.l.s8.bf16 %v4771
    %v5524 = vunpack.c.l.s8.bf16 %v4772
    %v5525 = vunpack.c.l.s8.bf16 %v4773
    %v5526 = vunpack.c.l.s8.bf16 %v4774
    %v5527 = vunpack.c.l.s8.bf16 %v4775
    %v5528 = vunpack.c.l.s8.bf16 %v4776
    %v5529 = vunpack.c.l.s8.bf16 %v4777
    %v5530 = vunpack.c.l.s8.bf16 %v4778
    %v5531 = vunpack.c.l.s8.bf16 %v4779
    %v5532 = vunpack.c.l.s8.bf16 %v4780
    %v5533 = vunpack.c.l.s8.bf16 %v4781
    %v5534 = vunpack.c.l.s8.bf16 %v4782
    %v5535 = vunpack.c.l.s8.bf16 %v4783
    %v5536 = vunpack.c.l.s8.bf16 %v4784
    %v5537 = vunpack.c.h.s8.bf16 %v4769
    %v5538 = vunpack.c.h.s8.bf16 %v4770
    %v5539 = vunpack.c.h.s8.bf16 %v4771
    %v5540 = vunpack.c.h.s8.bf16 %v4772
    %v5541 = vunpack.c.h.s8.bf16 %v4773
    %v5542 = vunpack.c.h.s8.bf16 %v4774
    %v5543 = vunpack.c.h.s8.bf16 %v4775
    %v5544 = vunpack.c.h.s8.bf16 %v4776
    %v5545 = vunpack.c.h.s8.bf16 %v4777
    %v5546 = vunpack.c.h.s8.bf16 %v4778
    %v5547 = vunpack.c.h.s8.bf16 %v4779
    %v5548 = vunpack.c.h.s8.bf16 %v4780
    %v5549 = vunpack.c.h.s8.bf16 %v4781
    %v5550 = vunpack.c.h.s8.bf16 %v4782
    %v5551 = vunpack.c.h.s8.bf16 %v4783
    %v5552 = vunpack.c.h.s8.bf16 %v4784
    %v5553 = vunpack.c.l.s8.bf16 %v4785
    %v5554 = vunpack.c.l.s8.bf16 %v4786
    %v5555 = vunpack.c.l.s8.bf16 %v4787
    %v5556 = vunpack.c.l.s8.bf16 %v4788
    %v5557 = vunpack.c.l.s8.bf16 %v4789
    %v5558 = vunpack.c.l.s8.bf16 %v4790
    %v5559 = vunpack.c.l.s8.bf16 %v4791
    %v5560 = vunpack.c.l.s8.bf16 %v4792
    %v5561 = vunpack.c.l.s8.bf16 %v4793
    %v5562 = vunpack.c.l.s8.bf16 %v4794
    %v5563 = vunpack.c.l.s8.bf16 %v4795
    %v5564 = vunpack.c.l.s8.bf16 %v4796
    %v5565 = vunpack.c.l.s8.bf16 %v4797
    %v5566 = vunpack.c.l.s8.bf16 %v4798
    %v5567 = vunpack.c.l.s8.bf16 %v4799
    %v5568 = vunpack.c.l.s8.bf16 %v4800
    %v5569 = vunpack.c.h.s8.bf16 %v4785
    %v5570 = vunpack.c.h.s8.bf16 %v4786
    %v5571 = vunpack.c.h.s8.bf16 %v4787
    %v5572 = vunpack.c.h.s8.bf16 %v4788
    %v5573 = vunpack.c.h.s8.bf16 %v4789
    %v5574 = vunpack.c.h.s8.bf16 %v4790
    %v5575 = vunpack.c.h.s8.bf16 %v4791
    %v5576 = vunpack.c.h.s8.bf16 %v4792
    %v5577 = vunpack.c.h.s8.bf16 %v4793
    %v5578 = vunpack.c.h.s8.bf16 %v4794
    %v5579 = vunpack.c.h.s8.bf16 %v4795
    %v5580 = vunpack.c.h.s8.bf16 %v4796
    %v5581 = vunpack.c.h.s8.bf16 %v4797
    %v5582 = vunpack.c.h.s8.bf16 %v4798
    %v5583 = vunpack.c.h.s8.bf16 %v4799
    %v5584 = vunpack.c.h.s8.bf16 %v4800
    %v5585 = vunpack.c.l.s8.bf16 %v4801
    %v5586 = vunpack.c.l.s8.bf16 %v4802
    %v5587 = vunpack.c.l.s8.bf16 %v4803
    %v5588 = vunpack.c.l.s8.bf16 %v4804
    %v5589 = vunpack.c.l.s8.bf16 %v4805
    %v5590 = vunpack.c.l.s8.bf16 %v4806
    %v5591 = vunpack.c.l.s8.bf16 %v4807
    %v5592 = vunpack.c.l.s8.bf16 %v4808
    %v5593 = vunpack.c.l.s8.bf16 %v4809
    %v5594 = vunpack.c.l.s8.bf16 %v4810
    %v5595 = vunpack.c.l.s8.bf16 %v4811
    %v5596 = vunpack.c.l.s8.bf16 %v4812
    %v5597 = vunpack.c.l.s8.bf16 %v4813
    %v5598 = vunpack.c.l.s8.bf16 %v4814
    %v5599 = vunpack.c.l.s8.bf16 %v4815
    %v5600 = vunpack.c.l.s8.bf16 %v4816
    %v5601 = vunpack.c.h.s8.bf16 %v4801
    %v5602 = vunpack.c.h.s8.bf16 %v4802
    %v5603 = vunpack.c.h.s8.bf16 %v4803
    %v5604 = vunpack.c.h.s8.bf16 %v4804
    %v5605 = vunpack.c.h.s8.bf16 %v4805
    %v5606 = vunpack.c.h.s8.bf16 %v4806
    %v5607 = vunpack.c.h.s8.bf16 %v4807
    %v5608 = vunpack.c.h.s8.bf16 %v4808
    %v5609 = vunpack.c.h.s8.bf16 %v4809
    %v5610 = vunpack.c.h.s8.bf16 %v4810
    %v5611 = vunpack.c.h.s8.bf16 %v4811
    %v5612 = vunpack.c.h.s8.bf16 %v4812
    %v5613 = vunpack.c.h.s8.bf16 %v4813
    %v5614 = vunpack.c.h.s8.bf16 %v4814
    %v5615 = vunpack.c.h.s8.bf16 %v4815
    %v5616 = vunpack.c.h.s8.bf16 %v4816
    %v5617 = vunpack.c.l.s8.bf16 %v4817
    %v5618 = vunpack.c.l.s8.bf16 %v4818
    %v5619 = vunpack.c.l.s8.bf16 %v4819
    %v5620 = vunpack.c.l.s8.bf16 %v4820
    %v5621 = vunpack.c.l.s8.bf16 %v4821
    %v5622 = vunpack.c.l.s8.bf16 %v4822
    %v5623 = vunpack.c.l.s8.bf16 %v4823
    %v5624 = vunpack.c.l.s8.bf16 %v4824
    %v5625 = vunpack.c.l.s8.bf16 %v4825
    %v5626 = vunpack.c.l.s8.bf16 %v4826
    %v5627 = vunpack.c.l.s8.bf16 %v4827
    %v5628 = vunpack.c.l.s8.bf16 %v4828
    %v5629 = vunpack.c.l.s8.bf16 %v4829
    %v5630 = vunpack.c.l.s8.bf16 %v4830
    %v5631 = vunpack.c.l.s8.bf16 %v4831
    %v5632 = vunpack.c.l.s8.bf16 %v4832
    %v5633 = vunpack.c.h.s8.bf16 %v4817
    %v5634 = vunpack.c.h.s8.bf16 %v4818
    %v5635 = vunpack.c.h.s8.bf16 %v4819
    %v5636 = vunpack.c.h.s8.bf16 %v4820
    %v5637 = vunpack.c.h.s8.bf16 %v4821
    %v5638 = vunpack.c.h.s8.bf16 %v4822
    %v5639 = vunpack.c.h.s8.bf16 %v4823
    %v5640 = vunpack.c.h.s8.bf16 %v4824
    %v5641 = vunpack.c.h.s8.bf16 %v4825
    %v5642 = vunpack.c.h.s8.bf16 %v4826
    %v5643 = vunpack.c.h.s8.bf16 %v4827
    %v5644 = vunpack.c.h.s8.bf16 %v4828
    %v5645 = vunpack.c.h.s8.bf16 %v4829
    %v5646 = vunpack.c.h.s8.bf16 %v4830
    %v5647 = vunpack.c.h.s8.bf16 %v4831
    %v5648 = vunpack.c.h.s8.bf16 %v4832
    %v5649 = vunpack.c.l.s8.bf16 %v4833
    %v5650 = vunpack.c.l.s8.bf16 %v4834
    %v5651 = vunpack.c.l.s8.bf16 %v4835
    %v5652 = vunpack.c.l.s8.bf16 %v4836
    %v5653 = vunpack.c.l.s8.bf16 %v4837
    %v5654 = vunpack.c.l.s8.bf16 %v4838
    %v5655 = vunpack.c.l.s8.bf16 %v4839
    %v5656 = vunpack.c.l.s8.bf16 %v4840
    %v5657 = vunpack.c.l.s8.bf16 %v4841
    %v5658 = vunpack.c.l.s8.bf16 %v4842
    %v5659 = vunpack.c.l.s8.bf16 %v4843
    %v5660 = vunpack.c.l.s8.bf16 %v4844
    %v5661 = vunpack.c.l.s8.bf16 %v4845
    %v5662 = vunpack.c.l.s8.bf16 %v4846
    %v5663 = vunpack.c.l.s8.bf16 %v4847
    %v5664 = vunpack.c.l.s8.bf16 %v4848
    %v5665 = vunpack.c.h.s8.bf16 %v4833
    %v5666 = vunpack.c.h.s8.bf16 %v4834
    %v5667 = vunpack.c.h.s8.bf16 %v4835
    %v5668 = vunpack.c.h.s8.bf16 %v4836
    %v5669 = vunpack.c.h.s8.bf16 %v4837
    %v5670 = vunpack.c.h.s8.bf16 %v4838
    %v5671 = vunpack.c.h.s8.bf16 %v4839
    %v5672 = vunpack.c.h.s8.bf16 %v4840
    %v5673 = vunpack.c.h.s8.bf16 %v4841
    %v5674 = vunpack.c.h.s8.bf16 %v4842
    %v5675 = vunpack.c.h.s8.bf16 %v4843
    %v5676 = vunpack.c.h.s8.bf16 %v4844
    %v5677 = vunpack.c.h.s8.bf16 %v4845
    %v5678 = vunpack.c.h.s8.bf16 %v4846
    %v5679 = vunpack.c.h.s8.bf16 %v4847
    %v5680 = vunpack.c.h.s8.bf16 %v4848
    %v5681 = vunpack.c.l.s8.bf16 %v4849
    %v5682 = vunpack.c.l.s8.bf16 %v4850
    %v5683 = vunpack.c.l.s8.bf16 %v4851
    %v5684 = vunpack.c.l.s8.bf16 %v4852
    %v5685 = vunpack.c.l.s8.bf16 %v4853
    %v5686 = vunpack.c.l.s8.bf16 %v4854
    %v5687 = vunpack.c.l.s8.bf16 %v4855
    %v5688 = vunpack.c.l.s8.bf16 %v4856
    %v5689 = vunpack.c.l.s8.bf16 %v4857
    %v5690 = vunpack.c.l.s8.bf16 %v4858
    %v5691 = vunpack.c.l.s8.bf16 %v4859
    %v5692 = vunpack.c.l.s8.bf16 %v4860
    %v5693 = vunpack.c.l.s8.bf16 %v4861
    %v5694 = vunpack.c.l.s8.bf16 %v4862
    %v5695 = vunpack.c.l.s8.bf16 %v4863
    %v5696 = vunpack.c.l.s8.bf16 %v4864
    %v5697 = vunpack.c.h.s8.bf16 %v4849
    %v5698 = vunpack.c.h.s8.bf16 %v4850
    %v5699 = vunpack.c.h.s8.bf16 %v4851
    %v5700 = vunpack.c.h.s8.bf16 %v4852
    %v5701 = vunpack.c.h.s8.bf16 %v4853
    %v5702 = vunpack.c.h.s8.bf16 %v4854
    %v5703 = vunpack.c.h.s8.bf16 %v4855
    %v5704 = vunpack.c.h.s8.bf16 %v4856
    %v5705 = vunpack.c.h.s8.bf16 %v4857
    %v5706 = vunpack.c.h.s8.bf16 %v4858
    %v5707 = vunpack.c.h.s8.bf16 %v4859
    %v5708 = vunpack.c.h.s8.bf16 %v4860
    %v5709 = vunpack.c.h.s8.bf16 %v4861
    %v5710 = vunpack.c.h.s8.bf16 %v4862
    %v5711 = vunpack.c.h.s8.bf16 %v4863
    %v5712 = vunpack.c.h.s8.bf16 %v4864
    %v5713 = vunpack.c.l.s8.bf16 %v4865
    %v5714 = vunpack.c.l.s8.bf16 %v4866
    %v5715 = vunpack.c.l.s8.bf16 %v4867
    %v5716 = vunpack.c.l.s8.bf16 %v4868
    %v5717 = vunpack.c.l.s8.bf16 %v4869
    %v5718 = vunpack.c.l.s8.bf16 %v4870
    %v5719 = vunpack.c.l.s8.bf16 %v4871
    %v5720 = vunpack.c.l.s8.bf16 %v4872
    %v5721 = vunpack.c.l.s8.bf16 %v4873
    %v5722 = vunpack.c.l.s8.bf16 %v4874
    %v5723 = vunpack.c.l.s8.bf16 %v4875
    %v5724 = vunpack.c.l.s8.bf16 %v4876
    %v5725 = vunpack.c.l.s8.bf16 %v4877
    %v5726 = vunpack.c.l.s8.bf16 %v4878
    %v5727 = vunpack.c.l.s8.bf16 %v4879
    %v5728 = vunpack.c.l.s8.bf16 %v4880
    %v5729 = vunpack.c.h.s8.bf16 %v4865
    %v5730 = vunpack.c.h.s8.bf16 %v4866
    %v5731 = vunpack.c.h.s8.bf16 %v4867
    %v5732 = vunpack.c.h.s8.bf16 %v4868
    %v5733 = vunpack.c.h.s8.bf16 %v4869
    %v5734 = vunpack.c.h.s8.bf16 %v4870
    %v5735 = vunpack.c.h.s8.bf16 %v4871
    %v5736 = vunpack.c.h.s8.bf16 %v4872
    %v5737 = vunpack.c.h.s8.bf16 %v4873
    %v5738 = vunpack.c.h.s8.bf16 %v4874
    %v5739 = vunpack.c.h.s8.bf16 %v4875
    %v5740 = vunpack.c.h.s8.bf16 %v4876
    %v5741 = vunpack.c.h.s8.bf16 %v4877
    %v5742 = vunpack.c.h.s8.bf16 %v4878
    %v5743 = vunpack.c.h.s8.bf16 %v4879
    %v5744 = vunpack.c.h.s8.bf16 %v4880
    %v5745 = vunpack.c.l.s8.bf16 %v4881
    %v5746 = vunpack.c.l.s8.bf16 %v4882
    %v5747 = vunpack.c.l.s8.bf16 %v4883
    %v5748 = vunpack.c.l.s8.bf16 %v4884
    %v5749 = vunpack.c.l.s8.bf16 %v4885
    %v5750 = vunpack.c.l.s8.bf16 %v4886
    %v5751 = vunpack.c.l.s8.bf16 %v4887
    %v5752 = vunpack.c.l.s8.bf16 %v4888
    %v5753 = vunpack.c.l.s8.bf16 %v4889
    %v5754 = vunpack.c.l.s8.bf16 %v4890
    %v5755 = vunpack.c.l.s8.bf16 %v4891
    %v5756 = vunpack.c.l.s8.bf16 %v4892
    %v5757 = vunpack.c.l.s8.bf16 %v4893
    %v5758 = vunpack.c.l.s8.bf16 %v4894
    %v5759 = vunpack.c.l.s8.bf16 %v4895
    %v5760 = vunpack.c.l.s8.bf16 %v4896
    %v5761 = vunpack.c.h.s8.bf16 %v4881
    %v5762 = vunpack.c.h.s8.bf16 %v4882
    %v5763 = vunpack.c.h.s8.bf16 %v4883
    %v5764 = vunpack.c.h.s8.bf16 %v4884
    %v5765 = vunpack.c.h.s8.bf16 %v4885
    %v5766 = vunpack.c.h.s8.bf16 %v4886
    %v5767 = vunpack.c.h.s8.bf16 %v4887
    %v5768 = vunpack.c.h.s8.bf16 %v4888
    %v5769 = vunpack.c.h.s8.bf16 %v4889
    %v5770 = vunpack.c.h.s8.bf16 %v4890
    %v5771 = vunpack.c.h.s8.bf16 %v4891
    %v5772 = vunpack.c.h.s8.bf16 %v4892
    %v5773 = vunpack.c.h.s8.bf16 %v4893
    %v5774 = vunpack.c.h.s8.bf16 %v4894
    %v5775 = vunpack.c.h.s8.bf16 %v4895
    %v5776 = vunpack.c.h.s8.bf16 %v4896
    %v5777 = vunpack.c.l.s8.bf16 %v4897
    %v5778 = vunpack.c.l.s8.bf16 %v4898
    %v5779 = vunpack.c.l.s8.bf16 %v4899
    %v5780 = vunpack.c.l.s8.bf16 %v4900
    %v5781 = vunpack.c.l.s8.bf16 %v4901
    %v5782 = vunpack.c.l.s8.bf16 %v4902
    %v5783 = vunpack.c.l.s8.bf16 %v4903
    %v5784 = vunpack.c.l.s8.bf16 %v4904
    %v5785 = vunpack.c.l.s8.bf16 %v4905
    %v5786 = vunpack.c.l.s8.bf16 %v4906
    %v5787 = vunpack.c.l.s8.bf16 %v4907
    %v5788 = vunpack.c.l.s8.bf16 %v4908
    %v5789 = vunpack.c.l.s8.bf16 %v4909
    %v5790 = vunpack.c.l.s8.bf16 %v4910
    %v5791 = vunpack.c.l.s8.bf16 %v4911
    %v5792 = vunpack.c.l.s8.bf16 %v4912
    %v5793 = vunpack.c.h.s8.bf16 %v4897
    %v5794 = vunpack.c.h.s8.bf16 %v4898
    %v5795 = vunpack.c.h.s8.bf16 %v4899
    %v5796 = vunpack.c.h.s8.bf16 %v4900
    %v5797 = vunpack.c.h.s8.bf16 %v4901
    %v5798 = vunpack.c.h.s8.bf16 %v4902
    %v5799 = vunpack.c.h.s8.bf16 %v4903
    %v5800 = vunpack.c.h.s8.bf16 %v4904
    %v5801 = vunpack.c.h.s8.bf16 %v4905
    %v5802 = vunpack.c.h.s8.bf16 %v4906
    %v5803 = vunpack.c.h.s8.bf16 %v4907
    %v5804 = vunpack.c.h.s8.bf16 %v4908
    %v5805 = vunpack.c.h.s8.bf16 %v4909
    %v5806 = vunpack.c.h.s8.bf16 %v4910
    %v5807 = vunpack.c.h.s8.bf16 %v4911
    %v5808 = vunpack.c.h.s8.bf16 %v4912
    %v5809 = vunpack.c.l.s8.bf16 %v4913
    %v5810 = vunpack.c.l.s8.bf16 %v4914
    %v5811 = vunpack.c.l.s8.bf16 %v4915
    %v5812 = vunpack.c.l.s8.bf16 %v4916
    %v5813 = vunpack.c.l.s8.bf16 %v4917
    %v5814 = vunpack.c.l.s8.bf16 %v4918
    %v5815 = vunpack.c.l.s8.bf16 %v4919
    %v5816 = vunpack.c.l.s8.bf16 %v4920
    %v5817 = vunpack.c.l.s8.bf16 %v4921
    %v5818 = vunpack.c.l.s8.bf16 %v4922
    %v5819 = vunpack.c.l.s8.bf16 %v4923
    %v5820 = vunpack.c.l.s8.bf16 %v4924
    %v5821 = vunpack.c.l.s8.bf16 %v4925
    %v5822 = vunpack.c.l.s8.bf16 %v4926
    %v5823 = vunpack.c.l.s8.bf16 %v4927
    %v5824 = vunpack.c.l.s8.bf16 %v4928
    %v5825 = vunpack.c.h.s8.bf16 %v4913
    %v5826 = vunpack.c.h.s8.bf16 %v4914
    %v5827 = vunpack.c.h.s8.bf16 %v4915
    %v5828 = vunpack.c.h.s8.bf16 %v4916
    %v5829 = vunpack.c.h.s8.bf16 %v4917
    %v5830 = vunpack.c.h.s8.bf16 %v4918
    %v5831 = vunpack.c.h.s8.bf16 %v4919
    %v5832 = vunpack.c.h.s8.bf16 %v4920
    %v5833 = vunpack.c.h.s8.bf16 %v4921
    %v5834 = vunpack.c.h.s8.bf16 %v4922
    %v5835 = vunpack.c.h.s8.bf16 %v4923
    %v5836 = vunpack.c.h.s8.bf16 %v4924
    %v5837 = vunpack.c.h.s8.bf16 %v4925
    %v5838 = vunpack.c.h.s8.bf16 %v4926
    %v5839 = vunpack.c.h.s8.bf16 %v4927
    %v5840 = vunpack.c.h.s8.bf16 %v4928
    %v5841 = vunpack.c.l.s8.bf16 %v4929
    %v5842 = vunpack.c.l.s8.bf16 %v4930
    %v5843 = vunpack.c.l.s8.bf16 %v4931
    %v5844 = vunpack.c.l.s8.bf16 %v4932
    %v5845 = vunpack.c.l.s8.bf16 %v4933
    %v5846 = vunpack.c.l.s8.bf16 %v4934
    %v5847 = vunpack.c.l.s8.bf16 %v4935
    %v5848 = vunpack.c.l.s8.bf16 %v4936
    %v5849 = vunpack.c.l.s8.bf16 %v4937
    %v5850 = vunpack.c.l.s8.bf16 %v4938
    %v5851 = vunpack.c.l.s8.bf16 %v4939
    %v5852 = vunpack.c.l.s8.bf16 %v4940
    %v5853 = vunpack.c.l.s8.bf16 %v4941
    %v5854 = vunpack.c.l.s8.bf16 %v4942
    %v5855 = vunpack.c.l.s8.bf16 %v4943
    %v5856 = vunpack.c.l.s8.bf16 %v4944
    %v5857 = vunpack.c.h.s8.bf16 %v4929
    %v5858 = vunpack.c.h.s8.bf16 %v4930
    %v5859 = vunpack.c.h.s8.bf16 %v4931
    %v5860 = vunpack.c.h.s8.bf16 %v4932
    %v5861 = vunpack.c.h.s8.bf16 %v4933
    %v5862 = vunpack.c.h.s8.bf16 %v4934
    %v5863 = vunpack.c.h.s8.bf16 %v4935
    %v5864 = vunpack.c.h.s8.bf16 %v4936
    %v5865 = vunpack.c.h.s8.bf16 %v4937
    %v5866 = vunpack.c.h.s8.bf16 %v4938
    %v5867 = vunpack.c.h.s8.bf16 %v4939
    %v5868 = vunpack.c.h.s8.bf16 %v4940
    %v5869 = vunpack.c.h.s8.bf16 %v4941
    %v5870 = vunpack.c.h.s8.bf16 %v4942
    %v5871 = vunpack.c.h.s8.bf16 %v4943
    %v5872 = vunpack.c.h.s8.bf16 %v4944
    %v5873 = vunpack.c.l.s8.bf16 %v4945
    %v5874 = vunpack.c.l.s8.bf16 %v4946
    %v5875 = vunpack.c.l.s8.bf16 %v4947
    %v5876 = vunpack.c.l.s8.bf16 %v4948
    %v5877 = vunpack.c.l.s8.bf16 %v4949
    %v5878 = vunpack.c.l.s8.bf16 %v4950
    %v5879 = vunpack.c.l.s8.bf16 %v4951
    %v5880 = vunpack.c.l.s8.bf16 %v4952
    %v5881 = vunpack.c.l.s8.bf16 %v4953
    %v5882 = vunpack.c.l.s8.bf16 %v4954
    %v5883 = vunpack.c.l.s8.bf16 %v4955
    %v5884 = vunpack.c.l.s8.bf16 %v4956
    %v5885 = vunpack.c.l.s8.bf16 %v4957
    %v5886 = vunpack.c.l.s8.bf16 %v4958
    %v5887 = vunpack.c.l.s8.bf16 %v4959
    %v5888 = vunpack.c.l.s8.bf16 %v4960
    %v5889 = vunpack.c.h.s8.bf16 %v4945
    %v5890 = vunpack.c.h.s8.bf16 %v4946
    %v5891 = vunpack.c.h.s8.bf16 %v4947
    %v5892 = vunpack.c.h.s8.bf16 %v4948
    %v5893 = vunpack.c.h.s8.bf16 %v4949
    %v5894 = vunpack.c.h.s8.bf16 %v4950
    %v5895 = vunpack.c.h.s8.bf16 %v4951
    %v5896 = vunpack.c.h.s8.bf16 %v4952
    %v5897 = vunpack.c.h.s8.bf16 %v4953
    %v5898 = vunpack.c.h.s8.bf16 %v4954
    %v5899 = vunpack.c.h.s8.bf16 %v4955
    %v5900 = vunpack.c.h.s8.bf16 %v4956
    %v5901 = vunpack.c.h.s8.bf16 %v4957
    %v5902 = vunpack.c.h.s8.bf16 %v4958
    %v5903 = vunpack.c.h.s8.bf16 %v4959
    %v5904 = vunpack.c.h.s8.bf16 %v4960
    %v5905 = vunpack.c.l.s8.bf16 %v4961
    %v5906 = vunpack.c.l.s8.bf16 %v4962
    %v5907 = vunpack.c.l.s8.bf16 %v4963
    %v5908 = vunpack.c.l.s8.bf16 %v4964
    %v5909 = vunpack.c.l.s8.bf16 %v4965
    %v5910 = vunpack.c.l.s8.bf16 %v4966
    %v5911 = vunpack.c.l.s8.bf16 %v4967
    %v5912 = vunpack.c.l.s8.bf16 %v4968
    %v5913 = vunpack.c.l.s8.bf16 %v4969
    %v5914 = vunpack.c.l.s8.bf16 %v4970
    %v5915 = vunpack.c.l.s8.bf16 %v4971
    %v5916 = vunpack.c.l.s8.bf16 %v4972
    %v5917 = vunpack.c.l.s8.bf16 %v4973
    %v5918 = vunpack.c.l.s8.bf16 %v4974
    %v5919 = vunpack.c.l.s8.bf16 %v4975
    %v5920 = vunpack.c.l.s8.bf16 %v4976
    %v5921 = vunpack.c.h.s8.bf16 %v4961
    %v5922 = vunpack.c.h.s8.bf16 %v4962
    %v5923 = vunpack.c.h.s8.bf16 %v4963
    %v5924 = vunpack.c.h.s8.bf16 %v4964
    %v5925 = vunpack.c.h.s8.bf16 %v4965
    %v5926 = vunpack.c.h.s8.bf16 %v4966
    %v5927 = vunpack.c.h.s8.bf16 %v4967
    %v5928 = vunpack.c.h.s8.bf16 %v4968
    %v5929 = vunpack.c.h.s8.bf16 %v4969
    %v5930 = vunpack.c.h.s8.bf16 %v4970
    %v5931 = vunpack.c.h.s8.bf16 %v4971
    %v5932 = vunpack.c.h.s8.bf16 %v4972
    %v5933 = vunpack.c.h.s8.bf16 %v4973
    %v5934 = vunpack.c.h.s8.bf16 %v4974
    %v5935 = vunpack.c.h.s8.bf16 %v4975
    %v5936 = vunpack.c.h.s8.bf16 %v4976
    %v5937 = vunpack.c.l.s8.bf16 %v4977
    %v5938 = vunpack.c.l.s8.bf16 %v4978
    %v5939 = vunpack.c.l.s8.bf16 %v4979
    %v5940 = vunpack.c.l.s8.bf16 %v4980
    %v5941 = vunpack.c.l.s8.bf16 %v4981
    %v5942 = vunpack.c.l.s8.bf16 %v4982
    %v5943 = vunpack.c.l.s8.bf16 %v4983
    %v5944 = vunpack.c.l.s8.bf16 %v4984
    %v5945 = vunpack.c.l.s8.bf16 %v4985
    %v5946 = vunpack.c.l.s8.bf16 %v4986
    %v5947 = vunpack.c.l.s8.bf16 %v4987
    %v5948 = vunpack.c.l.s8.bf16 %v4988
    %v5949 = vunpack.c.l.s8.bf16 %v4989
    %v5950 = vunpack.c.l.s8.bf16 %v4990
    %v5951 = vunpack.c.l.s8.bf16 %v4991
    %v5952 = vunpack.c.l.s8.bf16 %v4992
    %v5953 = vunpack.c.h.s8.bf16 %v4977
    %v5954 = vunpack.c.h.s8.bf16 %v4978
    %v5955 = vunpack.c.h.s8.bf16 %v4979
    %v5956 = vunpack.c.h.s8.bf16 %v4980
    %v5957 = vunpack.c.h.s8.bf16 %v4981
    %v5958 = vunpack.c.h.s8.bf16 %v4982
    %v5959 = vunpack.c.h.s8.bf16 %v4983
    %v5960 = vunpack.c.h.s8.bf16 %v4984
    %v5961 = vunpack.c.h.s8.bf16 %v4985
    %v5962 = vunpack.c.h.s8.bf16 %v4986
    %v5963 = vunpack.c.h.s8.bf16 %v4987
    %v5964 = vunpack.c.h.s8.bf16 %v4988
    %v5965 = vunpack.c.h.s8.bf16 %v4989
    %v5966 = vunpack.c.h.s8.bf16 %v4990
    %v5967 = vunpack.c.h.s8.bf16 %v4991
    %v5968 = vunpack.c.h.s8.bf16 %v4992
    %v5969 = vunpack.c.l.s8.bf16 %v4993
    %v5970 = vunpack.c.l.s8.bf16 %v4994
    %v5971 = vunpack.c.l.s8.bf16 %v4995
    %v5972 = vunpack.c.l.s8.bf16 %v4996
    %v5973 = vunpack.c.l.s8.bf16 %v4997
    %v5974 = vunpack.c.l.s8.bf16 %v4998
    %v5975 = vunpack.c.l.s8.bf16 %v4999
    %v5976 = vunpack.c.l.s8.bf16 %v5000
    %v5977 = vunpack.c.l.s8.bf16 %v5001
    %v5978 = vunpack.c.l.s8.bf16 %v5002
    %v5979 = vunpack.c.l.s8.bf16 %v5003
    %v5980 = vunpack.c.l.s8.bf16 %v5004
    %v5981 = vunpack.c.l.s8.bf16 %v5005
    %v5982 = vunpack.c.l.s8.bf16 %v5006
    %v5983 = vunpack.c.l.s8.bf16 %v5007
    %v5984 = vunpack.c.l.s8.bf16 %v5008
    %v5985 = vunpack.c.h.s8.bf16 %v4993
    %v5986 = vunpack.c.h.s8.bf16 %v4994
    %v5987 = vunpack.c.h.s8.bf16 %v4995
    %v5988 = vunpack.c.h.s8.bf16 %v4996
    %v5989 = vunpack.c.h.s8.bf16 %v4997
    %v5990 = vunpack.c.h.s8.bf16 %v4998
    %v5991 = vunpack.c.h.s8.bf16 %v4999
    %v5992 = vunpack.c.h.s8.bf16 %v5000
    %v5993 = vunpack.c.h.s8.bf16 %v5001
    %v5994 = vunpack.c.h.s8.bf16 %v5002
    %v5995 = vunpack.c.h.s8.bf16 %v5003
    %v5996 = vunpack.c.h.s8.bf16 %v5004
    %v5997 = vunpack.c.h.s8.bf16 %v5005
    %v5998 = vunpack.c.h.s8.bf16 %v5006
    %v5999 = vunpack.c.h.s8.bf16 %v5007
    %v6000 = vunpack.c.h.s8.bf16 %v5008
    %v6001 = vunpack.c.l.s8.bf16 %v5009
    %v6002 = vunpack.c.l.s8.bf16 %v5010
    %v6003 = vunpack.c.l.s8.bf16 %v5011
    %v6004 = vunpack.c.l.s8.bf16 %v5012
    %v6005 = vunpack.c.l.s8.bf16 %v5013
    %v6006 = vunpack.c.l.s8.bf16 %v5014
    %v6007 = vunpack.c.l.s8.bf16 %v5015
    %v6008 = vunpack.c.l.s8.bf16 %v5016
    %v6009 = vunpack.c.l.s8.bf16 %v5017
    %v6010 = vunpack.c.l.s8.bf16 %v5018
    %v6011 = vunpack.c.l.s8.bf16 %v5019
    %v6012 = vunpack.c.l.s8.bf16 %v5020
    %v6013 = vunpack.c.l.s8.bf16 %v5021
    %v6014 = vunpack.c.l.s8.bf16 %v5022
    %v6015 = vunpack.c.l.s8.bf16 %v5023
    %v6016 = vunpack.c.l.s8.bf16 %v5024
    %v6017 = vunpack.c.h.s8.bf16 %v5009
    %v6018 = vunpack.c.h.s8.bf16 %v5010
    %v6019 = vunpack.c.h.s8.bf16 %v5011
    %v6020 = vunpack.c.h.s8.bf16 %v5012
    %v6021 = vunpack.c.h.s8.bf16 %v5013
    %v6022 = vunpack.c.h.s8.bf16 %v5014
    %v6023 = vunpack.c.h.s8.bf16 %v5015
    %v6024 = vunpack.c.h.s8.bf16 %v5016
    %v6025 = vunpack.c.h.s8.bf16 %v5017
    %v6026 = vunpack.c.h.s8.bf16 %v5018
    %v6027 = vunpack.c.h.s8.bf16 %v5019
    %v6028 = vunpack.c.h.s8.bf16 %v5020
    %v6029 = vunpack.c.h.s8.bf16 %v5021
    %v6030 = vunpack.c.h.s8.bf16 %v5022
    %v6031 = vunpack.c.h.s8.bf16 %v5023
    %v6032 = vunpack.c.h.s8.bf16 %v5024
    %v6033 = vunpack.c.l.s8.bf16 %v5025
    %v6034 = vunpack.c.l.s8.bf16 %v5026
    %v6035 = vunpack.c.l.s8.bf16 %v5027
    %v6036 = vunpack.c.l.s8.bf16 %v5028
    %v6037 = vunpack.c.l.s8.bf16 %v5029
    %v6038 = vunpack.c.l.s8.bf16 %v5030
    %v6039 = vunpack.c.l.s8.bf16 %v5031
    %v6040 = vunpack.c.l.s8.bf16 %v5032
    %v6041 = vunpack.c.l.s8.bf16 %v5033
    %v6042 = vunpack.c.l.s8.bf16 %v5034
    %v6043 = vunpack.c.l.s8.bf16 %v5035
    %v6044 = vunpack.c.l.s8.bf16 %v5036
    %v6045 = vunpack.c.l.s8.bf16 %v5037
    %v6046 = vunpack.c.l.s8.bf16 %v5038
    %v6047 = vunpack.c.l.s8.bf16 %v5039
    %v6048 = vunpack.c.l.s8.bf16 %v5040
    %v6049 = vunpack.c.h.s8.bf16 %v5025
    %v6050 = vunpack.c.h.s8.bf16 %v5026
    %v6051 = vunpack.c.h.s8.bf16 %v5027
    %v6052 = vunpack.c.h.s8.bf16 %v5028
    %v6053 = vunpack.c.h.s8.bf16 %v5029
    %v6054 = vunpack.c.h.s8.bf16 %v5030
    %v6055 = vunpack.c.h.s8.bf16 %v5031
    %v6056 = vunpack.c.h.s8.bf16 %v5032
    %v6057 = vunpack.c.h.s8.bf16 %v5033
    %v6058 = vunpack.c.h.s8.bf16 %v5034
    %v6059 = vunpack.c.h.s8.bf16 %v5035
    %v6060 = vunpack.c.h.s8.bf16 %v5036
    %v6061 = vunpack.c.h.s8.bf16 %v5037
    %v6062 = vunpack.c.h.s8.bf16 %v5038
    %v6063 = vunpack.c.h.s8.bf16 %v5039
    %v6064 = vunpack.c.h.s8.bf16 %v5040
    %6065 = vmatprep.subr.bf16.mxu0 %v5154
    %6066 = vmatpush1.bf16.msra.mxu0 %v5153
    %6067 = vmatprep.subr.bf16.mxu0 %v5138
    %6068 = vmatpush1.bf16.msra.mxu0 %v5137
    %6069 = vmatprep.subr.bf16.mxu0 %v5122
    %6070 = vmatpush1.bf16.msra.mxu0 %v5121
    %6071 = vmatprep.subr.bf16.mxu0 %v5106
    %6072 = vmatpush1.bf16.msra.mxu0 %v5105
    %6073 = vmatprep.subr.bf16.mxu0 %v5090
    %6074 = vmatpush1.bf16.msra.mxu0 %v5089
    %6075 = vmatprep.subr.bf16.mxu0 %v5074
    %6076 = vmatpush1.bf16.msra.mxu0 %v5073
    %6077 = vmatprep.subr.bf16.mxu0 %v5058
    %6078 = vmatpush1.bf16.msra.mxu0 %v5057
    %6079 = vmatprep.subr.bf16.mxu0 %v5042
    %6080 = vmatpush1.bf16.msra.mxu0 %v5041
    %6081 = vmatprep.subr.bf16.mxu0 %v5282
    %6082 = vmatpush2.bf16.msra.mxu0 %v5281
    %6083 = vmatprep.subr.bf16.mxu0 %v5266
    %6084 = vmatpush2.bf16.msra.mxu0 %v5265
    %6085 = vmatprep.subr.bf16.mxu0 %v5250
    %6086 = vmatpush2.bf16.msra.mxu0 %v5249
    %6087 = vmatprep.subr.bf16.mxu0 %v5234
    %6088 = vmatpush2.bf16.msra.mxu0 %v5233
    %6089 = vmatprep.subr.bf16.mxu0 %v5218
    %6090 = vmatpush2.bf16.msra.mxu0 %v5217
    %6091 = vmatprep.subr.bf16.mxu0 %v5202
    %6092 = vmatpush2.bf16.msra.mxu0 %v5201
    %6093 = vmatprep.subr.bf16.mxu0 %v5186
    %6094 = vmatpush2.bf16.msra.mxu0 %v5185
    %6095 = vmatprep.subr.bf16.mxu0 %v5170
    %6096 = vmatpush2.bf16.msra.mxu0 %v5169
    %6097 = vmatprep.mubr.bf16.mxu0 %v4522
    %6098 = vmatmul.mubr.bf16.gmra.mxu0 %v4521
    %v6099 = vpop.f32.mrf.mxu0
    %v6100 = vadd.f32 0.0, %v6099
    %v6101 = vpop.f32.mrf.mxu0
    %v6102 = vadd.f32 0.0, %v6101
    %v6103 = vpop.f32.mrf.mxu0
    %v6104 = vpop.f32.mrf.mxu0
    %6105 = vdwg.mxu0
    %6106 = vmatprep.subr.bf16.mxu0 %v5410
    %6107 = vmatpush1.bf16.msra.mxu0 %v5409
    %6108 = vmatprep.subr.bf16.mxu0 %v5394
    %6109 = vmatpush1.bf16.msra.mxu0 %v5393
    %6110 = vmatprep.subr.bf16.mxu0 %v5378
    %6111 = vmatpush1.bf16.msra.mxu0 %v5377
    %6112 = vmatprep.subr.bf16.mxu0 %v5362
    %6113 = vmatpush1.bf16.msra.mxu0 %v5361
    %6114 = vmatprep.subr.bf16.mxu0 %v5346
    %6115 = vmatpush1.bf16.msra.mxu0 %v5345
    %6116 = vmatprep.subr.bf16.mxu0 %v5330
    %6117 = vmatpush1.bf16.msra.mxu0 %v5329
    %6118 = vmatprep.subr.bf16.mxu0 %v5314
    %6119 = vmatpush1.bf16.msra.mxu0 %v5313
    %6120 = vmatprep.subr.bf16.mxu0 %v5298
    %6121 = vmatpush1.bf16.msra.mxu0 %v5297
    %6122 = vmatprep.subr.bf16.mxu0 %v5538
    %6123 = vmatpush2.bf16.msra.mxu0 %v5537
    %6124 = vmatprep.subr.bf16.mxu0 %v5522
    %6125 = vmatpush2.bf16.msra.mxu0 %v5521
    %6126 = vmatprep.subr.bf16.mxu0 %v5506
    %6127 = vmatpush2.bf16.msra.mxu0 %v5505
    %6128 = vmatprep.subr.bf16.mxu0 %v5490
    %6129 = vmatpush2.bf16.msra.mxu0 %v5489
    %6130 = vmatprep.subr.bf16.mxu0 %v5474
    %6131 = vmatpush2.bf16.msra.mxu0 %v5473
    %6132 = vmatprep.subr.bf16.mxu0 %v5458
    %6133 = vmatpush2.bf16.msra.mxu0 %v5457
    %6134 = vmatprep.subr.bf16.mxu0 %v5442
    %6135 = vmatpush2.bf16.msra.mxu0 %v5441
    %6136 = vmatprep.subr.bf16.mxu0 %v5426
    %6137 = vmatpush2.bf16.msra.mxu0 %v5425
    %6138 = vmatprep.mubr.bf16.mxu0 %v4524
    %6139 = vmatmul.mubr.bf16.gmra.mxu0 %v4523
    %v6140 = vpop.f32.mrf.mxu0
    %v6141 = vadd.f32 %v6100, %v6140
    %v6142 = vpop.f32.mrf.mxu0
    %v6143 = vadd.f32 %v6102, %v6142
    %v6144 = vpop.f32.mrf.mxu0
    %v6145 = vpop.f32.mrf.mxu0
    %6146 = vdwg.mxu0
    %6147 = vmatprep.subr.bf16.mxu0 %v5666
    %6148 = vmatpush1.bf16.msra.mxu0 %v5665
    %6149 = vmatprep.subr.bf16.mxu0 %v5650
    %6150 = vmatpush1.bf16.msra.mxu0 %v5649
    %6151 = vmatprep.subr.bf16.mxu0 %v5634
    %6152 = vmatpush1.bf16.msra.mxu0 %v5633
    %6153 = vmatprep.subr.bf16.mxu0 %v5618
    %6154 = vmatpush1.bf16.msra.mxu0 %v5617
    %6155 = vmatprep.subr.bf16.mxu0 %v5602
    %6156 = vmatpush1.bf16.msra.mxu0 %v5601
    %6157 = vmatprep.subr.bf16.mxu0 %v5586
    %6158 = vmatpush1.bf16.msra.mxu0 %v5585
    %6159 = vmatprep.subr.bf16.mxu0 %v5570
    %6160 = vmatpush1.bf16.msra.mxu0 %v5569
    %6161 = vmatprep.subr.bf16.mxu0 %v5554
    %6162 = vmatpush1.bf16.msra.mxu0 %v5553
    %6163 = vmatprep.subr.bf16.mxu0 %v5794
    %6164 = vmatpush2.bf16.msra.mxu0 %v5793
    %6165 = vmatprep.subr.bf16.mxu0 %v5778
    %6166 = vmatpush2.bf16.msra.mxu0 %v5777
    %6167 = vmatprep.subr.bf16.mxu0 %v5762
    %6168 = vmatpush2.bf16.msra.mxu0 %v5761
    %6169 = vmatprep.subr.bf16.mxu0 %v5746
    %6170 = vmatpush2.bf16.msra.mxu0 %v5745
    %6171 = vmatprep.subr.bf16.mxu0 %v5730
    %6172 = vmatpush2.bf16.msra.mxu0 %v5729
    %6173 = vmatprep.subr.bf16.mxu0 %v5714
    %6174 = vmatpush2.bf16.msra.mxu0 %v5713
    %6175 = vmatprep.subr.bf16.mxu0 %v5698
    %6176 = vmatpush2.bf16.msra.mxu0 %v5697
    %6177 = vmatprep.subr.bf16.mxu0 %v5682
    %6178 = vmatpush2.bf16.msra.mxu0 %v5681
    %6179 = vmatprep.mubr.bf16.mxu0 %v4526
    %6180 = vmatmul.mubr.bf16.gmra.mxu0 %v4525
    %v6181 = vpop.f32.mrf.mxu0
    %v6182 = vadd.f32 %v6141, %v6181
    %v6183 = vpop.f32.mrf.mxu0
    %v6184 = vadd.f32 %v6143, %v6183
    %v6185 = vpop.f32.mrf.mxu0
    %v6186 = vpop.f32.mrf.mxu0
    %6187 = vdwg.mxu0
    %6188 = vmatprep.subr.bf16.mxu0 %v5922
    %6189 = vmatpush1.bf16.msra.mxu0 %v5921
    %6190 = vmatprep.subr.bf16.mxu0 %v5906
    %6191 = vmatpush1.bf16.msra.mxu0 %v5905
    %6192 = vmatprep.subr.bf16.mxu0 %v5890
    %6193 = vmatpush1.bf16.msra.mxu0 %v5889
    %6194 = vmatprep.subr.bf16.mxu0 %v5874
    %6195 = vmatpush1.bf16.msra.mxu0 %v5873
    %6196 = vmatprep.subr.bf16.mxu0 %v5858
    %6197 = vmatpush1.bf16.msra.mxu0 %v5857
    %6198 = vmatprep.subr.bf16.mxu0 %v5842
    %6199 = vmatpush1.bf16.msra.mxu0 %v5841
    %6200 = vmatprep.subr.bf16.mxu0 %v5826
    %6201 = vmatpush1.bf16.msra.mxu0 %v5825
    %6202 = vmatprep.subr.bf16.mxu0 %v5810
    %6203 = vmatpush1.bf16.msra.mxu0 %v5809
    %6204 = vmatprep.subr.bf16.mxu0 %v6050
    %6205 = vmatpush2.bf16.msra.mxu0 %v6049
    %6206 = vmatprep.subr.bf16.mxu0 %v6034
    %6207 = vmatpush2.bf16.msra.mxu0 %v6033
    %6208 = vmatprep.subr.bf16.mxu0 %v6018
    %6209 = vmatpush2.bf16.msra.mxu0 %v6017
    %6210 = vmatprep.subr.bf16.mxu0 %v6002
    %6211 = vmatpush2.bf16.msra.mxu0 %v6001
    %6212 = vmatprep.subr.bf16.mxu0 %v5986
    %6213 = vmatpush2.bf16.msra.mxu0 %v5985
    %6214 = vmatprep.subr.bf16.mxu0 %v5970
    %6215 = vmatpush2.bf16.msra.mxu0 %v5969
    %6216 = vmatprep.subr.bf16.mxu0 %v5954
    %6217 = vmatpush2.bf16.msra.mxu0 %v5953
    %6218 = vmatprep.subr.bf16.mxu0 %v5938
    %6219 = vmatpush2.bf16.msra.mxu0 %v5937
    %6220 = vmatprep.mubr.bf16.mxu0 %v4528
    %6221 = vmatmul.mubr.bf16.gmra.mxu0 %v4527
    %v6222 = vpop.f32.mrf.mxu0
    %v6223 = vadd.f32 %v6182, %v6222
    %v6224 = vpop.f32.mrf.mxu0
    %v6225 = vadd.f32 %v6184, %v6224
    %v6226 = vpop.f32.mrf.mxu0
    %v6227 = vpop.f32.mrf.mxu0
    %6228 = vdwg.mxu0
    %6229 = vmatprep.subr.bf16.mxu0 %v5156
    %6230 = vmatpush1.bf16.msra.mxu0 %v5155
    %6231 = vmatprep.subr.bf16.mxu0 %v5140
    %6232 = vmatpush1.bf16.msra.mxu0 %v5139
    %6233 = vmatprep.subr.bf16.mxu0 %v5124
    %6234 = vmatpush1.bf16.msra.mxu0 %v5123
    %6235 = vmatprep.subr.bf16.mxu0 %v5108
    %6236 = vmatpush1.bf16.msra.mxu0 %v5107
    %6237 = vmatprep.subr.bf16.mxu0 %v5092
    %6238 = vmatpush1.bf16.msra.mxu0 %v5091
    %6239 = vmatprep.subr.bf16.mxu0 %v5076
    %6240 = vmatpush1.bf16.msra.mxu0 %v5075
    %6241 = vmatprep.subr.bf16.mxu0 %v5060
    %6242 = vmatpush1.bf16.msra.mxu0 %v5059
    %6243 = vmatprep.subr.bf16.mxu0 %v5044
    %6244 = vmatpush1.bf16.msra.mxu0 %v5043
    %6245 = vmatprep.subr.bf16.mxu0 %v5284
    %6246 = vmatpush2.bf16.msra.mxu0 %v5283
    %6247 = vmatprep.subr.bf16.mxu0 %v5268
    %6248 = vmatpush2.bf16.msra.mxu0 %v5267
    %6249 = vmatprep.subr.bf16.mxu0 %v5252
    %6250 = vmatpush2.bf16.msra.mxu0 %v5251
    %6251 = vmatprep.subr.bf16.mxu0 %v5236
    %6252 = vmatpush2.bf16.msra.mxu0 %v5235
    %6253 = vmatprep.subr.bf16.mxu0 %v5220
    %6254 = vmatpush2.bf16.msra.mxu0 %v5219
    %6255 = vmatprep.subr.bf16.mxu0 %v5204
    %6256 = vmatpush2.bf16.msra.mxu0 %v5203
    %6257 = vmatprep.subr.bf16.mxu0 %v5188
    %6258 = vmatpush2.bf16.msra.mxu0 %v5187
    %6259 = vmatprep.subr.bf16.mxu0 %v5172
    %6260 = vmatpush2.bf16.msra.mxu0 %v5171
    %6261 = vmatprep.mubr.bf16.mxu0 %v4522
    %6262 = vmatmul.mubr.bf16.gmra.mxu0 %v4521
    %v6263 = vpop.f32.mrf.mxu0
    %v6264 = vadd.f32 0.0, %v6263
    %v6265 = vpop.f32.mrf.mxu0
    %v6266 = vadd.f32 0.0, %v6265
    %v6267 = vpop.f32.mrf.mxu0
    %v6268 = vpop.f32.mrf.mxu0
    %6269 = vdwg.mxu0
    %6270 = vmatprep.subr.bf16.mxu0 %v5412
    %6271 = vmatpush1.bf16.msra.mxu0 %v5411
    %6272 = vmatprep.subr.bf16.mxu0 %v5396
    %6273 = vmatpush1.bf16.msra.mxu0 %v5395
    %6274 = vmatprep.subr.bf16.mxu0 %v5380
    %6275 = vmatpush1.bf16.msra.mxu0 %v5379
    %6276 = vmatprep.subr.bf16.mxu0 %v5364
    %6277 = vmatpush1.bf16.msra.mxu0 %v5363
    %6278 = vmatprep.subr.bf16.mxu0 %v5348
    %6279 = vmatpush1.bf16.msra.mxu0 %v5347
    %6280 = vmatprep.subr.bf16.mxu0 %v5332
    %6281 = vmatpush1.bf16.msra.mxu0 %v5331
    %6282 = vmatprep.subr.bf16.mxu0 %v5316
    %6283 = vmatpush1.bf16.msra.mxu0 %v5315
    %6284 = vmatprep.subr.bf16.mxu0 %v5300
    %6285 = vmatpush1.bf16.msra.mxu0 %v5299
    %6286 = vmatprep.subr.bf16.mxu0 %v5540
    %6287 = vmatpush2.bf16.msra.mxu0 %v5539
    %6288 = vmatprep.subr.bf16.mxu0 %v5524
    %6289 = vmatpush2.bf16.msra.mxu0 %v5523
    %6290 = vmatprep.subr.bf16.mxu0 %v5508
    %6291 = vmatpush2.bf16.msra.mxu0 %v5507
    %6292 = vmatprep.subr.bf16.mxu0 %v5492
    %6293 = vmatpush2.bf16.msra.mxu0 %v5491
    %6294 = vmatprep.subr.bf16.mxu0 %v5476
    %6295 = vmatpush2.bf16.msra.mxu0 %v5475
    %6296 = vmatprep.subr.bf16.mxu0 %v5460
    %6297 = vmatpush2.bf16.msra.mxu0 %v5459
    %6298 = vmatprep.subr.bf16.mxu0 %v5444
    %6299 = vmatpush2.bf16.msra.mxu0 %v5443
    %6300 = vmatprep.subr.bf16.mxu0 %v5428
    %6301 = vmatpush2.bf16.msra.mxu0 %v5427
    %6302 = vmatprep.mubr.bf16.mxu0 %v4524
    %6303 = vmatmul.mubr.bf16.gmra.mxu0 %v4523
    %v6304 = vpop.f32.mrf.mxu0
    %v6305 = vadd.f32 %v6264, %v6304
    %v6306 = vpop.f32.mrf.mxu0
    %v6307 = vadd.f32 %v6266, %v6306
    %v6308 = vpop.f32.mrf.mxu0
    %v6309 = vpop.f32.mrf.mxu0
    %6310 = vdwg.mxu0
    %6311 = vmatprep.subr.bf16.mxu0 %v5668
    %6312 = vmatpush1.bf16.msra.mxu0 %v5667
    %6313 = vmatprep.subr.bf16.mxu0 %v5652
    %6314 = vmatpush1.bf16.msra.mxu0 %v5651
    %6315 = vmatprep.subr.bf16.mxu0 %v5636
    %6316 = vmatpush1.bf16.msra.mxu0 %v5635
    %6317 = vmatprep.subr.bf16.mxu0 %v5620
    %6318 = vmatpush1.bf16.msra.mxu0 %v5619
    %6319 = vmatprep.subr.bf16.mxu0 %v5604
    %6320 = vmatpush1.bf16.msra.mxu0 %v5603
    %6321 = vmatprep.subr.bf16.mxu0 %v5588
    %6322 = vmatpush1.bf16.msra.mxu0 %v5587
    %6323 = vmatprep.subr.bf16.mxu0 %v5572
    %6324 = vmatpush1.bf16.msra.mxu0 %v5571
    %6325 = vmatprep.subr.bf16.mxu0 %v5556
    %6326 = vmatpush1.bf16.msra.mxu0 %v5555
    %6327 = vmatprep.subr.bf16.mxu0 %v5796
    %6328 = vmatpush2.bf16.msra.mxu0 %v5795
    %6329 = vmatprep.subr.bf16.mxu0 %v5780
    %6330 = vmatpush2.bf16.msra.mxu0 %v5779
    %6331 = vmatprep.subr.bf16.mxu0 %v5764
    %6332 = vmatpush2.bf16.msra.mxu0 %v5763
    %6333 = vmatprep.subr.bf16.mxu0 %v5748
    %6334 = vmatpush2.bf16.msra.mxu0 %v5747
    %6335 = vmatprep.subr.bf16.mxu0 %v5732
    %6336 = vmatpush2.bf16.msra.mxu0 %v5731
    %6337 = vmatprep.subr.bf16.mxu0 %v5716
    %6338 = vmatpush2.bf16.msra.mxu0 %v5715
    %6339 = vmatprep.subr.bf16.mxu0 %v5700
    %6340 = vmatpush2.bf16.msra.mxu0 %v5699
    %6341 = vmatprep.subr.bf16.mxu0 %v5684
    %6342 = vmatpush2.bf16.msra.mxu0 %v5683
    %6343 = vmatprep.mubr.bf16.mxu0 %v4526
    %6344 = vmatmul.mubr.bf16.gmra.mxu0 %v4525
    %v6345 = vpop.f32.mrf.mxu0
    %v6346 = vadd.f32 %v6305, %v6345
    %v6347 = vpop.f32.mrf.mxu0
    %v6348 = vadd.f32 %v6307, %v6347
    %v6349 = vpop.f32.mrf.mxu0
    %v6350 = vpop.f32.mrf.mxu0
    %6351 = vdwg.mxu0
    %6352 = vmatprep.subr.bf16.mxu0 %v5924
    %6353 = vmatpush1.bf16.msra.mxu0 %v5923
    %6354 = vmatprep.subr.bf16.mxu0 %v5908
    %6355 = vmatpush1.bf16.msra.mxu0 %v5907
    %6356 = vmatprep.subr.bf16.mxu0 %v5892
    %6357 = vmatpush1.bf16.msra.mxu0 %v5891
    %6358 = vmatprep.subr.bf16.mxu0 %v5876
    %6359 = vmatpush1.bf16.msra.mxu0 %v5875
    %6360 = vmatprep.subr.bf16.mxu0 %v5860
    %6361 = vmatpush1.bf16.msra.mxu0 %v5859
    %6362 = vmatprep.subr.bf16.mxu0 %v5844
    %6363 = vmatpush1.bf16.msra.mxu0 %v5843
    %6364 = vmatprep.subr.bf16.mxu0 %v5828
    %6365 = vmatpush1.bf16.msra.mxu0 %v5827
    %6366 = vmatprep.subr.bf16.mxu0 %v5812
    %6367 = vmatpush1.bf16.msra.mxu0 %v5811
    %6368 = vmatprep.subr.bf16.mxu0 %v6052
    %6369 = vmatpush2.bf16.msra.mxu0 %v6051
    %6370 = vmatprep.subr.bf16.mxu0 %v6036
    %6371 = vmatpush2.bf16.msra.mxu0 %v6035
    %6372 = vmatprep.subr.bf16.mxu0 %v6020
    %6373 = vmatpush2.bf16.msra.mxu0 %v6019
    %6374 = vmatprep.subr.bf16.mxu0 %v6004
    %6375 = vmatpush2.bf16.msra.mxu0 %v6003
    %6376 = vmatprep.subr.bf16.mxu0 %v5988
    %6377 = vmatpush2.bf16.msra.mxu0 %v5987
    %6378 = vmatprep.subr.bf16.mxu0 %v5972
    %6379 = vmatpush2.bf16.msra.mxu0 %v5971
    %6380 = vmatprep.subr.bf16.mxu0 %v5956
    %6381 = vmatpush2.bf16.msra.mxu0 %v5955
    %6382 = vmatprep.subr.bf16.mxu0 %v5940
    %6383 = vmatpush2.bf16.msra.mxu0 %v5939
    %6384 = vmatprep.mubr.bf16.mxu0 %v4528
    %6385 = vmatmul.mubr.bf16.gmra.mxu0 %v4527
    %v6386 = vpop.f32.mrf.mxu0
    %v6387 = vadd.f32 %v6346, %v6386
    %v6388 = vpop.f32.mrf.mxu0
    %v6389 = vadd.f32 %v6348, %v6388
    %v6390 = vpop.f32.mrf.mxu0
    %v6391 = vpop.f32.mrf.mxu0
    %6392 = vdwg.mxu0
    %6393 = vmatprep.subr.bf16.mxu0 %v5158
    %6394 = vmatpush1.bf16.msra.mxu0 %v5157
    %6395 = vmatprep.subr.bf16.mxu0 %v5142
    %6396 = vmatpush1.bf16.msra.mxu0 %v5141
    %6397 = vmatprep.subr.bf16.mxu0 %v5126
    %6398 = vmatpush1.bf16.msra.mxu0 %v5125
    %6399 = vmatprep.subr.bf16.mxu0 %v5110
    %6400 = vmatpush1.bf16.msra.mxu0 %v5109
    %6401 = vmatprep.subr.bf16.mxu0 %v5094
    %6402 = vmatpush1.bf16.msra.mxu0 %v5093
    %6403 = vmatprep.subr.bf16.mxu0 %v5078
    %6404 = vmatpush1.bf16.msra.mxu0 %v5077
    %6405 = vmatprep.subr.bf16.mxu0 %v5062
    %6406 = vmatpush1.bf16.msra.mxu0 %v5061
    %6407 = vmatprep.subr.bf16.mxu0 %v5046
    %6408 = vmatpush1.bf16.msra.mxu0 %v5045
    %6409 = vmatprep.subr.bf16.mxu0 %v5286
    %6410 = vmatpush2.bf16.msra.mxu0 %v5285
    %6411 = vmatprep.subr.bf16.mxu0 %v5270
    %6412 = vmatpush2.bf16.msra.mxu0 %v5269
    %6413 = vmatprep.subr.bf16.mxu0 %v5254
    %6414 = vmatpush2.bf16.msra.mxu0 %v5253
    %6415 = vmatprep.subr.bf16.mxu0 %v5238
    %6416 = vmatpush2.bf16.msra.mxu0 %v5237
    %6417 = vmatprep.subr.bf16.mxu0 %v5222
    %6418 = vmatpush2.bf16.msra.mxu0 %v5221
    %6419 = vmatprep.subr.bf16.mxu0 %v5206
    %6420 = vmatpush2.bf16.msra.mxu0 %v5205
    %6421 = vmatprep.subr.bf16.mxu0 %v5190
    %6422 = vmatpush2.bf16.msra.mxu0 %v5189
    %6423 = vmatprep.subr.bf16.mxu0 %v5174
    %6424 = vmatpush2.bf16.msra.mxu0 %v5173
    %6425 = vmatprep.mubr.bf16.mxu0 %v4522
    %6426 = vmatmul.mubr.bf16.gmra.mxu0 %v4521
    %v6427 = vpop.f32.mrf.mxu0
    %v6428 = vadd.f32 0.0, %v6427
    %v6429 = vpop.f32.mrf.mxu0
    %v6430 = vadd.f32 0.0, %v6429
    %v6431 = vpop.f32.mrf.mxu0
    %v6432 = vpop.f32.mrf.mxu0
    %6433 = vdwg.mxu0
    %6434 = vmatprep.subr.bf16.mxu0 %v5414
    %6435 = vmatpush1.bf16.msra.mxu0 %v5413
    %6436 = vmatprep.subr.bf16.mxu0 %v5398
    %6437 = vmatpush1.bf16.msra.mxu0 %v5397
    %6438 = vmatprep.subr.bf16.mxu0 %v5382
    %6439 = vmatpush1.bf16.msra.mxu0 %v5381
    %6440 = vmatprep.subr.bf16.mxu0 %v5366
    %6441 = vmatpush1.bf16.msra.mxu0 %v5365
    %6442 = vmatprep.subr.bf16.mxu0 %v5350
    %6443 = vmatpush1.bf16.msra.mxu0 %v5349
    %6444 = vmatprep.subr.bf16.mxu0 %v5334
    %6445 = vmatpush1.bf16.msra.mxu0 %v5333
    %6446 = vmatprep.subr.bf16.mxu0 %v5318
    %6447 = vmatpush1.bf16.msra.mxu0 %v5317
    %6448 = vmatprep.subr.bf16.mxu0 %v5302
    %6449 = vmatpush1.bf16.msra.mxu0 %v5301
    %6450 = vmatprep.subr.bf16.mxu0 %v5542
    %6451 = vmatpush2.bf16.msra.mxu0 %v5541
    %6452 = vmatprep.subr.bf16.mxu0 %v5526
    %6453 = vmatpush2.bf16.msra.mxu0 %v5525
    %6454 = vmatprep.subr.bf16.mxu0 %v5510
    %6455 = vmatpush2.bf16.msra.mxu0 %v5509
    %6456 = vmatprep.subr.bf16.mxu0 %v5494
    %6457 = vmatpush2.bf16.msra.mxu0 %v5493
    %6458 = vmatprep.subr.bf16.mxu0 %v5478
    %6459 = vmatpush2.bf16.msra.mxu0 %v5477
    %6460 = vmatprep.subr.bf16.mxu0 %v5462
    %6461 = vmatpush2.bf16.msra.mxu0 %v5461
    %6462 = vmatprep.subr.bf16.mxu0 %v5446
    %6463 = vmatpush2.bf16.msra.mxu0 %v5445
    %6464 = vmatprep.subr.bf16.mxu0 %v5430
    %6465 = vmatpush2.bf16.msra.mxu0 %v5429
    %6466 = vmatprep.mubr.bf16.mxu0 %v4524
    %6467 = vmatmul.mubr.bf16.gmra.mxu0 %v4523
    %v6468 = vpop.f32.mrf.mxu0
    %v6469 = vadd.f32 %v6428, %v6468
    %v6470 = vpop.f32.mrf.mxu0
    %v6471 = vadd.f32 %v6430, %v6470
    %v6472 = vpop.f32.mrf.mxu0
    %v6473 = vpop.f32.mrf.mxu0
    %6474 = vdwg.mxu0
    %6475 = vmatprep.subr.bf16.mxu0 %v5670
    %6476 = vmatpush1.bf16.msra.mxu0 %v5669
    %6477 = vmatprep.subr.bf16.mxu0 %v5654
    %6478 = vmatpush1.bf16.msra.mxu0 %v5653
    %6479 = vmatprep.subr.bf16.mxu0 %v5638
    %6480 = vmatpush1.bf16.msra.mxu0 %v5637
    %6481 = vmatprep.subr.bf16.mxu0 %v5622
    %6482 = vmatpush1.bf16.msra.mxu0 %v5621
    %6483 = vmatprep.subr.bf16.mxu0 %v5606
    %6484 = vmatpush1.bf16.msra.mxu0 %v5605
    %6485 = vmatprep.subr.bf16.mxu0 %v5590
    %6486 = vmatpush1.bf16.msra.mxu0 %v5589
    %6487 = vmatprep.subr.bf16.mxu0 %v5574
    %6488 = vmatpush1.bf16.msra.mxu0 %v5573
    %6489 = vmatprep.subr.bf16.mxu0 %v5558
    %6490 = vmatpush1.bf16.msra.mxu0 %v5557
    %6491 = vmatprep.subr.bf16.mxu0 %v5798
    %6492 = vmatpush2.bf16.msra.mxu0 %v5797
    %6493 = vmatprep.subr.bf16.mxu0 %v5782
    %6494 = vmatpush2.bf16.msra.mxu0 %v5781
    %6495 = vmatprep.subr.bf16.mxu0 %v5766
    %6496 = vmatpush2.bf16.msra.mxu0 %v5765
    %6497 = vmatprep.subr.bf16.mxu0 %v5750
    %6498 = vmatpush2.bf16.msra.mxu0 %v5749
    %6499 = vmatprep.subr.bf16.mxu0 %v5734
    %6500 = vmatpush2.bf16.msra.mxu0 %v5733
    %6501 = vmatprep.subr.bf16.mxu0 %v5718
    %6502 = vmatpush2.bf16.msra.mxu0 %v5717
    %6503 = vmatprep.subr.bf16.mxu0 %v5702
    %6504 = vmatpush2.bf16.msra.mxu0 %v5701
    %6505 = vmatprep.subr.bf16.mxu0 %v5686
    %6506 = vmatpush2.bf16.msra.mxu0 %v5685
    %6507 = vmatprep.mubr.bf16.mxu0 %v4526
    %6508 = vmatmul.mubr.bf16.gmra.mxu0 %v4525
    %v6509 = vpop.f32.mrf.mxu0
    %v6510 = vadd.f32 %v6469, %v6509
    %v6511 = vpop.f32.mrf.mxu0
    %v6512 = vadd.f32 %v6471, %v6511
    %v6513 = vpop.f32.mrf.mxu0
    %v6514 = vpop.f32.mrf.mxu0
    %6515 = vdwg.mxu0
    %6516 = vmatprep.subr.bf16.mxu0 %v5926
    %6517 = vmatpush1.bf16.msra.mxu0 %v5925
    %6518 = vmatprep.subr.bf16.mxu0 %v5910
    %6519 = vmatpush1.bf16.msra.mxu0 %v5909
    %6520 = vmatprep.subr.bf16.mxu0 %v5894
    %6521 = vmatpush1.bf16.msra.mxu0 %v5893
    %6522 = vmatprep.subr.bf16.mxu0 %v5878
    %6523 = vmatpush1.bf16.msra.mxu0 %v5877
    %6524 = vmatprep.subr.bf16.mxu0 %v5862
    %6525 = vmatpush1.bf16.msra.mxu0 %v5861
    %6526 = vmatprep.subr.bf16.mxu0 %v5846
    %6527 = vmatpush1.bf16.msra.mxu0 %v5845
    %6528 = vmatprep.subr.bf16.mxu0 %v5830
    %6529 = vmatpush1.bf16.msra.mxu0 %v5829
    %6530 = vmatprep.subr.bf16.mxu0 %v5814
    %6531 = vmatpush1.bf16.msra.mxu0 %v5813
    %6532 = vmatprep.subr.bf16.mxu0 %v6054
    %6533 = vmatpush2.bf16.msra.mxu0 %v6053
    %6534 = vmatprep.subr.bf16.mxu0 %v6038
    %6535 = vmatpush2.bf16.msra.mxu0 %v6037
    %6536 = vmatprep.subr.bf16.mxu0 %v6022
    %6537 = vmatpush2.bf16.msra.mxu0 %v6021
    %6538 = vmatprep.subr.bf16.mxu0 %v6006
    %6539 = vmatpush2.bf16.msra.mxu0 %v6005
    %6540 = vmatprep.subr.bf16.mxu0 %v5990
    %6541 = vmatpush2.bf16.msra.mxu0 %v5989
    %6542 = vmatprep.subr.bf16.mxu0 %v5974
    %6543 = vmatpush2.bf16.msra.mxu0 %v5973
    %6544 = vmatprep.subr.bf16.mxu0 %v5958
    %6545 = vmatpush2.bf16.msra.mxu0 %v5957
    %6546 = vmatprep.subr.bf16.mxu0 %v5942
    %6547 = vmatpush2.bf16.msra.mxu0 %v5941
    %6548 = vmatprep.mubr.bf16.mxu0 %v4528
    %6549 = vmatmul.mubr.bf16.gmra.mxu0 %v4527
    %v6550 = vpop.f32.mrf.mxu0
    %v6551 = vadd.f32 %v6510, %v6550
    %v6552 = vpop.f32.mrf.mxu0
    %v6553 = vadd.f32 %v6512, %v6552
    %v6554 = vpop.f32.mrf.mxu0
    %v6555 = vpop.f32.mrf.mxu0
    %6556 = vdwg.mxu0
    %6557 = vmatprep.subr.bf16.mxu0 %v5160
    %6558 = vmatpush1.bf16.msra.mxu0 %v5159
    %6559 = vmatprep.subr.bf16.mxu0 %v5144
    %6560 = vmatpush1.bf16.msra.mxu0 %v5143
    %6561 = vmatprep.subr.bf16.mxu0 %v5128
    %6562 = vmatpush1.bf16.msra.mxu0 %v5127
    %6563 = vmatprep.subr.bf16.mxu0 %v5112
    %6564 = vmatpush1.bf16.msra.mxu0 %v5111
    %6565 = vmatprep.subr.bf16.mxu0 %v5096
    %6566 = vmatpush1.bf16.msra.mxu0 %v5095
    %6567 = vmatprep.subr.bf16.mxu0 %v5080
    %6568 = vmatpush1.bf16.msra.mxu0 %v5079
    %6569 = vmatprep.subr.bf16.mxu0 %v5064
    %6570 = vmatpush1.bf16.msra.mxu0 %v5063
    %6571 = vmatprep.subr.bf16.mxu0 %v5048
    %6572 = vmatpush1.bf16.msra.mxu0 %v5047
    %6573 = vmatprep.subr.bf16.mxu0 %v5288
    %6574 = vmatpush2.bf16.msra.mxu0 %v5287
    %6575 = vmatprep.subr.bf16.mxu0 %v5272
    %6576 = vmatpush2.bf16.msra.mxu0 %v5271
    %6577 = vmatprep.subr.bf16.mxu0 %v5256
    %6578 = vmatpush2.bf16.msra.mxu0 %v5255
    %6579 = vmatprep.subr.bf16.mxu0 %v5240
    %6580 = vmatpush2.bf16.msra.mxu0 %v5239
    %6581 = vmatprep.subr.bf16.mxu0 %v5224
    %6582 = vmatpush2.bf16.msra.mxu0 %v5223
    %6583 = vmatprep.subr.bf16.mxu0 %v5208
    %6584 = vmatpush2.bf16.msra.mxu0 %v5207
    %6585 = vmatprep.subr.bf16.mxu0 %v5192
    %6586 = vmatpush2.bf16.msra.mxu0 %v5191
    %6587 = vmatprep.subr.bf16.mxu0 %v5176
    %6588 = vmatpush2.bf16.msra.mxu0 %v5175
    %6589 = vmatprep.mubr.bf16.mxu0 %v4522
    %6590 = vmatmul.mubr.bf16.gmra.mxu0 %v4521
    %v6591 = vpop.f32.mrf.mxu0
    %v6592 = vadd.f32 0.0, %v6591
    %v6593 = vpop.f32.mrf.mxu0
    %v6594 = vadd.f32 0.0, %v6593
    %v6595 = vpop.f32.mrf.mxu0
    %v6596 = vpop.f32.mrf.mxu0
    %6597 = vdwg.mxu0
    %6598 = vmatprep.subr.bf16.mxu0 %v5416
    %6599 = vmatpush1.bf16.msra.mxu0 %v5415
    %6600 = vmatprep.subr.bf16.mxu0 %v5400
    %6601 = vmatpush1.bf16.msra.mxu0 %v5399
    %6602 = vmatprep.subr.bf16.mxu0 %v5384
    %6603 = vmatpush1.bf16.msra.mxu0 %v5383
    %6604 = vmatprep.subr.bf16.mxu0 %v5368
    %6605 = vmatpush1.bf16.msra.mxu0 %v5367
    %6606 = vmatprep.subr.bf16.mxu0 %v5352
    %6607 = vmatpush1.bf16.msra.mxu0 %v5351
    %6608 = vmatprep.subr.bf16.mxu0 %v5336
    %6609 = vmatpush1.bf16.msra.mxu0 %v5335
    %6610 = vmatprep.subr.bf16.mxu0 %v5320
    %6611 = vmatpush1.bf16.msra.mxu0 %v5319
    %6612 = vmatprep.subr.bf16.mxu0 %v5304
    %6613 = vmatpush1.bf16.msra.mxu0 %v5303
    %6614 = vmatprep.subr.bf16.mxu0 %v5544
    %6615 = vmatpush2.bf16.msra.mxu0 %v5543
    %6616 = vmatprep.subr.bf16.mxu0 %v5528
    %6617 = vmatpush2.bf16.msra.mxu0 %v5527
    %6618 = vmatprep.subr.bf16.mxu0 %v5512
    %6619 = vmatpush2.bf16.msra.mxu0 %v5511
    %6620 = vmatprep.subr.bf16.mxu0 %v5496
    %6621 = vmatpush2.bf16.msra.mxu0 %v5495
    %6622 = vmatprep.subr.bf16.mxu0 %v5480
    %6623 = vmatpush2.bf16.msra.mxu0 %v5479
    %6624 = vmatprep.subr.bf16.mxu0 %v5464
    %6625 = vmatpush2.bf16.msra.mxu0 %v5463
    %6626 = vmatprep.subr.bf16.mxu0 %v5448
    %6627 = vmatpush2.bf16.msra.mxu0 %v5447
    %6628 = vmatprep.subr.bf16.mxu0 %v5432
    %6629 = vmatpush2.bf16.msra.mxu0 %v5431
    %6630 = vmatprep.mubr.bf16.mxu0 %v4524
    %6631 = vmatmul.mubr.bf16.gmra.mxu0 %v4523
    %v6632 = vpop.f32.mrf.mxu0
    %v6633 = vadd.f32 %v6592, %v6632
    %v6634 = vpop.f32.mrf.mxu0
    %v6635 = vadd.f32 %v6594, %v6634
    %v6636 = vpop.f32.mrf.mxu0
    %v6637 = vpop.f32.mrf.mxu0
    %6638 = vdwg.mxu0
    %6639 = vmatprep.subr.bf16.mxu0 %v5672
    %6640 = vmatpush1.bf16.msra.mxu0 %v5671
    %6641 = vmatprep.subr.bf16.mxu0 %v5656
    %6642 = vmatpush1.bf16.msra.mxu0 %v5655
    %6643 = vmatprep.subr.bf16.mxu0 %v5640
    %6644 = vmatpush1.bf16.msra.mxu0 %v5639
    %6645 = vmatprep.subr.bf16.mxu0 %v5624
    %6646 = vmatpush1.bf16.msra.mxu0 %v5623
    %6647 = vmatprep.subr.bf16.mxu0 %v5608
    %6648 = vmatpush1.bf16.msra.mxu0 %v5607
    %6649 = vmatprep.subr.bf16.mxu0 %v5592
    %6650 = vmatpush1.bf16.msra.mxu0 %v5591
    %6651 = vmatprep.subr.bf16.mxu0 %v5576
    %6652 = vmatpush1.bf16.msra.mxu0 %v5575
    %6653 = vmatprep.subr.bf16.mxu0 %v5560
    %6654 = vmatpush1.bf16.msra.mxu0 %v5559
    %6655 = vmatprep.subr.bf16.mxu0 %v5800
    %6656 = vmatpush2.bf16.msra.mxu0 %v5799
    %6657 = vmatprep.subr.bf16.mxu0 %v5784
    %6658 = vmatpush2.bf16.msra.mxu0 %v5783
    %6659 = vmatprep.subr.bf16.mxu0 %v5768
    %6660 = vmatpush2.bf16.msra.mxu0 %v5767
    %6661 = vmatprep.subr.bf16.mxu0 %v5752
    %6662 = vmatpush2.bf16.msra.mxu0 %v5751
    %6663 = vmatprep.subr.bf16.mxu0 %v5736
    %6664 = vmatpush2.bf16.msra.mxu0 %v5735
    %6665 = vmatprep.subr.bf16.mxu0 %v5720
    %6666 = vmatpush2.bf16.msra.mxu0 %v5719
    %6667 = vmatprep.subr.bf16.mxu0 %v5704
    %6668 = vmatpush2.bf16.msra.mxu0 %v5703
    %6669 = vmatprep.subr.bf16.mxu0 %v5688
    %6670 = vmatpush2.bf16.msra.mxu0 %v5687
    %6671 = vmatprep.mubr.bf16.mxu0 %v4526
    %6672 = vmatmul.mubr.bf16.gmra.mxu0 %v4525
    %v6673 = vpop.f32.mrf.mxu0
    %v6674 = vadd.f32 %v6633, %v6673
    %v6675 = vpop.f32.mrf.mxu0
    %v6676 = vadd.f32 %v6635, %v6675
    %v6677 = vpop.f32.mrf.mxu0
    %v6678 = vpop.f32.mrf.mxu0
    %6679 = vdwg.mxu0
    %6680 = vmatprep.subr.bf16.mxu0 %v5928
    %6681 = vmatpush1.bf16.msra.mxu0 %v5927
    %6682 = vmatprep.subr.bf16.mxu0 %v5912
    %6683 = vmatpush1.bf16.msra.mxu0 %v5911
    %6684 = vmatprep.subr.bf16.mxu0 %v5896
    %6685 = vmatpush1.bf16.msra.mxu0 %v5895
    %6686 = vmatprep.subr.bf16.mxu0 %v5880
    %6687 = vmatpush1.bf16.msra.mxu0 %v5879
    %6688 = vmatprep.subr.bf16.mxu0 %v5864
    %6689 = vmatpush1.bf16.msra.mxu0 %v5863
    %6690 = vmatprep.subr.bf16.mxu0 %v5848
    %6691 = vmatpush1.bf16.msra.mxu0 %v5847
    %6692 = vmatprep.subr.bf16.mxu0 %v5832
    %6693 = vmatpush1.bf16.msra.mxu0 %v5831
    %6694 = vmatprep.subr.bf16.mxu0 %v5816
    %6695 = vmatpush1.bf16.msra.mxu0 %v5815
    %6696 = vmatprep.subr.bf16.mxu0 %v6056
    %6697 = vmatpush2.bf16.msra.mxu0 %v6055
    %6698 = vmatprep.subr.bf16.mxu0 %v6040
    %6699 = vmatpush2.bf16.msra.mxu0 %v6039
    %6700 = vmatprep.subr.bf16.mxu0 %v6024
    %6701 = vmatpush2.bf16.msra.mxu0 %v6023
    %6702 = vmatprep.subr.bf16.mxu0 %v6008
    %6703 = vmatpush2.bf16.msra.mxu0 %v6007
    %6704 = vmatprep.subr.bf16.mxu0 %v5992
    %6705 = vmatpush2.bf16.msra.mxu0 %v5991
    %6706 = vmatprep.subr.bf16.mxu0 %v5976
    %6707 = vmatpush2.bf16.msra.mxu0 %v5975
    %6708 = vmatprep.subr.bf16.mxu0 %v5960
    %6709 = vmatpush2.bf16.msra.mxu0 %v5959
    %6710 = vmatprep.subr.bf16.mxu0 %v5944
    %6711 = vmatpush2.bf16.msra.mxu0 %v5943
    %6712 = vmatprep.mubr.bf16.mxu0 %v4528
    %6713 = vmatmul.mubr.bf16.gmra.mxu0 %v4527
    %v6714 = vpop.f32.mrf.mxu0
    %v6715 = vadd.f32 %v6674, %v6714
    %v6716 = vpop.f32.mrf.mxu0
    %v6717 = vadd.f32 %v6676, %v6716
    %v6718 = vpop.f32.mrf.mxu0
    %v6719 = vpop.f32.mrf.mxu0
    %6720 = vdwg.mxu0
    %6721 = vmatprep.subr.bf16.mxu0 %v5162
    %6722 = vmatpush1.bf16.msra.mxu0 %v5161
    %6723 = vmatprep.subr.bf16.mxu0 %v5146
    %6724 = vmatpush1.bf16.msra.mxu0 %v5145
    %6725 = vmatprep.subr.bf16.mxu0 %v5130
    %6726 = vmatpush1.bf16.msra.mxu0 %v5129
    %6727 = vmatprep.subr.bf16.mxu0 %v5114
    %6728 = vmatpush1.bf16.msra.mxu0 %v5113
    %6729 = vmatprep.subr.bf16.mxu0 %v5098
    %6730 = vmatpush1.bf16.msra.mxu0 %v5097
    %6731 = vmatprep.subr.bf16.mxu0 %v5082
    %6732 = vmatpush1.bf16.msra.mxu0 %v5081
    %6733 = vmatprep.subr.bf16.mxu0 %v5066
    %6734 = vmatpush1.bf16.msra.mxu0 %v5065
    %6735 = vmatprep.subr.bf16.mxu0 %v5050
    %6736 = vmatpush1.bf16.msra.mxu0 %v5049
    %6737 = vmatprep.subr.bf16.mxu0 %v5290
    %6738 = vmatpush2.bf16.msra.mxu0 %v5289
    %6739 = vmatprep.subr.bf16.mxu0 %v5274
    %6740 = vmatpush2.bf16.msra.mxu0 %v5273
    %6741 = vmatprep.subr.bf16.mxu0 %v5258
    %6742 = vmatpush2.bf16.msra.mxu0 %v5257
    %6743 = vmatprep.subr.bf16.mxu0 %v5242
    %6744 = vmatpush2.bf16.msra.mxu0 %v5241
    %6745 = vmatprep.subr.bf16.mxu0 %v5226
    %6746 = vmatpush2.bf16.msra.mxu0 %v5225
    %6747 = vmatprep.subr.bf16.mxu0 %v5210
    %6748 = vmatpush2.bf16.msra.mxu0 %v5209
    %6749 = vmatprep.subr.bf16.mxu0 %v5194
    %6750 = vmatpush2.bf16.msra.mxu0 %v5193
    %6751 = vmatprep.subr.bf16.mxu0 %v5178
    %6752 = vmatpush2.bf16.msra.mxu0 %v5177
    %6753 = vmatprep.mubr.bf16.mxu0 %v4522
    %6754 = vmatmul.mubr.bf16.gmra.mxu0 %v4521
    %v6755 = vpop.f32.mrf.mxu0
    %v6756 = vadd.f32 0.0, %v6755
    %v6757 = vpop.f32.mrf.mxu0
    %v6758 = vadd.f32 0.0, %v6757
    %v6759 = vpop.f32.mrf.mxu0
    %v6760 = vpop.f32.mrf.mxu0
    %6761 = vdwg.mxu0
    %6762 = vmatprep.subr.bf16.mxu0 %v5418
    %6763 = vmatpush1.bf16.msra.mxu0 %v5417
    %6764 = vmatprep.subr.bf16.mxu0 %v5402
    %6765 = vmatpush1.bf16.msra.mxu0 %v5401
    %6766 = vmatprep.subr.bf16.mxu0 %v5386
    %6767 = vmatpush1.bf16.msra.mxu0 %v5385
    %6768 = vmatprep.subr.bf16.mxu0 %v5370
    %6769 = vmatpush1.bf16.msra.mxu0 %v5369
    %6770 = vmatprep.subr.bf16.mxu0 %v5354
    %6771 = vmatpush1.bf16.msra.mxu0 %v5353
    %6772 = vmatprep.subr.bf16.mxu0 %v5338
    %6773 = vmatpush1.bf16.msra.mxu0 %v5337
    %6774 = vmatprep.subr.bf16.mxu0 %v5322
    %6775 = vmatpush1.bf16.msra.mxu0 %v5321
    %6776 = vmatprep.subr.bf16.mxu0 %v5306
    %6777 = vmatpush1.bf16.msra.mxu0 %v5305
    %6778 = vmatprep.subr.bf16.mxu0 %v5546
    %6779 = vmatpush2.bf16.msra.mxu0 %v5545
    %6780 = vmatprep.subr.bf16.mxu0 %v5530
    %6781 = vmatpush2.bf16.msra.mxu0 %v5529
    %6782 = vmatprep.subr.bf16.mxu0 %v5514
    %6783 = vmatpush2.bf16.msra.mxu0 %v5513
    %6784 = vmatprep.subr.bf16.mxu0 %v5498
    %6785 = vmatpush2.bf16.msra.mxu0 %v5497
    %6786 = vmatprep.subr.bf16.mxu0 %v5482
    %6787 = vmatpush2.bf16.msra.mxu0 %v5481
    %6788 = vmatprep.subr.bf16.mxu0 %v5466
    %6789 = vmatpush2.bf16.msra.mxu0 %v5465
    %6790 = vmatprep.subr.bf16.mxu0 %v5450
    %6791 = vmatpush2.bf16.msra.mxu0 %v5449
    %6792 = vmatprep.subr.bf16.mxu0 %v5434
    %6793 = vmatpush2.bf16.msra.mxu0 %v5433
    %6794 = vmatprep.mubr.bf16.mxu0 %v4524
    %6795 = vmatmul.mubr.bf16.gmra.mxu0 %v4523
    %v6796 = vpop.f32.mrf.mxu0
    %v6797 = vadd.f32 %v6756, %v6796
    %v6798 = vpop.f32.mrf.mxu0
    %v6799 = vadd.f32 %v6758, %v6798
    %v6800 = vpop.f32.mrf.mxu0
    %v6801 = vpop.f32.mrf.mxu0
    %6802 = vdwg.mxu0
    %6803 = vmatprep.subr.bf16.mxu0 %v5674
    %6804 = vmatpush1.bf16.msra.mxu0 %v5673
    %6805 = vmatprep.subr.bf16.mxu0 %v5658
    %6806 = vmatpush1.bf16.msra.mxu0 %v5657
    %6807 = vmatprep.subr.bf16.mxu0 %v5642
    %6808 = vmatpush1.bf16.msra.mxu0 %v5641
    %6809 = vmatprep.subr.bf16.mxu0 %v5626
    %6810 = vmatpush1.bf16.msra.mxu0 %v5625
    %6811 = vmatprep.subr.bf16.mxu0 %v5610
    %6812 = vmatpush1.bf16.msra.mxu0 %v5609
    %6813 = vmatprep.subr.bf16.mxu0 %v5594
    %6814 = vmatpush1.bf16.msra.mxu0 %v5593
    %6815 = vmatprep.subr.bf16.mxu0 %v5578
    %6816 = vmatpush1.bf16.msra.mxu0 %v5577
    %6817 = vmatprep.subr.bf16.mxu0 %v5562
    %6818 = vmatpush1.bf16.msra.mxu0 %v5561
    %6819 = vmatprep.subr.bf16.mxu0 %v5802
    %6820 = vmatpush2.bf16.msra.mxu0 %v5801
    %6821 = vmatprep.subr.bf16.mxu0 %v5786
    %6822 = vmatpush2.bf16.msra.mxu0 %v5785
    %6823 = vmatprep.subr.bf16.mxu0 %v5770
    %6824 = vmatpush2.bf16.msra.mxu0 %v5769
    %6825 = vmatprep.subr.bf16.mxu0 %v5754
    %6826 = vmatpush2.bf16.msra.mxu0 %v5753
    %6827 = vmatprep.subr.bf16.mxu0 %v5738
    %6828 = vmatpush2.bf16.msra.mxu0 %v5737
    %6829 = vmatprep.subr.bf16.mxu0 %v5722
    %6830 = vmatpush2.bf16.msra.mxu0 %v5721
    %6831 = vmatprep.subr.bf16.mxu0 %v5706
    %6832 = vmatpush2.bf16.msra.mxu0 %v5705
    %6833 = vmatprep.subr.bf16.mxu0 %v5690
    %6834 = vmatpush2.bf16.msra.mxu0 %v5689
    %6835 = vmatprep.mubr.bf16.mxu0 %v4526
    %6836 = vmatmul.mubr.bf16.gmra.mxu0 %v4525
    %v6837 = vpop.f32.mrf.mxu0
    %v6838 = vadd.f32 %v6797, %v6837
    %v6839 = vpop.f32.mrf.mxu0
    %v6840 = vadd.f32 %v6799, %v6839
    %v6841 = vpop.f32.mrf.mxu0
    %v6842 = vpop.f32.mrf.mxu0
    %6843 = vdwg.mxu0
    %6844 = vmatprep.subr.bf16.mxu0 %v5930
    %6845 = vmatpush1.bf16.msra.mxu0 %v5929
    %6846 = vmatprep.subr.bf16.mxu0 %v5914
    %6847 = vmatpush1.bf16.msra.mxu0 %v5913
    %6848 = vmatprep.subr.bf16.mxu0 %v5898
    %6849 = vmatpush1.bf16.msra.mxu0 %v5897
    %6850 = vmatprep.subr.bf16.mxu0 %v5882
    %6851 = vmatpush1.bf16.msra.mxu0 %v5881
    %6852 = vmatprep.subr.bf16.mxu0 %v5866
    %6853 = vmatpush1.bf16.msra.mxu0 %v5865
    %6854 = vmatprep.subr.bf16.mxu0 %v5850
    %6855 = vmatpush1.bf16.msra.mxu0 %v5849
    %6856 = vmatprep.subr.bf16.mxu0 %v5834
    %6857 = vmatpush1.bf16.msra.mxu0 %v5833
    %6858 = vmatprep.subr.bf16.mxu0 %v5818
    %6859 = vmatpush1.bf16.msra.mxu0 %v5817
    %6860 = vmatprep.subr.bf16.mxu0 %v6058
    %6861 = vmatpush2.bf16.msra.mxu0 %v6057
    %6862 = vmatprep.subr.bf16.mxu0 %v6042
    %6863 = vmatpush2.bf16.msra.mxu0 %v6041
    %6864 = vmatprep.subr.bf16.mxu0 %v6026
    %6865 = vmatpush2.bf16.msra.mxu0 %v6025
    %6866 = vmatprep.subr.bf16.mxu0 %v6010
    %6867 = vmatpush2.bf16.msra.mxu0 %v6009
    %6868 = vmatprep.subr.bf16.mxu0 %v5994
    %6869 = vmatpush2.bf16.msra.mxu0 %v5993
    %6870 = vmatprep.subr.bf16.mxu0 %v5978
    %6871 = vmatpush2.bf16.msra.mxu0 %v5977
    %6872 = vmatprep.subr.bf16.mxu0 %v5962
    %6873 = vmatpush2.bf16.msra.mxu0 %v5961
    %6874 = vmatprep.subr.bf16.mxu0 %v5946
    %6875 = vmatpush2.bf16.msra.mxu0 %v5945
    %6876 = vmatprep.mubr.bf16.mxu0 %v4528
    %6877 = vmatmul.mubr.bf16.gmra.mxu0 %v4527
    %v6878 = vpop.f32.mrf.mxu0
    %v6879 = vadd.f32 %v6838, %v6878
    %v6880 = vpop.f32.mrf.mxu0
    %v6881 = vadd.f32 %v6840, %v6880
    %v6882 = vpop.f32.mrf.mxu0
    %v6883 = vpop.f32.mrf.mxu0
    %6884 = vdwg.mxu0
    %6885 = vmatprep.subr.bf16.mxu0 %v5164
    %6886 = vmatpush1.bf16.msra.mxu0 %v5163
    %6887 = vmatprep.subr.bf16.mxu0 %v5148
    %6888 = vmatpush1.bf16.msra.mxu0 %v5147
    %6889 = vmatprep.subr.bf16.mxu0 %v5132
    %6890 = vmatpush1.bf16.msra.mxu0 %v5131
    %6891 = vmatprep.subr.bf16.mxu0 %v5116
    %6892 = vmatpush1.bf16.msra.mxu0 %v5115
    %6893 = vmatprep.subr.bf16.mxu0 %v5100
    %6894 = vmatpush1.bf16.msra.mxu0 %v5099
    %6895 = vmatprep.subr.bf16.mxu0 %v5084
    %6896 = vmatpush1.bf16.msra.mxu0 %v5083
    %6897 = vmatprep.subr.bf16.mxu0 %v5068
    %6898 = vmatpush1.bf16.msra.mxu0 %v5067
    %6899 = vmatprep.subr.bf16.mxu0 %v5052
    %6900 = vmatpush1.bf16.msra.mxu0 %v5051
    %6901 = vmatprep.subr.bf16.mxu0 %v5292
    %6902 = vmatpush2.bf16.msra.mxu0 %v5291
    %6903 = vmatprep.subr.bf16.mxu0 %v5276
    %6904 = vmatpush2.bf16.msra.mxu0 %v5275
    %6905 = vmatprep.subr.bf16.mxu0 %v5260
    %6906 = vmatpush2.bf16.msra.mxu0 %v5259
    %6907 = vmatprep.subr.bf16.mxu0 %v5244
    %6908 = vmatpush2.bf16.msra.mxu0 %v5243
    %6909 = vmatprep.subr.bf16.mxu0 %v5228
    %6910 = vmatpush2.bf16.msra.mxu0 %v5227
    %6911 = vmatprep.subr.bf16.mxu0 %v5212
    %6912 = vmatpush2.bf16.msra.mxu0 %v5211
    %6913 = vmatprep.subr.bf16.mxu0 %v5196
    %6914 = vmatpush2.bf16.msra.mxu0 %v5195
    %6915 = vmatprep.subr.bf16.mxu0 %v5180
    %6916 = vmatpush2.bf16.msra.mxu0 %v5179
    %6917 = vmatprep.mubr.bf16.mxu0 %v4522
    %6918 = vmatmul.mubr.bf16.gmra.mxu0 %v4521
    %v6919 = vpop.f32.mrf.mxu0
    %v6920 = vadd.f32 0.0, %v6919
    %v6921 = vpop.f32.mrf.mxu0
    %v6922 = vadd.f32 0.0, %v6921
    %v6923 = vpop.f32.mrf.mxu0
    %v6924 = vpop.f32.mrf.mxu0
    %6925 = vdwg.mxu0
    %6926 = vmatprep.subr.bf16.mxu0 %v5420
    %6927 = vmatpush1.bf16.msra.mxu0 %v5419
    %6928 = vmatprep.subr.bf16.mxu0 %v5404
    %6929 = vmatpush1.bf16.msra.mxu0 %v5403
    %6930 = vmatprep.subr.bf16.mxu0 %v5388
    %6931 = vmatpush1.bf16.msra.mxu0 %v5387
    %6932 = vmatprep.subr.bf16.mxu0 %v5372
    %6933 = vmatpush1.bf16.msra.mxu0 %v5371
    %6934 = vmatprep.subr.bf16.mxu0 %v5356
    %6935 = vmatpush1.bf16.msra.mxu0 %v5355
    %6936 = vmatprep.subr.bf16.mxu0 %v5340
    %6937 = vmatpush1.bf16.msra.mxu0 %v5339
    %6938 = vmatprep.subr.bf16.mxu0 %v5324
    %6939 = vmatpush1.bf16.msra.mxu0 %v5323
    %6940 = vmatprep.subr.bf16.mxu0 %v5308
    %6941 = vmatpush1.bf16.msra.mxu0 %v5307
    %6942 = vmatprep.subr.bf16.mxu0 %v5548
    %6943 = vmatpush2.bf16.msra.mxu0 %v5547
    %6944 = vmatprep.subr.bf16.mxu0 %v5532
    %6945 = vmatpush2.bf16.msra.mxu0 %v5531
    %6946 = vmatprep.subr.bf16.mxu0 %v5516
    %6947 = vmatpush2.bf16.msra.mxu0 %v5515
    %6948 = vmatprep.subr.bf16.mxu0 %v5500
    %6949 = vmatpush2.bf16.msra.mxu0 %v5499
    %6950 = vmatprep.subr.bf16.mxu0 %v5484
    %6951 = vmatpush2.bf16.msra.mxu0 %v5483
    %6952 = vmatprep.subr.bf16.mxu0 %v5468
    %6953 = vmatpush2.bf16.msra.mxu0 %v5467
    %6954 = vmatprep.subr.bf16.mxu0 %v5452
    %6955 = vmatpush2.bf16.msra.mxu0 %v5451
    %6956 = vmatprep.subr.bf16.mxu0 %v5436
    %6957 = vmatpush2.bf16.msra.mxu0 %v5435
    %6958 = vmatprep.mubr.bf16.mxu0 %v4524
    %6959 = vmatmul.mubr.bf16.gmra.mxu0 %v4523
    %v6960 = vpop.f32.mrf.mxu0
    %v6961 = vadd.f32 %v6920, %v6960
    %v6962 = vpop.f32.mrf.mxu0
    %v6963 = vadd.f32 %v6922, %v6962
    %v6964 = vpop.f32.mrf.mxu0
    %v6965 = vpop.f32.mrf.mxu0
    %6966 = vdwg.mxu0
    %6967 = vmatprep.subr.bf16.mxu0 %v5676
    %6968 = vmatpush1.bf16.msra.mxu0 %v5675
    %6969 = vmatprep.subr.bf16.mxu0 %v5660
    %6970 = vmatpush1.bf16.msra.mxu0 %v5659
    %6971 = vmatprep.subr.bf16.mxu0 %v5644
    %6972 = vmatpush1.bf16.msra.mxu0 %v5643
    %6973 = vmatprep.subr.bf16.mxu0 %v5628
    %6974 = vmatpush1.bf16.msra.mxu0 %v5627
    %6975 = vmatprep.subr.bf16.mxu0 %v5612
    %6976 = vmatpush1.bf16.msra.mxu0 %v5611
    %6977 = vmatprep.subr.bf16.mxu0 %v5596
    %6978 = vmatpush1.bf16.msra.mxu0 %v5595
    %6979 = vmatprep.subr.bf16.mxu0 %v5580
    %6980 = vmatpush1.bf16.msra.mxu0 %v5579
    %6981 = vmatprep.subr.bf16.mxu0 %v5564
    %6982 = vmatpush1.bf16.msra.mxu0 %v5563
    %6983 = vmatprep.subr.bf16.mxu0 %v5804
    %6984 = vmatpush2.bf16.msra.mxu0 %v5803
    %6985 = vmatprep.subr.bf16.mxu0 %v5788
    %6986 = vmatpush2.bf16.msra.mxu0 %v5787
    %6987 = vmatprep.subr.bf16.mxu0 %v5772
    %6988 = vmatpush2.bf16.msra.mxu0 %v5771
    %6989 = vmatprep.subr.bf16.mxu0 %v5756
    %6990 = vmatpush2.bf16.msra.mxu0 %v5755
    %6991 = vmatprep.subr.bf16.mxu0 %v5740
    %6992 = vmatpush2.bf16.msra.mxu0 %v5739
    %6993 = vmatprep.subr.bf16.mxu0 %v5724
    %6994 = vmatpush2.bf16.msra.mxu0 %v5723
    %6995 = vmatprep.subr.bf16.mxu0 %v5708
    %6996 = vmatpush2.bf16.msra.mxu0 %v5707
    %6997 = vmatprep.subr.bf16.mxu0 %v5692
    %6998 = vmatpush2.bf16.msra.mxu0 %v5691
    %6999 = vmatprep.mubr.bf16.mxu0 %v4526
    %7000 = vmatmul.mubr.bf16.gmra.mxu0 %v4525
    %v7001 = vpop.f32.mrf.mxu0
    %v7002 = vadd.f32 %v6961, %v7001
    %v7003 = vpop.f32.mrf.mxu0
    %v7004 = vadd.f32 %v6963, %v7003
    %v7005 = vpop.f32.mrf.mxu0
    %v7006 = vpop.f32.mrf.mxu0
    %7007 = vdwg.mxu0
    %7008 = vmatprep.subr.bf16.mxu0 %v5932
    %7009 = vmatpush1.bf16.msra.mxu0 %v5931
    %7010 = vmatprep.subr.bf16.mxu0 %v5916
    %7011 = vmatpush1.bf16.msra.mxu0 %v5915
    %7012 = vmatprep.subr.bf16.mxu0 %v5900
    %7013 = vmatpush1.bf16.msra.mxu0 %v5899
    %7014 = vmatprep.subr.bf16.mxu0 %v5884
    %7015 = vmatpush1.bf16.msra.mxu0 %v5883
    %7016 = vmatprep.subr.bf16.mxu0 %v5868
    %7017 = vmatpush1.bf16.msra.mxu0 %v5867
    %7018 = vmatprep.subr.bf16.mxu0 %v5852
    %7019 = vmatpush1.bf16.msra.mxu0 %v5851
    %7020 = vmatprep.subr.bf16.mxu0 %v5836
    %7021 = vmatpush1.bf16.msra.mxu0 %v5835
    %7022 = vmatprep.subr.bf16.mxu0 %v5820
    %7023 = vmatpush1.bf16.msra.mxu0 %v5819
    %7024 = vmatprep.subr.bf16.mxu0 %v6060
    %7025 = vmatpush2.bf16.msra.mxu0 %v6059
    %7026 = vmatprep.subr.bf16.mxu0 %v6044
    %7027 = vmatpush2.bf16.msra.mxu0 %v6043
    %7028 = vmatprep.subr.bf16.mxu0 %v6028
    %7029 = vmatpush2.bf16.msra.mxu0 %v6027
    %7030 = vmatprep.subr.bf16.mxu0 %v6012
    %7031 = vmatpush2.bf16.msra.mxu0 %v6011
    %7032 = vmatprep.subr.bf16.mxu0 %v5996
    %7033 = vmatpush2.bf16.msra.mxu0 %v5995
    %7034 = vmatprep.subr.bf16.mxu0 %v5980
    %7035 = vmatpush2.bf16.msra.mxu0 %v5979
    %7036 = vmatprep.subr.bf16.mxu0 %v5964
    %7037 = vmatpush2.bf16.msra.mxu0 %v5963
    %7038 = vmatprep.subr.bf16.mxu0 %v5948
    %7039 = vmatpush2.bf16.msra.mxu0 %v5947
    %7040 = vmatprep.mubr.bf16.mxu0 %v4528
    %7041 = vmatmul.mubr.bf16.gmra.mxu0 %v4527
    %v7042 = vpop.f32.mrf.mxu0
    %v7043 = vadd.f32 %v7002, %v7042
    %v7044 = vpop.f32.mrf.mxu0
    %v7045 = vadd.f32 %v7004, %v7044
    %v7046 = vpop.f32.mrf.mxu0
    %v7047 = vpop.f32.mrf.mxu0
    %7048 = vdwg.mxu0
    %7049 = vmatprep.subr.bf16.mxu0 %v5166
    %7050 = vmatpush1.bf16.msra.mxu0 %v5165
    %7051 = vmatprep.subr.bf16.mxu0 %v5150
    %7052 = vmatpush1.bf16.msra.mxu0 %v5149
    %7053 = vmatprep.subr.bf16.mxu0 %v5134
    %7054 = vmatpush1.bf16.msra.mxu0 %v5133
    %7055 = vmatprep.subr.bf16.mxu0 %v5118
    %7056 = vmatpush1.bf16.msra.mxu0 %v5117
    %7057 = vmatprep.subr.bf16.mxu0 %v5102
    %7058 = vmatpush1.bf16.msra.mxu0 %v5101
    %7059 = vmatprep.subr.bf16.mxu0 %v5086
    %7060 = vmatpush1.bf16.msra.mxu0 %v5085
    %7061 = vmatprep.subr.bf16.mxu0 %v5070
    %7062 = vmatpush1.bf16.msra.mxu0 %v5069
    %7063 = vmatprep.subr.bf16.mxu0 %v5054
    %7064 = vmatpush1.bf16.msra.mxu0 %v5053
    %7065 = vmatprep.subr.bf16.mxu0 %v5294
    %7066 = vmatpush2.bf16.msra.mxu0 %v5293
    %7067 = vmatprep.subr.bf16.mxu0 %v5278
    %7068 = vmatpush2.bf16.msra.mxu0 %v5277
    %7069 = vmatprep.subr.bf16.mxu0 %v5262
    %7070 = vmatpush2.bf16.msra.mxu0 %v5261
    %7071 = vmatprep.subr.bf16.mxu0 %v5246
    %7072 = vmatpush2.bf16.msra.mxu0 %v5245
    %7073 = vmatprep.subr.bf16.mxu0 %v5230
    %7074 = vmatpush2.bf16.msra.mxu0 %v5229
    %7075 = vmatprep.subr.bf16.mxu0 %v5214
    %7076 = vmatpush2.bf16.msra.mxu0 %v5213
    %7077 = vmatprep.subr.bf16.mxu0 %v5198
    %7078 = vmatpush2.bf16.msra.mxu0 %v5197
    %7079 = vmatprep.subr.bf16.mxu0 %v5182
    %7080 = vmatpush2.bf16.msra.mxu0 %v5181
    %7081 = vmatprep.mubr.bf16.mxu0 %v4522
    %7082 = vmatmul.mubr.bf16.gmra.mxu0 %v4521
    %v7083 = vpop.f32.mrf.mxu0
    %v7084 = vadd.f32 0.0, %v7083
    %v7085 = vpop.f32.mrf.mxu0
    %v7086 = vadd.f32 0.0, %v7085
    %v7087 = vpop.f32.mrf.mxu0
    %v7088 = vpop.f32.mrf.mxu0
    %7089 = vdwg.mxu0
    %7090 = vmatprep.subr.bf16.mxu0 %v5422
    %7091 = vmatpush1.bf16.msra.mxu0 %v5421
    %7092 = vmatprep.subr.bf16.mxu0 %v5406
    %7093 = vmatpush1.bf16.msra.mxu0 %v5405
    %7094 = vmatprep.subr.bf16.mxu0 %v5390
    %7095 = vmatpush1.bf16.msra.mxu0 %v5389
    %7096 = vmatprep.subr.bf16.mxu0 %v5374
    %7097 = vmatpush1.bf16.msra.mxu0 %v5373
    %7098 = vmatprep.subr.bf16.mxu0 %v5358
    %7099 = vmatpush1.bf16.msra.mxu0 %v5357
    %7100 = vmatprep.subr.bf16.mxu0 %v5342
    %7101 = vmatpush1.bf16.msra.mxu0 %v5341
    %7102 = vmatprep.subr.bf16.mxu0 %v5326
    %7103 = vmatpush1.bf16.msra.mxu0 %v5325
    %7104 = vmatprep.subr.bf16.mxu0 %v5310
    %7105 = vmatpush1.bf16.msra.mxu0 %v5309
    %7106 = vmatprep.subr.bf16.mxu0 %v5550
    %7107 = vmatpush2.bf16.msra.mxu0 %v5549
    %7108 = vmatprep.subr.bf16.mxu0 %v5534
    %7109 = vmatpush2.bf16.msra.mxu0 %v5533
    %7110 = vmatprep.subr.bf16.mxu0 %v5518
    %7111 = vmatpush2.bf16.msra.mxu0 %v5517
    %7112 = vmatprep.subr.bf16.mxu0 %v5502
    %7113 = vmatpush2.bf16.msra.mxu0 %v5501
    %7114 = vmatprep.subr.bf16.mxu0 %v5486
    %7115 = vmatpush2.bf16.msra.mxu0 %v5485
    %7116 = vmatprep.subr.bf16.mxu0 %v5470
    %7117 = vmatpush2.bf16.msra.mxu0 %v5469
    %7118 = vmatprep.subr.bf16.mxu0 %v5454
    %7119 = vmatpush2.bf16.msra.mxu0 %v5453
    %7120 = vmatprep.subr.bf16.mxu0 %v5438
    %7121 = vmatpush2.bf16.msra.mxu0 %v5437
    %7122 = vmatprep.mubr.bf16.mxu0 %v4524
    %7123 = vmatmul.mubr.bf16.gmra.mxu0 %v4523
    %v7124 = vpop.f32.mrf.mxu0
    %v7125 = vadd.f32 %v7084, %v7124
    %v7126 = vpop.f32.mrf.mxu0
    %v7127 = vadd.f32 %v7086, %v7126
    %v7128 = vpop.f32.mrf.mxu0
    %v7129 = vpop.f32.mrf.mxu0
    %7130 = vdwg.mxu0
    %7131 = vmatprep.subr.bf16.mxu0 %v5678
    %7132 = vmatpush1.bf16.msra.mxu0 %v5677
    %7133 = vmatprep.subr.bf16.mxu0 %v5662
    %7134 = vmatpush1.bf16.msra.mxu0 %v5661
    %7135 = vmatprep.subr.bf16.mxu0 %v5646
    %7136 = vmatpush1.bf16.msra.mxu0 %v5645
    %7137 = vmatprep.subr.bf16.mxu0 %v5630
    %7138 = vmatpush1.bf16.msra.mxu0 %v5629
    %7139 = vmatprep.subr.bf16.mxu0 %v5614
    %7140 = vmatpush1.bf16.msra.mxu0 %v5613
    %7141 = vmatprep.subr.bf16.mxu0 %v5598
    %7142 = vmatpush1.bf16.msra.mxu0 %v5597
    %7143 = vmatprep.subr.bf16.mxu0 %v5582
    %7144 = vmatpush1.bf16.msra.mxu0 %v5581
    %7145 = vmatprep.subr.bf16.mxu0 %v5566
    %7146 = vmatpush1.bf16.msra.mxu0 %v5565
    %7147 = vmatprep.subr.bf16.mxu0 %v5806
    %7148 = vmatpush2.bf16.msra.mxu0 %v5805
    %7149 = vmatprep.subr.bf16.mxu0 %v5790
    %7150 = vmatpush2.bf16.msra.mxu0 %v5789
    %7151 = vmatprep.subr.bf16.mxu0 %v5774
    %7152 = vmatpush2.bf16.msra.mxu0 %v5773
    %7153 = vmatprep.subr.bf16.mxu0 %v5758
    %7154 = vmatpush2.bf16.msra.mxu0 %v5757
    %7155 = vmatprep.subr.bf16.mxu0 %v5742
    %7156 = vmatpush2.bf16.msra.mxu0 %v5741
    %7157 = vmatprep.subr.bf16.mxu0 %v5726
    %7158 = vmatpush2.bf16.msra.mxu0 %v5725
    %7159 = vmatprep.subr.bf16.mxu0 %v5710
    %7160 = vmatpush2.bf16.msra.mxu0 %v5709
    %7161 = vmatprep.subr.bf16.mxu0 %v5694
    %7162 = vmatpush2.bf16.msra.mxu0 %v5693
    %7163 = vmatprep.mubr.bf16.mxu0 %v4526
    %7164 = vmatmul.mubr.bf16.gmra.mxu0 %v4525
    %v7165 = vpop.f32.mrf.mxu0
    %v7166 = vadd.f32 %v7125, %v7165
    %v7167 = vpop.f32.mrf.mxu0
    %v7168 = vadd.f32 %v7127, %v7167
    %v7169 = vpop.f32.mrf.mxu0
    %v7170 = vpop.f32.mrf.mxu0
    %7171 = vdwg.mxu0
    %7172 = vmatprep.subr.bf16.mxu0 %v5934
    %7173 = vmatpush1.bf16.msra.mxu0 %v5933
    %7174 = vmatprep.subr.bf16.mxu0 %v5918
    %7175 = vmatpush1.bf16.msra.mxu0 %v5917
    %7176 = vmatprep.subr.bf16.mxu0 %v5902
    %7177 = vmatpush1.bf16.msra.mxu0 %v5901
    %7178 = vmatprep.subr.bf16.mxu0 %v5886
    %7179 = vmatpush1.bf16.msra.mxu0 %v5885
    %7180 = vmatprep.subr.bf16.mxu0 %v5870
    %7181 = vmatpush1.bf16.msra.mxu0 %v5869
    %7182 = vmatprep.subr.bf16.mxu0 %v5854
    %7183 = vmatpush1.bf16.msra.mxu0 %v5853
    %7184 = vmatprep.subr.bf16.mxu0 %v5838
    %7185 = vmatpush1.bf16.msra.mxu0 %v5837
    %7186 = vmatprep.subr.bf16.mxu0 %v5822
    %7187 = vmatpush1.bf16.msra.mxu0 %v5821
    %7188 = vmatprep.subr.bf16.mxu0 %v6062
    %7189 = vmatpush2.bf16.msra.mxu0 %v6061
    %7190 = vmatprep.subr.bf16.mxu0 %v6046
    %7191 = vmatpush2.bf16.msra.mxu0 %v6045
    %7192 = vmatprep.subr.bf16.mxu0 %v6030
    %7193 = vmatpush2.bf16.msra.mxu0 %v6029
    %7194 = vmatprep.subr.bf16.mxu0 %v6014
    %7195 = vmatpush2.bf16.msra.mxu0 %v6013
    %7196 = vmatprep.subr.bf16.mxu0 %v5998
    %7197 = vmatpush2.bf16.msra.mxu0 %v5997
    %7198 = vmatprep.subr.bf16.mxu0 %v5982
    %7199 = vmatpush2.bf16.msra.mxu0 %v5981
    %7200 = vmatprep.subr.bf16.mxu0 %v5966
    %7201 = vmatpush2.bf16.msra.mxu0 %v5965
    %7202 = vmatprep.subr.bf16.mxu0 %v5950
    %7203 = vmatpush2.bf16.msra.mxu0 %v5949
    %7204 = vmatprep.mubr.bf16.mxu0 %v4528
    %7205 = vmatmul.mubr.bf16.gmra.mxu0 %v4527
    %v7206 = vpop.f32.mrf.mxu0
    %v7207 = vadd.f32 %v7166, %v7206
    %v7208 = vpop.f32.mrf.mxu0
    %v7209 = vadd.f32 %v7168, %v7208
    %v7210 = vpop.f32.mrf.mxu0
    %v7211 = vpop.f32.mrf.mxu0
    %7212 = vdwg.mxu0
    %7213 = vmatprep.subr.bf16.mxu0 %v5168
    %7214 = vmatpush1.bf16.msra.mxu0 %v5167
    %7215 = vmatprep.subr.bf16.mxu0 %v5152
    %7216 = vmatpush1.bf16.msra.mxu0 %v5151
    %7217 = vmatprep.subr.bf16.mxu0 %v5136
    %7218 = vmatpush1.bf16.msra.mxu0 %v5135
    %7219 = vmatprep.subr.bf16.mxu0 %v5120
    %7220 = vmatpush1.bf16.msra.mxu0 %v5119
    %7221 = vmatprep.subr.bf16.mxu0 %v5104
    %7222 = vmatpush1.bf16.msra.mxu0 %v5103
    %7223 = vmatprep.subr.bf16.mxu0 %v5088
    %7224 = vmatpush1.bf16.msra.mxu0 %v5087
    %7225 = vmatprep.subr.bf16.mxu0 %v5072
    %7226 = vmatpush1.bf16.msra.mxu0 %v5071
    %7227 = vmatprep.subr.bf16.mxu0 %v5056
    %7228 = vmatpush1.bf16.msra.mxu0 %v5055
    %7229 = vmatprep.subr.bf16.mxu0 %v5296
    %7230 = vmatpush2.bf16.msra.mxu0 %v5295
    %7231 = vmatprep.subr.bf16.mxu0 %v5280
    %7232 = vmatpush2.bf16.msra.mxu0 %v5279
    %7233 = vmatprep.subr.bf16.mxu0 %v5264
    %7234 = vmatpush2.bf16.msra.mxu0 %v5263
    %7235 = vmatprep.subr.bf16.mxu0 %v5248
    %7236 = vmatpush2.bf16.msra.mxu0 %v5247
    %7237 = vmatprep.subr.bf16.mxu0 %v5232
    %7238 = vmatpush2.bf16.msra.mxu0 %v5231
    %7239 = vmatprep.subr.bf16.mxu0 %v5216
    %7240 = vmatpush2.bf16.msra.mxu0 %v5215
    %7241 = vmatprep.subr.bf16.mxu0 %v5200
    %7242 = vmatpush2.bf16.msra.mxu0 %v5199
    %7243 = vmatprep.subr.bf16.mxu0 %v5184
    %7244 = vmatpush2.bf16.msra.mxu0 %v5183
    %7245 = vmatprep.mubr.bf16.mxu0 %v4522
    %7246 = vmatmul.mubr.bf16.gmra.mxu0 %v4521
    %v7247 = vpop.f32.mrf.mxu0
    %v7248 = vadd.f32 0.0, %v7247
    %v7249 = vpop.f32.mrf.mxu0
    %v7250 = vadd.f32 0.0, %v7249
    %v7251 = vpop.f32.mrf.mxu0
    %v7252 = vpop.f32.mrf.mxu0
    %7253 = vdwg.mxu0
    %7254 = vmatprep.subr.bf16.mxu0 %v5424
    %7255 = vmatpush1.bf16.msra.mxu0 %v5423
    %7256 = vmatprep.subr.bf16.mxu0 %v5408
    %7257 = vmatpush1.bf16.msra.mxu0 %v5407
    %7258 = vmatprep.subr.bf16.mxu0 %v5392
    %7259 = vmatpush1.bf16.msra.mxu0 %v5391
    %7260 = vmatprep.subr.bf16.mxu0 %v5376
    %7261 = vmatpush1.bf16.msra.mxu0 %v5375
    %7262 = vmatprep.subr.bf16.mxu0 %v5360
    %7263 = vmatpush1.bf16.msra.mxu0 %v5359
    %7264 = vmatprep.subr.bf16.mxu0 %v5344
    %7265 = vmatpush1.bf16.msra.mxu0 %v5343
    %7266 = vmatprep.subr.bf16.mxu0 %v5328
    %7267 = vmatpush1.bf16.msra.mxu0 %v5327
    %7268 = vmatprep.subr.bf16.mxu0 %v5312
    %7269 = vmatpush1.bf16.msra.mxu0 %v5311
    %7270 = vmatprep.subr.bf16.mxu0 %v5552
    %7271 = vmatpush2.bf16.msra.mxu0 %v5551
    %7272 = vmatprep.subr.bf16.mxu0 %v5536
    %7273 = vmatpush2.bf16.msra.mxu0 %v5535
    %7274 = vmatprep.subr.bf16.mxu0 %v5520
    %7275 = vmatpush2.bf16.msra.mxu0 %v5519
    %7276 = vmatprep.subr.bf16.mxu0 %v5504
    %7277 = vmatpush2.bf16.msra.mxu0 %v5503
    %7278 = vmatprep.subr.bf16.mxu0 %v5488
    %7279 = vmatpush2.bf16.msra.mxu0 %v5487
    %7280 = vmatprep.subr.bf16.mxu0 %v5472
    %7281 = vmatpush2.bf16.msra.mxu0 %v5471
    %7282 = vmatprep.subr.bf16.mxu0 %v5456
    %7283 = vmatpush2.bf16.msra.mxu0 %v5455
    %7284 = vmatprep.subr.bf16.mxu0 %v5440
    %7285 = vmatpush2.bf16.msra.mxu0 %v5439
    %7286 = vmatprep.mubr.bf16.mxu0 %v4524
    %7287 = vmatmul.mubr.bf16.gmra.mxu0 %v4523
    %v7288 = vpop.f32.mrf.mxu0
    %v7289 = vadd.f32 %v7248, %v7288
    %v7290 = vpop.f32.mrf.mxu0
    %v7291 = vadd.f32 %v7250, %v7290
    %v7292 = vpop.f32.mrf.mxu0
    %v7293 = vpop.f32.mrf.mxu0
    %7294 = vdwg.mxu0
    %7295 = vmatprep.subr.bf16.mxu0 %v5680
    %7296 = vmatpush1.bf16.msra.mxu0 %v5679
    %7297 = vmatprep.subr.bf16.mxu0 %v5664
    %7298 = vmatpush1.bf16.msra.mxu0 %v5663
    %7299 = vmatprep.subr.bf16.mxu0 %v5648
    %7300 = vmatpush1.bf16.msra.mxu0 %v5647
    %7301 = vmatprep.subr.bf16.mxu0 %v5632
    %7302 = vmatpush1.bf16.msra.mxu0 %v5631
    %7303 = vmatprep.subr.bf16.mxu0 %v5616
    %7304 = vmatpush1.bf16.msra.mxu0 %v5615
    %7305 = vmatprep.subr.bf16.mxu0 %v5600
    %7306 = vmatpush1.bf16.msra.mxu0 %v5599
    %7307 = vmatprep.subr.bf16.mxu0 %v5584
    %7308 = vmatpush1.bf16.msra.mxu0 %v5583
    %7309 = vmatprep.subr.bf16.mxu0 %v5568
    %7310 = vmatpush1.bf16.msra.mxu0 %v5567
    %7311 = vmatprep.subr.bf16.mxu0 %v5808
    %7312 = vmatpush2.bf16.msra.mxu0 %v5807
    %7313 = vmatprep.subr.bf16.mxu0 %v5792
    %7314 = vmatpush2.bf16.msra.mxu0 %v5791
    %7315 = vmatprep.subr.bf16.mxu0 %v5776
    %7316 = vmatpush2.bf16.msra.mxu0 %v5775
    %7317 = vmatprep.subr.bf16.mxu0 %v5760
    %7318 = vmatpush2.bf16.msra.mxu0 %v5759
    %7319 = vmatprep.subr.bf16.mxu0 %v5744
    %7320 = vmatpush2.bf16.msra.mxu0 %v5743
    %7321 = vmatprep.subr.bf16.mxu0 %v5728
    %7322 = vmatpush2.bf16.msra.mxu0 %v5727
    %7323 = vmatprep.subr.bf16.mxu0 %v5712
    %7324 = vmatpush2.bf16.msra.mxu0 %v5711
    %7325 = vmatprep.subr.bf16.mxu0 %v5696
    %7326 = vmatpush2.bf16.msra.mxu0 %v5695
    %7327 = vmatprep.mubr.bf16.mxu0 %v4526
    %7328 = vmatmul.mubr.bf16.gmra.mxu0 %v4525
    %v7329 = vpop.f32.mrf.mxu0
    %v7330 = vadd.f32 %v7289, %v7329
    %v7331 = vpop.f32.mrf.mxu0
    %v7332 = vadd.f32 %v7291, %v7331
    %v7333 = vpop.f32.mrf.mxu0
    %v7334 = vpop.f32.mrf.mxu0
    %7335 = vdwg.mxu0
    %7336 = vmatprep.subr.bf16.mxu0 %v5936
    %7337 = vmatpush1.bf16.msra.mxu0 %v5935
    %7338 = vmatprep.subr.bf16.mxu0 %v5920
    %7339 = vmatpush1.bf16.msra.mxu0 %v5919
    %7340 = vmatprep.subr.bf16.mxu0 %v5904
    %7341 = vmatpush1.bf16.msra.mxu0 %v5903
    %7342 = vmatprep.subr.bf16.mxu0 %v5888
    %7343 = vmatpush1.bf16.msra.mxu0 %v5887
    %7344 = vmatprep.subr.bf16.mxu0 %v5872
    %7345 = vmatpush1.bf16.msra.mxu0 %v5871
    %7346 = vmatprep.subr.bf16.mxu0 %v5856
    %7347 = vmatpush1.bf16.msra.mxu0 %v5855
    %7348 = vmatprep.subr.bf16.mxu0 %v5840
    %7349 = vmatpush1.bf16.msra.mxu0 %v5839
    %7350 = vmatprep.subr.bf16.mxu0 %v5824
    %7351 = vmatpush1.bf16.msra.mxu0 %v5823
    %7352 = vmatprep.subr.bf16.mxu0 %v6064
    %7353 = vmatpush2.bf16.msra.mxu0 %v6063
    %7354 = vmatprep.subr.bf16.mxu0 %v6048
    %7355 = vmatpush2.bf16.msra.mxu0 %v6047
    %7356 = vmatprep.subr.bf16.mxu0 %v6032
    %7357 = vmatpush2.bf16.msra.mxu0 %v6031
    %7358 = vmatprep.subr.bf16.mxu0 %v6016
    %7359 = vmatpush2.bf16.msra.mxu0 %v6015
    %7360 = vmatprep.subr.bf16.mxu0 %v6000
    %7361 = vmatpush2.bf16.msra.mxu0 %v5999
    %7362 = vmatprep.subr.bf16.mxu0 %v5984
    %7363 = vmatpush2.bf16.msra.mxu0 %v5983
    %7364 = vmatprep.subr.bf16.mxu0 %v5968
    %7365 = vmatpush2.bf16.msra.mxu0 %v5967
    %7366 = vmatprep.subr.bf16.mxu0 %v5952
    %7367 = vmatpush2.bf16.msra.mxu0 %v5951
    %7368 = vmatprep.mubr.bf16.mxu0 %v4528
    %7369 = vmatmul.mubr.bf16.gmra.mxu0 %v4527
    %v7370 = vpop.f32.mrf.mxu0
    %v7371 = vadd.f32 %v7330, %v7370
    %v7372 = vpop.f32.mrf.mxu0
    %v7373 = vadd.f32 %v7332, %v7372
    %v7374 = vpop.f32.mrf.mxu0
    %v7375 = vpop.f32.mrf.mxu0
    %7376 = vdwg.mxu0
    %v7377 = vld [vmem:[#allocation31] sm:$0xff]
    %v7378 = vld [vmem:[#allocation31 + $0x8] sm:$0xff]
    %v7381 = vlaneseq
    %v7382 = vshrl.u32 %v7381, 7
    %v7383 = vsub.s32 0, %v7382
    %v7384 = vrot.slane %v7377, %v7383
    %v7385 = vlaneseq
    %v7386 = vshrl.u32 %v7385, 7
    %v7387 = vsub.s32 1, %v7386
    %v7388 = vrot.slane %v7377, %v7387
    %v7389 = vlaneseq
    %v7390 = vshrl.u32 %v7389, 7
    %v7391 = vsub.s32 2, %v7390
    %v7392 = vrot.slane %v7377, %v7391
    %v7393 = vlaneseq
    %v7394 = vshrl.u32 %v7393, 7
    %v7395 = vsub.s32 3, %v7394
    %v7396 = vrot.slane %v7377, %v7395
    %v7397 = vlaneseq
    %v7398 = vshrl.u32 %v7397, 7
    %v7399 = vsub.s32 4, %v7398
    %v7400 = vrot.slane %v7377, %v7399
    %v7401 = vlaneseq
    %v7402 = vshrl.u32 %v7401, 7
    %v7403 = vsub.s32 5, %v7402
    %v7404 = vrot.slane %v7377, %v7403
    %v7405 = vlaneseq
    %v7406 = vshrl.u32 %v7405, 7
    %v7407 = vsub.s32 6, %v7406
    %v7408 = vrot.slane %v7377, %v7407
    %v7409 = vlaneseq
    %v7410 = vshrl.u32 %v7409, 7
    %v7411 = vsub.s32 7, %v7410
    %v7412 = vrot.slane %v7377, %v7411
    %v7413 = vlaneseq
    %v7414 = vshrl.u32 %v7413, 7
    %v7415 = vsub.s32 0, %v7414
    %v7416 = vrot.slane %v7378, %v7415
    %v7417 = vlaneseq
    %v7418 = vshrl.u32 %v7417, 7
    %v7419 = vsub.s32 1, %v7418
    %v7420 = vrot.slane %v7378, %v7419
    %v7421 = vlaneseq
    %v7422 = vshrl.u32 %v7421, 7
    %v7423 = vsub.s32 2, %v7422
    %v7424 = vrot.slane %v7378, %v7423
    %v7425 = vlaneseq
    %v7426 = vshrl.u32 %v7425, 7
    %v7427 = vsub.s32 3, %v7426
    %v7428 = vrot.slane %v7378, %v7427
    %v7429 = vlaneseq
    %v7430 = vshrl.u32 %v7429, 7
    %v7431 = vsub.s32 4, %v7430
    %v7432 = vrot.slane %v7378, %v7431
    %v7433 = vlaneseq
    %v7434 = vshrl.u32 %v7433, 7
    %v7435 = vsub.s32 5, %v7434
    %v7436 = vrot.slane %v7378, %v7435
    %v7437 = vlaneseq
    %v7438 = vshrl.u32 %v7437, 7
    %v7439 = vsub.s32 6, %v7438
    %v7440 = vrot.slane %v7378, %v7439
    %v7441 = vlaneseq
    %v7442 = vshrl.u32 %v7441, 7
    %v7443 = vsub.s32 7, %v7442
    %v7444 = vrot.slane %v7378, %v7443
    %v7461 = vmul.f32 %v6223, %v7384
    %v7462 = vmul.f32 %v6225, %v7388
    %v7463 = vmul.f32 %v6387, %v7392
    %v7464 = vmul.f32 %v6389, %v7396
    %v7465 = vmul.f32 %v6551, %v7400
    %v7466 = vmul.f32 %v6553, %v7404
    %v7467 = vmul.f32 %v6715, %v7408
    %v7468 = vmul.f32 %v6717, %v7412
    %v7469 = vmul.f32 %v6879, %v7416
    %v7470 = vmul.f32 %v6881, %v7420
    %v7471 = vmul.f32 %v7043, %v7424
    %v7472 = vmul.f32 %v7045, %v7428
    %v7473 = vmul.f32 %v7207, %v7432
    %v7474 = vmul.f32 %v7209, %v7436
    %v7475 = vmul.f32 %v7371, %v7440
    %v7476 = vmul.f32 %v7373, %v7444
    %v7477 = vld [vmem:[#allocation33] sm:$0xff]
    %v7478 = vld [vmem:[#allocation33 + $0x8] sm:$0xff]
    %v7481 = vlaneseq
    %v7482 = vshrl.u32 %v7481, 7
    %v7483 = vsub.s32 0, %v7482
    %v7484 = vrot.slane %v7477, %v7483
    %v7485 = vlaneseq
    %v7486 = vshrl.u32 %v7485, 7
    %v7487 = vsub.s32 1, %v7486
    %v7488 = vrot.slane %v7477, %v7487
    %v7489 = vlaneseq
    %v7490 = vshrl.u32 %v7489, 7
    %v7491 = vsub.s32 2, %v7490
    %v7492 = vrot.slane %v7477, %v7491
    %v7493 = vlaneseq
    %v7494 = vshrl.u32 %v7493, 7
    %v7495 = vsub.s32 3, %v7494
    %v7496 = vrot.slane %v7477, %v7495
    %v7497 = vlaneseq
    %v7498 = vshrl.u32 %v7497, 7
    %v7499 = vsub.s32 4, %v7498
    %v7500 = vrot.slane %v7477, %v7499
    %v7501 = vlaneseq
    %v7502 = vshrl.u32 %v7501, 7
    %v7503 = vsub.s32 5, %v7502
    %v7504 = vrot.slane %v7477, %v7503
    %v7505 = vlaneseq
    %v7506 = vshrl.u32 %v7505, 7
    %v7507 = vsub.s32 6, %v7506
    %v7508 = vrot.slane %v7477, %v7507
    %v7509 = vlaneseq
    %v7510 = vshrl.u32 %v7509, 7
    %v7511 = vsub.s32 7, %v7510
    %v7512 = vrot.slane %v7477, %v7511
    %v7513 = vlaneseq
    %v7514 = vshrl.u32 %v7513, 7
    %v7515 = vsub.s32 0, %v7514
    %v7516 = vrot.slane %v7478, %v7515
    %v7517 = vlaneseq
    %v7518 = vshrl.u32 %v7517, 7
    %v7519 = vsub.s32 1, %v7518
    %v7520 = vrot.slane %v7478, %v7519
    %v7521 = vlaneseq
    %v7522 = vshrl.u32 %v7521, 7
    %v7523 = vsub.s32 2, %v7522
    %v7524 = vrot.slane %v7478, %v7523
    %v7525 = vlaneseq
    %v7526 = vshrl.u32 %v7525, 7
    %v7527 = vsub.s32 3, %v7526
    %v7528 = vrot.slane %v7478, %v7527
    %v7529 = vlaneseq
    %v7530 = vshrl.u32 %v7529, 7
    %v7531 = vsub.s32 4, %v7530
    %v7532 = vrot.slane %v7478, %v7531
    %v7533 = vlaneseq
    %v7534 = vshrl.u32 %v7533, 7
    %v7535 = vsub.s32 5, %v7534
    %v7536 = vrot.slane %v7478, %v7535
    %v7537 = vlaneseq
    %v7538 = vshrl.u32 %v7537, 7
    %v7539 = vsub.s32 6, %v7538
    %v7540 = vrot.slane %v7478, %v7539
    %v7541 = vlaneseq
    %v7542 = vshrl.u32 %v7541, 7
    %v7543 = vsub.s32 7, %v7542
    %v7544 = vrot.slane %v7478, %v7543
    %v7561 = vadd.f32 %v7461, %v7484
    %v7562 = vadd.f32 %v7462, %v7488
    %v7563 = vadd.f32 %v7463, %v7492
    %v7564 = vadd.f32 %v7464, %v7496
    %v7565 = vadd.f32 %v7465, %v7500
    %v7566 = vadd.f32 %v7466, %v7504
    %v7567 = vadd.f32 %v7467, %v7508
    %v7568 = vadd.f32 %v7468, %v7512
    %v7569 = vadd.f32 %v7469, %v7516
    %v7570 = vadd.f32 %v7470, %v7520
    %v7571 = vadd.f32 %v7471, %v7524
    %v7572 = vadd.f32 %v7472, %v7528
    %v7573 = vadd.f32 %v7473, %v7532
    %v7574 = vadd.f32 %v7474, %v7536
    %v7575 = vadd.f32 %v7475, %v7540
    %v7576 = vadd.f32 %v7476, %v7544
    %v7577 = vmul.f32 %v7561, 0.1
    %v7578 = vmul.f32 %v7562, 0.1
    %v7579 = vmul.f32 %v7563, 0.1
    %v7580 = vmul.f32 %v7564, 0.1
    %v7581 = vmul.f32 %v7565, 0.1
    %v7582 = vmul.f32 %v7566, 0.1
    %v7583 = vmul.f32 %v7567, 0.1
    %v7584 = vmul.f32 %v7568, 0.1
    %v7585 = vmul.f32 %v7569, 0.1
    %v7586 = vmul.f32 %v7570, 0.1
    %v7587 = vmul.f32 %v7571, 0.1
    %v7588 = vmul.f32 %v7572, 0.1
    %v7589 = vmul.f32 %v7573, 0.1
    %v7590 = vmul.f32 %v7574, 0.1
    %v7591 = vmul.f32 %v7575, 0.1
    %v7592 = vmul.f32 %v7576, 0.1
    %v7593 = vmax.f32 %v7561, %v7577
    %v7594 = vmax.f32 %v7562, %v7578
    %v7595 = vmax.f32 %v7563, %v7579
    %v7596 = vmax.f32 %v7564, %v7580
    %v7597 = vmax.f32 %v7565, %v7581
    %v7598 = vmax.f32 %v7566, %v7582
    %v7599 = vmax.f32 %v7567, %v7583
    %v7600 = vmax.f32 %v7568, %v7584
    %v7601 = vmax.f32 %v7569, %v7585
    %v7602 = vmax.f32 %v7570, %v7586
    %v7603 = vmax.f32 %v7571, %v7587
    %v7604 = vmax.f32 %v7572, %v7588
    %v7605 = vmax.f32 %v7573, %v7589
    %v7606 = vmax.f32 %v7574, %v7590
    %v7607 = vmax.f32 %v7575, %v7591
    %v7608 = vmax.f32 %v7576, %v7592
    %v7609 = vpack.c.bf16 %v7593, %v7593
    %v7610 = vpack.c.bf16 %v7594, %v7594
    %v7611 = vpack.c.bf16 %v7595, %v7595
    %v7612 = vpack.c.bf16 %v7596, %v7596
    %v7613 = vpack.c.bf16 %v7597, %v7597
    %v7614 = vpack.c.bf16 %v7598, %v7598
    %v7615 = vpack.c.bf16 %v7599, %v7599
    %v7616 = vpack.c.bf16 %v7600, %v7600
    %v7617 = vpack.c.bf16 %v7601, %v7601
    %v7618 = vpack.c.bf16 %v7602, %v7602
    %v7619 = vpack.c.bf16 %v7603, %v7603
    %v7620 = vpack.c.bf16 %v7604, %v7604
    %v7621 = vpack.c.bf16 %v7605, %v7605
    %v7622 = vpack.c.bf16 %v7606, %v7606
    %v7623 = vpack.c.bf16 %v7607, %v7607
    %v7624 = vpack.c.bf16 %v7608, %v7608
    %v7625 = vld [vmem:[#allocation34] sm:$0xff]
    %v7626 = vld [vmem:[#allocation34 + $0x8] sm:$0xff]
    %v7627 = vld [vmem:[#allocation34 + $0x10] sm:$0xff]
    %v7628 = vld [vmem:[#allocation34 + $0x18] sm:$0xff]
    %v7629 = vld [vmem:[#allocation34 + $0x20] sm:$0xff]
    %v7630 = vld [vmem:[#allocation34 + $0x28] sm:$0xff]
    %v7631 = vld [vmem:[#allocation34 + $0x30] sm:$0xff]
    %v7632 = vld [vmem:[#allocation34 + $0x38] sm:$0xff]
    %v7633 = vld [vmem:[#allocation34 + $0x40] sm:$0xff]
    %v7634 = vld [vmem:[#allocation34 + $0x48] sm:$0xff]
    %v7635 = vld [vmem:[#allocation34 + $0x50] sm:$0xff]
    %v7636 = vld [vmem:[#allocation34 + $0x58] sm:$0xff]
    %v7637 = vld [vmem:[#allocation34 + $0x60] sm:$0xff]
    %v7638 = vld [vmem:[#allocation34 + $0x68] sm:$0xff]
    %v7639 = vld [vmem:[#allocation34 + $0x70] sm:$0xff]
    %v7640 = vld [vmem:[#allocation34 + $0x78] sm:$0xff]
    %v7641 = vld [vmem:[#allocation34 + $0x80] sm:$0xff]
    %v7642 = vld [vmem:[#allocation34 + $0x88] sm:$0xff]
    %v7643 = vld [vmem:[#allocation34 + $0x90] sm:$0xff]
    %v7644 = vld [vmem:[#allocation34 + $0x98] sm:$0xff]
    %v7645 = vld [vmem:[#allocation34 + $0xa0] sm:$0xff]
    %v7646 = vld [vmem:[#allocation34 + $0xa8] sm:$0xff]
    %v7647 = vld [vmem:[#allocation34 + $0xb0] sm:$0xff]
    %v7648 = vld [vmem:[#allocation34 + $0xb8] sm:$0xff]
    %v7649 = vld [vmem:[#allocation34 + $0xc0] sm:$0xff]
    %v7650 = vld [vmem:[#allocation34 + $0xc8] sm:$0xff]
    %v7651 = vld [vmem:[#allocation34 + $0xd0] sm:$0xff]
    %v7652 = vld [vmem:[#allocation34 + $0xd8] sm:$0xff]
    %v7653 = vld [vmem:[#allocation34 + $0xe0] sm:$0xff]
    %v7654 = vld [vmem:[#allocation34 + $0xe8] sm:$0xff]
    %v7655 = vld [vmem:[#allocation34 + $0xf0] sm:$0xff]
    %v7656 = vld [vmem:[#allocation34 + $0xf8] sm:$0xff]
    %v7657 = vld [vmem:[#allocation34 + $0x100] sm:$0xff]
    %v7658 = vld [vmem:[#allocation34 + $0x108] sm:$0xff]
    %v7659 = vld [vmem:[#allocation34 + $0x110] sm:$0xff]
    %v7660 = vld [vmem:[#allocation34 + $0x118] sm:$0xff]
    %v7661 = vld [vmem:[#allocation34 + $0x120] sm:$0xff]
    %v7662 = vld [vmem:[#allocation34 + $0x128] sm:$0xff]
    %v7663 = vld [vmem:[#allocation34 + $0x130] sm:$0xff]
    %v7664 = vld [vmem:[#allocation34 + $0x138] sm:$0xff]
    %v7665 = vld [vmem:[#allocation34 + $0x140] sm:$0xff]
    %v7666 = vld [vmem:[#allocation34 + $0x148] sm:$0xff]
    %v7667 = vld [vmem:[#allocation34 + $0x150] sm:$0xff]
    %v7668 = vld [vmem:[#allocation34 + $0x158] sm:$0xff]
    %v7669 = vld [vmem:[#allocation34 + $0x160] sm:$0xff]
    %v7670 = vld [vmem:[#allocation34 + $0x168] sm:$0xff]
    %v7671 = vld [vmem:[#allocation34 + $0x170] sm:$0xff]
    %v7672 = vld [vmem:[#allocation34 + $0x178] sm:$0xff]
    %v7673 = vld [vmem:[#allocation34 + $0x180] sm:$0xff]
    %v7674 = vld [vmem:[#allocation34 + $0x188] sm:$0xff]
    %v7675 = vld [vmem:[#allocation34 + $0x190] sm:$0xff]
    %v7676 = vld [vmem:[#allocation34 + $0x198] sm:$0xff]
    %v7677 = vld [vmem:[#allocation34 + $0x1a0] sm:$0xff]
    %v7678 = vld [vmem:[#allocation34 + $0x1a8] sm:$0xff]
    %v7679 = vld [vmem:[#allocation34 + $0x1b0] sm:$0xff]
    %v7680 = vld [vmem:[#allocation34 + $0x1b8] sm:$0xff]
    %v7681 = vld [vmem:[#allocation34 + $0x1c0] sm:$0xff]
    %v7682 = vld [vmem:[#allocation34 + $0x1c8] sm:$0xff]
    %v7683 = vld [vmem:[#allocation34 + $0x1d0] sm:$0xff]
    %v7684 = vld [vmem:[#allocation34 + $0x1d8] sm:$0xff]
    %v7685 = vld [vmem:[#allocation34 + $0x1e0] sm:$0xff]
    %v7686 = vld [vmem:[#allocation34 + $0x1e8] sm:$0xff]
    %v7687 = vld [vmem:[#allocation34 + $0x1f0] sm:$0xff]
    %v7688 = vld [vmem:[#allocation34 + $0x1f8] sm:$0xff]
    %v7689 = vld [vmem:[#allocation34 + $0x200] sm:$0xff]
    %v7690 = vld [vmem:[#allocation34 + $0x208] sm:$0xff]
    %v7691 = vld [vmem:[#allocation34 + $0x210] sm:$0xff]
    %v7692 = vld [vmem:[#allocation34 + $0x218] sm:$0xff]
    %v7693 = vld [vmem:[#allocation34 + $0x220] sm:$0xff]
    %v7694 = vld [vmem:[#allocation34 + $0x228] sm:$0xff]
    %v7695 = vld [vmem:[#allocation34 + $0x230] sm:$0xff]
    %v7696 = vld [vmem:[#allocation34 + $0x238] sm:$0xff]
    %v7697 = vld [vmem:[#allocation34 + $0x240] sm:$0xff]
    %v7698 = vld [vmem:[#allocation34 + $0x248] sm:$0xff]
    %v7699 = vld [vmem:[#allocation34 + $0x250] sm:$0xff]
    %v7700 = vld [vmem:[#allocation34 + $0x258] sm:$0xff]
    %v7701 = vld [vmem:[#allocation34 + $0x260] sm:$0xff]
    %v7702 = vld [vmem:[#allocation34 + $0x268] sm:$0xff]
    %v7703 = vld [vmem:[#allocation34 + $0x270] sm:$0xff]
    %v7704 = vld [vmem:[#allocation34 + $0x278] sm:$0xff]
    %v7705 = vld [vmem:[#allocation34 + $0x280] sm:$0xff]
    %v7706 = vld [vmem:[#allocation34 + $0x288] sm:$0xff]
    %v7707 = vld [vmem:[#allocation34 + $0x290] sm:$0xff]
    %v7708 = vld [vmem:[#allocation34 + $0x298] sm:$0xff]
    %v7709 = vld [vmem:[#allocation34 + $0x2a0] sm:$0xff]
    %v7710 = vld [vmem:[#allocation34 + $0x2a8] sm:$0xff]
    %v7711 = vld [vmem:[#allocation34 + $0x2b0] sm:$0xff]
    %v7712 = vld [vmem:[#allocation34 + $0x2b8] sm:$0xff]
    %v7713 = vld [vmem:[#allocation34 + $0x2c0] sm:$0xff]
    %v7714 = vld [vmem:[#allocation34 + $0x2c8] sm:$0xff]
    %v7715 = vld [vmem:[#allocation34 + $0x2d0] sm:$0xff]
    %v7716 = vld [vmem:[#allocation34 + $0x2d8] sm:$0xff]
    %v7717 = vld [vmem:[#allocation34 + $0x2e0] sm:$0xff]
    %v7718 = vld [vmem:[#allocation34 + $0x2e8] sm:$0xff]
    %v7719 = vld [vmem:[#allocation34 + $0x2f0] sm:$0xff]
    %v7720 = vld [vmem:[#allocation34 + $0x2f8] sm:$0xff]
    %v7721 = vld [vmem:[#allocation34 + $0x300] sm:$0xff]
    %v7722 = vld [vmem:[#allocation34 + $0x308] sm:$0xff]
    %v7723 = vld [vmem:[#allocation34 + $0x310] sm:$0xff]
    %v7724 = vld [vmem:[#allocation34 + $0x318] sm:$0xff]
    %v7725 = vld [vmem:[#allocation34 + $0x320] sm:$0xff]
    %v7726 = vld [vmem:[#allocation34 + $0x328] sm:$0xff]
    %v7727 = vld [vmem:[#allocation34 + $0x330] sm:$0xff]
    %v7728 = vld [vmem:[#allocation34 + $0x338] sm:$0xff]
    %v7729 = vld [vmem:[#allocation34 + $0x340] sm:$0xff]
    %v7730 = vld [vmem:[#allocation34 + $0x348] sm:$0xff]
    %v7731 = vld [vmem:[#allocation34 + $0x350] sm:$0xff]
    %v7732 = vld [vmem:[#allocation34 + $0x358] sm:$0xff]
    %v7733 = vld [vmem:[#allocation34 + $0x360] sm:$0xff]
    %v7734 = vld [vmem:[#allocation34 + $0x368] sm:$0xff]
    %v7735 = vld [vmem:[#allocation34 + $0x370] sm:$0xff]
    %v7736 = vld [vmem:[#allocation34 + $0x378] sm:$0xff]
    %v7737 = vld [vmem:[#allocation34 + $0x380] sm:$0xff]
    %v7738 = vld [vmem:[#allocation34 + $0x388] sm:$0xff]
    %v7739 = vld [vmem:[#allocation34 + $0x390] sm:$0xff]
    %v7740 = vld [vmem:[#allocation34 + $0x398] sm:$0xff]
    %v7741 = vld [vmem:[#allocation34 + $0x3a0] sm:$0xff]
    %v7742 = vld [vmem:[#allocation34 + $0x3a8] sm:$0xff]
    %v7743 = vld [vmem:[#allocation34 + $0x3b0] sm:$0xff]
    %v7744 = vld [vmem:[#allocation34 + $0x3b8] sm:$0xff]
    %v7745 = vld [vmem:[#allocation34 + $0x3c0] sm:$0xff]
    %v7746 = vld [vmem:[#allocation34 + $0x3c8] sm:$0xff]
    %v7747 = vld [vmem:[#allocation34 + $0x3d0] sm:$0xff]
    %v7748 = vld [vmem:[#allocation34 + $0x3d8] sm:$0xff]
    %v7749 = vld [vmem:[#allocation34 + $0x3e0] sm:$0xff]
    %v7750 = vld [vmem:[#allocation34 + $0x3e8] sm:$0xff]
    %v7751 = vld [vmem:[#allocation34 + $0x3f0] sm:$0xff]
    %v7752 = vld [vmem:[#allocation34 + $0x3f8] sm:$0xff]
    %v7753 = vunpack.c.l.s8.bf16 %v7625
    %v7754 = vunpack.c.l.s8.bf16 %v7626
    %v7755 = vunpack.c.l.s8.bf16 %v7627
    %v7756 = vunpack.c.l.s8.bf16 %v7628
    %v7757 = vunpack.c.l.s8.bf16 %v7629
    %v7758 = vunpack.c.l.s8.bf16 %v7630
    %v7759 = vunpack.c.l.s8.bf16 %v7631
    %v7760 = vunpack.c.l.s8.bf16 %v7632
    %v7761 = vunpack.c.h.s8.bf16 %v7625
    %v7762 = vunpack.c.h.s8.bf16 %v7626
    %v7763 = vunpack.c.h.s8.bf16 %v7627
    %v7764 = vunpack.c.h.s8.bf16 %v7628
    %v7765 = vunpack.c.h.s8.bf16 %v7629
    %v7766 = vunpack.c.h.s8.bf16 %v7630
    %v7767 = vunpack.c.h.s8.bf16 %v7631
    %v7768 = vunpack.c.h.s8.bf16 %v7632
    %v7769 = vunpack.c.l.s8.bf16 %v7633
    %v7770 = vunpack.c.l.s8.bf16 %v7634
    %v7771 = vunpack.c.l.s8.bf16 %v7635
    %v7772 = vunpack.c.l.s8.bf16 %v7636
    %v7773 = vunpack.c.l.s8.bf16 %v7637
    %v7774 = vunpack.c.l.s8.bf16 %v7638
    %v7775 = vunpack.c.l.s8.bf16 %v7639
    %v7776 = vunpack.c.l.s8.bf16 %v7640
    %v7777 = vunpack.c.h.s8.bf16 %v7633
    %v7778 = vunpack.c.h.s8.bf16 %v7634
    %v7779 = vunpack.c.h.s8.bf16 %v7635
    %v7780 = vunpack.c.h.s8.bf16 %v7636
    %v7781 = vunpack.c.h.s8.bf16 %v7637
    %v7782 = vunpack.c.h.s8.bf16 %v7638
    %v7783 = vunpack.c.h.s8.bf16 %v7639
    %v7784 = vunpack.c.h.s8.bf16 %v7640
    %v7785 = vunpack.c.l.s8.bf16 %v7641
    %v7786 = vunpack.c.l.s8.bf16 %v7642
    %v7787 = vunpack.c.l.s8.bf16 %v7643
    %v7788 = vunpack.c.l.s8.bf16 %v7644
    %v7789 = vunpack.c.l.s8.bf16 %v7645
    %v7790 = vunpack.c.l.s8.bf16 %v7646
    %v7791 = vunpack.c.l.s8.bf16 %v7647
    %v7792 = vunpack.c.l.s8.bf16 %v7648
    %v7793 = vunpack.c.h.s8.bf16 %v7641
    %v7794 = vunpack.c.h.s8.bf16 %v7642
    %v7795 = vunpack.c.h.s8.bf16 %v7643
    %v7796 = vunpack.c.h.s8.bf16 %v7644
    %v7797 = vunpack.c.h.s8.bf16 %v7645
    %v7798 = vunpack.c.h.s8.bf16 %v7646
    %v7799 = vunpack.c.h.s8.bf16 %v7647
    %v7800 = vunpack.c.h.s8.bf16 %v7648
    %v7801 = vunpack.c.l.s8.bf16 %v7649
    %v7802 = vunpack.c.l.s8.bf16 %v7650
    %v7803 = vunpack.c.l.s8.bf16 %v7651
    %v7804 = vunpack.c.l.s8.bf16 %v7652
    %v7805 = vunpack.c.l.s8.bf16 %v7653
    %v7806 = vunpack.c.l.s8.bf16 %v7654
    %v7807 = vunpack.c.l.s8.bf16 %v7655
    %v7808 = vunpack.c.l.s8.bf16 %v7656
    %v7809 = vunpack.c.h.s8.bf16 %v7649
    %v7810 = vunpack.c.h.s8.bf16 %v7650
    %v7811 = vunpack.c.h.s8.bf16 %v7651
    %v7812 = vunpack.c.h.s8.bf16 %v7652
    %v7813 = vunpack.c.h.s8.bf16 %v7653
    %v7814 = vunpack.c.h.s8.bf16 %v7654
    %v7815 = vunpack.c.h.s8.bf16 %v7655
    %v7816 = vunpack.c.h.s8.bf16 %v7656
    %v7817 = vunpack.c.l.s8.bf16 %v7657
    %v7818 = vunpack.c.l.s8.bf16 %v7658
    %v7819 = vunpack.c.l.s8.bf16 %v7659
    %v7820 = vunpack.c.l.s8.bf16 %v7660
    %v7821 = vunpack.c.l.s8.bf16 %v7661
    %v7822 = vunpack.c.l.s8.bf16 %v7662
    %v7823 = vunpack.c.l.s8.bf16 %v7663
    %v7824 = vunpack.c.l.s8.bf16 %v7664
    %v7825 = vunpack.c.h.s8.bf16 %v7657
    %v7826 = vunpack.c.h.s8.bf16 %v7658
    %v7827 = vunpack.c.h.s8.bf16 %v7659
    %v7828 = vunpack.c.h.s8.bf16 %v7660
    %v7829 = vunpack.c.h.s8.bf16 %v7661
    %v7830 = vunpack.c.h.s8.bf16 %v7662
    %v7831 = vunpack.c.h.s8.bf16 %v7663
    %v7832 = vunpack.c.h.s8.bf16 %v7664
    %v7833 = vunpack.c.l.s8.bf16 %v7665
    %v7834 = vunpack.c.l.s8.bf16 %v7666
    %v7835 = vunpack.c.l.s8.bf16 %v7667
    %v7836 = vunpack.c.l.s8.bf16 %v7668
    %v7837 = vunpack.c.l.s8.bf16 %v7669
    %v7838 = vunpack.c.l.s8.bf16 %v7670
    %v7839 = vunpack.c.l.s8.bf16 %v7671
    %v7840 = vunpack.c.l.s8.bf16 %v7672
    %v7841 = vunpack.c.h.s8.bf16 %v7665
    %v7842 = vunpack.c.h.s8.bf16 %v7666
    %v7843 = vunpack.c.h.s8.bf16 %v7667
    %v7844 = vunpack.c.h.s8.bf16 %v7668
    %v7845 = vunpack.c.h.s8.bf16 %v7669
    %v7846 = vunpack.c.h.s8.bf16 %v7670
    %v7847 = vunpack.c.h.s8.bf16 %v7671
    %v7848 = vunpack.c.h.s8.bf16 %v7672
    %v7849 = vunpack.c.l.s8.bf16 %v7673
    %v7850 = vunpack.c.l.s8.bf16 %v7674
    %v7851 = vunpack.c.l.s8.bf16 %v7675
    %v7852 = vunpack.c.l.s8.bf16 %v7676
    %v7853 = vunpack.c.l.s8.bf16 %v7677
    %v7854 = vunpack.c.l.s8.bf16 %v7678
    %v7855 = vunpack.c.l.s8.bf16 %v7679
    %v7856 = vunpack.c.l.s8.bf16 %v7680
    %v7857 = vunpack.c.h.s8.bf16 %v7673
    %v7858 = vunpack.c.h.s8.bf16 %v7674
    %v7859 = vunpack.c.h.s8.bf16 %v7675
    %v7860 = vunpack.c.h.s8.bf16 %v7676
    %v7861 = vunpack.c.h.s8.bf16 %v7677
    %v7862 = vunpack.c.h.s8.bf16 %v7678
    %v7863 = vunpack.c.h.s8.bf16 %v7679
    %v7864 = vunpack.c.h.s8.bf16 %v7680
    %v7865 = vunpack.c.l.s8.bf16 %v7681
    %v7866 = vunpack.c.l.s8.bf16 %v7682
    %v7867 = vunpack.c.l.s8.bf16 %v7683
    %v7868 = vunpack.c.l.s8.bf16 %v7684
    %v7869 = vunpack.c.l.s8.bf16 %v7685
    %v7870 = vunpack.c.l.s8.bf16 %v7686
    %v7871 = vunpack.c.l.s8.bf16 %v7687
    %v7872 = vunpack.c.l.s8.bf16 %v7688
    %v7873 = vunpack.c.h.s8.bf16 %v7681
    %v7874 = vunpack.c.h.s8.bf16 %v7682
    %v7875 = vunpack.c.h.s8.bf16 %v7683
    %v7876 = vunpack.c.h.s8.bf16 %v7684
    %v7877 = vunpack.c.h.s8.bf16 %v7685
    %v7878 = vunpack.c.h.s8.bf16 %v7686
    %v7879 = vunpack.c.h.s8.bf16 %v7687
    %v7880 = vunpack.c.h.s8.bf16 %v7688
    %v7881 = vunpack.c.l.s8.bf16 %v7689
    %v7882 = vunpack.c.l.s8.bf16 %v7690
    %v7883 = vunpack.c.l.s8.bf16 %v7691
    %v7884 = vunpack.c.l.s8.bf16 %v7692
    %v7885 = vunpack.c.l.s8.bf16 %v7693
    %v7886 = vunpack.c.l.s8.bf16 %v7694
    %v7887 = vunpack.c.l.s8.bf16 %v7695
    %v7888 = vunpack.c.l.s8.bf16 %v7696
    %v7889 = vunpack.c.h.s8.bf16 %v7689
    %v7890 = vunpack.c.h.s8.bf16 %v7690
    %v7891 = vunpack.c.h.s8.bf16 %v7691
    %v7892 = vunpack.c.h.s8.bf16 %v7692
    %v7893 = vunpack.c.h.s8.bf16 %v7693
    %v7894 = vunpack.c.h.s8.bf16 %v7694
    %v7895 = vunpack.c.h.s8.bf16 %v7695
    %v7896 = vunpack.c.h.s8.bf16 %v7696
    %v7897 = vunpack.c.l.s8.bf16 %v7697
    %v7898 = vunpack.c.l.s8.bf16 %v7698
    %v7899 = vunpack.c.l.s8.bf16 %v7699
    %v7900 = vunpack.c.l.s8.bf16 %v7700
    %v7901 = vunpack.c.l.s8.bf16 %v7701
    %v7902 = vunpack.c.l.s8.bf16 %v7702
    %v7903 = vunpack.c.l.s8.bf16 %v7703
    %v7904 = vunpack.c.l.s8.bf16 %v7704
    %v7905 = vunpack.c.h.s8.bf16 %v7697
    %v7906 = vunpack.c.h.s8.bf16 %v7698
    %v7907 = vunpack.c.h.s8.bf16 %v7699
    %v7908 = vunpack.c.h.s8.bf16 %v7700
    %v7909 = vunpack.c.h.s8.bf16 %v7701
    %v7910 = vunpack.c.h.s8.bf16 %v7702
    %v7911 = vunpack.c.h.s8.bf16 %v7703
    %v7912 = vunpack.c.h.s8.bf16 %v7704
    %v7913 = vunpack.c.l.s8.bf16 %v7705
    %v7914 = vunpack.c.l.s8.bf16 %v7706
    %v7915 = vunpack.c.l.s8.bf16 %v7707
    %v7916 = vunpack.c.l.s8.bf16 %v7708
    %v7917 = vunpack.c.l.s8.bf16 %v7709
    %v7918 = vunpack.c.l.s8.bf16 %v7710
    %v7919 = vunpack.c.l.s8.bf16 %v7711
    %v7920 = vunpack.c.l.s8.bf16 %v7712
    %v7921 = vunpack.c.h.s8.bf16 %v7705
    %v7922 = vunpack.c.h.s8.bf16 %v7706
    %v7923 = vunpack.c.h.s8.bf16 %v7707
    %v7924 = vunpack.c.h.s8.bf16 %v7708
    %v7925 = vunpack.c.h.s8.bf16 %v7709
    %v7926 = vunpack.c.h.s8.bf16 %v7710
    %v7927 = vunpack.c.h.s8.bf16 %v7711
    %v7928 = vunpack.c.h.s8.bf16 %v7712
    %v7929 = vunpack.c.l.s8.bf16 %v7713
    %v7930 = vunpack.c.l.s8.bf16 %v7714
    %v7931 = vunpack.c.l.s8.bf16 %v7715
    %v7932 = vunpack.c.l.s8.bf16 %v7716
    %v7933 = vunpack.c.l.s8.bf16 %v7717
    %v7934 = vunpack.c.l.s8.bf16 %v7718
    %v7935 = vunpack.c.l.s8.bf16 %v7719
    %v7936 = vunpack.c.l.s8.bf16 %v7720
    %v7937 = vunpack.c.h.s8.bf16 %v7713
    %v7938 = vunpack.c.h.s8.bf16 %v7714
    %v7939 = vunpack.c.h.s8.bf16 %v7715
    %v7940 = vunpack.c.h.s8.bf16 %v7716
    %v7941 = vunpack.c.h.s8.bf16 %v7717
    %v7942 = vunpack.c.h.s8.bf16 %v7718
    %v7943 = vunpack.c.h.s8.bf16 %v7719
    %v7944 = vunpack.c.h.s8.bf16 %v7720
    %v7945 = vunpack.c.l.s8.bf16 %v7721
    %v7946 = vunpack.c.l.s8.bf16 %v7722
    %v7947 = vunpack.c.l.s8.bf16 %v7723
    %v7948 = vunpack.c.l.s8.bf16 %v7724
    %v7949 = vunpack.c.l.s8.bf16 %v7725
    %v7950 = vunpack.c.l.s8.bf16 %v7726
    %v7951 = vunpack.c.l.s8.bf16 %v7727
    %v7952 = vunpack.c.l.s8.bf16 %v7728
    %v7953 = vunpack.c.h.s8.bf16 %v7721
    %v7954 = vunpack.c.h.s8.bf16 %v7722
    %v7955 = vunpack.c.h.s8.bf16 %v7723
    %v7956 = vunpack.c.h.s8.bf16 %v7724
    %v7957 = vunpack.c.h.s8.bf16 %v7725
    %v7958 = vunpack.c.h.s8.bf16 %v7726
    %v7959 = vunpack.c.h.s8.bf16 %v7727
    %v7960 = vunpack.c.h.s8.bf16 %v7728
    %v7961 = vunpack.c.l.s8.bf16 %v7729
    %v7962 = vunpack.c.l.s8.bf16 %v7730
    %v7963 = vunpack.c.l.s8.bf16 %v7731
    %v7964 = vunpack.c.l.s8.bf16 %v7732
    %v7965 = vunpack.c.l.s8.bf16 %v7733
    %v7966 = vunpack.c.l.s8.bf16 %v7734
    %v7967 = vunpack.c.l.s8.bf16 %v7735
    %v7968 = vunpack.c.l.s8.bf16 %v7736
    %v7969 = vunpack.c.h.s8.bf16 %v7729
    %v7970 = vunpack.c.h.s8.bf16 %v7730
    %v7971 = vunpack.c.h.s8.bf16 %v7731
    %v7972 = vunpack.c.h.s8.bf16 %v7732
    %v7973 = vunpack.c.h.s8.bf16 %v7733
    %v7974 = vunpack.c.h.s8.bf16 %v7734
    %v7975 = vunpack.c.h.s8.bf16 %v7735
    %v7976 = vunpack.c.h.s8.bf16 %v7736
    %v7977 = vunpack.c.l.s8.bf16 %v7737
    %v7978 = vunpack.c.l.s8.bf16 %v7738
    %v7979 = vunpack.c.l.s8.bf16 %v7739
    %v7980 = vunpack.c.l.s8.bf16 %v7740
    %v7981 = vunpack.c.l.s8.bf16 %v7741
    %v7982 = vunpack.c.l.s8.bf16 %v7742
    %v7983 = vunpack.c.l.s8.bf16 %v7743
    %v7984 = vunpack.c.l.s8.bf16 %v7744
    %v7985 = vunpack.c.h.s8.bf16 %v7737
    %v7986 = vunpack.c.h.s8.bf16 %v7738
    %v7987 = vunpack.c.h.s8.bf16 %v7739
    %v7988 = vunpack.c.h.s8.bf16 %v7740
    %v7989 = vunpack.c.h.s8.bf16 %v7741
    %v7990 = vunpack.c.h.s8.bf16 %v7742
    %v7991 = vunpack.c.h.s8.bf16 %v7743
    %v7992 = vunpack.c.h.s8.bf16 %v7744
    %v7993 = vunpack.c.l.s8.bf16 %v7745
    %v7994 = vunpack.c.l.s8.bf16 %v7746
    %v7995 = vunpack.c.l.s8.bf16 %v7747
    %v7996 = vunpack.c.l.s8.bf16 %v7748
    %v7997 = vunpack.c.l.s8.bf16 %v7749
    %v7998 = vunpack.c.l.s8.bf16 %v7750
    %v7999 = vunpack.c.l.s8.bf16 %v7751
    %v8000 = vunpack.c.l.s8.bf16 %v7752
    %v8001 = vunpack.c.h.s8.bf16 %v7745
    %v8002 = vunpack.c.h.s8.bf16 %v7746
    %v8003 = vunpack.c.h.s8.bf16 %v7747
    %v8004 = vunpack.c.h.s8.bf16 %v7748
    %v8005 = vunpack.c.h.s8.bf16 %v7749
    %v8006 = vunpack.c.h.s8.bf16 %v7750
    %v8007 = vunpack.c.h.s8.bf16 %v7751
    %v8008 = vunpack.c.h.s8.bf16 %v7752
    %v8009 = vld [vmem:[#allocation36] sm:$0xff]
    %v8010 = vld [vmem:[#allocation37] sm:$0xff]
    %8011 = vmatprep.subr.bf16.mxu0 %v7810
    %8012 = vmatpush1.bf16.msra.mxu0 %v7809
    %8013 = vmatprep.subr.bf16.mxu0 %v7802
    %8014 = vmatpush1.bf16.msra.mxu0 %v7801
    %8015 = vmatprep.subr.bf16.mxu0 %v7794
    %8016 = vmatpush1.bf16.msra.mxu0 %v7793
    %8017 = vmatprep.subr.bf16.mxu0 %v7786
    %8018 = vmatpush1.bf16.msra.mxu0 %v7785
    %8019 = vmatprep.subr.bf16.mxu0 %v7778
    %8020 = vmatpush1.bf16.msra.mxu0 %v7777
    %8021 = vmatprep.subr.bf16.mxu0 %v7770
    %8022 = vmatpush1.bf16.msra.mxu0 %v7769
    %8023 = vmatprep.subr.bf16.mxu0 %v7762
    %8024 = vmatpush1.bf16.msra.mxu0 %v7761
    %8025 = vmatprep.subr.bf16.mxu0 %v7754
    %8026 = vmatpush1.bf16.msra.mxu0 %v7753
    %8027 = vmatprep.subr.bf16.mxu0 %v7874
    %8028 = vmatpush2.bf16.msra.mxu0 %v7873
    %8029 = vmatprep.subr.bf16.mxu0 %v7866
    %8030 = vmatpush2.bf16.msra.mxu0 %v7865
    %8031 = vmatprep.subr.bf16.mxu0 %v7858
    %8032 = vmatpush2.bf16.msra.mxu0 %v7857
    %8033 = vmatprep.subr.bf16.mxu0 %v7850
    %8034 = vmatpush2.bf16.msra.mxu0 %v7849
    %8035 = vmatprep.subr.bf16.mxu0 %v7842
    %8036 = vmatpush2.bf16.msra.mxu0 %v7841
    %8037 = vmatprep.subr.bf16.mxu0 %v7834
    %8038 = vmatpush2.bf16.msra.mxu0 %v7833
    %8039 = vmatprep.subr.bf16.mxu0 %v7826
    %8040 = vmatpush2.bf16.msra.mxu0 %v7825
    %8041 = vmatprep.subr.bf16.mxu0 %v7818
    %8042 = vmatpush2.bf16.msra.mxu0 %v7817
    %8043 = vmatprep.mubr.bf16.mxu0 %v7610
    %8044 = vmatmul.mubr.bf16.gmra.mxu0 %v7609
    %v8045 = vpop.f32.mrf.mxu0
    %v8046 = vadd.f32 0.0, %v8045
    %v8047 = vpop.f32.mrf.mxu0
    %v8048 = vadd.f32 0.0, %v8047
    %v8049 = vpop.f32.mrf.mxu0
    %v8050 = vpop.f32.mrf.mxu0
    %8051 = vdwg.mxu0
    %8052 = vmatprep.subr.bf16.mxu0 %v7938
    %8053 = vmatpush1.bf16.msra.mxu0 %v7937
    %8054 = vmatprep.subr.bf16.mxu0 %v7930
    %8055 = vmatpush1.bf16.msra.mxu0 %v7929
    %8056 = vmatprep.subr.bf16.mxu0 %v7922
    %8057 = vmatpush1.bf16.msra.mxu0 %v7921
    %8058 = vmatprep.subr.bf16.mxu0 %v7914
    %8059 = vmatpush1.bf16.msra.mxu0 %v7913
    %8060 = vmatprep.subr.bf16.mxu0 %v7906
    %8061 = vmatpush1.bf16.msra.mxu0 %v7905
    %8062 = vmatprep.subr.bf16.mxu0 %v7898
    %8063 = vmatpush1.bf16.msra.mxu0 %v7897
    %8064 = vmatprep.subr.bf16.mxu0 %v7890
    %8065 = vmatpush1.bf16.msra.mxu0 %v7889
    %8066 = vmatprep.subr.bf16.mxu0 %v7882
    %8067 = vmatpush1.bf16.msra.mxu0 %v7881
    %8068 = vmatprep.subr.bf16.mxu0 %v8002
    %8069 = vmatpush2.bf16.msra.mxu0 %v8001
    %8070 = vmatprep.subr.bf16.mxu0 %v7994
    %8071 = vmatpush2.bf16.msra.mxu0 %v7993
    %8072 = vmatprep.subr.bf16.mxu0 %v7986
    %8073 = vmatpush2.bf16.msra.mxu0 %v7985
    %8074 = vmatprep.subr.bf16.mxu0 %v7978
    %8075 = vmatpush2.bf16.msra.mxu0 %v7977
    %8076 = vmatprep.subr.bf16.mxu0 %v7970
    %8077 = vmatpush2.bf16.msra.mxu0 %v7969
    %8078 = vmatprep.subr.bf16.mxu0 %v7962
    %8079 = vmatpush2.bf16.msra.mxu0 %v7961
    %8080 = vmatprep.subr.bf16.mxu0 %v7954
    %8081 = vmatpush2.bf16.msra.mxu0 %v7953
    %8082 = vmatprep.subr.bf16.mxu0 %v7946
    %8083 = vmatpush2.bf16.msra.mxu0 %v7945
    %8084 = vmatprep.mubr.bf16.mxu0 %v7612
    %8085 = vmatmul.mubr.bf16.gmra.mxu0 %v7611
    %v8086 = vpop.f32.mrf.mxu0
    %v8087 = vadd.f32 %v8046, %v8086
    %v8088 = vpop.f32.mrf.mxu0
    %v8089 = vadd.f32 %v8048, %v8088
    %v8090 = vpop.f32.mrf.mxu0
    %v8091 = vpop.f32.mrf.mxu0
    %8092 = vdwg.mxu0
    %8093 = vmatprep.subr.bf16.mxu0 %v7812
    %8094 = vmatpush1.bf16.msra.mxu0 %v7811
    %8095 = vmatprep.subr.bf16.mxu0 %v7804
    %8096 = vmatpush1.bf16.msra.mxu0 %v7803
    %8097 = vmatprep.subr.bf16.mxu0 %v7796
    %8098 = vmatpush1.bf16.msra.mxu0 %v7795
    %8099 = vmatprep.subr.bf16.mxu0 %v7788
    %8100 = vmatpush1.bf16.msra.mxu0 %v7787
    %8101 = vmatprep.subr.bf16.mxu0 %v7780
    %8102 = vmatpush1.bf16.msra.mxu0 %v7779
    %8103 = vmatprep.subr.bf16.mxu0 %v7772
    %8104 = vmatpush1.bf16.msra.mxu0 %v7771
    %8105 = vmatprep.subr.bf16.mxu0 %v7764
    %8106 = vmatpush1.bf16.msra.mxu0 %v7763
    %8107 = vmatprep.subr.bf16.mxu0 %v7756
    %8108 = vmatpush1.bf16.msra.mxu0 %v7755
    %8109 = vmatprep.subr.bf16.mxu0 %v7876
    %8110 = vmatpush2.bf16.msra.mxu0 %v7875
    %8111 = vmatprep.subr.bf16.mxu0 %v7868
    %8112 = vmatpush2.bf16.msra.mxu0 %v7867
    %8113 = vmatprep.subr.bf16.mxu0 %v7860
    %8114 = vmatpush2.bf16.msra.mxu0 %v7859
    %8115 = vmatprep.subr.bf16.mxu0 %v7852
    %8116 = vmatpush2.bf16.msra.mxu0 %v7851
    %8117 = vmatprep.subr.bf16.mxu0 %v7844
    %8118 = vmatpush2.bf16.msra.mxu0 %v7843
    %8119 = vmatprep.subr.bf16.mxu0 %v7836
    %8120 = vmatpush2.bf16.msra.mxu0 %v7835
    %8121 = vmatprep.subr.bf16.mxu0 %v7828
    %8122 = vmatpush2.bf16.msra.mxu0 %v7827
    %8123 = vmatprep.subr.bf16.mxu0 %v7820
    %8124 = vmatpush2.bf16.msra.mxu0 %v7819
    %8125 = vmatprep.mubr.bf16.mxu0 %v7610
    %8126 = vmatmul.mubr.bf16.gmra.mxu0 %v7609
    %v8127 = vpop.f32.mrf.mxu0
    %v8128 = vadd.f32 0.0, %v8127
    %v8129 = vpop.f32.mrf.mxu0
    %v8130 = vadd.f32 0.0, %v8129
    %v8131 = vpop.f32.mrf.mxu0
    %v8132 = vpop.f32.mrf.mxu0
    %8133 = vdwg.mxu0
    %8134 = vmatprep.subr.bf16.mxu0 %v7940
    %8135 = vmatpush1.bf16.msra.mxu0 %v7939
    %8136 = vmatprep.subr.bf16.mxu0 %v7932
    %8137 = vmatpush1.bf16.msra.mxu0 %v7931
    %8138 = vmatprep.subr.bf16.mxu0 %v7924
    %8139 = vmatpush1.bf16.msra.mxu0 %v7923
    %8140 = vmatprep.subr.bf16.mxu0 %v7916
    %8141 = vmatpush1.bf16.msra.mxu0 %v7915
    %8142 = vmatprep.subr.bf16.mxu0 %v7908
    %8143 = vmatpush1.bf16.msra.mxu0 %v7907
    %8144 = vmatprep.subr.bf16.mxu0 %v7900
    %8145 = vmatpush1.bf16.msra.mxu0 %v7899
    %8146 = vmatprep.subr.bf16.mxu0 %v7892
    %8147 = vmatpush1.bf16.msra.mxu0 %v7891
    %8148 = vmatprep.subr.bf16.mxu0 %v7884
    %8149 = vmatpush1.bf16.msra.mxu0 %v7883
    %8150 = vmatprep.subr.bf16.mxu0 %v8004
    %8151 = vmatpush2.bf16.msra.mxu0 %v8003
    %8152 = vmatprep.subr.bf16.mxu0 %v7996
    %8153 = vmatpush2.bf16.msra.mxu0 %v7995
    %8154 = vmatprep.subr.bf16.mxu0 %v7988
    %8155 = vmatpush2.bf16.msra.mxu0 %v7987
    %8156 = vmatprep.subr.bf16.mxu0 %v7980
    %8157 = vmatpush2.bf16.msra.mxu0 %v7979
    %8158 = vmatprep.subr.bf16.mxu0 %v7972
    %8159 = vmatpush2.bf16.msra.mxu0 %v7971
    %8160 = vmatprep.subr.bf16.mxu0 %v7964
    %8161 = vmatpush2.bf16.msra.mxu0 %v7963
    %8162 = vmatprep.subr.bf16.mxu0 %v7956
    %8163 = vmatpush2.bf16.msra.mxu0 %v7955
    %8164 = vmatprep.subr.bf16.mxu0 %v7948
    %8165 = vmatpush2.bf16.msra.mxu0 %v7947
    %8166 = vmatprep.mubr.bf16.mxu0 %v7612
    %8167 = vmatmul.mubr.bf16.gmra.mxu0 %v7611
    %v8168 = vpop.f32.mrf.mxu0
    %v8169 = vadd.f32 %v8128, %v8168
    %v8170 = vpop.f32.mrf.mxu0
    %v8171 = vadd.f32 %v8130, %v8170
    %v8172 = vpop.f32.mrf.mxu0
    %v8173 = vpop.f32.mrf.mxu0
    %8174 = vdwg.mxu0
    %8175 = vmatprep.subr.bf16.mxu0 %v7814
    %8176 = vmatpush1.bf16.msra.mxu0 %v7813
    %8177 = vmatprep.subr.bf16.mxu0 %v7806
    %8178 = vmatpush1.bf16.msra.mxu0 %v7805
    %8179 = vmatprep.subr.bf16.mxu0 %v7798
    %8180 = vmatpush1.bf16.msra.mxu0 %v7797
    %8181 = vmatprep.subr.bf16.mxu0 %v7790
    %8182 = vmatpush1.bf16.msra.mxu0 %v7789
    %8183 = vmatprep.subr.bf16.mxu0 %v7782
    %8184 = vmatpush1.bf16.msra.mxu0 %v7781
    %8185 = vmatprep.subr.bf16.mxu0 %v7774
    %8186 = vmatpush1.bf16.msra.mxu0 %v7773
    %8187 = vmatprep.subr.bf16.mxu0 %v7766
    %8188 = vmatpush1.bf16.msra.mxu0 %v7765
    %8189 = vmatprep.subr.bf16.mxu0 %v7758
    %8190 = vmatpush1.bf16.msra.mxu0 %v7757
    %8191 = vmatprep.subr.bf16.mxu0 %v7878
    %8192 = vmatpush2.bf16.msra.mxu0 %v7877
    %8193 = vmatprep.subr.bf16.mxu0 %v7870
    %8194 = vmatpush2.bf16.msra.mxu0 %v7869
    %8195 = vmatprep.subr.bf16.mxu0 %v7862
    %8196 = vmatpush2.bf16.msra.mxu0 %v7861
    %8197 = vmatprep.subr.bf16.mxu0 %v7854
    %8198 = vmatpush2.bf16.msra.mxu0 %v7853
    %8199 = vmatprep.subr.bf16.mxu0 %v7846
    %8200 = vmatpush2.bf16.msra.mxu0 %v7845
    %8201 = vmatprep.subr.bf16.mxu0 %v7838
    %8202 = vmatpush2.bf16.msra.mxu0 %v7837
    %8203 = vmatprep.subr.bf16.mxu0 %v7830
    %8204 = vmatpush2.bf16.msra.mxu0 %v7829
    %8205 = vmatprep.subr.bf16.mxu0 %v7822
    %8206 = vmatpush2.bf16.msra.mxu0 %v7821
    %8207 = vmatprep.mubr.bf16.mxu0 %v7610
    %8208 = vmatmul.mubr.bf16.gmra.mxu0 %v7609
    %v8209 = vpop.f32.mrf.mxu0
    %v8210 = vadd.f32 0.0, %v8209
    %v8211 = vpop.f32.mrf.mxu0
    %v8212 = vadd.f32 0.0, %v8211
    %v8213 = vpop.f32.mrf.mxu0
    %v8214 = vpop.f32.mrf.mxu0
    %8215 = vdwg.mxu0
    %8216 = vmatprep.subr.bf16.mxu0 %v7942
    %8217 = vmatpush1.bf16.msra.mxu0 %v7941
    %8218 = vmatprep.subr.bf16.mxu0 %v7934
    %8219 = vmatpush1.bf16.msra.mxu0 %v7933
    %8220 = vmatprep.subr.bf16.mxu0 %v7926
    %8221 = vmatpush1.bf16.msra.mxu0 %v7925
    %8222 = vmatprep.subr.bf16.mxu0 %v7918
    %8223 = vmatpush1.bf16.msra.mxu0 %v7917
    %8224 = vmatprep.subr.bf16.mxu0 %v7910
    %8225 = vmatpush1.bf16.msra.mxu0 %v7909
    %8226 = vmatprep.subr.bf16.mxu0 %v7902
    %8227 = vmatpush1.bf16.msra.mxu0 %v7901
    %8228 = vmatprep.subr.bf16.mxu0 %v7894
    %8229 = vmatpush1.bf16.msra.mxu0 %v7893
    %8230 = vmatprep.subr.bf16.mxu0 %v7886
    %8231 = vmatpush1.bf16.msra.mxu0 %v7885
    %8232 = vmatprep.subr.bf16.mxu0 %v8006
    %8233 = vmatpush2.bf16.msra.mxu0 %v8005
    %8234 = vmatprep.subr.bf16.mxu0 %v7998
    %8235 = vmatpush2.bf16.msra.mxu0 %v7997
    %8236 = vmatprep.subr.bf16.mxu0 %v7990
    %8237 = vmatpush2.bf16.msra.mxu0 %v7989
    %8238 = vmatprep.subr.bf16.mxu0 %v7982
    %8239 = vmatpush2.bf16.msra.mxu0 %v7981
    %8240 = vmatprep.subr.bf16.mxu0 %v7974
    %8241 = vmatpush2.bf16.msra.mxu0 %v7973
    %8242 = vmatprep.subr.bf16.mxu0 %v7966
    %8243 = vmatpush2.bf16.msra.mxu0 %v7965
    %8244 = vmatprep.subr.bf16.mxu0 %v7958
    %8245 = vmatpush2.bf16.msra.mxu0 %v7957
    %8246 = vmatprep.subr.bf16.mxu0 %v7950
    %8247 = vmatpush2.bf16.msra.mxu0 %v7949
    %8248 = vmatprep.mubr.bf16.mxu0 %v7612
    %8249 = vmatmul.mubr.bf16.gmra.mxu0 %v7611
    %v8250 = vpop.f32.mrf.mxu0
    %v8251 = vadd.f32 %v8210, %v8250
    %v8252 = vpop.f32.mrf.mxu0
    %v8253 = vadd.f32 %v8212, %v8252
    %v8254 = vpop.f32.mrf.mxu0
    %v8255 = vpop.f32.mrf.mxu0
    %8256 = vdwg.mxu0
    %8257 = vmatprep.subr.bf16.mxu0 %v7816
    %8258 = vmatpush1.bf16.msra.mxu0 %v7815
    %8259 = vmatprep.subr.bf16.mxu0 %v7808
    %8260 = vmatpush1.bf16.msra.mxu0 %v7807
    %8261 = vmatprep.subr.bf16.mxu0 %v7800
    %8262 = vmatpush1.bf16.msra.mxu0 %v7799
    %8263 = vmatprep.subr.bf16.mxu0 %v7792
    %8264 = vmatpush1.bf16.msra.mxu0 %v7791
    %8265 = vmatprep.subr.bf16.mxu0 %v7784
    %8266 = vmatpush1.bf16.msra.mxu0 %v7783
    %8267 = vmatprep.subr.bf16.mxu0 %v7776
    %8268 = vmatpush1.bf16.msra.mxu0 %v7775
    %8269 = vmatprep.subr.bf16.mxu0 %v7768
    %8270 = vmatpush1.bf16.msra.mxu0 %v7767
    %8271 = vmatprep.subr.bf16.mxu0 %v7760
    %8272 = vmatpush1.bf16.msra.mxu0 %v7759
    %8273 = vmatprep.subr.bf16.mxu0 %v7880
    %8274 = vmatpush2.bf16.msra.mxu0 %v7879
    %8275 = vmatprep.subr.bf16.mxu0 %v7872
    %8276 = vmatpush2.bf16.msra.mxu0 %v7871
    %8277 = vmatprep.subr.bf16.mxu0 %v7864
    %8278 = vmatpush2.bf16.msra.mxu0 %v7863
    %8279 = vmatprep.subr.bf16.mxu0 %v7856
    %8280 = vmatpush2.bf16.msra.mxu0 %v7855
    %8281 = vmatprep.subr.bf16.mxu0 %v7848
    %8282 = vmatpush2.bf16.msra.mxu0 %v7847
    %8283 = vmatprep.subr.bf16.mxu0 %v7840
    %8284 = vmatpush2.bf16.msra.mxu0 %v7839
    %8285 = vmatprep.subr.bf16.mxu0 %v7832
    %8286 = vmatpush2.bf16.msra.mxu0 %v7831
    %8287 = vmatprep.subr.bf16.mxu0 %v7824
    %8288 = vmatpush2.bf16.msra.mxu0 %v7823
    %8289 = vmatprep.mubr.bf16.mxu0 %v7610
    %8290 = vmatmul.mubr.bf16.gmra.mxu0 %v7609
    %v8291 = vpop.f32.mrf.mxu0
    %v8292 = vadd.f32 0.0, %v8291
    %v8293 = vpop.f32.mrf.mxu0
    %v8294 = vadd.f32 0.0, %v8293
    %v8295 = vpop.f32.mrf.mxu0
    %v8296 = vpop.f32.mrf.mxu0
    %8297 = vdwg.mxu0
    %8298 = vmatprep.subr.bf16.mxu0 %v7944
    %8299 = vmatpush1.bf16.msra.mxu0 %v7943
    %8300 = vmatprep.subr.bf16.mxu0 %v7936
    %8301 = vmatpush1.bf16.msra.mxu0 %v7935
    %8302 = vmatprep.subr.bf16.mxu0 %v7928
    %8303 = vmatpush1.bf16.msra.mxu0 %v7927
    %8304 = vmatprep.subr.bf16.mxu0 %v7920
    %8305 = vmatpush1.bf16.msra.mxu0 %v7919
    %8306 = vmatprep.subr.bf16.mxu0 %v7912
    %8307 = vmatpush1.bf16.msra.mxu0 %v7911
    %8308 = vmatprep.subr.bf16.mxu0 %v7904
    %8309 = vmatpush1.bf16.msra.mxu0 %v7903
    %8310 = vmatprep.subr.bf16.mxu0 %v7896
    %8311 = vmatpush1.bf16.msra.mxu0 %v7895
    %8312 = vmatprep.subr.bf16.mxu0 %v7888
    %8313 = vmatpush1.bf16.msra.mxu0 %v7887
    %8314 = vmatprep.subr.bf16.mxu0 %v8008
    %8315 = vmatpush2.bf16.msra.mxu0 %v8007
    %8316 = vmatprep.subr.bf16.mxu0 %v8000
    %8317 = vmatpush2.bf16.msra.mxu0 %v7999
    %8318 = vmatprep.subr.bf16.mxu0 %v7992
    %8319 = vmatpush2.bf16.msra.mxu0 %v7991
    %8320 = vmatprep.subr.bf16.mxu0 %v7984
    %8321 = vmatpush2.bf16.msra.mxu0 %v7983
    %8322 = vmatprep.subr.bf16.mxu0 %v7976
    %8323 = vmatpush2.bf16.msra.mxu0 %v7975
    %8324 = vmatprep.subr.bf16.mxu0 %v7968
    %8325 = vmatpush2.bf16.msra.mxu0 %v7967
    %8326 = vmatprep.subr.bf16.mxu0 %v7960
    %8327 = vmatpush2.bf16.msra.mxu0 %v7959
    %8328 = vmatprep.subr.bf16.mxu0 %v7952
    %8329 = vmatpush2.bf16.msra.mxu0 %v7951
    %8330 = vmatprep.mubr.bf16.mxu0 %v7612
    %8331 = vmatmul.mubr.bf16.gmra.mxu0 %v7611
    %v8332 = vpop.f32.mrf.mxu0
    %v8333 = vadd.f32 %v8292, %v8332
    %v8334 = vpop.f32.mrf.mxu0
    %v8335 = vadd.f32 %v8294, %v8334
    %v8336 = vpop.f32.mrf.mxu0
    %v8337 = vpop.f32.mrf.mxu0
    %8338 = vdwg.mxu0
    %v8340 = vlaneseq
    %v8341 = vshrl.u32 %v8340, 7
    %v8342 = vsub.s32 0, %v8341
    %v8343 = vrot.slane %v8009, %v8342
    %v8344 = vlaneseq
    %v8345 = vshrl.u32 %v8344, 7
    %v8346 = vsub.s32 1, %v8345
    %v8347 = vrot.slane %v8009, %v8346
    %v8348 = vlaneseq
    %v8349 = vshrl.u32 %v8348, 7
    %v8350 = vsub.s32 2, %v8349
    %v8351 = vrot.slane %v8009, %v8350
    %v8352 = vlaneseq
    %v8353 = vshrl.u32 %v8352, 7
    %v8354 = vsub.s32 3, %v8353
    %v8355 = vrot.slane %v8009, %v8354
    %v8356 = vlaneseq
    %v8357 = vshrl.u32 %v8356, 7
    %v8358 = vsub.s32 4, %v8357
    %v8359 = vrot.slane %v8009, %v8358
    %v8360 = vlaneseq
    %v8361 = vshrl.u32 %v8360, 7
    %v8362 = vsub.s32 5, %v8361
    %v8363 = vrot.slane %v8009, %v8362
    %v8364 = vlaneseq
    %v8365 = vshrl.u32 %v8364, 7
    %v8366 = vsub.s32 6, %v8365
    %v8367 = vrot.slane %v8009, %v8366
    %v8368 = vlaneseq
    %v8369 = vshrl.u32 %v8368, 7
    %v8370 = vsub.s32 7, %v8369
    %v8371 = vrot.slane %v8009, %v8370
    %v8380 = vmul.f32 %v8087, %v8343
    %v8381 = vmul.f32 %v8089, %v8347
    %v8382 = vmul.f32 %v8169, %v8351
    %v8383 = vmul.f32 %v8171, %v8355
    %v8384 = vmul.f32 %v8251, %v8359
    %v8385 = vmul.f32 %v8253, %v8363
    %v8386 = vmul.f32 %v8333, %v8367
    %v8387 = vmul.f32 %v8335, %v8371
    %v8389 = vlaneseq
    %v8390 = vshrl.u32 %v8389, 7
    %v8391 = vsub.s32 0, %v8390
    %v8392 = vrot.slane %v8010, %v8391
    %v8393 = vlaneseq
    %v8394 = vshrl.u32 %v8393, 7
    %v8395 = vsub.s32 1, %v8394
    %v8396 = vrot.slane %v8010, %v8395
    %v8397 = vlaneseq
    %v8398 = vshrl.u32 %v8397, 7
    %v8399 = vsub.s32 2, %v8398
    %v8400 = vrot.slane %v8010, %v8399
    %v8401 = vlaneseq
    %v8402 = vshrl.u32 %v8401, 7
    %v8403 = vsub.s32 3, %v8402
    %v8404 = vrot.slane %v8010, %v8403
    %v8405 = vlaneseq
    %v8406 = vshrl.u32 %v8405, 7
    %v8407 = vsub.s32 4, %v8406
    %v8408 = vrot.slane %v8010, %v8407
    %v8409 = vlaneseq
    %v8410 = vshrl.u32 %v8409, 7
    %v8411 = vsub.s32 5, %v8410
    %v8412 = vrot.slane %v8010, %v8411
    %v8413 = vlaneseq
    %v8414 = vshrl.u32 %v8413, 7
    %v8415 = vsub.s32 6, %v8414
    %v8416 = vrot.slane %v8010, %v8415
    %v8417 = vlaneseq
    %v8418 = vshrl.u32 %v8417, 7
    %v8419 = vsub.s32 7, %v8418
    %v8420 = vrot.slane %v8010, %v8419
    %v8429 = vadd.f32 %v8380, %v8392
    %v8430 = vadd.f32 %v8381, %v8396
    %v8431 = vadd.f32 %v8382, %v8400
    %v8432 = vadd.f32 %v8383, %v8404
    %v8433 = vadd.f32 %v8384, %v8408
    %v8434 = vadd.f32 %v8385, %v8412
    %v8435 = vadd.f32 %v8386, %v8416
    %v8436 = vadd.f32 %v8387, %v8420
    %v8437 = vmul.f32 %v8429, 0.1
    %v8438 = vmul.f32 %v8430, 0.1
    %v8439 = vmul.f32 %v8431, 0.1
    %v8440 = vmul.f32 %v8432, 0.1
    %v8441 = vmul.f32 %v8433, 0.1
    %v8442 = vmul.f32 %v8434, 0.1
    %v8443 = vmul.f32 %v8435, 0.1
    %v8444 = vmul.f32 %v8436, 0.1
    %v8445 = vmax.f32 %v8429, %v8437
    %v8446 = vmax.f32 %v8430, %v8438
    %v8447 = vmax.f32 %v8431, %v8439
    %v8448 = vmax.f32 %v8432, %v8440
    %v8449 = vmax.f32 %v8433, %v8441
    %v8450 = vmax.f32 %v8434, %v8442
    %v8451 = vmax.f32 %v8435, %v8443
    %v8452 = vmax.f32 %v8436, %v8444
    %8453 = vst [vmem:[%s25] sm:$0xff] %v8445
    %8454 = vst [vmem:[%s25 + $0x8] sm:$0xff] %v8446
    %8455 = vst [vmem:[%s25 + $0x10] sm:$0xff] %v8447
    %8456 = vst [vmem:[%s25 + $0x18] sm:$0xff] %v8448
    %8457 = vst [vmem:[%s25 + $0x20] sm:$0xff] %v8449
    %8458 = vst [vmem:[%s25 + $0x28] sm:$0xff] %v8450
    %8459 = vst [vmem:[%s25 + $0x30] sm:$0xff] %v8451
    %8460 = vst [vmem:[%s25 + $0x38] sm:$0xff] %v8452
    %8461 = vmatprep.subr.bf16.mxu0 %v7810
    %8462 = vmatpush1.bf16.msra.mxu0 %v7809
    %8463 = vmatprep.subr.bf16.mxu0 %v7802
    %8464 = vmatpush1.bf16.msra.mxu0 %v7801
    %8465 = vmatprep.subr.bf16.mxu0 %v7794
    %8466 = vmatpush1.bf16.msra.mxu0 %v7793
    %8467 = vmatprep.subr.bf16.mxu0 %v7786
    %8468 = vmatpush1.bf16.msra.mxu0 %v7785
    %8469 = vmatprep.subr.bf16.mxu0 %v7778
    %8470 = vmatpush1.bf16.msra.mxu0 %v7777
    %8471 = vmatprep.subr.bf16.mxu0 %v7770
    %8472 = vmatpush1.bf16.msra.mxu0 %v7769
    %8473 = vmatprep.subr.bf16.mxu0 %v7762
    %8474 = vmatpush1.bf16.msra.mxu0 %v7761
    %8475 = vmatprep.subr.bf16.mxu0 %v7754
    %8476 = vmatpush1.bf16.msra.mxu0 %v7753
    %8477 = vmatprep.subr.bf16.mxu0 %v7874
    %8478 = vmatpush2.bf16.msra.mxu0 %v7873
    %8479 = vmatprep.subr.bf16.mxu0 %v7866
    %8480 = vmatpush2.bf16.msra.mxu0 %v7865
    %8481 = vmatprep.subr.bf16.mxu0 %v7858
    %8482 = vmatpush2.bf16.msra.mxu0 %v7857
    %8483 = vmatprep.subr.bf16.mxu0 %v7850
    %8484 = vmatpush2.bf16.msra.mxu0 %v7849
    %8485 = vmatprep.subr.bf16.mxu0 %v7842
    %8486 = vmatpush2.bf16.msra.mxu0 %v7841
    %8487 = vmatprep.subr.bf16.mxu0 %v7834
    %8488 = vmatpush2.bf16.msra.mxu0 %v7833
    %8489 = vmatprep.subr.bf16.mxu0 %v7826
    %8490 = vmatpush2.bf16.msra.mxu0 %v7825
    %8491 = vmatprep.subr.bf16.mxu0 %v7818
    %8492 = vmatpush2.bf16.msra.mxu0 %v7817
    %8493 = vmatprep.mubr.bf16.mxu0 %v7614
    %8494 = vmatmul.mubr.bf16.gmra.mxu0 %v7613
    %v8495 = vpop.f32.mrf.mxu0
    %v8496 = vadd.f32 0.0, %v8495
    %v8497 = vpop.f32.mrf.mxu0
    %v8498 = vadd.f32 0.0, %v8497
    %v8499 = vpop.f32.mrf.mxu0
    %v8500 = vpop.f32.mrf.mxu0
    %8501 = vdwg.mxu0
    %8502 = vmatprep.subr.bf16.mxu0 %v7938
    %8503 = vmatpush1.bf16.msra.mxu0 %v7937
    %8504 = vmatprep.subr.bf16.mxu0 %v7930
    %8505 = vmatpush1.bf16.msra.mxu0 %v7929
    %8506 = vmatprep.subr.bf16.mxu0 %v7922
    %8507 = vmatpush1.bf16.msra.mxu0 %v7921
    %8508 = vmatprep.subr.bf16.mxu0 %v7914
    %8509 = vmatpush1.bf16.msra.mxu0 %v7913
    %8510 = vmatprep.subr.bf16.mxu0 %v7906
    %8511 = vmatpush1.bf16.msra.mxu0 %v7905
    %8512 = vmatprep.subr.bf16.mxu0 %v7898
    %8513 = vmatpush1.bf16.msra.mxu0 %v7897
    %8514 = vmatprep.subr.bf16.mxu0 %v7890
    %8515 = vmatpush1.bf16.msra.mxu0 %v7889
    %8516 = vmatprep.subr.bf16.mxu0 %v7882
    %8517 = vmatpush1.bf16.msra.mxu0 %v7881
    %8518 = vmatprep.subr.bf16.mxu0 %v8002
    %8519 = vmatpush2.bf16.msra.mxu0 %v8001
    %8520 = vmatprep.subr.bf16.mxu0 %v7994
    %8521 = vmatpush2.bf16.msra.mxu0 %v7993
    %8522 = vmatprep.subr.bf16.mxu0 %v7986
    %8523 = vmatpush2.bf16.msra.mxu0 %v7985
    %8524 = vmatprep.subr.bf16.mxu0 %v7978
    %8525 = vmatpush2.bf16.msra.mxu0 %v7977
    %8526 = vmatprep.subr.bf16.mxu0 %v7970
    %8527 = vmatpush2.bf16.msra.mxu0 %v7969
    %8528 = vmatprep.subr.bf16.mxu0 %v7962
    %8529 = vmatpush2.bf16.msra.mxu0 %v7961
    %8530 = vmatprep.subr.bf16.mxu0 %v7954
    %8531 = vmatpush2.bf16.msra.mxu0 %v7953
    %8532 = vmatprep.subr.bf16.mxu0 %v7946
    %8533 = vmatpush2.bf16.msra.mxu0 %v7945
    %8534 = vmatprep.mubr.bf16.mxu0 %v7616
    %8535 = vmatmul.mubr.bf16.gmra.mxu0 %v7615
    %v8536 = vpop.f32.mrf.mxu0
    %v8537 = vadd.f32 %v8496, %v8536
    %v8538 = vpop.f32.mrf.mxu0
    %v8539 = vadd.f32 %v8498, %v8538
    %v8540 = vpop.f32.mrf.mxu0
    %v8541 = vpop.f32.mrf.mxu0
    %8542 = vdwg.mxu0
    %8543 = vmatprep.subr.bf16.mxu0 %v7812
    %8544 = vmatpush1.bf16.msra.mxu0 %v7811
    %8545 = vmatprep.subr.bf16.mxu0 %v7804
    %8546 = vmatpush1.bf16.msra.mxu0 %v7803
    %8547 = vmatprep.subr.bf16.mxu0 %v7796
    %8548 = vmatpush1.bf16.msra.mxu0 %v7795
    %8549 = vmatprep.subr.bf16.mxu0 %v7788
    %8550 = vmatpush1.bf16.msra.mxu0 %v7787
    %8551 = vmatprep.subr.bf16.mxu0 %v7780
    %8552 = vmatpush1.bf16.msra.mxu0 %v7779
    %8553 = vmatprep.subr.bf16.mxu0 %v7772
    %8554 = vmatpush1.bf16.msra.mxu0 %v7771
    %8555 = vmatprep.subr.bf16.mxu0 %v7764
    %8556 = vmatpush1.bf16.msra.mxu0 %v7763
    %8557 = vmatprep.subr.bf16.mxu0 %v7756
    %8558 = vmatpush1.bf16.msra.mxu0 %v7755
    %8559 = vmatprep.subr.bf16.mxu0 %v7876
    %8560 = vmatpush2.bf16.msra.mxu0 %v7875
    %8561 = vmatprep.subr.bf16.mxu0 %v7868
    %8562 = vmatpush2.bf16.msra.mxu0 %v7867
    %8563 = vmatprep.subr.bf16.mxu0 %v7860
    %8564 = vmatpush2.bf16.msra.mxu0 %v7859
    %8565 = vmatprep.subr.bf16.mxu0 %v7852
    %8566 = vmatpush2.bf16.msra.mxu0 %v7851
    %8567 = vmatprep.subr.bf16.mxu0 %v7844
    %8568 = vmatpush2.bf16.msra.mxu0 %v7843
    %8569 = vmatprep.subr.bf16.mxu0 %v7836
    %8570 = vmatpush2.bf16.msra.mxu0 %v7835
    %8571 = vmatprep.subr.bf16.mxu0 %v7828
    %8572 = vmatpush2.bf16.msra.mxu0 %v7827
    %8573 = vmatprep.subr.bf16.mxu0 %v7820
    %8574 = vmatpush2.bf16.msra.mxu0 %v7819
    %8575 = vmatprep.mubr.bf16.mxu0 %v7614
    %8576 = vmatmul.mubr.bf16.gmra.mxu0 %v7613
    %v8577 = vpop.f32.mrf.mxu0
    %v8578 = vadd.f32 0.0, %v8577
    %v8579 = vpop.f32.mrf.mxu0
    %v8580 = vadd.f32 0.0, %v8579
    %v8581 = vpop.f32.mrf.mxu0
    %v8582 = vpop.f32.mrf.mxu0
    %8583 = vdwg.mxu0
    %8584 = vmatprep.subr.bf16.mxu0 %v7940
    %8585 = vmatpush1.bf16.msra.mxu0 %v7939
    %8586 = vmatprep.subr.bf16.mxu0 %v7932
    %8587 = vmatpush1.bf16.msra.mxu0 %v7931
    %8588 = vmatprep.subr.bf16.mxu0 %v7924
    %8589 = vmatpush1.bf16.msra.mxu0 %v7923
    %8590 = vmatprep.subr.bf16.mxu0 %v7916
    %8591 = vmatpush1.bf16.msra.mxu0 %v7915
    %8592 = vmatprep.subr.bf16.mxu0 %v7908
    %8593 = vmatpush1.bf16.msra.mxu0 %v7907
    %8594 = vmatprep.subr.bf16.mxu0 %v7900
    %8595 = vmatpush1.bf16.msra.mxu0 %v7899
    %8596 = vmatprep.subr.bf16.mxu0 %v7892
    %8597 = vmatpush1.bf16.msra.mxu0 %v7891
    %8598 = vmatprep.subr.bf16.mxu0 %v7884
    %8599 = vmatpush1.bf16.msra.mxu0 %v7883
    %8600 = vmatprep.subr.bf16.mxu0 %v8004
    %8601 = vmatpush2.bf16.msra.mxu0 %v8003
    %8602 = vmatprep.subr.bf16.mxu0 %v7996
    %8603 = vmatpush2.bf16.msra.mxu0 %v7995
    %8604 = vmatprep.subr.bf16.mxu0 %v7988
    %8605 = vmatpush2.bf16.msra.mxu0 %v7987
    %8606 = vmatprep.subr.bf16.mxu0 %v7980
    %8607 = vmatpush2.bf16.msra.mxu0 %v7979
    %8608 = vmatprep.subr.bf16.mxu0 %v7972
    %8609 = vmatpush2.bf16.msra.mxu0 %v7971
    %8610 = vmatprep.subr.bf16.mxu0 %v7964
    %8611 = vmatpush2.bf16.msra.mxu0 %v7963
    %8612 = vmatprep.subr.bf16.mxu0 %v7956
    %8613 = vmatpush2.bf16.msra.mxu0 %v7955
    %8614 = vmatprep.subr.bf16.mxu0 %v7948
    %8615 = vmatpush2.bf16.msra.mxu0 %v7947
    %8616 = vmatprep.mubr.bf16.mxu0 %v7616
    %8617 = vmatmul.mubr.bf16.gmra.mxu0 %v7615
    %v8618 = vpop.f32.mrf.mxu0
    %v8619 = vadd.f32 %v8578, %v8618
    %v8620 = vpop.f32.mrf.mxu0
    %v8621 = vadd.f32 %v8580, %v8620
    %v8622 = vpop.f32.mrf.mxu0
    %v8623 = vpop.f32.mrf.mxu0
    %8624 = vdwg.mxu0
    %8625 = vmatprep.subr.bf16.mxu0 %v7814
    %8626 = vmatpush1.bf16.msra.mxu0 %v7813
    %8627 = vmatprep.subr.bf16.mxu0 %v7806
    %8628 = vmatpush1.bf16.msra.mxu0 %v7805
    %8629 = vmatprep.subr.bf16.mxu0 %v7798
    %8630 = vmatpush1.bf16.msra.mxu0 %v7797
    %8631 = vmatprep.subr.bf16.mxu0 %v7790
    %8632 = vmatpush1.bf16.msra.mxu0 %v7789
    %8633 = vmatprep.subr.bf16.mxu0 %v7782
    %8634 = vmatpush1.bf16.msra.mxu0 %v7781
    %8635 = vmatprep.subr.bf16.mxu0 %v7774
    %8636 = vmatpush1.bf16.msra.mxu0 %v7773
    %8637 = vmatprep.subr.bf16.mxu0 %v7766
    %8638 = vmatpush1.bf16.msra.mxu0 %v7765
    %8639 = vmatprep.subr.bf16.mxu0 %v7758
    %8640 = vmatpush1.bf16.msra.mxu0 %v7757
    %8641 = vmatprep.subr.bf16.mxu0 %v7878
    %8642 = vmatpush2.bf16.msra.mxu0 %v7877
    %8643 = vmatprep.subr.bf16.mxu0 %v7870
    %8644 = vmatpush2.bf16.msra.mxu0 %v7869
    %8645 = vmatprep.subr.bf16.mxu0 %v7862
    %8646 = vmatpush2.bf16.msra.mxu0 %v7861
    %8647 = vmatprep.subr.bf16.mxu0 %v7854
    %8648 = vmatpush2.bf16.msra.mxu0 %v7853
    %8649 = vmatprep.subr.bf16.mxu0 %v7846
    %8650 = vmatpush2.bf16.msra.mxu0 %v7845
    %8651 = vmatprep.subr.bf16.mxu0 %v7838
    %8652 = vmatpush2.bf16.msra.mxu0 %v7837
    %8653 = vmatprep.subr.bf16.mxu0 %v7830
    %8654 = vmatpush2.bf16.msra.mxu0 %v7829
    %8655 = vmatprep.subr.bf16.mxu0 %v7822
    %8656 = vmatpush2.bf16.msra.mxu0 %v7821
    %8657 = vmatprep.mubr.bf16.mxu0 %v7614
    %8658 = vmatmul.mubr.bf16.gmra.mxu0 %v7613
    %v8659 = vpop.f32.mrf.mxu0
    %v8660 = vadd.f32 0.0, %v8659
    %v8661 = vpop.f32.mrf.mxu0
    %v8662 = vadd.f32 0.0, %v8661
    %v8663 = vpop.f32.mrf.mxu0
    %v8664 = vpop.f32.mrf.mxu0
    %8665 = vdwg.mxu0
    %8666 = vmatprep.subr.bf16.mxu0 %v7942
    %8667 = vmatpush1.bf16.msra.mxu0 %v7941
    %8668 = vmatprep.subr.bf16.mxu0 %v7934
    %8669 = vmatpush1.bf16.msra.mxu0 %v7933
    %8670 = vmatprep.subr.bf16.mxu0 %v7926
    %8671 = vmatpush1.bf16.msra.mxu0 %v7925
    %8672 = vmatprep.subr.bf16.mxu0 %v7918
    %8673 = vmatpush1.bf16.msra.mxu0 %v7917
    %8674 = vmatprep.subr.bf16.mxu0 %v7910
    %8675 = vmatpush1.bf16.msra.mxu0 %v7909
    %8676 = vmatprep.subr.bf16.mxu0 %v7902
    %8677 = vmatpush1.bf16.msra.mxu0 %v7901
    %8678 = vmatprep.subr.bf16.mxu0 %v7894
    %8679 = vmatpush1.bf16.msra.mxu0 %v7893
    %8680 = vmatprep.subr.bf16.mxu0 %v7886
    %8681 = vmatpush1.bf16.msra.mxu0 %v7885
    %8682 = vmatprep.subr.bf16.mxu0 %v8006
    %8683 = vmatpush2.bf16.msra.mxu0 %v8005
    %8684 = vmatprep.subr.bf16.mxu0 %v7998
    %8685 = vmatpush2.bf16.msra.mxu0 %v7997
    %8686 = vmatprep.subr.bf16.mxu0 %v7990
    %8687 = vmatpush2.bf16.msra.mxu0 %v7989
    %8688 = vmatprep.subr.bf16.mxu0 %v7982
    %8689 = vmatpush2.bf16.msra.mxu0 %v7981
    %8690 = vmatprep.subr.bf16.mxu0 %v7974
    %8691 = vmatpush2.bf16.msra.mxu0 %v7973
    %8692 = vmatprep.subr.bf16.mxu0 %v7966
    %8693 = vmatpush2.bf16.msra.mxu0 %v7965
    %8694 = vmatprep.subr.bf16.mxu0 %v7958
    %8695 = vmatpush2.bf16.msra.mxu0 %v7957
    %8696 = vmatprep.subr.bf16.mxu0 %v7950
    %8697 = vmatpush2.bf16.msra.mxu0 %v7949
    %8698 = vmatprep.mubr.bf16.mxu0 %v7616
    %8699 = vmatmul.mubr.bf16.gmra.mxu0 %v7615
    %v8700 = vpop.f32.mrf.mxu0
    %v8701 = vadd.f32 %v8660, %v8700
    %v8702 = vpop.f32.mrf.mxu0
    %v8703 = vadd.f32 %v8662, %v8702
    %v8704 = vpop.f32.mrf.mxu0
    %v8705 = vpop.f32.mrf.mxu0
    %8706 = vdwg.mxu0
    %8707 = vmatprep.subr.bf16.mxu0 %v7816
    %8708 = vmatpush1.bf16.msra.mxu0 %v7815
    %8709 = vmatprep.subr.bf16.mxu0 %v7808
    %8710 = vmatpush1.bf16.msra.mxu0 %v7807
    %8711 = vmatprep.subr.bf16.mxu0 %v7800
    %8712 = vmatpush1.bf16.msra.mxu0 %v7799
    %8713 = vmatprep.subr.bf16.mxu0 %v7792
    %8714 = vmatpush1.bf16.msra.mxu0 %v7791
    %8715 = vmatprep.subr.bf16.mxu0 %v7784
    %8716 = vmatpush1.bf16.msra.mxu0 %v7783
    %8717 = vmatprep.subr.bf16.mxu0 %v7776
    %8718 = vmatpush1.bf16.msra.mxu0 %v7775
    %8719 = vmatprep.subr.bf16.mxu0 %v7768
    %8720 = vmatpush1.bf16.msra.mxu0 %v7767
    %8721 = vmatprep.subr.bf16.mxu0 %v7760
    %8722 = vmatpush1.bf16.msra.mxu0 %v7759
    %8723 = vmatprep.subr.bf16.mxu0 %v7880
    %8724 = vmatpush2.bf16.msra.mxu0 %v7879
    %8725 = vmatprep.subr.bf16.mxu0 %v7872
    %8726 = vmatpush2.bf16.msra.mxu0 %v7871
    %8727 = vmatprep.subr.bf16.mxu0 %v7864
    %8728 = vmatpush2.bf16.msra.mxu0 %v7863
    %8729 = vmatprep.subr.bf16.mxu0 %v7856
    %8730 = vmatpush2.bf16.msra.mxu0 %v7855
    %8731 = vmatprep.subr.bf16.mxu0 %v7848
    %8732 = vmatpush2.bf16.msra.mxu0 %v7847
    %8733 = vmatprep.subr.bf16.mxu0 %v7840
    %8734 = vmatpush2.bf16.msra.mxu0 %v7839
    %8735 = vmatprep.subr.bf16.mxu0 %v7832
    %8736 = vmatpush2.bf16.msra.mxu0 %v7831
    %8737 = vmatprep.subr.bf16.mxu0 %v7824
    %8738 = vmatpush2.bf16.msra.mxu0 %v7823
    %8739 = vmatprep.mubr.bf16.mxu0 %v7614
    %8740 = vmatmul.mubr.bf16.gmra.mxu0 %v7613
    %v8741 = vpop.f32.mrf.mxu0
    %v8742 = vadd.f32 0.0, %v8741
    %v8743 = vpop.f32.mrf.mxu0
    %v8744 = vadd.f32 0.0, %v8743
    %v8745 = vpop.f32.mrf.mxu0
    %v8746 = vpop.f32.mrf.mxu0
    %8747 = vdwg.mxu0
    %8748 = vmatprep.subr.bf16.mxu0 %v7944
    %8749 = vmatpush1.bf16.msra.mxu0 %v7943
    %8750 = vmatprep.subr.bf16.mxu0 %v7936
    %8751 = vmatpush1.bf16.msra.mxu0 %v7935
    %8752 = vmatprep.subr.bf16.mxu0 %v7928
    %8753 = vmatpush1.bf16.msra.mxu0 %v7927
    %8754 = vmatprep.subr.bf16.mxu0 %v7920
    %8755 = vmatpush1.bf16.msra.mxu0 %v7919
    %8756 = vmatprep.subr.bf16.mxu0 %v7912
    %8757 = vmatpush1.bf16.msra.mxu0 %v7911
    %8758 = vmatprep.subr.bf16.mxu0 %v7904
    %8759 = vmatpush1.bf16.msra.mxu0 %v7903
    %8760 = vmatprep.subr.bf16.mxu0 %v7896
    %8761 = vmatpush1.bf16.msra.mxu0 %v7895
    %8762 = vmatprep.subr.bf16.mxu0 %v7888
    %8763 = vmatpush1.bf16.msra.mxu0 %v7887
    %8764 = vmatprep.subr.bf16.mxu0 %v8008
    %8765 = vmatpush2.bf16.msra.mxu0 %v8007
    %8766 = vmatprep.subr.bf16.mxu0 %v8000
    %8767 = vmatpush2.bf16.msra.mxu0 %v7999
    %8768 = vmatprep.subr.bf16.mxu0 %v7992
    %8769 = vmatpush2.bf16.msra.mxu0 %v7991
    %8770 = vmatprep.subr.bf16.mxu0 %v7984
    %8771 = vmatpush2.bf16.msra.mxu0 %v7983
    %8772 = vmatprep.subr.bf16.mxu0 %v7976
    %8773 = vmatpush2.bf16.msra.mxu0 %v7975
    %8774 = vmatprep.subr.bf16.mxu0 %v7968
    %8775 = vmatpush2.bf16.msra.mxu0 %v7967
    %8776 = vmatprep.subr.bf16.mxu0 %v7960
    %8777 = vmatpush2.bf16.msra.mxu0 %v7959
    %8778 = vmatprep.subr.bf16.mxu0 %v7952
    %8779 = vmatpush2.bf16.msra.mxu0 %v7951
    %8780 = vmatprep.mubr.bf16.mxu0 %v7616
    %8781 = vmatmul.mubr.bf16.gmra.mxu0 %v7615
    %v8782 = vpop.f32.mrf.mxu0
    %v8783 = vadd.f32 %v8742, %v8782
    %v8784 = vpop.f32.mrf.mxu0
    %v8785 = vadd.f32 %v8744, %v8784
    %v8786 = vpop.f32.mrf.mxu0
    %v8787 = vpop.f32.mrf.mxu0
    %8788 = vdwg.mxu0
    %v8789 = vmul.f32 %v8537, %v8343
    %v8790 = vmul.f32 %v8539, %v8347
    %v8791 = vmul.f32 %v8619, %v8351
    %v8792 = vmul.f32 %v8621, %v8355
    %v8793 = vmul.f32 %v8701, %v8359
    %v8794 = vmul.f32 %v8703, %v8363
    %v8795 = vmul.f32 %v8783, %v8367
    %v8796 = vmul.f32 %v8785, %v8371
    %v8797 = vadd.f32 %v8789, %v8392
    %v8798 = vadd.f32 %v8790, %v8396
    %v8799 = vadd.f32 %v8791, %v8400
    %v8800 = vadd.f32 %v8792, %v8404
    %v8801 = vadd.f32 %v8793, %v8408
    %v8802 = vadd.f32 %v8794, %v8412
    %v8803 = vadd.f32 %v8795, %v8416
    %v8804 = vadd.f32 %v8796, %v8420
    %v8805 = vmul.f32 %v8797, 0.1
    %v8806 = vmul.f32 %v8798, 0.1
    %v8807 = vmul.f32 %v8799, 0.1
    %v8808 = vmul.f32 %v8800, 0.1
    %v8809 = vmul.f32 %v8801, 0.1
    %v8810 = vmul.f32 %v8802, 0.1
    %v8811 = vmul.f32 %v8803, 0.1
    %v8812 = vmul.f32 %v8804, 0.1
    %v8813 = vmax.f32 %v8797, %v8805
    %v8814 = vmax.f32 %v8798, %v8806
    %v8815 = vmax.f32 %v8799, %v8807
    %v8816 = vmax.f32 %v8800, %v8808
    %v8817 = vmax.f32 %v8801, %v8809
    %v8818 = vmax.f32 %v8802, %v8810
    %v8819 = vmax.f32 %v8803, %v8811
    %v8820 = vmax.f32 %v8804, %v8812
    %8821 = vst [vmem:[%s25 + $0x40] sm:$0xff] %v8813
    %8822 = vst [vmem:[%s25 + $0x48] sm:$0xff] %v8814
    %8823 = vst [vmem:[%s25 + $0x50] sm:$0xff] %v8815
    %8824 = vst [vmem:[%s25 + $0x58] sm:$0xff] %v8816
    %8825 = vst [vmem:[%s25 + $0x60] sm:$0xff] %v8817
    %8826 = vst [vmem:[%s25 + $0x68] sm:$0xff] %v8818
    %8827 = vst [vmem:[%s25 + $0x70] sm:$0xff] %v8819
    %8828 = vst [vmem:[%s25 + $0x78] sm:$0xff] %v8820
    %8829 = vmatprep.subr.bf16.mxu0 %v7810
    %8830 = vmatpush1.bf16.msra.mxu0 %v7809
    %8831 = vmatprep.subr.bf16.mxu0 %v7802
    %8832 = vmatpush1.bf16.msra.mxu0 %v7801
    %8833 = vmatprep.subr.bf16.mxu0 %v7794
    %8834 = vmatpush1.bf16.msra.mxu0 %v7793
    %8835 = vmatprep.subr.bf16.mxu0 %v7786
    %8836 = vmatpush1.bf16.msra.mxu0 %v7785
    %8837 = vmatprep.subr.bf16.mxu0 %v7778
    %8838 = vmatpush1.bf16.msra.mxu0 %v7777
    %8839 = vmatprep.subr.bf16.mxu0 %v7770
    %8840 = vmatpush1.bf16.msra.mxu0 %v7769
    %8841 = vmatprep.subr.bf16.mxu0 %v7762
    %8842 = vmatpush1.bf16.msra.mxu0 %v7761
    %8843 = vmatprep.subr.bf16.mxu0 %v7754
    %8844 = vmatpush1.bf16.msra.mxu0 %v7753
    %8845 = vmatprep.subr.bf16.mxu0 %v7874
    %8846 = vmatpush2.bf16.msra.mxu0 %v7873
    %8847 = vmatprep.subr.bf16.mxu0 %v7866
    %8848 = vmatpush2.bf16.msra.mxu0 %v7865
    %8849 = vmatprep.subr.bf16.mxu0 %v7858
    %8850 = vmatpush2.bf16.msra.mxu0 %v7857
    %8851 = vmatprep.subr.bf16.mxu0 %v7850
    %8852 = vmatpush2.bf16.msra.mxu0 %v7849
    %8853 = vmatprep.subr.bf16.mxu0 %v7842
    %8854 = vmatpush2.bf16.msra.mxu0 %v7841
    %8855 = vmatprep.subr.bf16.mxu0 %v7834
    %8856 = vmatpush2.bf16.msra.mxu0 %v7833
    %8857 = vmatprep.subr.bf16.mxu0 %v7826
    %8858 = vmatpush2.bf16.msra.mxu0 %v7825
    %8859 = vmatprep.subr.bf16.mxu0 %v7818
    %8860 = vmatpush2.bf16.msra.mxu0 %v7817
    %8861 = vmatprep.mubr.bf16.mxu0 %v7618
    %8862 = vmatmul.mubr.bf16.gmra.mxu0 %v7617
    %v8863 = vpop.f32.mrf.mxu0
    %v8864 = vadd.f32 0.0, %v8863
    %v8865 = vpop.f32.mrf.mxu0
    %v8866 = vadd.f32 0.0, %v8865
    %v8867 = vpop.f32.mrf.mxu0
    %v8868 = vpop.f32.mrf.mxu0
    %8869 = vdwg.mxu0
    %8870 = vmatprep.subr.bf16.mxu0 %v7938
    %8871 = vmatpush1.bf16.msra.mxu0 %v7937
    %8872 = vmatprep.subr.bf16.mxu0 %v7930
    %8873 = vmatpush1.bf16.msra.mxu0 %v7929
    %8874 = vmatprep.subr.bf16.mxu0 %v7922
    %8875 = vmatpush1.bf16.msra.mxu0 %v7921
    %8876 = vmatprep.subr.bf16.mxu0 %v7914
    %8877 = vmatpush1.bf16.msra.mxu0 %v7913
    %8878 = vmatprep.subr.bf16.mxu0 %v7906
    %8879 = vmatpush1.bf16.msra.mxu0 %v7905
    %8880 = vmatprep.subr.bf16.mxu0 %v7898
    %8881 = vmatpush1.bf16.msra.mxu0 %v7897
    %8882 = vmatprep.subr.bf16.mxu0 %v7890
    %8883 = vmatpush1.bf16.msra.mxu0 %v7889
    %8884 = vmatprep.subr.bf16.mxu0 %v7882
    %8885 = vmatpush1.bf16.msra.mxu0 %v7881
    %8886 = vmatprep.subr.bf16.mxu0 %v8002
    %8887 = vmatpush2.bf16.msra.mxu0 %v8001
    %8888 = vmatprep.subr.bf16.mxu0 %v7994
    %8889 = vmatpush2.bf16.msra.mxu0 %v7993
    %8890 = vmatprep.subr.bf16.mxu0 %v7986
    %8891 = vmatpush2.bf16.msra.mxu0 %v7985
    %8892 = vmatprep.subr.bf16.mxu0 %v7978
    %8893 = vmatpush2.bf16.msra.mxu0 %v7977
    %8894 = vmatprep.subr.bf16.mxu0 %v7970
    %8895 = vmatpush2.bf16.msra.mxu0 %v7969
    %8896 = vmatprep.subr.bf16.mxu0 %v7962
    %8897 = vmatpush2.bf16.msra.mxu0 %v7961
    %8898 = vmatprep.subr.bf16.mxu0 %v7954
    %8899 = vmatpush2.bf16.msra.mxu0 %v7953
    %8900 = vmatprep.subr.bf16.mxu0 %v7946
    %8901 = vmatpush2.bf16.msra.mxu0 %v7945
    %8902 = vmatprep.mubr.bf16.mxu0 %v7620
    %8903 = vmatmul.mubr.bf16.gmra.mxu0 %v7619
    %v8904 = vpop.f32.mrf.mxu0
    %v8905 = vadd.f32 %v8864, %v8904
    %v8906 = vpop.f32.mrf.mxu0
    %v8907 = vadd.f32 %v8866, %v8906
    %v8908 = vpop.f32.mrf.mxu0
    %v8909 = vpop.f32.mrf.mxu0
    %8910 = vdwg.mxu0
    %8911 = vmatprep.subr.bf16.mxu0 %v7812
    %8912 = vmatpush1.bf16.msra.mxu0 %v7811
    %8913 = vmatprep.subr.bf16.mxu0 %v7804
    %8914 = vmatpush1.bf16.msra.mxu0 %v7803
    %8915 = vmatprep.subr.bf16.mxu0 %v7796
    %8916 = vmatpush1.bf16.msra.mxu0 %v7795
    %8917 = vmatprep.subr.bf16.mxu0 %v7788
    %8918 = vmatpush1.bf16.msra.mxu0 %v7787
    %8919 = vmatprep.subr.bf16.mxu0 %v7780
    %8920 = vmatpush1.bf16.msra.mxu0 %v7779
    %8921 = vmatprep.subr.bf16.mxu0 %v7772
    %8922 = vmatpush1.bf16.msra.mxu0 %v7771
    %8923 = vmatprep.subr.bf16.mxu0 %v7764
    %8924 = vmatpush1.bf16.msra.mxu0 %v7763
    %8925 = vmatprep.subr.bf16.mxu0 %v7756
    %8926 = vmatpush1.bf16.msra.mxu0 %v7755
    %8927 = vmatprep.subr.bf16.mxu0 %v7876
    %8928 = vmatpush2.bf16.msra.mxu0 %v7875
    %8929 = vmatprep.subr.bf16.mxu0 %v7868
    %8930 = vmatpush2.bf16.msra.mxu0 %v7867
    %8931 = vmatprep.subr.bf16.mxu0 %v7860
    %8932 = vmatpush2.bf16.msra.mxu0 %v7859
    %8933 = vmatprep.subr.bf16.mxu0 %v7852
    %8934 = vmatpush2.bf16.msra.mxu0 %v7851
    %8935 = vmatprep.subr.bf16.mxu0 %v7844
    %8936 = vmatpush2.bf16.msra.mxu0 %v7843
    %8937 = vmatprep.subr.bf16.mxu0 %v7836
    %8938 = vmatpush2.bf16.msra.mxu0 %v7835
    %8939 = vmatprep.subr.bf16.mxu0 %v7828
    %8940 = vmatpush2.bf16.msra.mxu0 %v7827
    %8941 = vmatprep.subr.bf16.mxu0 %v7820
    %8942 = vmatpush2.bf16.msra.mxu0 %v7819
    %8943 = vmatprep.mubr.bf16.mxu0 %v7618
    %8944 = vmatmul.mubr.bf16.gmra.mxu0 %v7617
    %v8945 = vpop.f32.mrf.mxu0
    %v8946 = vadd.f32 0.0, %v8945
    %v8947 = vpop.f32.mrf.mxu0
    %v8948 = vadd.f32 0.0, %v8947
    %v8949 = vpop.f32.mrf.mxu0
    %v8950 = vpop.f32.mrf.mxu0
    %8951 = vdwg.mxu0
    %8952 = vmatprep.subr.bf16.mxu0 %v7940
    %8953 = vmatpush1.bf16.msra.mxu0 %v7939
    %8954 = vmatprep.subr.bf16.mxu0 %v7932
    %8955 = vmatpush1.bf16.msra.mxu0 %v7931
    %8956 = vmatprep.subr.bf16.mxu0 %v7924
    %8957 = vmatpush1.bf16.msra.mxu0 %v7923
    %8958 = vmatprep.subr.bf16.mxu0 %v7916
    %8959 = vmatpush1.bf16.msra.mxu0 %v7915
    %8960 = vmatprep.subr.bf16.mxu0 %v7908
    %8961 = vmatpush1.bf16.msra.mxu0 %v7907
    %8962 = vmatprep.subr.bf16.mxu0 %v7900
    %8963 = vmatpush1.bf16.msra.mxu0 %v7899
    %8964 = vmatprep.subr.bf16.mxu0 %v7892
    %8965 = vmatpush1.bf16.msra.mxu0 %v7891
    %8966 = vmatprep.subr.bf16.mxu0 %v7884
    %8967 = vmatpush1.bf16.msra.mxu0 %v7883
    %8968 = vmatprep.subr.bf16.mxu0 %v8004
    %8969 = vmatpush2.bf16.msra.mxu0 %v8003
    %8970 = vmatprep.subr.bf16.mxu0 %v7996
    %8971 = vmatpush2.bf16.msra.mxu0 %v7995
    %8972 = vmatprep.subr.bf16.mxu0 %v7988
    %8973 = vmatpush2.bf16.msra.mxu0 %v7987
    %8974 = vmatprep.subr.bf16.mxu0 %v7980
    %8975 = vmatpush2.bf16.msra.mxu0 %v7979
    %8976 = vmatprep.subr.bf16.mxu0 %v7972
    %8977 = vmatpush2.bf16.msra.mxu0 %v7971
    %8978 = vmatprep.subr.bf16.mxu0 %v7964
    %8979 = vmatpush2.bf16.msra.mxu0 %v7963
    %8980 = vmatprep.subr.bf16.mxu0 %v7956
    %8981 = vmatpush2.bf16.msra.mxu0 %v7955
    %8982 = vmatprep.subr.bf16.mxu0 %v7948
    %8983 = vmatpush2.bf16.msra.mxu0 %v7947
    %8984 = vmatprep.mubr.bf16.mxu0 %v7620
    %8985 = vmatmul.mubr.bf16.gmra.mxu0 %v7619
    %v8986 = vpop.f32.mrf.mxu0
    %v8987 = vadd.f32 %v8946, %v8986
    %v8988 = vpop.f32.mrf.mxu0
    %v8989 = vadd.f32 %v8948, %v8988
    %v8990 = vpop.f32.mrf.mxu0
    %v8991 = vpop.f32.mrf.mxu0
    %8992 = vdwg.mxu0
    %8993 = vmatprep.subr.bf16.mxu0 %v7814
    %8994 = vmatpush1.bf16.msra.mxu0 %v7813
    %8995 = vmatprep.subr.bf16.mxu0 %v7806
    %8996 = vmatpush1.bf16.msra.mxu0 %v7805
    %8997 = vmatprep.subr.bf16.mxu0 %v7798
    %8998 = vmatpush1.bf16.msra.mxu0 %v7797
    %8999 = vmatprep.subr.bf16.mxu0 %v7790
    %9000 = vmatpush1.bf16.msra.mxu0 %v7789
    %9001 = vmatprep.subr.bf16.mxu0 %v7782
    %9002 = vmatpush1.bf16.msra.mxu0 %v7781
    %9003 = vmatprep.subr.bf16.mxu0 %v7774
    %9004 = vmatpush1.bf16.msra.mxu0 %v7773
    %9005 = vmatprep.subr.bf16.mxu0 %v7766
    %9006 = vmatpush1.bf16.msra.mxu0 %v7765
    %9007 = vmatprep.subr.bf16.mxu0 %v7758
    %9008 = vmatpush1.bf16.msra.mxu0 %v7757
    %9009 = vmatprep.subr.bf16.mxu0 %v7878
    %9010 = vmatpush2.bf16.msra.mxu0 %v7877
    %9011 = vmatprep.subr.bf16.mxu0 %v7870
    %9012 = vmatpush2.bf16.msra.mxu0 %v7869
    %9013 = vmatprep.subr.bf16.mxu0 %v7862
    %9014 = vmatpush2.bf16.msra.mxu0 %v7861
    %9015 = vmatprep.subr.bf16.mxu0 %v7854
    %9016 = vmatpush2.bf16.msra.mxu0 %v7853
    %9017 = vmatprep.subr.bf16.mxu0 %v7846
    %9018 = vmatpush2.bf16.msra.mxu0 %v7845
    %9019 = vmatprep.subr.bf16.mxu0 %v7838
    %9020 = vmatpush2.bf16.msra.mxu0 %v7837
    %9021 = vmatprep.subr.bf16.mxu0 %v7830
    %9022 = vmatpush2.bf16.msra.mxu0 %v7829
    %9023 = vmatprep.subr.bf16.mxu0 %v7822
    %9024 = vmatpush2.bf16.msra.mxu0 %v7821
    %9025 = vmatprep.mubr.bf16.mxu0 %v7618
    %9026 = vmatmul.mubr.bf16.gmra.mxu0 %v7617
    %v9027 = vpop.f32.mrf.mxu0
    %v9028 = vadd.f32 0.0, %v9027
    %v9029 = vpop.f32.mrf.mxu0
    %v9030 = vadd.f32 0.0, %v9029
    %v9031 = vpop.f32.mrf.mxu0
    %v9032 = vpop.f32.mrf.mxu0
    %9033 = vdwg.mxu0
    %9034 = vmatprep.subr.bf16.mxu0 %v7942
    %9035 = vmatpush1.bf16.msra.mxu0 %v7941
    %9036 = vmatprep.subr.bf16.mxu0 %v7934
    %9037 = vmatpush1.bf16.msra.mxu0 %v7933
    %9038 = vmatprep.subr.bf16.mxu0 %v7926
    %9039 = vmatpush1.bf16.msra.mxu0 %v7925
    %9040 = vmatprep.subr.bf16.mxu0 %v7918
    %9041 = vmatpush1.bf16.msra.mxu0 %v7917
    %9042 = vmatprep.subr.bf16.mxu0 %v7910
    %9043 = vmatpush1.bf16.msra.mxu0 %v7909
    %9044 = vmatprep.subr.bf16.mxu0 %v7902
    %9045 = vmatpush1.bf16.msra.mxu0 %v7901
    %9046 = vmatprep.subr.bf16.mxu0 %v7894
    %9047 = vmatpush1.bf16.msra.mxu0 %v7893
    %9048 = vmatprep.subr.bf16.mxu0 %v7886
    %9049 = vmatpush1.bf16.msra.mxu0 %v7885
    %9050 = vmatprep.subr.bf16.mxu0 %v8006
    %9051 = vmatpush2.bf16.msra.mxu0 %v8005
    %9052 = vmatprep.subr.bf16.mxu0 %v7998
    %9053 = vmatpush2.bf16.msra.mxu0 %v7997
    %9054 = vmatprep.subr.bf16.mxu0 %v7990
    %9055 = vmatpush2.bf16.msra.mxu0 %v7989
    %9056 = vmatprep.subr.bf16.mxu0 %v7982
    %9057 = vmatpush2.bf16.msra.mxu0 %v7981
    %9058 = vmatprep.subr.bf16.mxu0 %v7974
    %9059 = vmatpush2.bf16.msra.mxu0 %v7973
    %9060 = vmatprep.subr.bf16.mxu0 %v7966
    %9061 = vmatpush2.bf16.msra.mxu0 %v7965
    %9062 = vmatprep.subr.bf16.mxu0 %v7958
    %9063 = vmatpush2.bf16.msra.mxu0 %v7957
    %9064 = vmatprep.subr.bf16.mxu0 %v7950
    %9065 = vmatpush2.bf16.msra.mxu0 %v7949
    %9066 = vmatprep.mubr.bf16.mxu0 %v7620
    %9067 = vmatmul.mubr.bf16.gmra.mxu0 %v7619
    %v9068 = vpop.f32.mrf.mxu0
    %v9069 = vadd.f32 %v9028, %v9068
    %v9070 = vpop.f32.mrf.mxu0
    %v9071 = vadd.f32 %v9030, %v9070
    %v9072 = vpop.f32.mrf.mxu0
    %v9073 = vpop.f32.mrf.mxu0
    %9074 = vdwg.mxu0
    %9075 = vmatprep.subr.bf16.mxu0 %v7816
    %9076 = vmatpush1.bf16.msra.mxu0 %v7815
    %9077 = vmatprep.subr.bf16.mxu0 %v7808
    %9078 = vmatpush1.bf16.msra.mxu0 %v7807
    %9079 = vmatprep.subr.bf16.mxu0 %v7800
    %9080 = vmatpush1.bf16.msra.mxu0 %v7799
    %9081 = vmatprep.subr.bf16.mxu0 %v7792
    %9082 = vmatpush1.bf16.msra.mxu0 %v7791
    %9083 = vmatprep.subr.bf16.mxu0 %v7784
    %9084 = vmatpush1.bf16.msra.mxu0 %v7783
    %9085 = vmatprep.subr.bf16.mxu0 %v7776
    %9086 = vmatpush1.bf16.msra.mxu0 %v7775
    %9087 = vmatprep.subr.bf16.mxu0 %v7768
    %9088 = vmatpush1.bf16.msra.mxu0 %v7767
    %9089 = vmatprep.subr.bf16.mxu0 %v7760
    %9090 = vmatpush1.bf16.msra.mxu0 %v7759
    %9091 = vmatprep.subr.bf16.mxu0 %v7880
    %9092 = vmatpush2.bf16.msra.mxu0 %v7879
    %9093 = vmatprep.subr.bf16.mxu0 %v7872
    %9094 = vmatpush2.bf16.msra.mxu0 %v7871
    %9095 = vmatprep.subr.bf16.mxu0 %v7864
    %9096 = vmatpush2.bf16.msra.mxu0 %v7863
    %9097 = vmatprep.subr.bf16.mxu0 %v7856
    %9098 = vmatpush2.bf16.msra.mxu0 %v7855
    %9099 = vmatprep.subr.bf16.mxu0 %v7848
    %9100 = vmatpush2.bf16.msra.mxu0 %v7847
    %9101 = vmatprep.subr.bf16.mxu0 %v7840
    %9102 = vmatpush2.bf16.msra.mxu0 %v7839
    %9103 = vmatprep.subr.bf16.mxu0 %v7832
    %9104 = vmatpush2.bf16.msra.mxu0 %v7831
    %9105 = vmatprep.subr.bf16.mxu0 %v7824
    %9106 = vmatpush2.bf16.msra.mxu0 %v7823
    %9107 = vmatprep.mubr.bf16.mxu0 %v7618
    %9108 = vmatmul.mubr.bf16.gmra.mxu0 %v7617
    %v9109 = vpop.f32.mrf.mxu0
    %v9110 = vadd.f32 0.0, %v9109
    %v9111 = vpop.f32.mrf.mxu0
    %v9112 = vadd.f32 0.0, %v9111
    %v9113 = vpop.f32.mrf.mxu0
    %v9114 = vpop.f32.mrf.mxu0
    %9115 = vdwg.mxu0
    %9116 = vmatprep.subr.bf16.mxu0 %v7944
    %9117 = vmatpush1.bf16.msra.mxu0 %v7943
    %9118 = vmatprep.subr.bf16.mxu0 %v7936
    %9119 = vmatpush1.bf16.msra.mxu0 %v7935
    %9120 = vmatprep.subr.bf16.mxu0 %v7928
    %9121 = vmatpush1.bf16.msra.mxu0 %v7927
    %9122 = vmatprep.subr.bf16.mxu0 %v7920
    %9123 = vmatpush1.bf16.msra.mxu0 %v7919
    %9124 = vmatprep.subr.bf16.mxu0 %v7912
    %9125 = vmatpush1.bf16.msra.mxu0 %v7911
    %9126 = vmatprep.subr.bf16.mxu0 %v7904
    %9127 = vmatpush1.bf16.msra.mxu0 %v7903
    %9128 = vmatprep.subr.bf16.mxu0 %v7896
    %9129 = vmatpush1.bf16.msra.mxu0 %v7895
    %9130 = vmatprep.subr.bf16.mxu0 %v7888
    %9131 = vmatpush1.bf16.msra.mxu0 %v7887
    %9132 = vmatprep.subr.bf16.mxu0 %v8008
    %9133 = vmatpush2.bf16.msra.mxu0 %v8007
    %9134 = vmatprep.subr.bf16.mxu0 %v8000
    %9135 = vmatpush2.bf16.msra.mxu0 %v7999
    %9136 = vmatprep.subr.bf16.mxu0 %v7992
    %9137 = vmatpush2.bf16.msra.mxu0 %v7991
    %9138 = vmatprep.subr.bf16.mxu0 %v7984
    %9139 = vmatpush2.bf16.msra.mxu0 %v7983
    %9140 = vmatprep.subr.bf16.mxu0 %v7976
    %9141 = vmatpush2.bf16.msra.mxu0 %v7975
    %9142 = vmatprep.subr.bf16.mxu0 %v7968
    %9143 = vmatpush2.bf16.msra.mxu0 %v7967
    %9144 = vmatprep.subr.bf16.mxu0 %v7960
    %9145 = vmatpush2.bf16.msra.mxu0 %v7959
    %9146 = vmatprep.subr.bf16.mxu0 %v7952
    %9147 = vmatpush2.bf16.msra.mxu0 %v7951
    %9148 = vmatprep.mubr.bf16.mxu0 %v7620
    %9149 = vmatmul.mubr.bf16.gmra.mxu0 %v7619
    %v9150 = vpop.f32.mrf.mxu0
    %v9151 = vadd.f32 %v9110, %v9150
    %v9152 = vpop.f32.mrf.mxu0
    %v9153 = vadd.f32 %v9112, %v9152
    %v9154 = vpop.f32.mrf.mxu0
    %v9155 = vpop.f32.mrf.mxu0
    %9156 = vdwg.mxu0
    %v9157 = vmul.f32 %v8905, %v8343
    %v9158 = vmul.f32 %v8907, %v8347
    %v9159 = vmul.f32 %v8987, %v8351
    %v9160 = vmul.f32 %v8989, %v8355
    %v9161 = vmul.f32 %v9069, %v8359
    %v9162 = vmul.f32 %v9071, %v8363
    %v9163 = vmul.f32 %v9151, %v8367
    %v9164 = vmul.f32 %v9153, %v8371
    %v9165 = vadd.f32 %v9157, %v8392
    %v9166 = vadd.f32 %v9158, %v8396
    %v9167 = vadd.f32 %v9159, %v8400
    %v9168 = vadd.f32 %v9160, %v8404
    %v9169 = vadd.f32 %v9161, %v8408
    %v9170 = vadd.f32 %v9162, %v8412
    %v9171 = vadd.f32 %v9163, %v8416
    %v9172 = vadd.f32 %v9164, %v8420
    %v9173 = vmul.f32 %v9165, 0.1
    %v9174 = vmul.f32 %v9166, 0.1
    %v9175 = vmul.f32 %v9167, 0.1
    %v9176 = vmul.f32 %v9168, 0.1
    %v9177 = vmul.f32 %v9169, 0.1
    %v9178 = vmul.f32 %v9170, 0.1
    %v9179 = vmul.f32 %v9171, 0.1
    %v9180 = vmul.f32 %v9172, 0.1
    %v9181 = vmax.f32 %v9165, %v9173
    %v9182 = vmax.f32 %v9166, %v9174
    %v9183 = vmax.f32 %v9167, %v9175
    %v9184 = vmax.f32 %v9168, %v9176
    %v9185 = vmax.f32 %v9169, %v9177
    %v9186 = vmax.f32 %v9170, %v9178
    %v9187 = vmax.f32 %v9171, %v9179
    %v9188 = vmax.f32 %v9172, %v9180
    %9189 = vst [vmem:[%s25 + $0x80] sm:$0xff] %v9181
    %9190 = vst [vmem:[%s25 + $0x88] sm:$0xff] %v9182
    %9191 = vst [vmem:[%s25 + $0x90] sm:$0xff] %v9183
    %9192 = vst [vmem:[%s25 + $0x98] sm:$0xff] %v9184
    %9193 = vst [vmem:[%s25 + $0xa0] sm:$0xff] %v9185
    %9194 = vst [vmem:[%s25 + $0xa8] sm:$0xff] %v9186
    %9195 = vst [vmem:[%s25 + $0xb0] sm:$0xff] %v9187
    %9196 = vst [vmem:[%s25 + $0xb8] sm:$0xff] %v9188
    %9197 = vmatprep.subr.bf16.mxu0 %v7810
    %9198 = vmatpush1.bf16.msra.mxu0 %v7809
    %9199 = vmatprep.subr.bf16.mxu0 %v7802
    %9200 = vmatpush1.bf16.msra.mxu0 %v7801
    %9201 = vmatprep.subr.bf16.mxu0 %v7794
    %9202 = vmatpush1.bf16.msra.mxu0 %v7793
    %9203 = vmatprep.subr.bf16.mxu0 %v7786
    %9204 = vmatpush1.bf16.msra.mxu0 %v7785
    %9205 = vmatprep.subr.bf16.mxu0 %v7778
    %9206 = vmatpush1.bf16.msra.mxu0 %v7777
    %9207 = vmatprep.subr.bf16.mxu0 %v7770
    %9208 = vmatpush1.bf16.msra.mxu0 %v7769
    %9209 = vmatprep.subr.bf16.mxu0 %v7762
    %9210 = vmatpush1.bf16.msra.mxu0 %v7761
    %9211 = vmatprep.subr.bf16.mxu0 %v7754
    %9212 = vmatpush1.bf16.msra.mxu0 %v7753
    %9213 = vmatprep.subr.bf16.mxu0 %v7874
    %9214 = vmatpush2.bf16.msra.mxu0 %v7873
    %9215 = vmatprep.subr.bf16.mxu0 %v7866
    %9216 = vmatpush2.bf16.msra.mxu0 %v7865
    %9217 = vmatprep.subr.bf16.mxu0 %v7858
    %9218 = vmatpush2.bf16.msra.mxu0 %v7857
    %9219 = vmatprep.subr.bf16.mxu0 %v7850
    %9220 = vmatpush2.bf16.msra.mxu0 %v7849
    %9221 = vmatprep.subr.bf16.mxu0 %v7842
    %9222 = vmatpush2.bf16.msra.mxu0 %v7841
    %9223 = vmatprep.subr.bf16.mxu0 %v7834
    %9224 = vmatpush2.bf16.msra.mxu0 %v7833
    %9225 = vmatprep.subr.bf16.mxu0 %v7826
    %9226 = vmatpush2.bf16.msra.mxu0 %v7825
    %9227 = vmatprep.subr.bf16.mxu0 %v7818
    %9228 = vmatpush2.bf16.msra.mxu0 %v7817
    %9229 = vmatprep.mubr.bf16.mxu0 %v7622
    %9230 = vmatmul.mubr.bf16.gmra.mxu0 %v7621
    %v9231 = vpop.f32.mrf.mxu0
    %v9232 = vadd.f32 0.0, %v9231
    %v9233 = vpop.f32.mrf.mxu0
    %v9234 = vadd.f32 0.0, %v9233
    %v9235 = vpop.f32.mrf.mxu0
    %v9236 = vpop.f32.mrf.mxu0
    %9237 = vdwg.mxu0
    %9238 = vmatprep.subr.bf16.mxu0 %v7938
    %9239 = vmatpush1.bf16.msra.mxu0 %v7937
    %9240 = vmatprep.subr.bf16.mxu0 %v7930
    %9241 = vmatpush1.bf16.msra.mxu0 %v7929
    %9242 = vmatprep.subr.bf16.mxu0 %v7922
    %9243 = vmatpush1.bf16.msra.mxu0 %v7921
    %9244 = vmatprep.subr.bf16.mxu0 %v7914
    %9245 = vmatpush1.bf16.msra.mxu0 %v7913
    %9246 = vmatprep.subr.bf16.mxu0 %v7906
    %9247 = vmatpush1.bf16.msra.mxu0 %v7905
    %9248 = vmatprep.subr.bf16.mxu0 %v7898
    %9249 = vmatpush1.bf16.msra.mxu0 %v7897
    %9250 = vmatprep.subr.bf16.mxu0 %v7890
    %9251 = vmatpush1.bf16.msra.mxu0 %v7889
    %9252 = vmatprep.subr.bf16.mxu0 %v7882
    %9253 = vmatpush1.bf16.msra.mxu0 %v7881
    %9254 = vmatprep.subr.bf16.mxu0 %v8002
    %9255 = vmatpush2.bf16.msra.mxu0 %v8001
    %9256 = vmatprep.subr.bf16.mxu0 %v7994
    %9257 = vmatpush2.bf16.msra.mxu0 %v7993
    %9258 = vmatprep.subr.bf16.mxu0 %v7986
    %9259 = vmatpush2.bf16.msra.mxu0 %v7985
    %9260 = vmatprep.subr.bf16.mxu0 %v7978
    %9261 = vmatpush2.bf16.msra.mxu0 %v7977
    %9262 = vmatprep.subr.bf16.mxu0 %v7970
    %9263 = vmatpush2.bf16.msra.mxu0 %v7969
    %9264 = vmatprep.subr.bf16.mxu0 %v7962
    %9265 = vmatpush2.bf16.msra.mxu0 %v7961
    %9266 = vmatprep.subr.bf16.mxu0 %v7954
    %9267 = vmatpush2.bf16.msra.mxu0 %v7953
    %9268 = vmatprep.subr.bf16.mxu0 %v7946
    %9269 = vmatpush2.bf16.msra.mxu0 %v7945
    %9270 = vmatprep.mubr.bf16.mxu0 %v7624
    %9271 = vmatmul.mubr.bf16.gmra.mxu0 %v7623
    %v9272 = vpop.f32.mrf.mxu0
    %v9273 = vadd.f32 %v9232, %v9272
    %v9274 = vpop.f32.mrf.mxu0
    %v9275 = vadd.f32 %v9234, %v9274
    %v9276 = vpop.f32.mrf.mxu0
    %v9277 = vpop.f32.mrf.mxu0
    %9278 = vdwg.mxu0
    %9279 = vmatprep.subr.bf16.mxu0 %v7812
    %9280 = vmatpush1.bf16.msra.mxu0 %v7811
    %9281 = vmatprep.subr.bf16.mxu0 %v7804
    %9282 = vmatpush1.bf16.msra.mxu0 %v7803
    %9283 = vmatprep.subr.bf16.mxu0 %v7796
    %9284 = vmatpush1.bf16.msra.mxu0 %v7795
    %9285 = vmatprep.subr.bf16.mxu0 %v7788
    %9286 = vmatpush1.bf16.msra.mxu0 %v7787
    %9287 = vmatprep.subr.bf16.mxu0 %v7780
    %9288 = vmatpush1.bf16.msra.mxu0 %v7779
    %9289 = vmatprep.subr.bf16.mxu0 %v7772
    %9290 = vmatpush1.bf16.msra.mxu0 %v7771
    %9291 = vmatprep.subr.bf16.mxu0 %v7764
    %9292 = vmatpush1.bf16.msra.mxu0 %v7763
    %9293 = vmatprep.subr.bf16.mxu0 %v7756
    %9294 = vmatpush1.bf16.msra.mxu0 %v7755
    %9295 = vmatprep.subr.bf16.mxu0 %v7876
    %9296 = vmatpush2.bf16.msra.mxu0 %v7875
    %9297 = vmatprep.subr.bf16.mxu0 %v7868
    %9298 = vmatpush2.bf16.msra.mxu0 %v7867
    %9299 = vmatprep.subr.bf16.mxu0 %v7860
    %9300 = vmatpush2.bf16.msra.mxu0 %v7859
    %9301 = vmatprep.subr.bf16.mxu0 %v7852
    %9302 = vmatpush2.bf16.msra.mxu0 %v7851
    %9303 = vmatprep.subr.bf16.mxu0 %v7844
    %9304 = vmatpush2.bf16.msra.mxu0 %v7843
    %9305 = vmatprep.subr.bf16.mxu0 %v7836
    %9306 = vmatpush2.bf16.msra.mxu0 %v7835
    %9307 = vmatprep.subr.bf16.mxu0 %v7828
    %9308 = vmatpush2.bf16.msra.mxu0 %v7827
    %9309 = vmatprep.subr.bf16.mxu0 %v7820
    %9310 = vmatpush2.bf16.msra.mxu0 %v7819
    %9311 = vmatprep.mubr.bf16.mxu0 %v7622
    %9312 = vmatmul.mubr.bf16.gmra.mxu0 %v7621
    %v9313 = vpop.f32.mrf.mxu0
    %v9314 = vadd.f32 0.0, %v9313
    %v9315 = vpop.f32.mrf.mxu0
    %v9316 = vadd.f32 0.0, %v9315
    %v9317 = vpop.f32.mrf.mxu0
    %v9318 = vpop.f32.mrf.mxu0
    %9319 = vdwg.mxu0
    %9320 = vmatprep.subr.bf16.mxu0 %v7940
    %9321 = vmatpush1.bf16.msra.mxu0 %v7939
    %9322 = vmatprep.subr.bf16.mxu0 %v7932
    %9323 = vmatpush1.bf16.msra.mxu0 %v7931
    %9324 = vmatprep.subr.bf16.mxu0 %v7924
    %9325 = vmatpush1.bf16.msra.mxu0 %v7923
    %9326 = vmatprep.subr.bf16.mxu0 %v7916
    %9327 = vmatpush1.bf16.msra.mxu0 %v7915
    %9328 = vmatprep.subr.bf16.mxu0 %v7908
    %9329 = vmatpush1.bf16.msra.mxu0 %v7907
    %9330 = vmatprep.subr.bf16.mxu0 %v7900
    %9331 = vmatpush1.bf16.msra.mxu0 %v7899
    %9332 = vmatprep.subr.bf16.mxu0 %v7892
    %9333 = vmatpush1.bf16.msra.mxu0 %v7891
    %9334 = vmatprep.subr.bf16.mxu0 %v7884
    %9335 = vmatpush1.bf16.msra.mxu0 %v7883
    %9336 = vmatprep.subr.bf16.mxu0 %v8004
    %9337 = vmatpush2.bf16.msra.mxu0 %v8003
    %9338 = vmatprep.subr.bf16.mxu0 %v7996
    %9339 = vmatpush2.bf16.msra.mxu0 %v7995
    %9340 = vmatprep.subr.bf16.mxu0 %v7988
    %9341 = vmatpush2.bf16.msra.mxu0 %v7987
    %9342 = vmatprep.subr.bf16.mxu0 %v7980
    %9343 = vmatpush2.bf16.msra.mxu0 %v7979
    %9344 = vmatprep.subr.bf16.mxu0 %v7972
    %9345 = vmatpush2.bf16.msra.mxu0 %v7971
    %9346 = vmatprep.subr.bf16.mxu0 %v7964
    %9347 = vmatpush2.bf16.msra.mxu0 %v7963
    %9348 = vmatprep.subr.bf16.mxu0 %v7956
    %9349 = vmatpush2.bf16.msra.mxu0 %v7955
    %9350 = vmatprep.subr.bf16.mxu0 %v7948
    %9351 = vmatpush2.bf16.msra.mxu0 %v7947
    %9352 = vmatprep.mubr.bf16.mxu0 %v7624
    %9353 = vmatmul.mubr.bf16.gmra.mxu0 %v7623
    %v9354 = vpop.f32.mrf.mxu0
    %v9355 = vadd.f32 %v9314, %v9354
    %v9356 = vpop.f32.mrf.mxu0
    %v9357 = vadd.f32 %v9316, %v9356
    %v9358 = vpop.f32.mrf.mxu0
    %v9359 = vpop.f32.mrf.mxu0
    %9360 = vdwg.mxu0
    %9361 = vmatprep.subr.bf16.mxu0 %v7814
    %9362 = vmatpush1.bf16.msra.mxu0 %v7813
    %9363 = vmatprep.subr.bf16.mxu0 %v7806
    %9364 = vmatpush1.bf16.msra.mxu0 %v7805
    %9365 = vmatprep.subr.bf16.mxu0 %v7798
    %9366 = vmatpush1.bf16.msra.mxu0 %v7797
    %9367 = vmatprep.subr.bf16.mxu0 %v7790
    %9368 = vmatpush1.bf16.msra.mxu0 %v7789
    %9369 = vmatprep.subr.bf16.mxu0 %v7782
    %9370 = vmatpush1.bf16.msra.mxu0 %v7781
    %9371 = vmatprep.subr.bf16.mxu0 %v7774
    %9372 = vmatpush1.bf16.msra.mxu0 %v7773
    %9373 = vmatprep.subr.bf16.mxu0 %v7766
    %9374 = vmatpush1.bf16.msra.mxu0 %v7765
    %9375 = vmatprep.subr.bf16.mxu0 %v7758
    %9376 = vmatpush1.bf16.msra.mxu0 %v7757
    %9377 = vmatprep.subr.bf16.mxu0 %v7878
    %9378 = vmatpush2.bf16.msra.mxu0 %v7877
    %9379 = vmatprep.subr.bf16.mxu0 %v7870
    %9380 = vmatpush2.bf16.msra.mxu0 %v7869
    %9381 = vmatprep.subr.bf16.mxu0 %v7862
    %9382 = vmatpush2.bf16.msra.mxu0 %v7861
    %9383 = vmatprep.subr.bf16.mxu0 %v7854
    %9384 = vmatpush2.bf16.msra.mxu0 %v7853
    %9385 = vmatprep.subr.bf16.mxu0 %v7846
    %9386 = vmatpush2.bf16.msra.mxu0 %v7845
    %9387 = vmatprep.subr.bf16.mxu0 %v7838
    %9388 = vmatpush2.bf16.msra.mxu0 %v7837
    %9389 = vmatprep.subr.bf16.mxu0 %v7830
    %9390 = vmatpush2.bf16.msra.mxu0 %v7829
    %9391 = vmatprep.subr.bf16.mxu0 %v7822
    %9392 = vmatpush2.bf16.msra.mxu0 %v7821
    %9393 = vmatprep.mubr.bf16.mxu0 %v7622
    %9394 = vmatmul.mubr.bf16.gmra.mxu0 %v7621
    %v9395 = vpop.f32.mrf.mxu0
    %v9396 = vadd.f32 0.0, %v9395
    %v9397 = vpop.f32.mrf.mxu0
    %v9398 = vadd.f32 0.0, %v9397
    %v9399 = vpop.f32.mrf.mxu0
    %v9400 = vpop.f32.mrf.mxu0
    %9401 = vdwg.mxu0
    %9402 = vmatprep.subr.bf16.mxu0 %v7942
    %9403 = vmatpush1.bf16.msra.mxu0 %v7941
    %9404 = vmatprep.subr.bf16.mxu0 %v7934
    %9405 = vmatpush1.bf16.msra.mxu0 %v7933
    %9406 = vmatprep.subr.bf16.mxu0 %v7926
    %9407 = vmatpush1.bf16.msra.mxu0 %v7925
    %9408 = vmatprep.subr.bf16.mxu0 %v7918
    %9409 = vmatpush1.bf16.msra.mxu0 %v7917
    %9410 = vmatprep.subr.bf16.mxu0 %v7910
    %9411 = vmatpush1.bf16.msra.mxu0 %v7909
    %9412 = vmatprep.subr.bf16.mxu0 %v7902
    %9413 = vmatpush1.bf16.msra.mxu0 %v7901
    %9414 = vmatprep.subr.bf16.mxu0 %v7894
    %9415 = vmatpush1.bf16.msra.mxu0 %v7893
    %9416 = vmatprep.subr.bf16.mxu0 %v7886
    %9417 = vmatpush1.bf16.msra.mxu0 %v7885
    %9418 = vmatprep.subr.bf16.mxu0 %v8006
    %9419 = vmatpush2.bf16.msra.mxu0 %v8005
    %9420 = vmatprep.subr.bf16.mxu0 %v7998
    %9421 = vmatpush2.bf16.msra.mxu0 %v7997
    %9422 = vmatprep.subr.bf16.mxu0 %v7990
    %9423 = vmatpush2.bf16.msra.mxu0 %v7989
    %9424 = vmatprep.subr.bf16.mxu0 %v7982
    %9425 = vmatpush2.bf16.msra.mxu0 %v7981
    %9426 = vmatprep.subr.bf16.mxu0 %v7974
    %9427 = vmatpush2.bf16.msra.mxu0 %v7973
    %9428 = vmatprep.subr.bf16.mxu0 %v7966
    %9429 = vmatpush2.bf16.msra.mxu0 %v7965
    %9430 = vmatprep.subr.bf16.mxu0 %v7958
    %9431 = vmatpush2.bf16.msra.mxu0 %v7957
    %9432 = vmatprep.subr.bf16.mxu0 %v7950
    %9433 = vmatpush2.bf16.msra.mxu0 %v7949
    %9434 = vmatprep.mubr.bf16.mxu0 %v7624
    %9435 = vmatmul.mubr.bf16.gmra.mxu0 %v7623
    %v9436 = vpop.f32.mrf.mxu0
    %v9437 = vadd.f32 %v9396, %v9436
    %v9438 = vpop.f32.mrf.mxu0
    %v9439 = vadd.f32 %v9398, %v9438
    %v9440 = vpop.f32.mrf.mxu0
    %v9441 = vpop.f32.mrf.mxu0
    %9442 = vdwg.mxu0
    %9443 = vmatprep.subr.bf16.mxu0 %v7816
    %9444 = vmatpush1.bf16.msra.mxu0 %v7815
    %9445 = vmatprep.subr.bf16.mxu0 %v7808
    %9446 = vmatpush1.bf16.msra.mxu0 %v7807
    %9447 = vmatprep.subr.bf16.mxu0 %v7800
    %9448 = vmatpush1.bf16.msra.mxu0 %v7799
    %9449 = vmatprep.subr.bf16.mxu0 %v7792
    %9450 = vmatpush1.bf16.msra.mxu0 %v7791
    %9451 = vmatprep.subr.bf16.mxu0 %v7784
    %9452 = vmatpush1.bf16.msra.mxu0 %v7783
    %9453 = vmatprep.subr.bf16.mxu0 %v7776
    %9454 = vmatpush1.bf16.msra.mxu0 %v7775
    %9455 = vmatprep.subr.bf16.mxu0 %v7768
    %9456 = vmatpush1.bf16.msra.mxu0 %v7767
    %9457 = vmatprep.subr.bf16.mxu0 %v7760
    %9458 = vmatpush1.bf16.msra.mxu0 %v7759
    %9459 = vmatprep.subr.bf16.mxu0 %v7880
    %9460 = vmatpush2.bf16.msra.mxu0 %v7879
    %9461 = vmatprep.subr.bf16.mxu0 %v7872
    %9462 = vmatpush2.bf16.msra.mxu0 %v7871
    %9463 = vmatprep.subr.bf16.mxu0 %v7864
    %9464 = vmatpush2.bf16.msra.mxu0 %v7863
    %9465 = vmatprep.subr.bf16.mxu0 %v7856
    %9466 = vmatpush2.bf16.msra.mxu0 %v7855
    %9467 = vmatprep.subr.bf16.mxu0 %v7848
    %9468 = vmatpush2.bf16.msra.mxu0 %v7847
    %9469 = vmatprep.subr.bf16.mxu0 %v7840
    %9470 = vmatpush2.bf16.msra.mxu0 %v7839
    %9471 = vmatprep.subr.bf16.mxu0 %v7832
    %9472 = vmatpush2.bf16.msra.mxu0 %v7831
    %9473 = vmatprep.subr.bf16.mxu0 %v7824
    %9474 = vmatpush2.bf16.msra.mxu0 %v7823
    %9475 = vmatprep.mubr.bf16.mxu0 %v7622
    %9476 = vmatmul.mubr.bf16.gmra.mxu0 %v7621
    %v9477 = vpop.f32.mrf.mxu0
    %v9478 = vadd.f32 0.0, %v9477
    %v9479 = vpop.f32.mrf.mxu0
    %v9480 = vadd.f32 0.0, %v9479
    %v9481 = vpop.f32.mrf.mxu0
    %v9482 = vpop.f32.mrf.mxu0
    %9483 = vdwg.mxu0
    %9484 = vmatprep.subr.bf16.mxu0 %v7944
    %9485 = vmatpush1.bf16.msra.mxu0 %v7943
    %9486 = vmatprep.subr.bf16.mxu0 %v7936
    %9487 = vmatpush1.bf16.msra.mxu0 %v7935
    %9488 = vmatprep.subr.bf16.mxu0 %v7928
    %9489 = vmatpush1.bf16.msra.mxu0 %v7927
    %9490 = vmatprep.subr.bf16.mxu0 %v7920
    %9491 = vmatpush1.bf16.msra.mxu0 %v7919
    %9492 = vmatprep.subr.bf16.mxu0 %v7912
    %9493 = vmatpush1.bf16.msra.mxu0 %v7911
    %9494 = vmatprep.subr.bf16.mxu0 %v7904
    %9495 = vmatpush1.bf16.msra.mxu0 %v7903
    %9496 = vmatprep.subr.bf16.mxu0 %v7896
    %9497 = vmatpush1.bf16.msra.mxu0 %v7895
    %9498 = vmatprep.subr.bf16.mxu0 %v7888
    %9499 = vmatpush1.bf16.msra.mxu0 %v7887
    %9500 = vmatprep.subr.bf16.mxu0 %v8008
    %9501 = vmatpush2.bf16.msra.mxu0 %v8007
    %9502 = vmatprep.subr.bf16.mxu0 %v8000
    %9503 = vmatpush2.bf16.msra.mxu0 %v7999
    %9504 = vmatprep.subr.bf16.mxu0 %v7992
    %9505 = vmatpush2.bf16.msra.mxu0 %v7991
    %9506 = vmatprep.subr.bf16.mxu0 %v7984
    %9507 = vmatpush2.bf16.msra.mxu0 %v7983
    %9508 = vmatprep.subr.bf16.mxu0 %v7976
    %9509 = vmatpush2.bf16.msra.mxu0 %v7975
    %9510 = vmatprep.subr.bf16.mxu0 %v7968
    %9511 = vmatpush2.bf16.msra.mxu0 %v7967
    %9512 = vmatprep.subr.bf16.mxu0 %v7960
    %9513 = vmatpush2.bf16.msra.mxu0 %v7959
    %9514 = vmatprep.subr.bf16.mxu0 %v7952
    %9515 = vmatpush2.bf16.msra.mxu0 %v7951
    %9516 = vmatprep.mubr.bf16.mxu0 %v7624
    %9517 = vmatmul.mubr.bf16.gmra.mxu0 %v7623
    %v9518 = vpop.f32.mrf.mxu0
    %v9519 = vadd.f32 %v9478, %v9518
    %v9520 = vpop.f32.mrf.mxu0
    %v9521 = vadd.f32 %v9480, %v9520
    %v9522 = vpop.f32.mrf.mxu0
    %v9523 = vpop.f32.mrf.mxu0
    %9524 = vdwg.mxu0
    %v9525 = vmul.f32 %v9273, %v8343
    %v9526 = vmul.f32 %v9275, %v8347
    %v9527 = vmul.f32 %v9355, %v8351
    %v9528 = vmul.f32 %v9357, %v8355
    %v9529 = vmul.f32 %v9437, %v8359
    %v9530 = vmul.f32 %v9439, %v8363
    %v9531 = vmul.f32 %v9519, %v8367
    %v9532 = vmul.f32 %v9521, %v8371
    %v9533 = vadd.f32 %v9525, %v8392
    %v9534 = vadd.f32 %v9526, %v8396
    %v9535 = vadd.f32 %v9527, %v8400
    %v9536 = vadd.f32 %v9528, %v8404
    %v9537 = vadd.f32 %v9529, %v8408
    %v9538 = vadd.f32 %v9530, %v8412
    %v9539 = vadd.f32 %v9531, %v8416
    %v9540 = vadd.f32 %v9532, %v8420
    %v9541 = vmul.f32 %v9533, 0.1
    %v9542 = vmul.f32 %v9534, 0.1
    %v9543 = vmul.f32 %v9535, 0.1
    %v9544 = vmul.f32 %v9536, 0.1
    %v9545 = vmul.f32 %v9537, 0.1
    %v9546 = vmul.f32 %v9538, 0.1
    %v9547 = vmul.f32 %v9539, 0.1
    %v9548 = vmul.f32 %v9540, 0.1
    %v9549 = vmax.f32 %v9533, %v9541
    %v9550 = vmax.f32 %v9534, %v9542
    %v9551 = vmax.f32 %v9535, %v9543
    %v9552 = vmax.f32 %v9536, %v9544
    %v9553 = vmax.f32 %v9537, %v9545
    %v9554 = vmax.f32 %v9538, %v9546
    %v9555 = vmax.f32 %v9539, %v9547
    %v9556 = vmax.f32 %v9540, %v9548
    %9557 = vst [vmem:[%s25 + $0xc0] sm:$0xff] %v9549
    %9558 = vst [vmem:[%s25 + $0xc8] sm:$0xff] %v9550
    %9559 = vst [vmem:[%s25 + $0xd0] sm:$0xff] %v9551
    %9560 = vst [vmem:[%s25 + $0xd8] sm:$0xff] %v9552
    %9561 = vst [vmem:[%s25 + $0xe0] sm:$0xff] %v9553
    %9562 = vst [vmem:[%s25 + $0xe8] sm:$0xff] %v9554
    %9563 = vst [vmem:[%s25 + $0xf0] sm:$0xff] %v9555
    %9564 = vst [vmem:[%s25 + $0xf8] sm:$0xff] %v9556
    // Predicated region
    $region198: #{spectrogram_cnn_forward.1} parent=1 // pred_check
      _
    $region199: #{spectrogram_cnn_forward.1} parent=1 // pred_check_branch
      %9566 = sbr.rel (0) target = $region201
    $region200: #{spectrogram_cnn_forward.1} parent=1 // pred_region
      _
    $region201: #{spectrogram_cnn_forward.1} parent=1 // pred_fallthru
      _
    // Predicated region
    $region202: #{spectrogram_cnn_forward.1} parent=1 // pred_check
      _
    $region203: #{spectrogram_cnn_forward.1} parent=1 // pred_check_branch
      %9568 = sbr.rel (0) target = $region205
    $region204: #{spectrogram_cnn_forward.1} parent=1 // pred_region
      _
    $region205: #{spectrogram_cnn_forward.1} parent=1 // pred_fallthru
      _
    %9569 = vsyncpa [#allocation3], 1
    %9570 = vsyncpa [#allocation5], 1
    %9571 = vsyncpa [#allocation8], 1
    %9572 = vsyncpa [#allocation11], 1
    %9573 = vsyncpa [#allocation14], 1
    %9574 = vsyncpa [#allocation17], 1
    %9575 = vsyncpa [#allocation20], 1
    %9576 = vsyncpa [#allocation23], 1
    %9577 = vsyncpa [#allocation26], 1
    %9578 = vsyncpa [#allocation29], 1
    %9579 = vsyncpa [#allocation32], 1
    %9580 = vsyncpa [#allocation35], 1
    %9581 = vsyncpa [#allocation38], 1

</llo_original>
